<compile_context>
chip_gen: v7x
topology: tpu7x:2x2x1
jax: 0.10.0
libtpu: 0.0.40
codegen_flags: <defaults>
</compile_context>

<pallas_src>
import functools
import math

import jax
import jax.numpy as jnp
from jax.experimental import pallas as pl
from jax.experimental.pallas import tpu as pltpu


# ----------------------------------------------------------------------------
# Pallas kernels
# ----------------------------------------------------------------------------

def _decoder_layer_kernel(
        x_ref, enc_ref, tbias_ref, sbias_ref,
        sa_wqkv_ref, sa_bqkv_ref, sa_wo_ref, sa_bo_ref, ln1_g_ref, ln1_b_ref,
        ea_wq_ref, ea_bq_ref, ea_wkv_ref, ea_bkv_ref, ea_wo_ref, ea_bo_ref,
        ln2_g_ref, ln2_b_ref,
        ff_w1_ref, ff_b1_ref, ff_w2_ref, ff_b2_ref, ln3_g_ref, ln3_b_ref,
        o_ref, *, num_heads, head_size):
    """One full decoder layer for a single batch element (grid over B)."""
    E = num_heads * head_size
    scale = 1.0 / math.sqrt(head_size)
    f32 = jnp.float32

    x_bf = x_ref[...]        # (S_trg, E)  bf16
    enc_bf = enc_ref[...]    # (S_src, E)  bf16

    def layer_norm(r, g_ref, b_ref):
        # r: f32 (S, E); LayerNorm over last dim, eps = 1e-5 (PyTorch default).
        mu = jnp.mean(r, axis=-1, keepdims=True)
        var = jnp.mean((r - mu) * (r - mu), axis=-1, keepdims=True)
        nrm = (r - mu) * jax.lax.rsqrt(var + 1e-5)
        return nrm * g_ref[...] + b_ref[...]

    def mha(q_bf, k_bf, v_bf, bias, wo_ref, bo_ref):
        # q_bf: (Sq, E) bf16; k_bf/v_bf: (Sk, E) bf16; bias: (Sq, Sk) f32 additive.
        wo = wo_ref[...]                                   # (E, E) bf16
        acc = jnp.zeros((q_bf.shape[0], E), f32)
        for h in range(num_heads):                         # static unroll (H small)
            lo, hi = h * head_size, (h + 1) * head_size
            qh, kh, vh = q_bf[:, lo:hi], k_bf[:, lo:hi], v_bf[:, lo:hi]
            # q @ k^T via dot_general contracting the head dims (no explicit .T)
            s = jax.lax.dot_general(qh, kh, (((1,), (1,)), ((), ())),
                                    preferred_element_type=f32)
            s = s * scale + bias
            s = s - jnp.max(s, axis=-1, keepdims=True)     # f32 softmax stats
            p = jnp.exp(s)
            p = p * pl.reciprocal(jnp.sum(p, axis=-1, keepdims=True), approx=True)
            ctx = jnp.dot(p.astype(vh.dtype), vh, preferred_element_type=f32)
            # Fold the head-concat directly into the output projection:
            #   concat_h(ctx_h) @ Wo == sum_h ctx_h @ Wo[h*Dh:(h+1)*Dh, :]
            acc = acc + jnp.dot(ctx.astype(wo.dtype), wo[lo:hi, :],
                                preferred_element_type=f32)
        return acc + bo_ref[...]

    # ---- masked self-attention + residual + LayerNorm --------------------
    qkv = jnp.dot(x_bf, sa_wqkv_ref[...], preferred_element_type=f32) + sa_bqkv_ref[...]
    qkv = qkv.astype(x_bf.dtype)
    q, k, v = qkv[:, :E], qkv[:, E:2 * E], qkv[:, 2 * E:]
    attn = mha(q, k, v, tbias_ref[...], sa_wo_ref, sa_bo_ref)
    x_f = layer_norm(x_bf.astype(f32) + attn, ln1_g_ref, ln1_b_ref)
    x_bf = x_f.astype(o_ref.dtype)

    # ---- encoder-decoder attention + residual + LayerNorm ----------------
    q = (jnp.dot(x_bf, ea_wq_ref[...], preferred_element_type=f32)
         + ea_bq_ref[...]).astype(x_bf.dtype)
    kv = (jnp.dot(enc_bf, ea_wkv_ref[...], preferred_element_type=f32)
          + ea_bkv_ref[...]).astype(x_bf.dtype)
    k, v = kv[:, :E], kv[:, E:]
    attn = mha(q, k, v, sbias_ref[...], ea_wo_ref, ea_bo_ref)
    x_f = layer_norm(x_f + attn, ln2_g_ref, ln2_b_ref)
    x_bf = x_f.astype(o_ref.dtype)

    # ---- feed-forward (w1 + ReLU + w2) + residual + LayerNorm -------------
    h1 = jnp.dot(x_bf, ff_w1_ref[...], preferred_element_type=f32) + ff_b1_ref[...]
    h1 = jnp.maximum(h1, 0.0).astype(x_bf.dtype)           # hidden stays in VMEM
    h2 = jnp.dot(h1, ff_w2_ref[...], preferred_element_type=f32) + ff_b2_ref[...]
    x_f = layer_norm(x_f + h2, ln3_g_ref, ln3_b_ref)

    o_ref[...] = x_f.astype(o_ref.dtype)


def _linear_bias_kernel(x_ref, w_ref, b_ref, o_ref):
    # x: (tm, K) bf16, w: (K, Npad) bf16, b: (1, Npad) f32 -> o: (tm, Npad) f32
    y = jnp.dot(x_ref[...], w_ref[...], preferred_element_type=jnp.float32)
    o_ref[...] = (y + b_ref[...]).astype(o_ref.dtype)


# ----------------------------------------------------------------------------
# Pallas wrappers
# ----------------------------------------------------------------------------

def decoder_layer(lp, x, enc, tbias, sbias, num_heads):
    """x: (B, S, E) bf16; enc: (B, Ss, E) bf16; tbias: (B, S, S); sbias: (B, S, Ss)."""
    B, S, E = x.shape
    S_src = enc.shape[1]
    head_size = E // num_heads

    weights = [lp["sa_wqkv"], lp["sa_bqkv"], lp["sa_wo"], lp["sa_bo"],
               lp["ln1_g"], lp["ln1_b"],
               lp["ea_wq"], lp["ea_bq"], lp["ea_wkv"], lp["ea_bkv"],
               lp["ea_wo"], lp["ea_bo"], lp["ln2_g"], lp["ln2_b"],
               lp["ff_w1"], lp["ff_b1"], lp["ff_w2"], lp["ff_b2"],
               lp["ln3_g"], lp["ln3_b"]]

    in_specs = [
        pl.BlockSpec((None, S, E), lambda b: (b, 0, 0)),        # x
        pl.BlockSpec((None, S_src, E), lambda b: (b, 0, 0)),    # enc
        pl.BlockSpec((None, S, S), lambda b: (b, 0, 0)),        # self-attn bias
        pl.BlockSpec((None, S, S_src), lambda b: (b, 0, 0)),    # cross-attn bias
    ] + [pl.BlockSpec(w.shape, lambda b: (0, 0)) for w in weights]

    return pl.pallas_call(
        functools.partial(_decoder_layer_kernel,
                          num_heads=num_heads, head_size=head_size),
        out_shape=jax.ShapeDtypeStruct((B, S, E), x.dtype),
        grid=(B,),
        in_specs=in_specs,
        out_specs=pl.BlockSpec((None, S, E), lambda b: (b, 0, 0)),
        compiler_params=pltpu.CompilerParams(
            dimension_semantics=("parallel",)),    # shards over TCs (v7x megacore)
    )(x, enc, tbias, sbias, *weights)


def output_projection(x, w, b, vocab_size):
    """x: (B, S, E) bf16; w: (E, Npad) bf16; b: (1, Npad) f32 -> (B, S, V) f32."""
    B, S, E = x.shape
    M = B * S
    Npad = w.shape[1]
    tm = M if M <= 512 or M % 512 != 0 else 512   # M-tiling for large M
    out = pl.pallas_call(
        _linear_bias_kernel,
        out_shape=jax.ShapeDtypeStruct((M, Npad), jnp.float32),
        grid=(M // tm,),
        in_specs=[
            pl.BlockSpec((tm, E), lambda i: (i, 0)),
            pl.BlockSpec((E, Npad), lambda i: (0, 0)),
            pl.BlockSpec((1, Npad), lambda i: (0, 0)),
        ],
        out_specs=pl.BlockSpec((tm, Npad), lambda i: (i, 0)),
        compiler_params=pltpu.CompilerParams(dimension_semantics=("parallel",)),
    )(x.reshape(M, E), w, b)
    return out[:, :vocab_size].reshape(B, S, vocab_size)


# ----------------------------------------------------------------------------
# Model (glue)
# ----------------------------------------------------------------------------

def decoder_forward(params, tokens, enc_out, src_mask, trg_mask, *,
                    num_heads, vocab_size):
    x = jnp.take(params["embed"], tokens, axis=0)           # (B, S, E) bf16 gather
    # dropout -> identity (eval mode)
    enc = enc_out.astype(jnp.bfloat16)
    # Additive float mask bias: 0 where mask==1, -1e9 where mask==0
    # (equivalent to torch masked_fill_(mask == 0, -1e9)).
    tbias = (trg_mask[:, 0].astype(jnp.float32) - 1.0) * 1e9   # (B, S, S)
    sbias = (src_mask[:, 0].astype(jnp.float32) - 1.0) * 1e9   # (B, S, Ss)
    for lp in params["layers"]:
        x = decoder_layer(lp, x, enc, tbias, sbias, num_heads)
    return output_projection(x, params["w_out"], params["b_out"], vocab_size)


# ----------------------------------------------------------------------------
# Deterministic parameter init (torch-style defaults)
# ----------------------------------------------------------------------------

def init_params(key, vocab_size, embed_size, hidden_size, num_layers, num_heads):
    w_dtype = jnp.bfloat16   # matmul operands bf16; biases / LN params f32

    def dense(k, fan_in, fan_out):
        kw, kb = jax.random.split(k)
        bound = 1.0 / math.sqrt(fan_in)
        w = jax.random.uniform(kw, (fan_in, fan_out), jnp.float32, -bound, bound)
        b = jax.random.uniform(kb, (1, fan_out), jnp.float32, -bound, bound)
        return w.astype(w_dtype), b

    keys = jax.random.split(key, 2 + num_layers)
    params = {
        "embed": jax.random.normal(
            keys[0], (vocab_size, embed_size), jnp.float32).astype(w_dtype),
    }

    # Final vocab projection: pad N to a multiple of 128 for lane-dense stores.
    vpad = ((vocab_size + 127) // 128) * 128
    w_out, b_out = dense(keys[1], embed_size, vocab_size)
    params["w_out"] = jnp.pad(w_out, ((0, 0), (0, vpad - vocab_size)))
    params["b_out"] = jnp.pad(b_out, ((0, 0), (0, vpad - vocab_size)))

    layers = []
    for li in range(num_layers):
        lk = jax.random.split(keys[2 + li], 7)
        sa_wqkv, sa_bqkv = dense(lk[0], embed_size, 3 * embed_size)   # fused Q|K|V
        sa_wo, sa_bo = dense(lk[1], embed_size, embed_size)
        ea_wq, ea_bq = dense(lk[2], embed_size, embed_size)
        ea_wkv, ea_bkv = dense(lk[3], embed_size, 2 * embed_size)     # fused K|V
        ea_wo, ea_bo = dense(lk[4], embed_size, embed_size)
        ff_w1, ff_b1 = dense(lk[5], embed_size, hidden_size)
        ff_w2, ff_b2 = dense(lk[6], hidden_size, embed_size)
        ones = jnp.ones((1, embed_size), jnp.float32)
        zeros = jnp.zeros((1, embed_size), jnp.float32)
        layers.append(dict(
            sa_wqkv=sa_wqkv, sa_bqkv=sa_bqkv, sa_wo=sa_wo, sa_bo=sa_bo,
            ln1_g=ones, ln1_b=zeros,
            ea_wq=ea_wq, ea_bq=ea_bq, ea_wkv=ea_wkv, ea_bkv=ea_bkv,
            ea_wo=ea_wo, ea_bo=ea_bo, ln2_g=ones, ln2_b=zeros,
            ff_w1=ff_w1, ff_b1=ff_b1, ff_w2=ff_w2, ff_b2=ff_b2,
            ln3_g=ones, ln3_b=zeros))
    params["layers"] = layers
    return params


# ----------------------------------------------------------------------------
# Main
# ----------------------------------------------------------------------------

if __name__ == "__main__":
    VOCAB = 50
    EMBED = 32
    HIDDEN = 64
    NUM_LAYERS = 2
    NUM_HEADS = 4
    B, S_TRG, S_SRC = 2, 8, 8

    key = jax.random.PRNGKey(0)
    k_par, k_tok, k_enc = jax.random.split(key, 3)

    params = init_params(k_par, VOCAB, EMBED, HIDDEN, NUM_LAYERS, NUM_HEADS)

    tokens = jax.random.randint(k_tok, (B, S_TRG), 0, VOCAB, dtype=jnp.int32)
    encoder_outputs = jax.random.normal(k_enc, (B, S_SRC, EMBED), jnp.float32)

    # src_mask: all-ones (no padding); trg_mask: causal lower-triangular.
    src_mask = jnp.ones((B, 1, S_TRG, S_SRC), jnp.int32)
    trg_mask = jnp.tril(jnp.ones((S_TRG, S_TRG), jnp.int32))[None, None].repeat(B, 0)

    fwd = jax.jit(functools.partial(decoder_forward,
                                    num_heads=NUM_HEADS, vocab_size=VOCAB))
    logits = fwd(params, tokens, encoder_outputs, src_mask, trg_mask)
    jax.block_until_ready(logits)

    assert logits.shape == (B, S_TRG, VOCAB)
    assert bool(jnp.all(jnp.isfinite(logits)))
    print("KERNEL_OK")
</pallas_src>

<mosaic_0001>
module attributes {stable_mosaic.version = 11 : i64} {
  func.func @_linear_bias_kernel(%arg0: i32, %arg1: memref<16x32xbf16, #tpu.memory_space<vmem>>, %arg2: memref<32x128xbf16, #tpu.memory_space<vmem>>, %arg3: memref<1x128xf32, #tpu.memory_space<vmem>>, %arg4: memref<16x128xf32, #tpu.memory_space<vmem>>) attributes {dimension_semantics = [#tpu.dimension_semantics<parallel>], iteration_bounds = array<i64: 1>, scalar_prefetch = 0 : i64, scratch_operands = 0 : i64, tpu.core_type = #tpu.core_type<tc>, window_params = [{transform_indices = @transform_0, window_bounds = array<i64: 16, 32>}, {pipeline_mode = #tpu.pipeline_mode<synchronous>, transform_indices = @transform_1, window_bounds = array<i64: 32, 128>}, {pipeline_mode = #tpu.pipeline_mode<synchronous>, transform_indices = @transform_2, window_bounds = array<i64: 1, 128>}, {transform_indices = @transform_3, window_bounds = array<i64: 16, 128>}]} {
    %c0 = arith.constant 0 : index
    %c0_0 = arith.constant 0 : index
    %0 = vector.load %arg1[%c0, %c0_0] : memref<16x32xbf16, #tpu.memory_space<vmem>>, vector<16x32xbf16>
    %c0_1 = arith.constant 0 : index
    %c0_2 = arith.constant 0 : index
    %1 = vector.load %arg2[%c0_1, %c0_2] : memref<32x128xbf16, #tpu.memory_space<vmem>>, vector<32x128xbf16>
    %cst = arith.constant dense<0.000000e+00> : vector<16x128xf32>
    %2 = tpu.matmul %0, %1, %cst {dimension_numbers = #tpu.dot_dimension_numbers<[1], [0], [0], [1], [0, 0, 1, 1], [], []>} : vector<16x32xbf16>, vector<32x128xbf16>, vector<16x128xf32> -> vector<16x128xf32>
    %c0_3 = arith.constant 0 : index
    %c0_4 = arith.constant 0 : index
    %3 = vector.load %arg3[%c0_3, %c0_4] : memref<1x128xf32, #tpu.memory_space<vmem>>, vector<1x128xf32>
    %4 = vector.broadcast %3 : vector<1x128xf32> to vector<16x128xf32>
    %5 = arith.addf %2, %4 : vector<16x128xf32>
    %c0_5 = arith.constant 0 : index
    %c0_6 = arith.constant 0 : index
    %6 = vector.load %arg4[%c0_5, %c0_6] : memref<16x128xf32, #tpu.memory_space<vmem>>, vector<16x128xf32>
    tpu.vector_store %arg4[%c0_5, %c0_6], %5 {strides = array<i32>} : memref<16x128xf32, #tpu.memory_space<vmem>>, vector<16x128xf32>,
    return
  }
  func.func @transform_0(%arg0: i32) -> (i32, i32) {
    %c0_i32 = arith.constant 0 : i32
    %c0_i32_0 = arith.constant 0 : i32
    return %arg0, %c0_i32 : i32, i32
  }
  func.func @transform_1(%arg0: i32) -> (i32, i32) {
    %c0_i32 = arith.constant 0 : i32
    %c0_i32_0 = arith.constant 0 : i32
    %c0_i32_1 = arith.constant 0 : i32
    return %c0_i32, %c0_i32_0 : i32, i32
  }
  func.func @transform_2(%arg0: i32) -> (i32, i32) {
    %c0_i32 = arith.constant 0 : i32
    %c0_i32_0 = arith.constant 0 : i32
    %c0_i32_1 = arith.constant 0 : i32
    return %c0_i32, %c0_i32_0 : i32, i32
  }
  func.func @transform_3(%arg0: i32) -> (i32, i32) {
    %c0_i32 = arith.constant 0 : i32
    %c0_i32_0 = arith.constant 0 : i32
    return %arg0, %c0_i32 : i32, i32
  }
}

module attributes {stable_mosaic.version = 11 : i64} {
  func.func @_decoder_layer_kernel(%arg0: i32, %arg1: memref<1x8x32xbf16, #tpu.memory_space<vmem>>, %arg2: memref<1x8x32xbf16, #tpu.memory_space<vmem>>, %arg3: memref<1x8x8xf32, #tpu.memory_space<vmem>>, %arg4: memref<1x8x8xf32, #tpu.memory_space<vmem>>, %arg5: memref<32x96xbf16, #tpu.memory_space<vmem>>, %arg6: memref<1x96xf32, #tpu.memory_space<vmem>>, %arg7: memref<32x32xbf16, #tpu.memory_space<vmem>>, %arg8: memref<1x32xf32, #tpu.memory_space<vmem>>, %arg9: memref<1x32xf32, #tpu.memory_space<vmem>>, %arg10: memref<1x32xf32, #tpu.memory_space<vmem>>, %arg11: memref<32x32xbf16, #tpu.memory_space<vmem>>, %arg12: memref<1x32xf32, #tpu.memory_space<vmem>>, %arg13: memref<32x64xbf16, #tpu.memory_space<vmem>>, %arg14: memref<1x64xf32, #tpu.memory_space<vmem>>, %arg15: memref<32x32xbf16, #tpu.memory_space<vmem>>, %arg16: memref<1x32xf32, #tpu.memory_space<vmem>>, %arg17: memref<1x32xf32, #tpu.memory_space<vmem>>, %arg18: memref<1x32xf32, #tpu.memory_space<vmem>>, %arg19: memref<32x64xbf16, #tpu.memory_space<vmem>>, %arg20: memref<1x64xf32, #tpu.memory_space<vmem>>, %arg21: memref<64x32xbf16, #tpu.memory_space<vmem>>, %arg22: memref<1x32xf32, #tpu.memory_space<vmem>>, %arg23: memref<1x32xf32, #tpu.memory_space<vmem>>, %arg24: memref<1x32xf32, #tpu.memory_space<vmem>>, %arg25: memref<1x8x32xbf16, #tpu.memory_space<vmem>>) attributes {dimension_semantics = [#tpu.dimension_semantics<parallel>], iteration_bounds = array<i64: 2>, scalar_prefetch = 0 : i64, scratch_operands = 0 : i64, tpu.core_type = #tpu.core_type<tc>, window_params = [{transform_indices = @transform_0, window_bounds = array<i64: 1, 8, 32>}, {transform_indices = @transform_1, window_bounds = array<i64: 1, 8, 32>}, {transform_indices = @transform_2, window_bounds = array<i64: 1, 8, 8>}, {transform_indices = @transform_3, window_bounds = array<i64: 1, 8, 8>}, {pipeline_mode = #tpu.pipeline_mode<synchronous>, transform_indices = @transform_4, window_bounds = array<i64: 32, 96>}, {pipeline_mode = #tpu.pipeline_mode<synchronous>, transform_indices = @transform_5, window_bounds = array<i64: 1, 96>}, {pipeline_mode = #tpu.pipeline_mode<synchronous>, transform_indices = @transform_6, window_bounds = array<i64: 32, 32>}, {pipeline_mode = #tpu.pipeline_mode<synchronous>, transform_indices = @transform_7, window_bounds = array<i64: 1, 32>}, {pipeline_mode = #tpu.pipeline_mode<synchronous>, transform_indices = @transform_8, window_bounds = array<i64: 1, 32>}, {pipeline_mode = #tpu.pipeline_mode<synchronous>, transform_indices = @transform_9, window_bounds = array<i64: 1, 32>}, {pipeline_mode = #tpu.pipeline_mode<synchronous>, transform_indices = @transform_10, window_bounds = array<i64: 32, 32>}, {pipeline_mode = #tpu.pipeline_mode<synchronous>, transform_indices = @transform_11, window_bounds = array<i64: 1, 32>}, {pipeline_mode = #tpu.pipeline_mode<synchronous>, transform_indices = @transform_12, window_bounds = array<i64: 32, 64>}, {pipeline_mode = #tpu.pipeline_mode<synchronous>, transform_indices = @transform_13, window_bounds = array<i64: 1, 64>}, {pipeline_mode = #tpu.pipeline_mode<synchronous>, transform_indices = @transform_14, window_bounds = array<i64: 32, 32>}, {pipeline_mode = #tpu.pipeline_mode<synchronous>, transform_indices = @transform_15, window_bounds = array<i64: 1, 32>}, {pipeline_mode = #tpu.pipeline_mode<synchronous>, transform_indices = @transform_16, window_bounds = array<i64: 1, 32>}, {pipeline_mode = #tpu.pipeline_mode<synchronous>, transform_indices = @transform_17, window_bounds = array<i64: 1, 32>}, {pipeline_mode = #tpu.pipeline_mode<synchronous>, transform_indices = @transform_18, window_bounds = array<i64: 32, 64>}, {pipeline_mode = #tpu.pipeline_mode<synchronous>, transform_indices = @transform_19, window_bounds = array<i64: 1, 64>}, {pipeline_mode = #tpu.pipeline_mode<synchronous>, transform_indices = @transform_20, window_bounds = array<i64: 64, 32>}, {pipeline_mode = #tpu.pipeline_mode<synchronous>, transform_indices = @transform_21, window_bounds = array<i64: 1, 32>}, {pipeline_mode = #tpu.pipeline_mode<synchronous>, transform_indices = @transform_22, window_bounds = array<i64: 1, 32>}, {pipeline_mode = #tpu.pipeline_mode<synchronous>, transform_indices = @transform_23, window_bounds = array<i64: 1, 32>}, {transform_indices = @transform_24, window_bounds = array<i64: 1, 8, 32>}]} {
    %c0 = arith.constant 0 : index
    %c0_0 = arith.constant 0 : index
    %c0_1 = arith.constant 0 : index
    %0 = vector.load %arg1[%c0, %c0_0, %c0_1] : memref<1x8x32xbf16, #tpu.memory_space<vmem>>, vector<1x8x32xbf16>
    %1 = vector.shape_cast %0 : vector<1x8x32xbf16> to vector<8x32xbf16>
    %c0_2 = arith.constant 0 : index
    %c0_3 = arith.constant 0 : index
    %c0_4 = arith.constant 0 : index
    %2 = vector.load %arg2[%c0_2, %c0_3, %c0_4] : memref<1x8x32xbf16, #tpu.memory_space<vmem>>, vector<1x8x32xbf16>
    %3 = vector.shape_cast %2 : vector<1x8x32xbf16> to vector<8x32xbf16>
    %c0_5 = arith.constant 0 : index
    %c0_6 = arith.constant 0 : index
    %4 = vector.load %arg5[%c0_5, %c0_6] : memref<32x96xbf16, #tpu.memory_space<vmem>>, vector<32x96xbf16>
    %cst = arith.constant dense<0.000000e+00> : vector<8x96xf32>
    %5 = tpu.matmul %1, %4, %cst {dimension_numbers = #tpu.dot_dimension_numbers<[1], [0], [0], [1], [0, 0, 1, 1], [], []>} : vector<8x32xbf16>, vector<32x96xbf16>, vector<8x96xf32> -> vector<8x96xf32>
    %c0_7 = arith.constant 0 : index
    %c0_8 = arith.constant 0 : index
    %6 = vector.load %arg6[%c0_7, %c0_8] : memref<1x96xf32, #tpu.memory_space<vmem>>, vector<1x96xf32>
    %7 = vector.broadcast %6 : vector<1x96xf32> to vector<8x96xf32>
    %8 = arith.addf %5, %7 : vector<8x96xf32>
    %9 = arith.truncf %8 : vector<8x96xf32> to vector<8x96xbf16>
    %10 = vector.extract_strided_slice %9 {offsets = [0, 0], sizes = [8, 32], strides = [1, 1]} : vector<8x96xbf16> to vector<8x32xbf16>
    %11 = vector.extract_strided_slice %9 {offsets = [0, 32], sizes = [8, 32], strides = [1, 1]} : vector<8x96xbf16> to vector<8x32xbf16>
    %12 = vector.extract_strided_slice %9 {offsets = [0, 64], sizes = [8, 32], strides = [1, 1]} : vector<8x96xbf16> to vector<8x32xbf16>
    %c0_9 = arith.constant 0 : index
    %c0_10 = arith.constant 0 : index
    %c0_11 = arith.constant 0 : index
    %13 = vector.load %arg3[%c0_9, %c0_10, %c0_11] : memref<1x8x8xf32, #tpu.memory_space<vmem>>, vector<1x8x8xf32>
    %14 = vector.shape_cast %13 : vector<1x8x8xf32> to vector<8x8xf32>
    %c0_12 = arith.constant 0 : index
    %c0_13 = arith.constant 0 : index
    %15 = vector.load %arg7[%c0_12, %c0_13] : memref<32x32xbf16, #tpu.memory_space<vmem>>, vector<32x32xbf16>
    %cst_14 = arith.constant 0.000000e+00 : f32
    %16 = vector.broadcast %cst_14 : f32 to vector<8x32xf32>
    %17 = vector.extract_strided_slice %10 {offsets = [0, 0], sizes = [8, 8], strides = [1, 1]} : vector<8x32xbf16> to vector<8x8xbf16>
    %18 = vector.extract_strided_slice %11 {offsets = [0, 0], sizes = [8, 8], strides = [1, 1]} : vector<8x32xbf16> to vector<8x8xbf16>
    %19 = vector.extract_strided_slice %12 {offsets = [0, 0], sizes = [8, 8], strides = [1, 1]} : vector<8x32xbf16> to vector<8x8xbf16>
    %cst_15 = arith.constant dense<0.000000e+00> : vector<8x8xf32>
    %20 = tpu.matmul %17, %18, %cst_15 {dimension_numbers = #tpu.dot_dimension_numbers<[1], [1], [0], [0], [0, 0, 1, 0], [], []>} : vector<8x8xbf16>, vector<8x8xbf16>, vector<8x8xf32> -> vector<8x8xf32>
    %cst_16 = arith.constant 0.353553385 : f32
    %21 = vector.broadcast %cst_16 : f32 to vector<8x8xf32>
    %22 = arith.mulf %20, %21 : vector<8x8xf32>
    %23 = arith.addf %22, %14 : vector<8x8xf32>
    %cst_17 = arith.constant dense<0xFF800000> : vector<8xf32>
    %24 = vector.multi_reduction <maximumf>, %23, %cst_17 [1] : vector<8x8xf32> to vector<8xf32>
    %25 = vector.shape_cast %24 : vector<8xf32> to vector<8x1xf32>
    %26 = vector.broadcast %25 : vector<8x1xf32> to vector<8x8xf32>
    %27 = arith.subf %23, %26 : vector<8x8xf32>
    %28 = math.exp %27 : vector<8x8xf32>
    %cst_18 = arith.constant dense<0.000000e+00> : vector<8xf32>
    %29 = vector.multi_reduction <add>, %28, %cst_18 [1] : vector<8x8xf32> to vector<8xf32>
    %30 = vector.shape_cast %29 : vector<8xf32> to vector<8x1xf32>
    %31 = tpu.reciprocal %30 {approx = true} : vector<8x1xf32> -> vector<8x1xf32>
    %32 = vector.broadcast %31 : vector<8x1xf32> to vector<8x8xf32>
    %33 = arith.mulf %28, %32 : vector<8x8xf32>
    %34 = arith.truncf %33 : vector<8x8xf32> to vector<8x8xbf16>
    %cst_19 = arith.constant dense<0.000000e+00> : vector<8x8xf32>
    %35 = tpu.matmul %34, %19, %cst_19 {dimension_numbers = #tpu.dot_dimension_numbers<[1], [0], [0], [1], [0, 0, 1, 1], [], []>} : vector<8x8xbf16>, vector<8x8xbf16>, vector<8x8xf32> -> vector<8x8xf32>
    %36 = arith.truncf %35 : vector<8x8xf32> to vector<8x8xbf16>
    %37 = vector.extract_strided_slice %15 {offsets = [0, 0], sizes = [8, 32], strides = [1, 1]} : vector<32x32xbf16> to vector<8x32xbf16>
    %cst_20 = arith.constant dense<0.000000e+00> : vector<8x32xf32>
    %38 = tpu.matmul %36, %37, %cst_20 {dimension_numbers = #tpu.dot_dimension_numbers<[1], [0], [0], [1], [0, 0, 1, 1], [], []>} : vector<8x8xbf16>, vector<8x32xbf16>, vector<8x32xf32> -> vector<8x32xf32>
    %39 = arith.addf %16, %38 : vector<8x32xf32>
    %40 = vector.extract_strided_slice %10 {offsets = [0, 8], sizes = [8, 8], strides = [1, 1]} : vector<8x32xbf16> to vector<8x8xbf16>
    %41 = vector.extract_strided_slice %11 {offsets = [0, 8], sizes = [8, 8], strides = [1, 1]} : vector<8x32xbf16> to vector<8x8xbf16>
    %42 = vector.extract_strided_slice %12 {offsets = [0, 8], sizes = [8, 8], strides = [1, 1]} : vector<8x32xbf16> to vector<8x8xbf16>
    %cst_21 = arith.constant dense<0.000000e+00> : vector<8x8xf32>
    %43 = tpu.matmul %40, %41, %cst_21 {dimension_numbers = #tpu.dot_dimension_numbers<[1], [1], [0], [0], [0, 0, 1, 0], [], []>} : vector<8x8xbf16>, vector<8x8xbf16>, vector<8x8xf32> -> vector<8x8xf32>
    %cst_22 = arith.constant 0.353553385 : f32
    %44 = vector.broadcast %cst_22 : f32 to vector<8x8xf32>
    %45 = arith.mulf %43, %44 : vector<8x8xf32>
    %46 = arith.addf %45, %14 : vector<8x8xf32>
    %cst_23 = arith.constant dense<0xFF800000> : vector<8xf32>
    %47 = vector.multi_reduction <maximumf>, %46, %cst_23 [1] : vector<8x8xf32> to vector<8xf32>
    %48 = vector.shape_cast %47 : vector<8xf32> to vector<8x1xf32>
    %49 = vector.broadcast %48 : vector<8x1xf32> to vector<8x8xf32>
    %50 = arith.subf %46, %49 : vector<8x8xf32>
    %51 = math.exp %50 : vector<8x8xf32>
    %cst_24 = arith.constant dense<0.000000e+00> : vector<8xf32>
    %52 = vector.multi_reduction <add>, %51, %cst_24 [1] : vector<8x8xf32> to vector<8xf32>
    %53 = vector.shape_cast %52 : vector<8xf32> to vector<8x1xf32>
    %54 = tpu.reciprocal %53 {approx = true} : vector<8x1xf32> -> vector<8x1xf32>
    %55 = vector.broadcast %54 : vector<8x1xf32> to vector<8x8xf32>
    %56 = arith.mulf %51, %55 : vector<8x8xf32>
    %57 = arith.truncf %56 : vector<8x8xf32> to vector<8x8xbf16>
    %cst_25 = arith.constant dense<0.000000e+00> : vector<8x8xf32>
    %58 = tpu.matmul %57, %42, %cst_25 {dimension_numbers = #tpu.dot_dimension_numbers<[1], [0], [0], [1], [0, 0, 1, 1], [], []>} : vector<8x8xbf16>, vector<8x8xbf16>, vector<8x8xf32> -> vector<8x8xf32>
    %59 = arith.truncf %58 : vector<8x8xf32> to vector<8x8xbf16>
    %60 = vector.extract_strided_slice %15 {offsets = [8, 0], sizes = [8, 32], strides = [1, 1]} : vector<32x32xbf16> to vector<8x32xbf16>
    %cst_26 = arith.constant dense<0.000000e+00> : vector<8x32xf32>
    %61 = tpu.matmul %59, %60, %cst_26 {dimension_numbers = #tpu.dot_dimension_numbers<[1], [0], [0], [1], [0, 0, 1, 1], [], []>} : vector<8x8xbf16>, vector<8x32xbf16>, vector<8x32xf32> -> vector<8x32xf32>
    %62 = arith.addf %39, %61 : vector<8x32xf32>
    %63 = vector.extract_strided_slice %10 {offsets = [0, 16], sizes = [8, 8], strides = [1, 1]} : vector<8x32xbf16> to vector<8x8xbf16>
    %64 = vector.extract_strided_slice %11 {offsets = [0, 16], sizes = [8, 8], strides = [1, 1]} : vector<8x32xbf16> to vector<8x8xbf16>
    %65 = vector.extract_strided_slice %12 {offsets = [0, 16], sizes = [8, 8], strides = [1, 1]} : vector<8x32xbf16> to vector<8x8xbf16>
    %cst_27 = arith.constant dense<0.000000e+00> : vector<8x8xf32>
    %66 = tpu.matmul %63, %64, %cst_27 {dimension_numbers = #tpu.dot_dimension_numbers<[1], [1], [0], [0], [0, 0, 1, 0], [], []>} : vector<8x8xbf16>, vector<8x8xbf16>, vector<8x8xf32> -> vector<8x8xf32>
    %cst_28 = arith.constant 0.353553385 : f32
    %67 = vector.broadcast %cst_28 : f32 to vector<8x8xf32>
    %68 = arith.mulf %66, %67 : vector<8x8xf32>
    %69 = arith.addf %68, %14 : vector<8x8xf32>
    %cst_29 = arith.constant dense<0xFF800000> : vector<8xf32>
    %70 = vector.multi_reduction <maximumf>, %69, %cst_29 [1] : vector<8x8xf32> to vector<8xf32>
    %71 = vector.shape_cast %70 : vector<8xf32> to vector<8x1xf32>
    %72 = vector.broadcast %71 : vector<8x1xf32> to vector<8x8xf32>
    %73 = arith.subf %69, %72 : vector<8x8xf32>
    %74 = math.exp %73 : vector<8x8xf32>
    %cst_30 = arith.constant dense<0.000000e+00> : vector<8xf32>
    %75 = vector.multi_reduction <add>, %74, %cst_30 [1] : vector<8x8xf32> to vector<8xf32>
    %76 = vector.shape_cast %75 : vector<8xf32> to vector<8x1xf32>
    %77 = tpu.reciprocal %76 {approx = true} : vector<8x1xf32> -> vector<8x1xf32>
    %78 = vector.broadcast %77 : vector<8x1xf32> to vector<8x8xf32>
    %79 = arith.mulf %74, %78 : vector<8x8xf32>
    %80 = arith.truncf %79 : vector<8x8xf32> to vector<8x8xbf16>
    %cst_31 = arith.constant dense<0.000000e+00> : vector<8x8xf32>
    %81 = tpu.matmul %80, %65, %cst_31 {dimension_numbers = #tpu.dot_dimension_numbers<[1], [0], [0], [1], [0, 0, 1, 1], [], []>} : vector<8x8xbf16>, vector<8x8xbf16>, vector<8x8xf32> -> vector<8x8xf32>
    %82 = arith.truncf %81 : vector<8x8xf32> to vector<8x8xbf16>
    %83 = vector.extract_strided_slice %15 {offsets = [16, 0], sizes = [8, 32], strides = [1, 1]} : vector<32x32xbf16> to vector<8x32xbf16>
    %cst_32 = arith.constant dense<0.000000e+00> : vector<8x32xf32>
    %84 = tpu.matmul %82, %83, %cst_32 {dimension_numbers = #tpu.dot_dimension_numbers<[1], [0], [0], [1], [0, 0, 1, 1], [], []>} : vector<8x8xbf16>, vector<8x32xbf16>, vector<8x32xf32> -> vector<8x32xf32>
    %85 = arith.addf %62, %84 : vector<8x32xf32>
    %86 = vector.extract_strided_slice %10 {offsets = [0, 24], sizes = [8, 8], strides = [1, 1]} : vector<8x32xbf16> to vector<8x8xbf16>
    %87 = vector.extract_strided_slice %11 {offsets = [0, 24], sizes = [8, 8], strides = [1, 1]} : vector<8x32xbf16> to vector<8x8xbf16>
    %88 = vector.extract_strided_slice %12 {offsets = [0, 24], sizes = [8, 8], strides = [1, 1]} : vector<8x32xbf16> to vector<8x8xbf16>
    %cst_33 = arith.constant dense<0.000000e+00> : vector<8x8xf32>
    %89 = tpu.matmul %86, %87, %cst_33 {dimension_numbers = #tpu.dot_dimension_numbers<[1], [1], [0], [0], [0, 0, 1, 0], [], []>} : vector<8x8xbf16>, vector<8x8xbf16>, vector<8x8xf32> -> vector<8x8xf32>
    %cst_34 = arith.constant 0.353553385 : f32
    %90 = vector.broadcast %cst_34 : f32 to vector<8x8xf32>
    %91 = arith.mulf %89, %90 : vector<8x8xf32>
    %92 = arith.addf %91, %14 : vector<8x8xf32>
    %cst_35 = arith.constant dense<0xFF800000> : vector<8xf32>
    %93 = vector.multi_reduction <maximumf>, %92, %cst_35 [1] : vector<8x8xf32> to vector<8xf32>
    %94 = vector.shape_cast %93 : vector<8xf32> to vector<8x1xf32>
    %95 = vector.broadcast %94 : vector<8x1xf32> to vector<8x8xf32>
    %96 = arith.subf %92, %95 : vector<8x8xf32>
    %97 = math.exp %96 : vector<8x8xf32>
    %cst_36 = arith.constant dense<0.000000e+00> : vector<8xf32>
    %98 = vector.multi_reduction <add>, %97, %cst_36 [1] : vector<8x8xf32> to vector<8xf32>
    %99 = vector.shape_cast %98 : vector<8xf32> to vector<8x1xf32>
    %100 = tpu.reciprocal %99 {approx = true} : vector<8x1xf32> -> vector<8x1xf32>
    %101 = vector.broadcast %100 : vector<8x1xf32> to vector<8x8xf32>
    %102 = arith.mulf %97, %101 : vector<8x8xf32>
    %103 = arith.truncf %102 : vector<8x8xf32> to vector<8x8xbf16>
    %cst_37 = arith.constant dense<0.000000e+00> : vector<8x8xf32>
    %104 = tpu.matmul %103, %88, %cst_37 {dimension_numbers = #tpu.dot_dimension_numbers<[1], [0], [0], [1], [0, 0, 1, 1], [], []>} : vector<8x8xbf16>, vector<8x8xbf16>, vector<8x8xf32> -> vector<8x8xf32>
    %105 = arith.truncf %104 : vector<8x8xf32> to vector<8x8xbf16>
    %106 = vector.extract_strided_slice %15 {offsets = [24, 0], sizes = [8, 32], strides = [1, 1]} : vector<32x32xbf16> to vector<8x32xbf16>
    %cst_38 = arith.constant dense<0.000000e+00> : vector<8x32xf32>
    %107 = tpu.matmul %105, %106, %cst_38 {dimension_numbers = #tpu.dot_dimension_numbers<[1], [0], [0], [1], [0, 0, 1, 1], [], []>} : vector<8x8xbf16>, vector<8x32xbf16>, vector<8x32xf32> -> vector<8x32xf32>
    %108 = arith.addf %85, %107 : vector<8x32xf32>
    %c0_39 = arith.constant 0 : index
    %c0_40 = arith.constant 0 : index
    %109 = vector.load %arg8[%c0_39, %c0_40] : memref<1x32xf32, #tpu.memory_space<vmem>>, vector<1x32xf32>
    %110 = vector.broadcast %109 : vector<1x32xf32> to vector<8x32xf32>
    %111 = arith.addf %108, %110 : vector<8x32xf32>
    %112 = arith.extf %1 : vector<8x32xbf16> to vector<8x32xf32>
    %113 = arith.addf %112, %111 : vector<8x32xf32>
    %cst_41 = arith.constant dense<0.000000e+00> : vector<8xf32>
    %114 = vector.multi_reduction <add>, %113, %cst_41 [1] : vector<8x32xf32> to vector<8xf32>
    %115 = vector.shape_cast %114 : vector<8xf32> to vector<8x1xf32>
    %cst_42 = arith.constant 3.200000e+01 : f32
    %116 = vector.broadcast %cst_42 : f32 to vector<8x1xf32>
    %117 = arith.divf %115, %116 : vector<8x1xf32>
    %118 = vector.broadcast %117 : vector<8x1xf32> to vector<8x32xf32>
    %119 = arith.subf %113, %118 : vector<8x32xf32>
    %120 = vector.broadcast %117 : vector<8x1xf32> to vector<8x32xf32>
    %121 = arith.subf %113, %120 : vector<8x32xf32>
    %122 = arith.mulf %119, %121 : vector<8x32xf32>
    %cst_43 = arith.constant dense<0.000000e+00> : vector<8xf32>
    %123 = vector.multi_reduction <add>, %122, %cst_43 [1] : vector<8x32xf32> to vector<8xf32>
    %124 = vector.shape_cast %123 : vector<8xf32> to vector<8x1xf32>
    %cst_44 = arith.constant 3.200000e+01 : f32
    %125 = vector.broadcast %cst_44 : f32 to vector<8x1xf32>
    %126 = arith.divf %124, %125 : vector<8x1xf32>
    %127 = vector.broadcast %117 : vector<8x1xf32> to vector<8x32xf32>
    %128 = arith.subf %113, %127 : vector<8x32xf32>
    %cst_45 = arith.constant 9.99999974E-6 : f32
    %129 = vector.broadcast %cst_45 : f32 to vector<8x1xf32>
    %130 = arith.addf %126, %129 : vector<8x1xf32>
    %131 = math.rsqrt %130 : vector<8x1xf32>
    %132 = vector.broadcast %131 : vector<8x1xf32> to vector<8x32xf32>
    %133 = arith.mulf %128, %132 : vector<8x32xf32>
    %c0_46 = arith.constant 0 : index
    %c0_47 = arith.constant 0 : index
    %134 = vector.load %arg9[%c0_46, %c0_47] : memref<1x32xf32, #tpu.memory_space<vmem>>, vector<1x32xf32>
    %135 = vector.broadcast %134 : vector<1x32xf32> to vector<8x32xf32>
    %136 = arith.mulf %133, %135 : vector<8x32xf32>
    %c0_48 = arith.constant 0 : index
    %c0_49 = arith.constant 0 : index
    %137 = vector.load %arg10[%c0_48, %c0_49] : memref<1x32xf32, #tpu.memory_space<vmem>>, vector<1x32xf32>
    %138 = vector.broadcast %137 : vector<1x32xf32> to vector<8x32xf32>
    %139 = arith.addf %136, %138 : vector<8x32xf32>
    %140 = arith.truncf %139 : vector<8x32xf32> to vector<8x32xbf16>
    %c0_50 = arith.constant 0 : index
    %c0_51 = arith.constant 0 : index
    %141 = vector.load %arg11[%c0_50, %c0_51] : memref<32x32xbf16, #tpu.memory_space<vmem>>, vector<32x32xbf16>
    %cst_52 = arith.constant dense<0.000000e+00> : vector<8x32xf32>
    %142 = tpu.matmul %140, %141, %cst_52 {dimension_numbers = #tpu.dot_dimension_numbers<[1], [0], [0], [1], [0, 0, 1, 1], [], []>} : vector<8x32xbf16>, vector<32x32xbf16>, vector<8x32xf32> -> vector<8x32xf32>
    %c0_53 = arith.constant 0 : index
    %c0_54 = arith.constant 0 : index
    %143 = vector.load %arg12[%c0_53, %c0_54] : memref<1x32xf32, #tpu.memory_space<vmem>>, vector<1x32xf32>
    %144 = vector.broadcast %143 : vector<1x32xf32> to vector<8x32xf32>
    %145 = arith.addf %142, %144 : vector<8x32xf32>
    %146 = arith.truncf %145 : vector<8x32xf32> to vector<8x32xbf16>
    %c0_55 = arith.constant 0 : index
    %c0_56 = arith.constant 0 : index
    %147 = vector.load %arg13[%c0_55, %c0_56] : memref<32x64xbf16, #tpu.memory_space<vmem>>, vector<32x64xbf16>
    %cst_57 = arith.constant dense<0.000000e+00> : vector<8x64xf32>
    %148 = tpu.matmul %3, %147, %cst_57 {dimension_numbers = #tpu.dot_dimension_numbers<[1], [0], [0], [1], [0, 0, 1, 1], [], []>} : vector<8x32xbf16>, vector<32x64xbf16>, vector<8x64xf32> -> vector<8x64xf32>
    %c0_58 = arith.constant 0 : index
    %c0_59 = arith.constant 0 : index
    %149 = vector.load %arg14[%c0_58, %c0_59] : memref<1x64xf32, #tpu.memory_space<vmem>>, vector<1x64xf32>
    %150 = vector.broadcast %149 : vector<1x64xf32> to vector<8x64xf32>
    %151 = arith.addf %148, %150 : vector<8x64xf32>
    %152 = arith.truncf %151 : vector<8x64xf32> to vector<8x64xbf16>
    %153 = vector.extract_strided_slice %152 {offsets = [0, 0], sizes = [8, 32], strides = [1, 1]} : vector<8x64xbf16> to vector<8x32xbf16>
    %154 = vector.extract_strided_slice %152 {offsets = [0, 32], sizes = [8, 32], strides = [1, 1]} : vector<8x64xbf16> to vector<8x32xbf16>
    %c0_60 = arith.constant 0 : index
    %c0_61 = arith.constant 0 : index
    %c0_62 = arith.constant 0 : index
    %155 = vector.load %arg4[%c0_60, %c0_61, %c0_62] : memref<1x8x8xf32, #tpu.memory_space<vmem>>, vector<1x8x8xf32>
    %156 = vector.shape_cast %155 : vector<1x8x8xf32> to vector<8x8xf32>
    %c0_63 = arith.constant 0 : index
    %c0_64 = arith.constant 0 : index
    %157 = vector.load %arg15[%c0_63, %c0_64] : memref<32x32xbf16, #tpu.memory_space<vmem>>, vector<32x32xbf16>
    %cst_65 = arith.constant 0.000000e+00 : f32
    %158 = vector.broadcast %cst_65 : f32 to vector<8x32xf32>
    %159 = vector.extract_strided_slice %146 {offsets = [0, 0], sizes = [8, 8], strides = [1, 1]} : vector<8x32xbf16> to vector<8x8xbf16>
    %160 = vector.extract_strided_slice %153 {offsets = [0, 0], sizes = [8, 8], strides = [1, 1]} : vector<8x32xbf16> to vector<8x8xbf16>
    %161 = vector.extract_strided_slice %154 {offsets = [0, 0], sizes = [8, 8], strides = [1, 1]} : vector<8x32xbf16> to vector<8x8xbf16>
    %cst_66 = arith.constant dense<0.000000e+00> : vector<8x8xf32>
    %162 = tpu.matmul %159, %160, %cst_66 {dimension_numbers = #tpu.dot_dimension_numbers<[1], [1], [0], [0], [0, 0, 1, 0], [], []>} : vector<8x8xbf16>, vector<8x8xbf16>, vector<8x8xf32> -> vector<8x8xf32>
    %cst_67 = arith.constant 0.353553385 : f32
    %163 = vector.broadcast %cst_67 : f32 to vector<8x8xf32>
    %164 = arith.mulf %162, %163 : vector<8x8xf32>
    %165 = arith.addf %164, %156 : vector<8x8xf32>
    %cst_68 = arith.constant dense<0xFF800000> : vector<8xf32>
    %166 = vector.multi_reduction <maximumf>, %165, %cst_68 [1] : vector<8x8xf32> to vector<8xf32>
    %167 = vector.shape_cast %166 : vector<8xf32> to vector<8x1xf32>
    %168 = vector.broadcast %167 : vector<8x1xf32> to vector<8x8xf32>
    %169 = arith.subf %165, %168 : vector<8x8xf32>
    %170 = math.exp %169 : vector<8x8xf32>
    %cst_69 = arith.constant dense<0.000000e+00> : vector<8xf32>
    %171 = vector.multi_reduction <add>, %170, %cst_69 [1] : vector<8x8xf32> to vector<8xf32>
    %172 = vector.shape_cast %171 : vector<8xf32> to vector<8x1xf32>
    %173 = tpu.reciprocal %172 {approx = true} : vector<8x1xf32> -> vector<8x1xf32>
    %174 = vector.broadcast %173 : vector<8x1xf32> to vector<8x8xf32>
    %175 = arith.mulf %170, %174 : vector<8x8xf32>
    %176 = arith.truncf %175 : vector<8x8xf32> to vector<8x8xbf16>
    %cst_70 = arith.constant dense<0.000000e+00> : vector<8x8xf32>
    %177 = tpu.matmul %176, %161, %cst_70 {dimension_numbers = #tpu.dot_dimension_numbers<[1], [0], [0], [1], [0, 0, 1, 1], [], []>} : vector<8x8xbf16>, vector<8x8xbf16>, vector<8x8xf32> -> vector<8x8xf32>
    %178 = arith.truncf %177 : vector<8x8xf32> to vector<8x8xbf16>
    %179 = vector.extract_strided_slice %157 {offsets = [0, 0], sizes = [8, 32], strides = [1, 1]} : vector<32x32xbf16> to vector<8x32xbf16>
    %cst_71 = arith.constant dense<0.000000e+00> : vector<8x32xf32>
    %180 = tpu.matmul %178, %179, %cst_71 {dimension_numbers = #tpu.dot_dimension_numbers<[1], [0], [0], [1], [0, 0, 1, 1], [], []>} : vector<8x8xbf16>, vector<8x32xbf16>, vector<8x32xf32> -> vector<8x32xf32>
    %181 = arith.addf %158, %180 : vector<8x32xf32>
    %182 = vector.extract_strided_slice %146 {offsets = [0, 8], sizes = [8, 8], strides = [1, 1]} : vector<8x32xbf16> to vector<8x8xbf16>
    %183 = vector.extract_strided_slice %153 {offsets = [0, 8], sizes = [8, 8], strides = [1, 1]} : vector<8x32xbf16> to vector<8x8xbf16>
    %184 = vector.extract_strided_slice %154 {offsets = [0, 8], sizes = [8, 8], strides = [1, 1]} : vector<8x32xbf16> to vector<8x8xbf16>
    %cst_72 = arith.constant dense<0.000000e+00> : vector<8x8xf32>
    %185 = tpu.matmul %182, %183, %cst_72 {dimension_numbers = #tpu.dot_dimension_numbers<[1], [1], [0], [0], [0, 0, 1, 0], [], []>} : vector<8x8xbf16>, vector<8x8xbf16>, vector<8x8xf32> -> vector<8x8xf32>
    %cst_73 = arith.constant 0.353553385 : f32
    %186 = vector.broadcast %cst_73 : f32 to vector<8x8xf32>
    %187 = arith.mulf %185, %186 : vector<8x8xf32>
    %188 = arith.addf %187, %156 : vector<8x8xf32>
    %cst_74 = arith.constant dense<0xFF800000> : vector<8xf32>
    %189 = vector.multi_reduction <maximumf>, %188, %cst_74 [1] : vector<8x8xf32> to vector<8xf32>
    %190 = vector.shape_cast %189 : vector<8xf32> to vector<8x1xf32>
    %191 = vector.broadcast %190 : vector<8x1xf32> to vector<8x8xf32>
    %192 = arith.subf %188, %191 : vector<8x8xf32>
    %193 = math.exp %192 : vector<8x8xf32>
    %cst_75 = arith.constant dense<0.000000e+00> : vector<8xf32>
    %194 = vector.multi_reduction <add>, %193, %cst_75 [1] : vector<8x8xf32> to vector<8xf32>
    %195 = vector.shape_cast %194 : vector<8xf32> to vector<8x1xf32>
    %196 = tpu.reciprocal %195 {approx = true} : vector<8x1xf32> -> vector<8x1xf32>
    %197 = vector.broadcast %196 : vector<8x1xf32> to vector<8x8xf32>
    %198 = arith.mulf %193, %197 : vector<8x8xf32>
    %199 = arith.truncf %198 : vector<8x8xf32> to vector<8x8xbf16>
    %cst_76 = arith.constant dense<0.000000e+00> : vector<8x8xf32>
    %200 = tpu.matmul %199, %184, %cst_76 {dimension_numbers = #tpu.dot_dimension_numbers<[1], [0], [0], [1], [0, 0, 1, 1], [], []>} : vector<8x8xbf16>, vector<8x8xbf16>, vector<8x8xf32> -> vector<8x8xf32>
    %201 = arith.truncf %200 : vector<8x8xf32> to vector<8x8xbf16>
    %202 = vector.extract_strided_slice %157 {offsets = [8, 0], sizes = [8, 32], strides = [1, 1]} : vector<32x32xbf16> to vector<8x32xbf16>
    %cst_77 = arith.constant dense<0.000000e+00> : vector<8x32xf32>
    %203 = tpu.matmul %201, %202, %cst_77 {dimension_numbers = #tpu.dot_dimension_numbers<[1], [0], [0], [1], [0, 0, 1, 1], [], []>} : vector<8x8xbf16>, vector<8x32xbf16>, vector<8x32xf32> -> vector<8x32xf32>
    %204 = arith.addf %181, %203 : vector<8x32xf32>
    %205 = vector.extract_strided_slice %146 {offsets = [0, 16], sizes = [8, 8], strides = [1, 1]} : vector<8x32xbf16> to vector<8x8xbf16>
    %206 = vector.extract_strided_slice %153 {offsets = [0, 16], sizes = [8, 8], strides = [1, 1]} : vector<8x32xbf16> to vector<8x8xbf16>
    %207 = vector.extract_strided_slice %154 {offsets = [0, 16], sizes = [8, 8], strides = [1, 1]} : vector<8x32xbf16> to vector<8x8xbf16>
    %cst_78 = arith.constant dense<0.000000e+00> : vector<8x8xf32>
    %208 = tpu.matmul %205, %206, %cst_78 {dimension_numbers = #tpu.dot_dimension_numbers<[1], [1], [0], [0], [0, 0, 1, 0], [], []>} : vector<8x8xbf16>, vector<8x8xbf16>, vector<8x8xf32> -> vector<8x8xf32>
    %cst_79 = arith.constant 0.353553385 : f32
    %209 = vector.broadcast %cst_79 : f32 to vector<8x8xf32>
    %210 = arith.mulf %208, %209 : vector<8x8xf32>
    %211 = arith.addf %210, %156 : vector<8x8xf32>
    %cst_80 = arith.constant dense<0xFF800000> : vector<8xf32>
    %212 = vector.multi_reduction <maximumf>, %211, %cst_80 [1] : vector<8x8xf32> to vector<8xf32>
    %213 = vector.shape_cast %212 : vector<8xf32> to vector<8x1xf32>
    %214 = vector.broadcast %213 : vector<8x1xf32> to vector<8x8xf32>
    %215 = arith.subf %211, %214 : vector<8x8xf32>
    %216 = math.exp %215 : vector<8x8xf32>
    %cst_81 = arith.constant dense<0.000000e+00> : vector<8xf32>
    %217 = vector.multi_reduction <add>, %216, %cst_81 [1] : vector<8x8xf32> to vector<8xf32>
    %218 = vector.shape_cast %217 : vector<8xf32> to vector<8x1xf32>
    %219 = tpu.reciprocal %218 {approx = true} : vector<8x1xf32> -> vector<8x1xf32>
    %220 = vector.broadcast %219 : vector<8x1xf32> to vector<8x8xf32>
    %221 = arith.mulf %216, %220 : vector<8x8xf32>
    %222 = arith.truncf %221 : vector<8x8xf32> to vector<8x8xbf16>
    %cst_82 = arith.constant dense<0.000000e+00> : vector<8x8xf32>
    %223 = tpu.matmul %222, %207, %cst_82 {dimension_numbers = #tpu.dot_dimension_numbers<[1], [0], [0], [1], [0, 0, 1, 1], [], []>} : vector<8x8xbf16>, vector<8x8xbf16>, vector<8x8xf32> -> vector<8x8xf32>
    %224 = arith.truncf %223 : vector<8x8xf32> to vector<8x8xbf16>
    %225 = vector.extract_strided_slice %157 {offsets = [16, 0], sizes = [8, 32], strides = [1, 1]} : vector<32x32xbf16> to vector<8x32xbf16>
    %cst_83 = arith.constant dense<0.000000e+00> : vector<8x32xf32>
    %226 = tpu.matmul %224, %225, %cst_83 {dimension_numbers = #tpu.dot_dimension_numbers<[1], [0], [0], [1], [0, 0, 1, 1], [], []>} : vector<8x8xbf16>, vector<8x32xbf16>, vector<8x32xf32> -> vector<8x32xf32>
    %227 = arith.addf %204, %226 : vector<8x32xf32>
    %228 = vector.extract_strided_slice %146 {offsets = [0, 24], sizes = [8, 8], strides = [1, 1]} : vector<8x32xbf16> to vector<8x8xbf16>
    %229 = vector.extract_strided_slice %153 {offsets = [0, 24], sizes = [8, 8], strides = [1, 1]} : vector<8x32xbf16> to vector<8x8xbf16>
    %230 = vector.extract_strided_slice %154 {offsets = [0, 24], sizes = [8, 8], strides = [1, 1]} : vector<8x32xbf16> to vector<8x8xbf16>
    %cst_84 = arith.constant dense<0.000000e+00> : vector<8x8xf32>
    %231 = tpu.matmul %228, %229, %cst_84 {dimension_numbers = #tpu.dot_dimension_numbers<[1], [1], [0], [0], [0, 0, 1, 0], [], []>} : vector<8x8xbf16>, vector<8x8xbf16>, vector<8x8xf32> -> vector<8x8xf32>
    %cst_85 = arith.constant 0.353553385 : f32
    %232 = vector.broadcast %cst_85 : f32 to vector<8x8xf32>
    %233 = arith.mulf %231, %232 : vector<8x8xf32>
    %234 = arith.addf %233, %156 : vector<8x8xf32>
    %cst_86 = arith.constant dense<0xFF800000> : vector<8xf32>
    %235 = vector.multi_reduction <maximumf>, %234, %cst_86 [1] : vector<8x8xf32> to vector<8xf32>
    %236 = vector.shape_cast %235 : vector<8xf32> to vector<8x1xf32>
    %237 = vector.broadcast %236 : vector<8x1xf32> to vector<8x8xf32>
    %238 = arith.subf %234, %237 : vector<8x8xf32>
    %239 = math.exp %238 : vector<8x8xf32>
    %cst_87 = arith.constant dense<0.000000e+00> : vector<8xf32>
    %240 = vector.multi_reduction <add>, %239, %cst_87 [1] : vector<8x8xf32> to vector<8xf32>
    %241 = vector.shape_cast %240 : vector<8xf32> to vector<8x1xf32>
    %242 = tpu.reciprocal %241 {approx = true} : vector<8x1xf32> -> vector<8x1xf32>
    %243 = vector.broadcast %242 : vector<8x1xf32> to vector<8x8xf32>
    %244 = arith.mulf %239, %243 : vector<8x8xf32>
    %245 = arith.truncf %244 : vector<8x8xf32> to vector<8x8xbf16>
    %cst_88 = arith.constant dense<0.000000e+00> : vector<8x8xf32>
    %246 = tpu.matmul %245, %230, %cst_88 {dimension_numbers = #tpu.dot_dimension_numbers<[1], [0], [0], [1], [0, 0, 1, 1], [], []>} : vector<8x8xbf16>, vector<8x8xbf16>, vector<8x8xf32> -> vector<8x8xf32>
    %247 = arith.truncf %246 : vector<8x8xf32> to vector<8x8xbf16>
    %248 = vector.extract_strided_slice %157 {offsets = [24, 0], sizes = [8, 32], strides = [1, 1]} : vector<32x32xbf16> to vector<8x32xbf16>
    %cst_89 = arith.constant dense<0.000000e+00> : vector<8x32xf32>
    %249 = tpu.matmul %247, %248, %cst_89 {dimension_numbers = #tpu.dot_dimension_numbers<[1], [0], [0], [1], [0, 0, 1, 1], [], []>} : vector<8x8xbf16>, vector<8x32xbf16>, vector<8x32xf32> -> vector<8x32xf32>
    %250 = arith.addf %227, %249 : vector<8x32xf32>
    %c0_90 = arith.constant 0 : index
    %c0_91 = arith.constant 0 : index
    %251 = vector.load %arg16[%c0_90, %c0_91] : memref<1x32xf32, #tpu.memory_space<vmem>>, vector<1x32xf32>
    %252 = vector.broadcast %251 : vector<1x32xf32> to vector<8x32xf32>
    %253 = arith.addf %250, %252 : vector<8x32xf32>
    %254 = arith.addf %139, %253 : vector<8x32xf32>
    %cst_92 = arith.constant dense<0.000000e+00> : vector<8xf32>
    %255 = vector.multi_reduction <add>, %254, %cst_92 [1] : vector<8x32xf32> to vector<8xf32>
    %256 = vector.shape_cast %255 : vector<8xf32> to vector<8x1xf32>
    %cst_93 = arith.constant 3.200000e+01 : f32
    %257 = vector.broadcast %cst_93 : f32 to vector<8x1xf32>
    %258 = arith.divf %256, %257 : vector<8x1xf32>
    %259 = vector.broadcast %258 : vector<8x1xf32> to vector<8x32xf32>
    %260 = arith.subf %254, %259 : vector<8x32xf32>
    %261 = vector.broadcast %258 : vector<8x1xf32> to vector<8x32xf32>
    %262 = arith.subf %254, %261 : vector<8x32xf32>
    %263 = arith.mulf %260, %262 : vector<8x32xf32>
    %cst_94 = arith.constant dense<0.000000e+00> : vector<8xf32>
    %264 = vector.multi_reduction <add>, %263, %cst_94 [1] : vector<8x32xf32> to vector<8xf32>
    %265 = vector.shape_cast %264 : vector<8xf32> to vector<8x1xf32>
    %cst_95 = arith.constant 3.200000e+01 : f32
    %266 = vector.broadcast %cst_95 : f32 to vector<8x1xf32>
    %267 = arith.divf %265, %266 : vector<8x1xf32>
    %268 = vector.broadcast %258 : vector<8x1xf32> to vector<8x32xf32>
    %269 = arith.subf %254, %268 : vector<8x32xf32>
    %cst_96 = arith.constant 9.99999974E-6 : f32
    %270 = vector.broadcast %cst_96 : f32 to vector<8x1xf32>
    %271 = arith.addf %267, %270 : vector<8x1xf32>
    %272 = math.rsqrt %271 : vector<8x1xf32>
    %273 = vector.broadcast %272 : vector<8x1xf32> to vector<8x32xf32>
    %274 = arith.mulf %269, %273 : vector<8x32xf32>
    %c0_97 = arith.constant 0 : index
    %c0_98 = arith.constant 0 : index
    %275 = vector.load %arg17[%c0_97, %c0_98] : memref<1x32xf32, #tpu.memory_space<vmem>>, vector<1x32xf32>
    %276 = vector.broadcast %275 : vector<1x32xf32> to vector<8x32xf32>
    %277 = arith.mulf %274, %276 : vector<8x32xf32>
    %c0_99 = arith.constant 0 : index
    %c0_100 = arith.constant 0 : index
    %278 = vector.load %arg18[%c0_99, %c0_100] : memref<1x32xf32, #tpu.memory_space<vmem>>, vector<1x32xf32>
    %279 = vector.broadcast %278 : vector<1x32xf32> to vector<8x32xf32>
    %280 = arith.addf %277, %279 : vector<8x32xf32>
    %281 = arith.truncf %280 : vector<8x32xf32> to vector<8x32xbf16>
    %c0_101 = arith.constant 0 : index
    %c0_102 = arith.constant 0 : index
    %282 = vector.load %arg19[%c0_101, %c0_102] : memref<32x64xbf16, #tpu.memory_space<vmem>>, vector<32x64xbf16>
    %cst_103 = arith.constant dense<0.000000e+00> : vector<8x64xf32>
    %283 = tpu.matmul %281, %282, %cst_103 {dimension_numbers = #tpu.dot_dimension_numbers<[1], [0], [0], [1], [0, 0, 1, 1], [], []>} : vector<8x32xbf16>, vector<32x64xbf16>, vector<8x64xf32> -> vector<8x64xf32>
    %c0_104 = arith.constant 0 : index
    %c0_105 = arith.constant 0 : index
    %284 = vector.load %arg20[%c0_104, %c0_105] : memref<1x64xf32, #tpu.memory_space<vmem>>, vector<1x64xf32>
    %285 = vector.broadcast %284 : vector<1x64xf32> to vector<8x64xf32>
    %286 = arith.addf %283, %285 : vector<8x64xf32>
    %cst_106 = arith.constant 0.000000e+00 : f32
    %287 = vector.broadcast %cst_106 : f32 to vector<8x64xf32>
    %288 = arith.maximumf %286, %287 : vector<8x64xf32>
    %289 = arith.truncf %288 : vector<8x64xf32> to vector<8x64xbf16>
    %c0_107 = arith.constant 0 : index
    %c0_108 = arith.constant 0 : index
    %290 = vector.load %arg21[%c0_107, %c0_108] : memref<64x32xbf16, #tpu.memory_space<vmem>>, vector<64x32xbf16>
    %cst_109 = arith.constant dense<0.000000e+00> : vector<8x32xf32>
    %291 = tpu.matmul %289, %290, %cst_109 {dimension_numbers = #tpu.dot_dimension_numbers<[1], [0], [0], [1], [0, 0, 1, 1], [], []>} : vector<8x64xbf16>, vector<64x32xbf16>, vector<8x32xf32> -> vector<8x32xf32>
    %c0_110 = arith.constant 0 : index
    %c0_111 = arith.constant 0 : index
    %292 = vector.load %arg22[%c0_110, %c0_111] : memref<1x32xf32, #tpu.memory_space<vmem>>, vector<1x32xf32>
    %293 = vector.broadcast %292 : vector<1x32xf32> to vector<8x32xf32>
    %294 = arith.addf %291, %293 : vector<8x32xf32>
    %295 = arith.addf %280, %294 : vector<8x32xf32>
    %cst_112 = arith.constant dense<0.000000e+00> : vector<8xf32>
    %296 = vector.multi_reduction <add>, %295, %cst_112 [1] : vector<8x32xf32> to vector<8xf32>
    %297 = vector.shape_cast %296 : vector<8xf32> to vector<8x1xf32>
    %cst_113 = arith.constant 3.200000e+01 : f32
    %298 = vector.broadcast %cst_113 : f32 to vector<8x1xf32>
    %299 = arith.divf %297, %298 : vector<8x1xf32>
    %300 = vector.broadcast %299 : vector<8x1xf32> to vector<8x32xf32>
    %301 = arith.subf %295, %300 : vector<8x32xf32>
    %302 = vector.broadcast %299 : vector<8x1xf32> to vector<8x32xf32>
    %303 = arith.subf %295, %302 : vector<8x32xf32>
    %304 = arith.mulf %301, %303 : vector<8x32xf32>
    %cst_114 = arith.constant dense<0.000000e+00> : vector<8xf32>
    %305 = vector.multi_reduction <add>, %304, %cst_114 [1] : vector<8x32xf32> to vector<8xf32>
    %306 = vector.shape_cast %305 : vector<8xf32> to vector<8x1xf32>
    %cst_115 = arith.constant 3.200000e+01 : f32
    %307 = vector.broadcast %cst_115 : f32 to vector<8x1xf32>
    %308 = arith.divf %306, %307 : vector<8x1xf32>
    %309 = vector.broadcast %299 : vector<8x1xf32> to vector<8x32xf32>
    %310 = arith.subf %295, %309 : vector<8x32xf32>
    %cst_116 = arith.constant 9.99999974E-6 : f32
    %311 = vector.broadcast %cst_116 : f32 to vector<8x1xf32>
    %312 = arith.addf %308, %311 : vector<8x1xf32>
    %313 = math.rsqrt %312 : vector<8x1xf32>
    %314 = vector.broadcast %313 : vector<8x1xf32> to vector<8x32xf32>
    %315 = arith.mulf %310, %314 : vector<8x32xf32>
    %c0_117 = arith.constant 0 : index
    %c0_118 = arith.constant 0 : index
    %316 = vector.load %arg23[%c0_117, %c0_118] : memref<1x32xf32, #tpu.memory_space<vmem>>, vector<1x32xf32>
    %317 = vector.broadcast %316 : vector<1x32xf32> to vector<8x32xf32>
    %318 = arith.mulf %315, %317 : vector<8x32xf32>
    %c0_119 = arith.constant 0 : index
    %c0_120 = arith.constant 0 : index
    %319 = vector.load %arg24[%c0_119, %c0_120] : memref<1x32xf32, #tpu.memory_space<vmem>>, vector<1x32xf32>
    %320 = vector.broadcast %319 : vector<1x32xf32> to vector<8x32xf32>
    %321 = arith.addf %318, %320 : vector<8x32xf32>
    %322 = arith.truncf %321 : vector<8x32xf32> to vector<8x32xbf16>
    %c0_121 = arith.constant 0 : index
    %c0_122 = arith.constant 0 : index
    %c0_123 = arith.constant 0 : index
    %323 = vector.load %arg25[%c0_121, %c0_122, %c0_123] : memref<1x8x32xbf16, #tpu.memory_space<vmem>>, vector<1x8x32xbf16>
    %324 = vector.shape_cast %323 : vector<1x8x32xbf16> to vector<8x32xbf16>
    %325 = vector.shape_cast %322 : vector<8x32xbf16> to vector<1x8x32xbf16>
    tpu.vector_store %arg25[%c0_121, %c0_122, %c0_123], %325 {strides = array<i32>} : memref<1x8x32xbf16, #tpu.memory_space<vmem>>, vector<1x8x32xbf16>,
    return
  }
  func.func @transform_0(%arg0: i32) -> (i32, i32, i32) {
    %c0_i32 = arith.constant 0 : i32
    %c0_i32_0 = arith.constant 0 : i32
    %c0_i32_1 = arith.constant 0 : i32
    return %arg0, %c0_i32, %c0_i32_0 : i32, i32, i32
  }
  func.func @transform_1(%arg0: i32) -> (i32, i32, i32) {
    %c0_i32 = arith.constant 0 : i32
    %c0_i32_0 = arith.constant 0 : i32
    %c0_i32_1 = arith.constant 0 : i32
    return %arg0, %c0_i32, %c0_i32_0 : i32, i32, i32
  }
  func.func @transform_2(%arg0: i32) -> (i32, i32, i32) {
    %c0_i32 = arith.constant 0 : i32
    %c0_i32_0 = arith.constant 0 : i32
    %c0_i32_1 = arith.constant 0 : i32
    return %arg0, %c0_i32, %c0_i32_0 : i32, i32, i32
  }
  func.func @transform_3(%arg0: i32) -> (i32, i32, i32) {
    %c0_i32 = arith.constant 0 : i32
    %c0_i32_0 = arith.constant 0 : i32
    %c0_i32_1 = arith.constant 0 : i32
    return %arg0, %c0_i32, %c0_i32_0 : i32, i32, i32
  }
  func.func @transform_4(%arg0: i32) -> (i32, i32) {
    %c0_i32 = arith.constant 0 : i32
    %c0_i32_0 = arith.constant 0 : i32
    %c0_i32_1 = arith.constant 0 : i32
    return %c0_i32, %c0_i32_0 : i32, i32
  }
  func.func @transform_5(%arg0: i32) -> (i32, i32) {
    %c0_i32 = arith.constant 0 : i32
    %c0_i32_0 = arith.constant 0 : i32
    %c0_i32_1 = arith.constant 0 : i32
    return %c0_i32, %c0_i32_0 : i32, i32
  }
  func.func @transform_6(%arg0: i32) -> (i32, i32) {
    %c0_i32 = arith.constant 0 : i32
    %c0_i32_0 = arith.constant 0 : i32
    %c0_i32_1 = arith.constant 0 : i32
    return %c0_i32, %c0_i32_0 : i32, i32
  }
  func.func @transform_7(%arg0: i32) -> (i32, i32) {
    %c0_i32 = arith.constant 0 : i32
    %c0_i32_0 = arith.constant 0 : i32
    %c0_i32_1 = arith.constant 0 : i32
    return %c0_i32, %c0_i32_0 : i32, i32
  }
  func.func @transform_8(%arg0: i32) -> (i32, i32) {
    %c0_i32 = arith.constant 0 : i32
    %c0_i32_0 = arith.constant 0 : i32
    %c0_i32_1 = arith.constant 0 : i32
    return %c0_i32, %c0_i32_0 : i32, i32
  }
  func.func @transform_9(%arg0: i32) -> (i32, i32) {
    %c0_i32 = arith.constant 0 : i32
    %c0_i32_0 = arith.constant 0 : i32
    %c0_i32_1 = arith.constant 0 : i32
    return %c0_i32, %c0_i32_0 : i32, i32
  }
  func.func @transform_10(%arg0: i32) -> (i32, i32) {
    %c0_i32 = arith.constant 0 : i32
    %c0_i32_0 = arith.constant 0 : i32
    %c0_i32_1 = arith.constant 0 : i32
    return %c0_i32, %c0_i32_0 : i32, i32
  }
  func.func @transform_11(%arg0: i32) -> (i32, i32) {
    %c0_i32 = arith.constant 0 : i32
    %c0_i32_0 = arith.constant 0 : i32
    %c0_i32_1 = arith.constant 0 : i32
    return %c0_i32, %c0_i32_0 : i32, i32
  }
  func.func @transform_12(%arg0: i32) -> (i32, i32) {
    %c0_i32 = arith.constant 0 : i32
    %c0_i32_0 = arith.constant 0 : i32
    %c0_i32_1 = arith.constant 0 : i32
    return %c0_i32, %c0_i32_0 : i32, i32
  }
  func.func @transform_13(%arg0: i32) -> (i32, i32) {
    %c0_i32 = arith.constant 0 : i32
    %c0_i32_0 = arith.constant 0 : i32
    %c0_i32_1 = arith.constant 0 : i32
    return %c0_i32, %c0_i32_0 : i32, i32
  }
  func.func @transform_14(%arg0: i32) -> (i32, i32) {
    %c0_i32 = arith.constant 0 : i32
    %c0_i32_0 = arith.constant 0 : i32
    %c0_i32_1 = arith.constant 0 : i32
    return %c0_i32, %c0_i32_0 : i32, i32
  }
  func.func @transform_15(%arg0: i32) -> (i32, i32) {
    %c0_i32 = arith.constant 0 : i32
    %c0_i32_0 = arith.constant 0 : i32
    %c0_i32_1 = arith.constant 0 : i32
    return %c0_i32, %c0_i32_0 : i32, i32
  }
  func.func @transform_16(%arg0: i32) -> (i32, i32) {
    %c0_i32 = arith.constant 0 : i32
    %c0_i32_0 = arith.constant 0 : i32
    %c0_i32_1 = arith.constant 0 : i32
    return %c0_i32, %c0_i32_0 : i32, i32
  }
  func.func @transform_17(%arg0: i32) -> (i32, i32) {
    %c0_i32 = arith.constant 0 : i32
    %c0_i32_0 = arith.constant 0 : i32
    %c0_i32_1 = arith.constant 0 : i32
    return %c0_i32, %c0_i32_0 : i32, i32
  }
  func.func @transform_18(%arg0: i32) -> (i32, i32) {
    %c0_i32 = arith.constant 0 : i32
    %c0_i32_0 = arith.constant 0 : i32
    %c0_i32_1 = arith.constant 0 : i32
    return %c0_i32, %c0_i32_0 : i32, i32
  }
  func.func @transform_19(%arg0: i32) -> (i32, i32) {
    %c0_i32 = arith.constant 0 : i32
    %c0_i32_0 = arith.constant 0 : i32
    %c0_i32_1 = arith.constant 0 : i32
    return %c0_i32, %c0_i32_0 : i32, i32
  }
  func.func @transform_20(%arg0: i32) -> (i32, i32) {
    %c0_i32 = arith.constant 0 : i32
    %c0_i32_0 = arith.constant 0 : i32
    %c0_i32_1 = arith.constant 0 : i32
    return %c0_i32, %c0_i32_0 : i32, i32
  }
  func.func @transform_21(%arg0: i32) -> (i32, i32) {
    %c0_i32 = arith.constant 0 : i32
    %c0_i32_0 = arith.constant 0 : i32
    %c0_i32_1 = arith.constant 0 : i32
    return %c0_i32, %c0_i32_0 : i32, i32
  }
  func.func @transform_22(%arg0: i32) -> (i32, i32) {
    %c0_i32 = arith.constant 0 : i32
    %c0_i32_0 = arith.constant 0 : i32
    %c0_i32_1 = arith.constant 0 : i32
    return %c0_i32, %c0_i32_0 : i32, i32
  }
  func.func @transform_23(%arg0: i32) -> (i32, i32) {
    %c0_i32 = arith.constant 0 : i32
    %c0_i32_0 = arith.constant 0 : i32
    %c0_i32_1 = arith.constant 0 : i32
    return %c0_i32, %c0_i32_0 : i32, i32
  }
  func.func @transform_24(%arg0: i32) -> (i32, i32, i32) {
    %c0_i32 = arith.constant 0 : i32
    %c0_i32_0 = arith.constant 0 : i32
    %c0_i32_1 = arith.constant 0 : i32
    return %arg0, %c0_i32, %c0_i32_0 : i32, i32, i32
  }
}

module attributes {stable_mosaic.version = 11 : i64} {
  func.func @_decoder_layer_kernel(%arg0: i32, %arg1: memref<1x8x32xbf16, #tpu.memory_space<vmem>>, %arg2: memref<1x8x32xbf16, #tpu.memory_space<vmem>>, %arg3: memref<1x8x8xf32, #tpu.memory_space<vmem>>, %arg4: memref<1x8x8xf32, #tpu.memory_space<vmem>>, %arg5: memref<32x96xbf16, #tpu.memory_space<vmem>>, %arg6: memref<1x96xf32, #tpu.memory_space<vmem>>, %arg7: memref<32x32xbf16, #tpu.memory_space<vmem>>, %arg8: memref<1x32xf32, #tpu.memory_space<vmem>>, %arg9: memref<1x32xf32, #tpu.memory_space<vmem>>, %arg10: memref<1x32xf32, #tpu.memory_space<vmem>>, %arg11: memref<32x32xbf16, #tpu.memory_space<vmem>>, %arg12: memref<1x32xf32, #tpu.memory_space<vmem>>, %arg13: memref<32x64xbf16, #tpu.memory_space<vmem>>, %arg14: memref<1x64xf32, #tpu.memory_space<vmem>>, %arg15: memref<32x32xbf16, #tpu.memory_space<vmem>>, %arg16: memref<1x32xf32, #tpu.memory_space<vmem>>, %arg17: memref<1x32xf32, #tpu.memory_space<vmem>>, %arg18: memref<1x32xf32, #tpu.memory_space<vmem>>, %arg19: memref<32x64xbf16, #tpu.memory_space<vmem>>, %arg20: memref<1x64xf32, #tpu.memory_space<vmem>>, %arg21: memref<64x32xbf16, #tpu.memory_space<vmem>>, %arg22: memref<1x32xf32, #tpu.memory_space<vmem>>, %arg23: memref<1x32xf32, #tpu.memory_space<vmem>>, %arg24: memref<1x32xf32, #tpu.memory_space<vmem>>, %arg25: memref<1x8x32xbf16, #tpu.memory_space<vmem>>) attributes {dimension_semantics = [#tpu.dimension_semantics<parallel>], iteration_bounds = array<i64: 2>, scalar_prefetch = 0 : i64, scratch_operands = 0 : i64, tpu.core_type = #tpu.core_type<tc>, window_params = [{transform_indices = @transform_0, window_bounds = array<i64: 1, 8, 32>}, {transform_indices = @transform_1, window_bounds = array<i64: 1, 8, 32>}, {transform_indices = @transform_2, window_bounds = array<i64: 1, 8, 8>}, {transform_indices = @transform_3, window_bounds = array<i64: 1, 8, 8>}, {pipeline_mode = #tpu.pipeline_mode<synchronous>, transform_indices = @transform_4, window_bounds = array<i64: 32, 96>}, {pipeline_mode = #tpu.pipeline_mode<synchronous>, transform_indices = @transform_5, window_bounds = array<i64: 1, 96>}, {pipeline_mode = #tpu.pipeline_mode<synchronous>, transform_indices = @transform_6, window_bounds = array<i64: 32, 32>}, {pipeline_mode = #tpu.pipeline_mode<synchronous>, transform_indices = @transform_7, window_bounds = array<i64: 1, 32>}, {pipeline_mode = #tpu.pipeline_mode<synchronous>, transform_indices = @transform_8, window_bounds = array<i64: 1, 32>}, {pipeline_mode = #tpu.pipeline_mode<synchronous>, transform_indices = @transform_9, window_bounds = array<i64: 1, 32>}, {pipeline_mode = #tpu.pipeline_mode<synchronous>, transform_indices = @transform_10, window_bounds = array<i64: 32, 32>}, {pipeline_mode = #tpu.pipeline_mode<synchronous>, transform_indices = @transform_11, window_bounds = array<i64: 1, 32>}, {pipeline_mode = #tpu.pipeline_mode<synchronous>, transform_indices = @transform_12, window_bounds = array<i64: 32, 64>}, {pipeline_mode = #tpu.pipeline_mode<synchronous>, transform_indices = @transform_13, window_bounds = array<i64: 1, 64>}, {pipeline_mode = #tpu.pipeline_mode<synchronous>, transform_indices = @transform_14, window_bounds = array<i64: 32, 32>}, {pipeline_mode = #tpu.pipeline_mode<synchronous>, transform_indices = @transform_15, window_bounds = array<i64: 1, 32>}, {pipeline_mode = #tpu.pipeline_mode<synchronous>, transform_indices = @transform_16, window_bounds = array<i64: 1, 32>}, {pipeline_mode = #tpu.pipeline_mode<synchronous>, transform_indices = @transform_17, window_bounds = array<i64: 1, 32>}, {pipeline_mode = #tpu.pipeline_mode<synchronous>, transform_indices = @transform_18, window_bounds = array<i64: 32, 64>}, {pipeline_mode = #tpu.pipeline_mode<synchronous>, transform_indices = @transform_19, window_bounds = array<i64: 1, 64>}, {pipeline_mode = #tpu.pipeline_mode<synchronous>, transform_indices = @transform_20, window_bounds = array<i64: 64, 32>}, {pipeline_mode = #tpu.pipeline_mode<synchronous>, transform_indices = @transform_21, window_bounds = array<i64: 1, 32>}, {pipeline_mode = #tpu.pipeline_mode<synchronous>, transform_indices = @transform_22, window_bounds = array<i64: 1, 32>}, {pipeline_mode = #tpu.pipeline_mode<synchronous>, transform_indices = @transform_23, window_bounds = array<i64: 1, 32>}, {transform_indices = @transform_24, window_bounds = array<i64: 1, 8, 32>}]} {
    %c0 = arith.constant 0 : index
    %c0_0 = arith.constant 0 : index
    %c0_1 = arith.constant 0 : index
    %0 = vector.load %arg1[%c0, %c0_0, %c0_1] : memref<1x8x32xbf16, #tpu.memory_space<vmem>>, vector<1x8x32xbf16>
    %1 = vector.shape_cast %0 : vector<1x8x32xbf16> to vector<8x32xbf16>
    %c0_2 = arith.constant 0 : index
    %c0_3 = arith.constant 0 : index
    %c0_4 = arith.constant 0 : index
    %2 = vector.load %arg2[%c0_2, %c0_3, %c0_4] : memref<1x8x32xbf16, #tpu.memory_space<vmem>>, vector<1x8x32xbf16>
    %3 = vector.shape_cast %2 : vector<1x8x32xbf16> to vector<8x32xbf16>
    %c0_5 = arith.constant 0 : index
    %c0_6 = arith.constant 0 : index
    %4 = vector.load %arg5[%c0_5, %c0_6] : memref<32x96xbf16, #tpu.memory_space<vmem>>, vector<32x96xbf16>
    %cst = arith.constant dense<0.000000e+00> : vector<8x96xf32>
    %5 = tpu.matmul %1, %4, %cst {dimension_numbers = #tpu.dot_dimension_numbers<[1], [0], [0], [1], [0, 0, 1, 1], [], []>} : vector<8x32xbf16>, vector<32x96xbf16>, vector<8x96xf32> -> vector<8x96xf32>
    %c0_7 = arith.constant 0 : index
    %c0_8 = arith.constant 0 : index
    %6 = vector.load %arg6[%c0_7, %c0_8] : memref<1x96xf32, #tpu.memory_space<vmem>>, vector<1x96xf32>
    %7 = vector.broadcast %6 : vector<1x96xf32> to vector<8x96xf32>
    %8 = arith.addf %5, %7 : vector<8x96xf32>
    %9 = arith.truncf %8 : vector<8x96xf32> to vector<8x96xbf16>
    %10 = vector.extract_strided_slice %9 {offsets = [0, 0], sizes = [8, 32], strides = [1, 1]} : vector<8x96xbf16> to vector<8x32xbf16>
    %11 = vector.extract_strided_slice %9 {offsets = [0, 32], sizes = [8, 32], strides = [1, 1]} : vector<8x96xbf16> to vector<8x32xbf16>
    %12 = vector.extract_strided_slice %9 {offsets = [0, 64], sizes = [8, 32], strides = [1, 1]} : vector<8x96xbf16> to vector<8x32xbf16>
    %c0_9 = arith.constant 0 : index
    %c0_10 = arith.constant 0 : index
    %c0_11 = arith.constant 0 : index
    %13 = vector.load %arg3[%c0_9, %c0_10, %c0_11] : memref<1x8x8xf32, #tpu.memory_space<vmem>>, vector<1x8x8xf32>
    %14 = vector.shape_cast %13 : vector<1x8x8xf32> to vector<8x8xf32>
    %c0_12 = arith.constant 0 : index
    %c0_13 = arith.constant 0 : index
    %15 = vector.load %arg7[%c0_12, %c0_13] : memref<32x32xbf16, #tpu.memory_space<vmem>>, vector<32x32xbf16>
    %cst_14 = arith.constant 0.000000e+00 : f32
    %16 = vector.broadcast %cst_14 : f32 to vector<8x32xf32>
    %17 = vector.extract_strided_slice %10 {offsets = [0, 0], sizes = [8, 8], strides = [1, 1]} : vector<8x32xbf16> to vector<8x8xbf16>
    %18 = vector.extract_strided_slice %11 {offsets = [0, 0], sizes = [8, 8], strides = [1, 1]} : vector<8x32xbf16> to vector<8x8xbf16>
    %19 = vector.extract_strided_slice %12 {offsets = [0, 0], sizes = [8, 8], strides = [1, 1]} : vector<8x32xbf16> to vector<8x8xbf16>
    %cst_15 = arith.constant dense<0.000000e+00> : vector<8x8xf32>
    %20 = tpu.matmul %17, %18, %cst_15 {dimension_numbers = #tpu.dot_dimension_numbers<[1], [1], [0], [0], [0, 0, 1, 0], [], []>} : vector<8x8xbf16>, vector<8x8xbf16>, vector<8x8xf32> -> vector<8x8xf32>
    %cst_16 = arith.constant 0.353553385 : f32
    %21 = vector.broadcast %cst_16 : f32 to vector<8x8xf32>
    %22 = arith.mulf %20, %21 : vector<8x8xf32>
    %23 = arith.addf %22, %14 : vector<8x8xf32>
    %cst_17 = arith.constant dense<0xFF800000> : vector<8xf32>
    %24 = vector.multi_reduction <maximumf>, %23, %cst_17 [1] : vector<8x8xf32> to vector<8xf32>
    %25 = vector.shape_cast %24 : vector<8xf32> to vector<8x1xf32>
    %26 = vector.broadcast %25 : vector<8x1xf32> to vector<8x8xf32>
    %27 = arith.subf %23, %26 : vector<8x8xf32>
    %28 = math.exp %27 : vector<8x8xf32>
    %cst_18 = arith.constant dense<0.000000e+00> : vector<8xf32>
    %29 = vector.multi_reduction <add>, %28, %cst_18 [1] : vector<8x8xf32> to vector<8xf32>
    %30 = vector.shape_cast %29 : vector<8xf32> to vector<8x1xf32>
    %31 = tpu.reciprocal %30 {approx = true} : vector<8x1xf32> -> vector<8x1xf32>
    %32 = vector.broadcast %31 : vector<8x1xf32> to vector<8x8xf32>
    %33 = arith.mulf %28, %32 : vector<8x8xf32>
    %34 = arith.truncf %33 : vector<8x8xf32> to vector<8x8xbf16>
    %cst_19 = arith.constant dense<0.000000e+00> : vector<8x8xf32>
    %35 = tpu.matmul %34, %19, %cst_19 {dimension_numbers = #tpu.dot_dimension_numbers<[1], [0], [0], [1], [0, 0, 1, 1], [], []>} : vector<8x8xbf16>, vector<8x8xbf16>, vector<8x8xf32> -> vector<8x8xf32>
    %36 = arith.truncf %35 : vector<8x8xf32> to vector<8x8xbf16>
    %37 = vector.extract_strided_slice %15 {offsets = [0, 0], sizes = [8, 32], strides = [1, 1]} : vector<32x32xbf16> to vector<8x32xbf16>
    %cst_20 = arith.constant dense<0.000000e+00> : vector<8x32xf32>
    %38 = tpu.matmul %36, %37, %cst_20 {dimension_numbers = #tpu.dot_dimension_numbers<[1], [0], [0], [1], [0, 0, 1, 1], [], []>} : vector<8x8xbf16>, vector<8x32xbf16>, vector<8x32xf32> -> vector<8x32xf32>
    %39 = arith.addf %16, %38 : vector<8x32xf32>
    %40 = vector.extract_strided_slice %10 {offsets = [0, 8], sizes = [8, 8], strides = [1, 1]} : vector<8x32xbf16> to vector<8x8xbf16>
    %41 = vector.extract_strided_slice %11 {offsets = [0, 8], sizes = [8, 8], strides = [1, 1]} : vector<8x32xbf16> to vector<8x8xbf16>
    %42 = vector.extract_strided_slice %12 {offsets = [0, 8], sizes = [8, 8], strides = [1, 1]} : vector<8x32xbf16> to vector<8x8xbf16>
    %cst_21 = arith.constant dense<0.000000e+00> : vector<8x8xf32>
    %43 = tpu.matmul %40, %41, %cst_21 {dimension_numbers = #tpu.dot_dimension_numbers<[1], [1], [0], [0], [0, 0, 1, 0], [], []>} : vector<8x8xbf16>, vector<8x8xbf16>, vector<8x8xf32> -> vector<8x8xf32>
    %cst_22 = arith.constant 0.353553385 : f32
    %44 = vector.broadcast %cst_22 : f32 to vector<8x8xf32>
    %45 = arith.mulf %43, %44 : vector<8x8xf32>
    %46 = arith.addf %45, %14 : vector<8x8xf32>
    %cst_23 = arith.constant dense<0xFF800000> : vector<8xf32>
    %47 = vector.multi_reduction <maximumf>, %46, %cst_23 [1] : vector<8x8xf32> to vector<8xf32>
    %48 = vector.shape_cast %47 : vector<8xf32> to vector<8x1xf32>
    %49 = vector.broadcast %48 : vector<8x1xf32> to vector<8x8xf32>
    %50 = arith.subf %46, %49 : vector<8x8xf32>
    %51 = math.exp %50 : vector<8x8xf32>
    %cst_24 = arith.constant dense<0.000000e+00> : vector<8xf32>
    %52 = vector.multi_reduction <add>, %51, %cst_24 [1] : vector<8x8xf32> to vector<8xf32>
    %53 = vector.shape_cast %52 : vector<8xf32> to vector<8x1xf32>
    %54 = tpu.reciprocal %53 {approx = true} : vector<8x1xf32> -> vector<8x1xf32>
    %55 = vector.broadcast %54 : vector<8x1xf32> to vector<8x8xf32>
    %56 = arith.mulf %51, %55 : vector<8x8xf32>
    %57 = arith.truncf %56 : vector<8x8xf32> to vector<8x8xbf16>
    %cst_25 = arith.constant dense<0.000000e+00> : vector<8x8xf32>
    %58 = tpu.matmul %57, %42, %cst_25 {dimension_numbers = #tpu.dot_dimension_numbers<[1], [0], [0], [1], [0, 0, 1, 1], [], []>} : vector<8x8xbf16>, vector<8x8xbf16>, vector<8x8xf32> -> vector<8x8xf32>
    %59 = arith.truncf %58 : vector<8x8xf32> to vector<8x8xbf16>
    %60 = vector.extract_strided_slice %15 {offsets = [8, 0], sizes = [8, 32], strides = [1, 1]} : vector<32x32xbf16> to vector<8x32xbf16>
    %cst_26 = arith.constant dense<0.000000e+00> : vector<8x32xf32>
    %61 = tpu.matmul %59, %60, %cst_26 {dimension_numbers = #tpu.dot_dimension_numbers<[1], [0], [0], [1], [0, 0, 1, 1], [], []>} : vector<8x8xbf16>, vector<8x32xbf16>, vector<8x32xf32> -> vector<8x32xf32>
    %62 = arith.addf %39, %61 : vector<8x32xf32>
    %63 = vector.extract_strided_slice %10 {offsets = [0, 16], sizes = [8, 8], strides = [1, 1]} : vector<8x32xbf16> to vector<8x8xbf16>
    %64 = vector.extract_strided_slice %11 {offsets = [0, 16], sizes = [8, 8], strides = [1, 1]} : vector<8x32xbf16> to vector<8x8xbf16>
    %65 = vector.extract_strided_slice %12 {offsets = [0, 16], sizes = [8, 8], strides = [1, 1]} : vector<8x32xbf16> to vector<8x8xbf16>
    %cst_27 = arith.constant dense<0.000000e+00> : vector<8x8xf32>
    %66 = tpu.matmul %63, %64, %cst_27 {dimension_numbers = #tpu.dot_dimension_numbers<[1], [1], [0], [0], [0, 0, 1, 0], [], []>} : vector<8x8xbf16>, vector<8x8xbf16>, vector<8x8xf32> -> vector<8x8xf32>
    %cst_28 = arith.constant 0.353553385 : f32
    %67 = vector.broadcast %cst_28 : f32 to vector<8x8xf32>
    %68 = arith.mulf %66, %67 : vector<8x8xf32>
    %69 = arith.addf %68, %14 : vector<8x8xf32>
    %cst_29 = arith.constant dense<0xFF800000> : vector<8xf32>
    %70 = vector.multi_reduction <maximumf>, %69, %cst_29 [1] : vector<8x8xf32> to vector<8xf32>
    %71 = vector.shape_cast %70 : vector<8xf32> to vector<8x1xf32>
    %72 = vector.broadcast %71 : vector<8x1xf32> to vector<8x8xf32>
    %73 = arith.subf %69, %72 : vector<8x8xf32>
    %74 = math.exp %73 : vector<8x8xf32>
    %cst_30 = arith.constant dense<0.000000e+00> : vector<8xf32>
    %75 = vector.multi_reduction <add>, %74, %cst_30 [1] : vector<8x8xf32> to vector<8xf32>
    %76 = vector.shape_cast %75 : vector<8xf32> to vector<8x1xf32>
    %77 = tpu.reciprocal %76 {approx = true} : vector<8x1xf32> -> vector<8x1xf32>
    %78 = vector.broadcast %77 : vector<8x1xf32> to vector<8x8xf32>
    %79 = arith.mulf %74, %78 : vector<8x8xf32>
    %80 = arith.truncf %79 : vector<8x8xf32> to vector<8x8xbf16>
    %cst_31 = arith.constant dense<0.000000e+00> : vector<8x8xf32>
    %81 = tpu.matmul %80, %65, %cst_31 {dimension_numbers = #tpu.dot_dimension_numbers<[1], [0], [0], [1], [0, 0, 1, 1], [], []>} : vector<8x8xbf16>, vector<8x8xbf16>, vector<8x8xf32> -> vector<8x8xf32>
    %82 = arith.truncf %81 : vector<8x8xf32> to vector<8x8xbf16>
    %83 = vector.extract_strided_slice %15 {offsets = [16, 0], sizes = [8, 32], strides = [1, 1]} : vector<32x32xbf16> to vector<8x32xbf16>
    %cst_32 = arith.constant dense<0.000000e+00> : vector<8x32xf32>
    %84 = tpu.matmul %82, %83, %cst_32 {dimension_numbers = #tpu.dot_dimension_numbers<[1], [0], [0], [1], [0, 0, 1, 1], [], []>} : vector<8x8xbf16>, vector<8x32xbf16>, vector<8x32xf32> -> vector<8x32xf32>
    %85 = arith.addf %62, %84 : vector<8x32xf32>
    %86 = vector.extract_strided_slice %10 {offsets = [0, 24], sizes = [8, 8], strides = [1, 1]} : vector<8x32xbf16> to vector<8x8xbf16>
    %87 = vector.extract_strided_slice %11 {offsets = [0, 24], sizes = [8, 8], strides = [1, 1]} : vector<8x32xbf16> to vector<8x8xbf16>
    %88 = vector.extract_strided_slice %12 {offsets = [0, 24], sizes = [8, 8], strides = [1, 1]} : vector<8x32xbf16> to vector<8x8xbf16>
    %cst_33 = arith.constant dense<0.000000e+00> : vector<8x8xf32>
    %89 = tpu.matmul %86, %87, %cst_33 {dimension_numbers = #tpu.dot_dimension_numbers<[1], [1], [0], [0], [0, 0, 1, 0], [], []>} : vector<8x8xbf16>, vector<8x8xbf16>, vector<8x8xf32> -> vector<8x8xf32>
    %cst_34 = arith.constant 0.353553385 : f32
    %90 = vector.broadcast %cst_34 : f32 to vector<8x8xf32>
    %91 = arith.mulf %89, %90 : vector<8x8xf32>
    %92 = arith.addf %91, %14 : vector<8x8xf32>
    %cst_35 = arith.constant dense<0xFF800000> : vector<8xf32>
    %93 = vector.multi_reduction <maximumf>, %92, %cst_35 [1] : vector<8x8xf32> to vector<8xf32>
    %94 = vector.shape_cast %93 : vector<8xf32> to vector<8x1xf32>
    %95 = vector.broadcast %94 : vector<8x1xf32> to vector<8x8xf32>
    %96 = arith.subf %92, %95 : vector<8x8xf32>
    %97 = math.exp %96 : vector<8x8xf32>
    %cst_36 = arith.constant dense<0.000000e+00> : vector<8xf32>
    %98 = vector.multi_reduction <add>, %97, %cst_36 [1] : vector<8x8xf32> to vector<8xf32>
    %99 = vector.shape_cast %98 : vector<8xf32> to vector<8x1xf32>
    %100 = tpu.reciprocal %99 {approx = true} : vector<8x1xf32> -> vector<8x1xf32>
    %101 = vector.broadcast %100 : vector<8x1xf32> to vector<8x8xf32>
    %102 = arith.mulf %97, %101 : vector<8x8xf32>
    %103 = arith.truncf %102 : vector<8x8xf32> to vector<8x8xbf16>
    %cst_37 = arith.constant dense<0.000000e+00> : vector<8x8xf32>
    %104 = tpu.matmul %103, %88, %cst_37 {dimension_numbers = #tpu.dot_dimension_numbers<[1], [0], [0], [1], [0, 0, 1, 1], [], []>} : vector<8x8xbf16>, vector<8x8xbf16>, vector<8x8xf32> -> vector<8x8xf32>
    %105 = arith.truncf %104 : vector<8x8xf32> to vector<8x8xbf16>
    %106 = vector.extract_strided_slice %15 {offsets = [24, 0], sizes = [8, 32], strides = [1, 1]} : vector<32x32xbf16> to vector<8x32xbf16>
    %cst_38 = arith.constant dense<0.000000e+00> : vector<8x32xf32>
    %107 = tpu.matmul %105, %106, %cst_38 {dimension_numbers = #tpu.dot_dimension_numbers<[1], [0], [0], [1], [0, 0, 1, 1], [], []>} : vector<8x8xbf16>, vector<8x32xbf16>, vector<8x32xf32> -> vector<8x32xf32>
    %108 = arith.addf %85, %107 : vector<8x32xf32>
    %c0_39 = arith.constant 0 : index
    %c0_40 = arith.constant 0 : index
    %109 = vector.load %arg8[%c0_39, %c0_40] : memref<1x32xf32, #tpu.memory_space<vmem>>, vector<1x32xf32>
    %110 = vector.broadcast %109 : vector<1x32xf32> to vector<8x32xf32>
    %111 = arith.addf %108, %110 : vector<8x32xf32>
    %112 = arith.extf %1 : vector<8x32xbf16> to vector<8x32xf32>
    %113 = arith.addf %112, %111 : vector<8x32xf32>
    %cst_41 = arith.constant dense<0.000000e+00> : vector<8xf32>
    %114 = vector.multi_reduction <add>, %113, %cst_41 [1] : vector<8x32xf32> to vector<8xf32>
    %115 = vector.shape_cast %114 : vector<8xf32> to vector<8x1xf32>
    %cst_42 = arith.constant 3.200000e+01 : f32
    %116 = vector.broadcast %cst_42 : f32 to vector<8x1xf32>
    %117 = arith.divf %115, %116 : vector<8x1xf32>
    %118 = vector.broadcast %117 : vector<8x1xf32> to vector<8x32xf32>
    %119 = arith.subf %113, %118 : vector<8x32xf32>
    %120 = vector.broadcast %117 : vector<8x1xf32> to vector<8x32xf32>
    %121 = arith.subf %113, %120 : vector<8x32xf32>
    %122 = arith.mulf %119, %121 : vector<8x32xf32>
    %cst_43 = arith.constant dense<0.000000e+00> : vector<8xf32>
    %123 = vector.multi_reduction <add>, %122, %cst_43 [1] : vector<8x32xf32> to vector<8xf32>
    %124 = vector.shape_cast %123 : vector<8xf32> to vector<8x1xf32>
    %cst_44 = arith.constant 3.200000e+01 : f32
    %125 = vector.broadcast %cst_44 : f32 to vector<8x1xf32>
    %126 = arith.divf %124, %125 : vector<8x1xf32>
    %127 = vector.broadcast %117 : vector<8x1xf32> to vector<8x32xf32>
    %128 = arith.subf %113, %127 : vector<8x32xf32>
    %cst_45 = arith.constant 9.99999974E-6 : f32
    %129 = vector.broadcast %cst_45 : f32 to vector<8x1xf32>
    %130 = arith.addf %126, %129 : vector<8x1xf32>
    %131 = math.rsqrt %130 : vector<8x1xf32>
    %132 = vector.broadcast %131 : vector<8x1xf32> to vector<8x32xf32>
    %133 = arith.mulf %128, %132 : vector<8x32xf32>
    %c0_46 = arith.constant 0 : index
    %c0_47 = arith.constant 0 : index
    %134 = vector.load %arg9[%c0_46, %c0_47] : memref<1x32xf32, #tpu.memory_space<vmem>>, vector<1x32xf32>
    %135 = vector.broadcast %134 : vector<1x32xf32> to vector<8x32xf32>
    %136 = arith.mulf %133, %135 : vector<8x32xf32>
    %c0_48 = arith.constant 0 : index
    %c0_49 = arith.constant 0 : index
    %137 = vector.load %arg10[%c0_48, %c0_49] : memref<1x32xf32, #tpu.memory_space<vmem>>, vector<1x32xf32>
    %138 = vector.broadcast %137 : vector<1x32xf32> to vector<8x32xf32>
    %139 = arith.addf %136, %138 : vector<8x32xf32>
    %140 = arith.truncf %139 : vector<8x32xf32> to vector<8x32xbf16>
    %c0_50 = arith.constant 0 : index
    %c0_51 = arith.constant 0 : index
    %141 = vector.load %arg11[%c0_50, %c0_51] : memref<32x32xbf16, #tpu.memory_space<vmem>>, vector<32x32xbf16>
    %cst_52 = arith.constant dense<0.000000e+00> : vector<8x32xf32>
    %142 = tpu.matmul %140, %141, %cst_52 {dimension_numbers = #tpu.dot_dimension_numbers<[1], [0], [0], [1], [0, 0, 1, 1], [], []>} : vector<8x32xbf16>, vector<32x32xbf16>, vector<8x32xf32> -> vector<8x32xf32>
    %c0_53 = arith.constant 0 : index
    %c0_54 = arith.constant 0 : index
    %143 = vector.load %arg12[%c0_53, %c0_54] : memref<1x32xf32, #tpu.memory_space<vmem>>, vector<1x32xf32>
    %144 = vector.broadcast %143 : vector<1x32xf32> to vector<8x32xf32>
    %145 = arith.addf %142, %144 : vector<8x32xf32>
    %146 = arith.truncf %145 : vector<8x32xf32> to vector<8x32xbf16>
    %c0_55 = arith.constant 0 : index
    %c0_56 = arith.constant 0 : index
    %147 = vector.load %arg13[%c0_55, %c0_56] : memref<32x64xbf16, #tpu.memory_space<vmem>>, vector<32x64xbf16>
    %cst_57 = arith.constant dense<0.000000e+00> : vector<8x64xf32>
    %148 = tpu.matmul %3, %147, %cst_57 {dimension_numbers = #tpu.dot_dimension_numbers<[1], [0], [0], [1], [0, 0, 1, 1], [], []>} : vector<8x32xbf16>, vector<32x64xbf16>, vector<8x64xf32> -> vector<8x64xf32>
    %c0_58 = arith.constant 0 : index
    %c0_59 = arith.constant 0 : index
    %149 = vector.load %arg14[%c0_58, %c0_59] : memref<1x64xf32, #tpu.memory_space<vmem>>, vector<1x64xf32>
    %150 = vector.broadcast %149 : vector<1x64xf32> to vector<8x64xf32>
    %151 = arith.addf %148, %150 : vector<8x64xf32>
    %152 = arith.truncf %151 : vector<8x64xf32> to vector<8x64xbf16>
    %153 = vector.extract_strided_slice %152 {offsets = [0, 0], sizes = [8, 32], strides = [1, 1]} : vector<8x64xbf16> to vector<8x32xbf16>
    %154 = vector.extract_strided_slice %152 {offsets = [0, 32], sizes = [8, 32], strides = [1, 1]} : vector<8x64xbf16> to vector<8x32xbf16>
    %c0_60 = arith.constant 0 : index
    %c0_61 = arith.constant 0 : index
    %c0_62 = arith.constant 0 : index
    %155 = vector.load %arg4[%c0_60, %c0_61, %c0_62] : memref<1x8x8xf32, #tpu.memory_space<vmem>>, vector<1x8x8xf32>
    %156 = vector.shape_cast %155 : vector<1x8x8xf32> to vector<8x8xf32>
    %c0_63 = arith.constant 0 : index
    %c0_64 = arith.constant 0 : index
    %157 = vector.load %arg15[%c0_63, %c0_64] : memref<32x32xbf16, #tpu.memory_space<vmem>>, vector<32x32xbf16>
    %cst_65 = arith.constant 0.000000e+00 : f32
    %158 = vector.broadcast %cst_65 : f32 to vector<8x32xf32>
    %159 = vector.extract_strided_slice %146 {offsets = [0, 0], sizes = [8, 8], strides = [1, 1]} : vector<8x32xbf16> to vector<8x8xbf16>
    %160 = vector.extract_strided_slice %153 {offsets = [0, 0], sizes = [8, 8], strides = [1, 1]} : vector<8x32xbf16> to vector<8x8xbf16>
    %161 = vector.extract_strided_slice %154 {offsets = [0, 0], sizes = [8, 8], strides = [1, 1]} : vector<8x32xbf16> to vector<8x8xbf16>
    %cst_66 = arith.constant dense<0.000000e+00> : vector<8x8xf32>
    %162 = tpu.matmul %159, %160, %cst_66 {dimension_numbers = #tpu.dot_dimension_numbers<[1], [1], [0], [0], [0, 0, 1, 0], [], []>} : vector<8x8xbf16>, vector<8x8xbf16>, vector<8x8xf32> -> vector<8x8xf32>
    %cst_67 = arith.constant 0.353553385 : f32
    %163 = vector.broadcast %cst_67 : f32 to vector<8x8xf32>
    %164 = arith.mulf %162, %163 : vector<8x8xf32>
    %165 = arith.addf %164, %156 : vector<8x8xf32>
    %cst_68 = arith.constant dense<0xFF800000> : vector<8xf32>
    %166 = vector.multi_reduction <maximumf>, %165, %cst_68 [1] : vector<8x8xf32> to vector<8xf32>
    %167 = vector.shape_cast %166 : vector<8xf32> to vector<8x1xf32>
    %168 = vector.broadcast %167 : vector<8x1xf32> to vector<8x8xf32>
    %169 = arith.subf %165, %168 : vector<8x8xf32>
    %170 = math.exp %169 : vector<8x8xf32>
    %cst_69 = arith.constant dense<0.000000e+00> : vector<8xf32>
    %171 = vector.multi_reduction <add>, %170, %cst_69 [1] : vector<8x8xf32> to vector<8xf32>
    %172 = vector.shape_cast %171 : vector<8xf32> to vector<8x1xf32>
    %173 = tpu.reciprocal %172 {approx = true} : vector<8x1xf32> -> vector<8x1xf32>
    %174 = vector.broadcast %173 : vector<8x1xf32> to vector<8x8xf32>
    %175 = arith.mulf %170, %174 : vector<8x8xf32>
    %176 = arith.truncf %175 : vector<8x8xf32> to vector<8x8xbf16>
    %cst_70 = arith.constant dense<0.000000e+00> : vector<8x8xf32>
    %177 = tpu.matmul %176, %161, %cst_70 {dimension_numbers = #tpu.dot_dimension_numbers<[1], [0], [0], [1], [0, 0, 1, 1], [], []>} : vector<8x8xbf16>, vector<8x8xbf16>, vector<8x8xf32> -> vector<8x8xf32>
    %178 = arith.truncf %177 : vector<8x8xf32> to vector<8x8xbf16>
    %179 = vector.extract_strided_slice %157 {offsets = [0, 0], sizes = [8, 32], strides = [1, 1]} : vector<32x32xbf16> to vector<8x32xbf16>
    %cst_71 = arith.constant dense<0.000000e+00> : vector<8x32xf32>
    %180 = tpu.matmul %178, %179, %cst_71 {dimension_numbers = #tpu.dot_dimension_numbers<[1], [0], [0], [1], [0, 0, 1, 1], [], []>} : vector<8x8xbf16>, vector<8x32xbf16>, vector<8x32xf32> -> vector<8x32xf32>
    %181 = arith.addf %158, %180 : vector<8x32xf32>
    %182 = vector.extract_strided_slice %146 {offsets = [0, 8], sizes = [8, 8], strides = [1, 1]} : vector<8x32xbf16> to vector<8x8xbf16>
    %183 = vector.extract_strided_slice %153 {offsets = [0, 8], sizes = [8, 8], strides = [1, 1]} : vector<8x32xbf16> to vector<8x8xbf16>
    %184 = vector.extract_strided_slice %154 {offsets = [0, 8], sizes = [8, 8], strides = [1, 1]} : vector<8x32xbf16> to vector<8x8xbf16>
    %cst_72 = arith.constant dense<0.000000e+00> : vector<8x8xf32>
    %185 = tpu.matmul %182, %183, %cst_72 {dimension_numbers = #tpu.dot_dimension_numbers<[1], [1], [0], [0], [0, 0, 1, 0], [], []>} : vector<8x8xbf16>, vector<8x8xbf16>, vector<8x8xf32> -> vector<8x8xf32>
    %cst_73 = arith.constant 0.353553385 : f32
    %186 = vector.broadcast %cst_73 : f32 to vector<8x8xf32>
    %187 = arith.mulf %185, %186 : vector<8x8xf32>
    %188 = arith.addf %187, %156 : vector<8x8xf32>
    %cst_74 = arith.constant dense<0xFF800000> : vector<8xf32>
    %189 = vector.multi_reduction <maximumf>, %188, %cst_74 [1] : vector<8x8xf32> to vector<8xf32>
    %190 = vector.shape_cast %189 : vector<8xf32> to vector<8x1xf32>
    %191 = vector.broadcast %190 : vector<8x1xf32> to vector<8x8xf32>
    %192 = arith.subf %188, %191 : vector<8x8xf32>
    %193 = math.exp %192 : vector<8x8xf32>
    %cst_75 = arith.constant dense<0.000000e+00> : vector<8xf32>
    %194 = vector.multi_reduction <add>, %193, %cst_75 [1] : vector<8x8xf32> to vector<8xf32>
    %195 = vector.shape_cast %194 : vector<8xf32> to vector<8x1xf32>
    %196 = tpu.reciprocal %195 {approx = true} : vector<8x1xf32> -> vector<8x1xf32>
    %197 = vector.broadcast %196 : vector<8x1xf32> to vector<8x8xf32>
    %198 = arith.mulf %193, %197 : vector<8x8xf32>
    %199 = arith.truncf %198 : vector<8x8xf32> to vector<8x8xbf16>
    %cst_76 = arith.constant dense<0.000000e+00> : vector<8x8xf32>
    %200 = tpu.matmul %199, %184, %cst_76 {dimension_numbers = #tpu.dot_dimension_numbers<[1], [0], [0], [1], [0, 0, 1, 1], [], []>} : vector<8x8xbf16>, vector<8x8xbf16>, vector<8x8xf32> -> vector<8x8xf32>
    %201 = arith.truncf %200 : vector<8x8xf32> to vector<8x8xbf16>
    %202 = vector.extract_strided_slice %157 {offsets = [8, 0], sizes = [8, 32], strides = [1, 1]} : vector<32x32xbf16> to vector<8x32xbf16>
    %cst_77 = arith.constant dense<0.000000e+00> : vector<8x32xf32>
    %203 = tpu.matmul %201, %202, %cst_77 {dimension_numbers = #tpu.dot_dimension_numbers<[1], [0], [0], [1], [0, 0, 1, 1], [], []>} : vector<8x8xbf16>, vector<8x32xbf16>, vector<8x32xf32> -> vector<8x32xf32>
    %204 = arith.addf %181, %203 : vector<8x32xf32>
    %205 = vector.extract_strided_slice %146 {offsets = [0, 16], sizes = [8, 8], strides = [1, 1]} : vector<8x32xbf16> to vector<8x8xbf16>
    %206 = vector.extract_strided_slice %153 {offsets = [0, 16], sizes = [8, 8], strides = [1, 1]} : vector<8x32xbf16> to vector<8x8xbf16>
    %207 = vector.extract_strided_slice %154 {offsets = [0, 16], sizes = [8, 8], strides = [1, 1]} : vector<8x32xbf16> to vector<8x8xbf16>
    %cst_78 = arith.constant dense<0.000000e+00> : vector<8x8xf32>
    %208 = tpu.matmul %205, %206, %cst_78 {dimension_numbers = #tpu.dot_dimension_numbers<[1], [1], [0], [0], [0, 0, 1, 0], [], []>} : vector<8x8xbf16>, vector<8x8xbf16>, vector<8x8xf32> -> vector<8x8xf32>
    %cst_79 = arith.constant 0.353553385 : f32
    %209 = vector.broadcast %cst_79 : f32 to vector<8x8xf32>
    %210 = arith.mulf %208, %209 : vector<8x8xf32>
    %211 = arith.addf %210, %156 : vector<8x8xf32>
    %cst_80 = arith.constant dense<0xFF800000> : vector<8xf32>
    %212 = vector.multi_reduction <maximumf>, %211, %cst_80 [1] : vector<8x8xf32> to vector<8xf32>
    %213 = vector.shape_cast %212 : vector<8xf32> to vector<8x1xf32>
    %214 = vector.broadcast %213 : vector<8x1xf32> to vector<8x8xf32>
    %215 = arith.subf %211, %214 : vector<8x8xf32>
    %216 = math.exp %215 : vector<8x8xf32>
    %cst_81 = arith.constant dense<0.000000e+00> : vector<8xf32>
    %217 = vector.multi_reduction <add>, %216, %cst_81 [1] : vector<8x8xf32> to vector<8xf32>
    %218 = vector.shape_cast %217 : vector<8xf32> to vector<8x1xf32>
    %219 = tpu.reciprocal %218 {approx = true} : vector<8x1xf32> -> vector<8x1xf32>
    %220 = vector.broadcast %219 : vector<8x1xf32> to vector<8x8xf32>
    %221 = arith.mulf %216, %220 : vector<8x8xf32>
    %222 = arith.truncf %221 : vector<8x8xf32> to vector<8x8xbf16>
    %cst_82 = arith.constant dense<0.000000e+00> : vector<8x8xf32>
    %223 = tpu.matmul %222, %207, %cst_82 {dimension_numbers = #tpu.dot_dimension_numbers<[1], [0], [0], [1], [0, 0, 1, 1], [], []>} : vector<8x8xbf16>, vector<8x8xbf16>, vector<8x8xf32> -> vector<8x8xf32>
    %224 = arith.truncf %223 : vector<8x8xf32> to vector<8x8xbf16>
    %225 = vector.extract_strided_slice %157 {offsets = [16, 0], sizes = [8, 32], strides = [1, 1]} : vector<32x32xbf16> to vector<8x32xbf16>
    %cst_83 = arith.constant dense<0.000000e+00> : vector<8x32xf32>
    %226 = tpu.matmul %224, %225, %cst_83 {dimension_numbers = #tpu.dot_dimension_numbers<[1], [0], [0], [1], [0, 0, 1, 1], [], []>} : vector<8x8xbf16>, vector<8x32xbf16>, vector<8x32xf32> -> vector<8x32xf32>
    %227 = arith.addf %204, %226 : vector<8x32xf32>
    %228 = vector.extract_strided_slice %146 {offsets = [0, 24], sizes = [8, 8], strides = [1, 1]} : vector<8x32xbf16> to vector<8x8xbf16>
    %229 = vector.extract_strided_slice %153 {offsets = [0, 24], sizes = [8, 8], strides = [1, 1]} : vector<8x32xbf16> to vector<8x8xbf16>
    %230 = vector.extract_strided_slice %154 {offsets = [0, 24], sizes = [8, 8], strides = [1, 1]} : vector<8x32xbf16> to vector<8x8xbf16>
    %cst_84 = arith.constant dense<0.000000e+00> : vector<8x8xf32>
    %231 = tpu.matmul %228, %229, %cst_84 {dimension_numbers = #tpu.dot_dimension_numbers<[1], [1], [0], [0], [0, 0, 1, 0], [], []>} : vector<8x8xbf16>, vector<8x8xbf16>, vector<8x8xf32> -> vector<8x8xf32>
    %cst_85 = arith.constant 0.353553385 : f32
    %232 = vector.broadcast %cst_85 : f32 to vector<8x8xf32>
    %233 = arith.mulf %231, %232 : vector<8x8xf32>
    %234 = arith.addf %233, %156 : vector<8x8xf32>
    %cst_86 = arith.constant dense<0xFF800000> : vector<8xf32>
    %235 = vector.multi_reduction <maximumf>, %234, %cst_86 [1] : vector<8x8xf32> to vector<8xf32>
    %236 = vector.shape_cast %235 : vector<8xf32> to vector<8x1xf32>
    %237 = vector.broadcast %236 : vector<8x1xf32> to vector<8x8xf32>
    %238 = arith.subf %234, %237 : vector<8x8xf32>
    %239 = math.exp %238 : vector<8x8xf32>
    %cst_87 = arith.constant dense<0.000000e+00> : vector<8xf32>
    %240 = vector.multi_reduction <add>, %239, %cst_87 [1] : vector<8x8xf32> to vector<8xf32>
    %241 = vector.shape_cast %240 : vector<8xf32> to vector<8x1xf32>
    %242 = tpu.reciprocal %241 {approx = true} : vector<8x1xf32> -> vector<8x1xf32>
    %243 = vector.broadcast %242 : vector<8x1xf32> to vector<8x8xf32>
    %244 = arith.mulf %239, %243 : vector<8x8xf32>
    %245 = arith.truncf %244 : vector<8x8xf32> to vector<8x8xbf16>
    %cst_88 = arith.constant dense<0.000000e+00> : vector<8x8xf32>
    %246 = tpu.matmul %245, %230, %cst_88 {dimension_numbers = #tpu.dot_dimension_numbers<[1], [0], [0], [1], [0, 0, 1, 1], [], []>} : vector<8x8xbf16>, vector<8x8xbf16>, vector<8x8xf32> -> vector<8x8xf32>
    %247 = arith.truncf %246 : vector<8x8xf32> to vector<8x8xbf16>
    %248 = vector.extract_strided_slice %157 {offsets = [24, 0], sizes = [8, 32], strides = [1, 1]} : vector<32x32xbf16> to vector<8x32xbf16>
    %cst_89 = arith.constant dense<0.000000e+00> : vector<8x32xf32>
    %249 = tpu.matmul %247, %248, %cst_89 {dimension_numbers = #tpu.dot_dimension_numbers<[1], [0], [0], [1], [0, 0, 1, 1], [], []>} : vector<8x8xbf16>, vector<8x32xbf16>, vector<8x32xf32> -> vector<8x32xf32>
    %250 = arith.addf %227, %249 : vector<8x32xf32>
    %c0_90 = arith.constant 0 : index
    %c0_91 = arith.constant 0 : index
    %251 = vector.load %arg16[%c0_90, %c0_91] : memref<1x32xf32, #tpu.memory_space<vmem>>, vector<1x32xf32>
    %252 = vector.broadcast %251 : vector<1x32xf32> to vector<8x32xf32>
    %253 = arith.addf %250, %252 : vector<8x32xf32>
    %254 = arith.addf %139, %253 : vector<8x32xf32>
    %cst_92 = arith.constant dense<0.000000e+00> : vector<8xf32>
    %255 = vector.multi_reduction <add>, %254, %cst_92 [1] : vector<8x32xf32> to vector<8xf32>
    %256 = vector.shape_cast %255 : vector<8xf32> to vector<8x1xf32>
    %cst_93 = arith.constant 3.200000e+01 : f32
    %257 = vector.broadcast %cst_93 : f32 to vector<8x1xf32>
    %258 = arith.divf %256, %257 : vector<8x1xf32>
    %259 = vector.broadcast %258 : vector<8x1xf32> to vector<8x32xf32>
    %260 = arith.subf %254, %259 : vector<8x32xf32>
    %261 = vector.broadcast %258 : vector<8x1xf32> to vector<8x32xf32>
    %262 = arith.subf %254, %261 : vector<8x32xf32>
    %263 = arith.mulf %260, %262 : vector<8x32xf32>
    %cst_94 = arith.constant dense<0.000000e+00> : vector<8xf32>
    %264 = vector.multi_reduction <add>, %263, %cst_94 [1] : vector<8x32xf32> to vector<8xf32>
    %265 = vector.shape_cast %264 : vector<8xf32> to vector<8x1xf32>
    %cst_95 = arith.constant 3.200000e+01 : f32
    %266 = vector.broadcast %cst_95 : f32 to vector<8x1xf32>
    %267 = arith.divf %265, %266 : vector<8x1xf32>
    %268 = vector.broadcast %258 : vector<8x1xf32> to vector<8x32xf32>
    %269 = arith.subf %254, %268 : vector<8x32xf32>
    %cst_96 = arith.constant 9.99999974E-6 : f32
    %270 = vector.broadcast %cst_96 : f32 to vector<8x1xf32>
    %271 = arith.addf %267, %270 : vector<8x1xf32>
    %272 = math.rsqrt %271 : vector<8x1xf32>
    %273 = vector.broadcast %272 : vector<8x1xf32> to vector<8x32xf32>
    %274 = arith.mulf %269, %273 : vector<8x32xf32>
    %c0_97 = arith.constant 0 : index
    %c0_98 = arith.constant 0 : index
    %275 = vector.load %arg17[%c0_97, %c0_98] : memref<1x32xf32, #tpu.memory_space<vmem>>, vector<1x32xf32>
    %276 = vector.broadcast %275 : vector<1x32xf32> to vector<8x32xf32>
    %277 = arith.mulf %274, %276 : vector<8x32xf32>
    %c0_99 = arith.constant 0 : index
    %c0_100 = arith.constant 0 : index
    %278 = vector.load %arg18[%c0_99, %c0_100] : memref<1x32xf32, #tpu.memory_space<vmem>>, vector<1x32xf32>
    %279 = vector.broadcast %278 : vector<1x32xf32> to vector<8x32xf32>
    %280 = arith.addf %277, %279 : vector<8x32xf32>
    %281 = arith.truncf %280 : vector<8x32xf32> to vector<8x32xbf16>
    %c0_101 = arith.constant 0 : index
    %c0_102 = arith.constant 0 : index
    %282 = vector.load %arg19[%c0_101, %c0_102] : memref<32x64xbf16, #tpu.memory_space<vmem>>, vector<32x64xbf16>
    %cst_103 = arith.constant dense<0.000000e+00> : vector<8x64xf32>
    %283 = tpu.matmul %281, %282, %cst_103 {dimension_numbers = #tpu.dot_dimension_numbers<[1], [0], [0], [1], [0, 0, 1, 1], [], []>} : vector<8x32xbf16>, vector<32x64xbf16>, vector<8x64xf32> -> vector<8x64xf32>
    %c0_104 = arith.constant 0 : index
    %c0_105 = arith.constant 0 : index
    %284 = vector.load %arg20[%c0_104, %c0_105] : memref<1x64xf32, #tpu.memory_space<vmem>>, vector<1x64xf32>
    %285 = vector.broadcast %284 : vector<1x64xf32> to vector<8x64xf32>
    %286 = arith.addf %283, %285 : vector<8x64xf32>
    %cst_106 = arith.constant 0.000000e+00 : f32
    %287 = vector.broadcast %cst_106 : f32 to vector<8x64xf32>
    %288 = arith.maximumf %286, %287 : vector<8x64xf32>
    %289 = arith.truncf %288 : vector<8x64xf32> to vector<8x64xbf16>
    %c0_107 = arith.constant 0 : index
    %c0_108 = arith.constant 0 : index
    %290 = vector.load %arg21[%c0_107, %c0_108] : memref<64x32xbf16, #tpu.memory_space<vmem>>, vector<64x32xbf16>
    %cst_109 = arith.constant dense<0.000000e+00> : vector<8x32xf32>
    %291 = tpu.matmul %289, %290, %cst_109 {dimension_numbers = #tpu.dot_dimension_numbers<[1], [0], [0], [1], [0, 0, 1, 1], [], []>} : vector<8x64xbf16>, vector<64x32xbf16>, vector<8x32xf32> -> vector<8x32xf32>
    %c0_110 = arith.constant 0 : index
    %c0_111 = arith.constant 0 : index
    %292 = vector.load %arg22[%c0_110, %c0_111] : memref<1x32xf32, #tpu.memory_space<vmem>>, vector<1x32xf32>
    %293 = vector.broadcast %292 : vector<1x32xf32> to vector<8x32xf32>
    %294 = arith.addf %291, %293 : vector<8x32xf32>
    %295 = arith.addf %280, %294 : vector<8x32xf32>
    %cst_112 = arith.constant dense<0.000000e+00> : vector<8xf32>
    %296 = vector.multi_reduction <add>, %295, %cst_112 [1] : vector<8x32xf32> to vector<8xf32>
    %297 = vector.shape_cast %296 : vector<8xf32> to vector<8x1xf32>
    %cst_113 = arith.constant 3.200000e+01 : f32
    %298 = vector.broadcast %cst_113 : f32 to vector<8x1xf32>
    %299 = arith.divf %297, %298 : vector<8x1xf32>
    %300 = vector.broadcast %299 : vector<8x1xf32> to vector<8x32xf32>
    %301 = arith.subf %295, %300 : vector<8x32xf32>
    %302 = vector.broadcast %299 : vector<8x1xf32> to vector<8x32xf32>
    %303 = arith.subf %295, %302 : vector<8x32xf32>
    %304 = arith.mulf %301, %303 : vector<8x32xf32>
    %cst_114 = arith.constant dense<0.000000e+00> : vector<8xf32>
    %305 = vector.multi_reduction <add>, %304, %cst_114 [1] : vector<8x32xf32> to vector<8xf32>
    %306 = vector.shape_cast %305 : vector<8xf32> to vector<8x1xf32>
    %cst_115 = arith.constant 3.200000e+01 : f32
    %307 = vector.broadcast %cst_115 : f32 to vector<8x1xf32>
    %308 = arith.divf %306, %307 : vector<8x1xf32>
    %309 = vector.broadcast %299 : vector<8x1xf32> to vector<8x32xf32>
    %310 = arith.subf %295, %309 : vector<8x32xf32>
    %cst_116 = arith.constant 9.99999974E-6 : f32
    %311 = vector.broadcast %cst_116 : f32 to vector<8x1xf32>
    %312 = arith.addf %308, %311 : vector<8x1xf32>
    %313 = math.rsqrt %312 : vector<8x1xf32>
    %314 = vector.broadcast %313 : vector<8x1xf32> to vector<8x32xf32>
    %315 = arith.mulf %310, %314 : vector<8x32xf32>
    %c0_117 = arith.constant 0 : index
    %c0_118 = arith.constant 0 : index
    %316 = vector.load %arg23[%c0_117, %c0_118] : memref<1x32xf32, #tpu.memory_space<vmem>>, vector<1x32xf32>
    %317 = vector.broadcast %316 : vector<1x32xf32> to vector<8x32xf32>
    %318 = arith.mulf %315, %317 : vector<8x32xf32>
    %c0_119 = arith.constant 0 : index
    %c0_120 = arith.constant 0 : index
    %319 = vector.load %arg24[%c0_119, %c0_120] : memref<1x32xf32, #tpu.memory_space<vmem>>, vector<1x32xf32>
    %320 = vector.broadcast %319 : vector<1x32xf32> to vector<8x32xf32>
    %321 = arith.addf %318, %320 : vector<8x32xf32>
    %322 = arith.truncf %321 : vector<8x32xf32> to vector<8x32xbf16>
    %c0_121 = arith.constant 0 : index
    %c0_122 = arith.constant 0 : index
    %c0_123 = arith.constant 0 : index
    %323 = vector.load %arg25[%c0_121, %c0_122, %c0_123] : memref<1x8x32xbf16, #tpu.memory_space<vmem>>, vector<1x8x32xbf16>
    %324 = vector.shape_cast %323 : vector<1x8x32xbf16> to vector<8x32xbf16>
    %325 = vector.shape_cast %322 : vector<8x32xbf16> to vector<1x8x32xbf16>
    tpu.vector_store %arg25[%c0_121, %c0_122, %c0_123], %325 {strides = array<i32>} : memref<1x8x32xbf16, #tpu.memory_space<vmem>>, vector<1x8x32xbf16>,
    return
  }
  func.func @transform_0(%arg0: i32) -> (i32, i32, i32) {
    %c0_i32 = arith.constant 0 : i32
    %c0_i32_0 = arith.constant 0 : i32
    %c0_i32_1 = arith.constant 0 : i32
    return %arg0, %c0_i32, %c0_i32_0 : i32, i32, i32
  }
  func.func @transform_1(%arg0: i32) -> (i32, i32, i32) {
    %c0_i32 = arith.constant 0 : i32
    %c0_i32_0 = arith.constant 0 : i32
    %c0_i32_1 = arith.constant 0 : i32
    return %arg0, %c0_i32, %c0_i32_0 : i32, i32, i32
  }
  func.func @transform_2(%arg0: i32) -> (i32, i32, i32) {
    %c0_i32 = arith.constant 0 : i32
    %c0_i32_0 = arith.constant 0 : i32
    %c0_i32_1 = arith.constant 0 : i32
    return %arg0, %c0_i32, %c0_i32_0 : i32, i32, i32
  }
  func.func @transform_3(%arg0: i32) -> (i32, i32, i32) {
    %c0_i32 = arith.constant 0 : i32
    %c0_i32_0 = arith.constant 0 : i32
    %c0_i32_1 = arith.constant 0 : i32
    return %arg0, %c0_i32, %c0_i32_0 : i32, i32, i32
  }
  func.func @transform_4(%arg0: i32) -> (i32, i32) {
    %c0_i32 = arith.constant 0 : i32
    %c0_i32_0 = arith.constant 0 : i32
    %c0_i32_1 = arith.constant 0 : i32
    return %c0_i32, %c0_i32_0 : i32, i32
  }
  func.func @transform_5(%arg0: i32) -> (i32, i32) {
    %c0_i32 = arith.constant 0 : i32
    %c0_i32_0 = arith.constant 0 : i32
    %c0_i32_1 = arith.constant 0 : i32
    return %c0_i32, %c0_i32_0 : i32, i32
  }
  func.func @transform_6(%arg0: i32) -> (i32, i32) {
    %c0_i32 = arith.constant 0 : i32
    %c0_i32_0 = arith.constant 0 : i32
    %c0_i32_1 = arith.constant 0 : i32
    return %c0_i32, %c0_i32_0 : i32, i32
  }
  func.func @transform_7(%arg0: i32) -> (i32, i32) {
    %c0_i32 = arith.constant 0 : i32
    %c0_i32_0 = arith.constant 0 : i32
    %c0_i32_1 = arith.constant 0 : i32
    return %c0_i32, %c0_i32_0 : i32, i32
  }
  func.func @transform_8(%arg0: i32) -> (i32, i32) {
    %c0_i32 = arith.constant 0 : i32
    %c0_i32_0 = arith.constant 0 : i32
    %c0_i32_1 = arith.constant 0 : i32
    return %c0_i32, %c0_i32_0 : i32, i32
  }
  func.func @transform_9(%arg0: i32) -> (i32, i32) {
    %c0_i32 = arith.constant 0 : i32
    %c0_i32_0 = arith.constant 0 : i32
    %c0_i32_1 = arith.constant 0 : i32
    return %c0_i32, %c0_i32_0 : i32, i32
  }
  func.func @transform_10(%arg0: i32) -> (i32, i32) {
    %c0_i32 = arith.constant 0 : i32
    %c0_i32_0 = arith.constant 0 : i32
    %c0_i32_1 = arith.constant 0 : i32
    return %c0_i32, %c0_i32_0 : i32, i32
  }
  func.func @transform_11(%arg0: i32) -> (i32, i32) {
    %c0_i32 = arith.constant 0 : i32
    %c0_i32_0 = arith.constant 0 : i32
    %c0_i32_1 = arith.constant 0 : i32
    return %c0_i32, %c0_i32_0 : i32, i32
  }
  func.func @transform_12(%arg0: i32) -> (i32, i32) {
    %c0_i32 = arith.constant 0 : i32
    %c0_i32_0 = arith.constant 0 : i32
    %c0_i32_1 = arith.constant 0 : i32
    return %c0_i32, %c0_i32_0 : i32, i32
  }
  func.func @transform_13(%arg0: i32) -> (i32, i32) {
    %c0_i32 = arith.constant 0 : i32
    %c0_i32_0 = arith.constant 0 : i32
    %c0_i32_1 = arith.constant 0 : i32
    return %c0_i32, %c0_i32_0 : i32, i32
  }
  func.func @transform_14(%arg0: i32) -> (i32, i32) {
    %c0_i32 = arith.constant 0 : i32
    %c0_i32_0 = arith.constant 0 : i32
    %c0_i32_1 = arith.constant 0 : i32
    return %c0_i32, %c0_i32_0 : i32, i32
  }
  func.func @transform_15(%arg0: i32) -> (i32, i32) {
    %c0_i32 = arith.constant 0 : i32
    %c0_i32_0 = arith.constant 0 : i32
    %c0_i32_1 = arith.constant 0 : i32
    return %c0_i32, %c0_i32_0 : i32, i32
  }
  func.func @transform_16(%arg0: i32) -> (i32, i32) {
    %c0_i32 = arith.constant 0 : i32
    %c0_i32_0 = arith.constant 0 : i32
    %c0_i32_1 = arith.constant 0 : i32
    return %c0_i32, %c0_i32_0 : i32, i32
  }
  func.func @transform_17(%arg0: i32) -> (i32, i32) {
    %c0_i32 = arith.constant 0 : i32
    %c0_i32_0 = arith.constant 0 : i32
    %c0_i32_1 = arith.constant 0 : i32
    return %c0_i32, %c0_i32_0 : i32, i32
  }
  func.func @transform_18(%arg0: i32) -> (i32, i32) {
    %c0_i32 = arith.constant 0 : i32
    %c0_i32_0 = arith.constant 0 : i32
    %c0_i32_1 = arith.constant 0 : i32
    return %c0_i32, %c0_i32_0 : i32, i32
  }
  func.func @transform_19(%arg0: i32) -> (i32, i32) {
    %c0_i32 = arith.constant 0 : i32
    %c0_i32_0 = arith.constant 0 : i32
    %c0_i32_1 = arith.constant 0 : i32
    return %c0_i32, %c0_i32_0 : i32, i32
  }
  func.func @transform_20(%arg0: i32) -> (i32, i32) {
    %c0_i32 = arith.constant 0 : i32
    %c0_i32_0 = arith.constant 0 : i32
    %c0_i32_1 = arith.constant 0 : i32
    return %c0_i32, %c0_i32_0 : i32, i32
  }
  func.func @transform_21(%arg0: i32) -> (i32, i32) {
    %c0_i32 = arith.constant 0 : i32
    %c0_i32_0 = arith.constant 0 : i32
    %c0_i32_1 = arith.constant 0 : i32
    return %c0_i32, %c0_i32_0 : i32, i32
  }
  func.func @transform_22(%arg0: i32) -> (i32, i32) {
    %c0_i32 = arith.constant 0 : i32
    %c0_i32_0 = arith.constant 0 : i32
    %c0_i32_1 = arith.constant 0 : i32
    return %c0_i32, %c0_i32_0 : i32, i32
  }
  func.func @transform_23(%arg0: i32) -> (i32, i32) {
    %c0_i32 = arith.constant 0 : i32
    %c0_i32_0 = arith.constant 0 : i32
    %c0_i32_1 = arith.constant 0 : i32
    return %c0_i32, %c0_i32_0 : i32, i32
  }
  func.func @transform_24(%arg0: i32) -> (i32, i32, i32) {
    %c0_i32 = arith.constant 0 : i32
    %c0_i32_0 = arith.constant 0 : i32
    %c0_i32_1 = arith.constant 0 : i32
    return %arg0, %c0_i32, %c0_i32_0 : i32, i32, i32
  }
}

</mosaic_0001>

<llo_original>
// kernel: decoder_forward.5
$region0: #{decoder_forward.5}
  #allocation0 [shape = 'u32[]', space=smem, size = 0x4, offset = 0x4, fixed_abs, tag = 'smem constant byte address 0x4 - core index']
  #allocation1 [shape = 'u32[144,128]{1,0:T(1,128)}', space=vmem, size = 0x12000, scoped, tag = 'internal scratch']
  %s0 = inlined_call_operand.vmem [shape: bf16[16,32], index: 0, kind: input, shape index: {}]
  %s1 = inlined_call_operand.vmem [shape: bf16[32,128], index: 1, kind: input, shape index: {}]
  %s2 = inlined_call_operand.vmem [shape: f32[1,128], index: 2, kind: input, shape index: {}]
  %s3 = inlined_call_operand.vmem [shape: f32[16,128], index: 3, kind: output, shape index: {}]
  %s4 = sld [smem:[#allocation0]]
  $region22: #{decoder_forward.5} parent=0
    _
  %s6 = ssub.s32 1, %s4
  %s7 = scalar_select 0, %s6, %s4
  // Predicated region
  $region2: #{decoder_forward.5} parent=0 // pred_check
    _
  $region3: #{decoder_forward.5} parent=0 // pred_check_branch
    %9 = sbr.rel (0) target = $region5
  $region4: #{decoder_forward.5} parent=0 // pred_region
    _
  $region5: #{decoder_forward.5} parent=0 // pred_fallthru
    _
  // Predicated region
  $region6: #{decoder_forward.5} parent=0 // pred_check
    _
  $region7: #{decoder_forward.5} parent=0 // pred_check_branch
    %11 = sbr.rel (0) target = $region9
  $region8: #{decoder_forward.5} parent=0 // pred_region
    _
  $region9: #{decoder_forward.5} parent=0 // pred_fallthru
    _
  // Predicated region
  $region10: #{decoder_forward.5} parent=0 // pred_check
    _
  $region11: #{decoder_forward.5} parent=0 // pred_check_branch
    %13 = sbr.rel (0) target = $region13
  $region12: #{decoder_forward.5} parent=0 // pred_region
    _
  $region13: #{decoder_forward.5} parent=0 // pred_fallthru
    _
  %v15 = vld [vmem:[%s0] sm:$0xf]
  %v16 = vld [vmem:[%s0 + $0x4] sm:$0xf]
  %v17 = vld [vmem:[%s1] sm:$0xf]
  %v18 = vld [vmem:[%s1 + $0x4] sm:$0xf]
  %v19 = vld [vmem:[%s1 + $0x8] sm:$0xf]
  %v20 = vld [vmem:[%s1 + $0xc] sm:$0xf]
  %v21 = vld [vmem:[%s2] sm:$0x1]
  %v23 = vlaneseq
  %v24 = vshrl.u32 %v23, 7
  %v25 = vsub.s32 0, %v24
  %v26 = vrot.slane %v21, %v25
  %v30 = vunpack.c.l.b16 %v15
  %v31 = vunpack.c.l.b16 %v16
  %v32 = vpack.c.b16 %v31, %v30
  %v37 = vunpack.c.l.b16 %v17
  %v38 = vunpack.c.l.b16 %v18
  %v39 = vunpack.c.l.b16 %v19
  %v40 = vunpack.c.l.b16 %v20
  %v41 = vpack.c.b16 %v38, %v37
  %v42 = vpack.c.b16 %v40, %v39
  %vm45 = vcmask 261120
  %v47 = vsel %vm45, %v32, 0
  %49 = vmatprep.subr.bf16.mxu0 0
  %50 = vmatpush1.bf16.msra.mxu0 %v41
  %51 = vmatprep.subr.bf16.mxu0 0
  %52 = vmatpush1.bf16.msra.mxu0 %v42
  %53 = vmatprep.subr.bf16.mxu0 0
  %54 = vmatpush1.bf16.msra.mxu0 0
  %55 = vmatprep.subr.bf16.mxu0 0
  %56 = vmatpush1.bf16.msra.mxu0 0
  %57 = vmatprep.subr.bf16.mxu0 0
  %58 = vmatpush1.bf16.msra.mxu0 0
  %59 = vmatprep.subr.bf16.mxu0 0
  %60 = vmatpush1.bf16.msra.mxu0 0
  %61 = vmatprep.subr.bf16.mxu0 0
  %62 = vmatpush1.bf16.msra.mxu0 0
  %63 = vmatprep.subr.bf16.mxu0 0
  %64 = vmatpush1.bf16.msra.mxu0 0
  %65 = vmatprep.subr.bf16.mxu0 0
  %66 = vmatpush1.bf16.msra.mxu0 0
  %67 = vmatprep.subr.bf16.mxu0 0
  %68 = vmatpush1.bf16.msra.mxu0 0
  %69 = vmatprep.subr.bf16.mxu0 0
  %70 = vmatpush1.bf16.msra.mxu0 0
  %71 = vmatprep.subr.bf16.mxu0 0
  %72 = vmatpush1.bf16.msra.mxu0 0
  %73 = vmatprep.subr.bf16.mxu0 0
  %74 = vmatpush1.bf16.msra.mxu0 0
  %75 = vmatprep.subr.bf16.mxu0 0
  %76 = vmatpush1.bf16.msra.mxu0 0
  %77 = vmatprep.subr.bf16.mxu0 0
  %78 = vmatpush1.bf16.msra.mxu0 0
  %79 = vmatprep.subr.bf16.mxu0 0
  %80 = vmatpush1.bf16.msra.mxu0 0
  %81 = vmatprep.mubr.bf16.mxu0 0
  %82 = vmatmul.mubr.bf16.gmra.mrb[0].mxu0 %v47
  %v83 = vpop.f32.mrb[0].mxu0
  %v84 = vadd.f32 %v26, %v83
  %v85 = vpop.f32.mrb[0].mxu0
  %v86 = vpop.f32.mrb[0].mxu0
  %v87 = vadd.f32 %v26, %v86
  %v88 = vpop.f32.mrb[0].mxu0
  %89 = vdwg.mxu0
  %90 = vst [vmem:[%s3] sm:$0xff] %v84
  %91 = vst [vmem:[%s3 + $0x8] sm:$0xff] %v87
  // Predicated region
  $region14: #{decoder_forward.5} parent=0 // pred_check
    _
  $region15: #{decoder_forward.5} parent=0 // pred_check_branch
    %93 = sbr.rel (0) target = $region17
  $region16: #{decoder_forward.5} parent=0 // pred_region
    _
  $region17: #{decoder_forward.5} parent=0 // pred_fallthru
    _
  // Predicated region
  $region18: #{decoder_forward.5} parent=0 // pred_check
    _
  $region19: #{decoder_forward.5} parent=0 // pred_check_branch
    %95 = sbr.rel (0) target = $region21
  $region20: #{decoder_forward.5} parent=0 // pred_region
    _
  $region21: #{decoder_forward.5} parent=0 // pred_fallthru
    _

// kernel: decoder_forward.3
$region0: #{decoder_forward.3}
  #allocation0 [shape = 'u32[]', space=smem, size = 0x4, offset = 0x4, fixed_abs, tag = 'smem constant byte address 0x4 - core index']
  #allocation1 [shape = 'u32[144,128]{1,0:T(1,128)}', space=vmem, size = 0x12000, scoped, tag = 'internal scratch']
  %s0 = inlined_call_operand.vmem [shape: bf16[2,8,32], index: 0, kind: input, shape index: {}]
  %s1 = inlined_call_operand.vmem [shape: bf16[2,8,32], index: 1, kind: input, shape index: {}]
  %s2 = inlined_call_operand.vmem [shape: f32[2,8,8], index: 2, kind: input, shape index: {}]
  %s3 = inlined_call_operand.vmem [shape: f32[2,8,8], index: 3, kind: input, shape index: {}]
  %s4 = inlined_call_operand.vmem [shape: bf16[32,96], index: 4, kind: input, shape index: {}]
  %s5 = inlined_call_operand.vmem [shape: f32[1,96], index: 5, kind: input, shape index: {}]
  %s6 = inlined_call_operand.vmem [shape: bf16[32,32], index: 6, kind: input, shape index: {}]
  %s7 = inlined_call_operand.vmem [shape: f32[1,32], index: 7, kind: input, shape index: {}]
  %s8 = inlined_call_operand.vmem [shape: f32[1,32], index: 8, kind: input, shape index: {}]
  %s9 = inlined_call_operand.vmem [shape: f32[1,32], index: 9, kind: input, shape index: {}]
  %s10 = inlined_call_operand.vmem [shape: bf16[32,32], index: 10, kind: input, shape index: {}]
  %s11 = inlined_call_operand.vmem [shape: f32[1,32], index: 11, kind: input, shape index: {}]
  %s12 = inlined_call_operand.vmem [shape: bf16[32,64], index: 12, kind: input, shape index: {}]
  %s13 = inlined_call_operand.vmem [shape: f32[1,64], index: 13, kind: input, shape index: {}]
  %s14 = inlined_call_operand.vmem [shape: bf16[32,32], index: 14, kind: input, shape index: {}]
  %s15 = inlined_call_operand.vmem [shape: f32[1,32], index: 15, kind: input, shape index: {}]
  %s16 = inlined_call_operand.vmem [shape: f32[1,32], index: 16, kind: input, shape index: {}]
  %s17 = inlined_call_operand.vmem [shape: f32[1,32], index: 17, kind: input, shape index: {}]
  %s18 = inlined_call_operand.vmem [shape: bf16[32,64], index: 18, kind: input, shape index: {}]
  %s19 = inlined_call_operand.vmem [shape: f32[1,64], index: 19, kind: input, shape index: {}]
  %s20 = inlined_call_operand.vmem [shape: bf16[64,32], index: 20, kind: input, shape index: {}]
  %s21 = inlined_call_operand.vmem [shape: f32[1,32], index: 21, kind: input, shape index: {}]
  %s22 = inlined_call_operand.vmem [shape: f32[1,32], index: 22, kind: input, shape index: {}]
  %s23 = inlined_call_operand.vmem [shape: f32[1,32], index: 23, kind: input, shape index: {}]
  %s24 = inlined_call_operand.vmem [shape: bf16[2,8,32], index: 24, kind: output, shape index: {}]
  %s25 = sld [smem:[#allocation0]]
  $region129: #{decoder_forward.3} parent=0
    _
  %s27 = ssub.s32 1, %s25
  %s28 = scalar_select 0, %s27, %s25
  loop: start=0, step=1, limit=4
  $region2: #{decoder_forward.3} parent=0 // loop_pre_header
    _
  $region3: #{decoder_forward.3} parent=0 // loop_header
    %s30 = sphi 0, %s34
    %p31 = scmp.ge.s32.totalorder %s30, 4
    %s40 = sphi 0, %s42
    %s43 = sphi 0, %s40
    %s44 = sphi 0, %s43
    %s60 = sphi 0, %s44
    %s66 = sphi 0, %s68
    %s69 = sphi 0, %s66
    %s70 = sphi 0, %s69
    %s86 = sphi 0, %s70
    %s92 = sphi 0, %s94
    %s95 = sphi 0, %s92
    %s96 = sphi 0, %s95
    %s112 = sphi 0, %s96
    %s118 = sphi 0, %s120
    %s121 = sphi 0, %s118
    %s122 = sphi 0, %s121
    %s138 = sphi 0, %s122
    %s142 = sphi 0, %s142
    %s144 = sphi 0, %s142
    %s145 = sphi 0, %s144
    %s159 = sphi 0, %s145
    %s163 = sphi 0, %s163
    %s165 = sphi 0, %s163
    %s166 = sphi 0, %s165
    %s180 = sphi 0, %s166
    %s184 = sphi 0, %s184
    %s186 = sphi 0, %s184
    %s187 = sphi 0, %s186
    %s201 = sphi 0, %s187
    %s205 = sphi 0, %s205
    %s207 = sphi 0, %s205
    %s208 = sphi 0, %s207
    %s222 = sphi 0, %s208
    %s226 = sphi 0, %s226
    %s228 = sphi 0, %s226
    %s229 = sphi 0, %s228
    %s243 = sphi 0, %s229
    %s247 = sphi 0, %s247
    %s249 = sphi 0, %s247
    %s250 = sphi 0, %s249
    %s264 = sphi 0, %s250
    %s268 = sphi 0, %s268
    %s270 = sphi 0, %s268
    %s271 = sphi 0, %s270
    %s285 = sphi 0, %s271
    %s289 = sphi 0, %s289
    %s291 = sphi 0, %s289
    %s292 = sphi 0, %s291
    %s306 = sphi 0, %s292
    %s310 = sphi 0, %s310
    %s312 = sphi 0, %s310
    %s313 = sphi 0, %s312
    %s327 = sphi 0, %s313
    %s331 = sphi 0, %s331
    %s333 = sphi 0, %s331
    %s334 = sphi 0, %s333
    %s348 = sphi 0, %s334
    %s352 = sphi 0, %s352
    %s354 = sphi 0, %s352
    %s355 = sphi 0, %s354
    %s369 = sphi 0, %s355
    %s373 = sphi 0, %s373
    %s375 = sphi 0, %s373
    %s376 = sphi 0, %s375
    %s390 = sphi 0, %s376
    %s394 = sphi 0, %s394
    %s396 = sphi 0, %s394
    %s397 = sphi 0, %s396
    %s411 = sphi 0, %s397
    %s415 = sphi 0, %s415
    %s417 = sphi 0, %s415
    %s418 = sphi 0, %s417
    %s432 = sphi 0, %s418
    %s436 = sphi 0, %s436
    %s438 = sphi 0, %s436
    %s439 = sphi 0, %s438
    %s453 = sphi 0, %s439
    %s457 = sphi 0, %s457
    %s459 = sphi 0, %s457
    %s460 = sphi 0, %s459
    %s474 = sphi 0, %s460
    %s478 = sphi 0, %s478
    %s480 = sphi 0, %s478
    %s481 = sphi 0, %s480
    %s495 = sphi 0, %s481
    %s499 = sphi 0, %s499
    %s501 = sphi 0, %s499
    %s502 = sphi 0, %s501
    %s516 = sphi 0, %s502
    %s520 = sphi 0, %s520
    %s522 = sphi 0, %s520
    %s523 = sphi 0, %s522
    %s537 = sphi 0, %s523
    %s541 = sphi 0, %s541
    %s543 = sphi 0, %s541
    %s544 = sphi 0, %s543
    %s558 = sphi 0, %s544
    %s564 = sphi 0, %s566
    %s567 = sphi 0, %s564
    %s568 = sphi 0, %s567
    %s584 = sphi 0, %s568
  $region4: #{decoder_forward.3} parent=0 // loop_header_branch
    %33 = sbr.rel (%p31) target = $region8
  $region5: #{decoder_forward.3} parent=0 // loop_body
    %s35 = ssub.s32 %s30, 1
    %s36 = ssub.s32 %s30, 2
    %s37 = sadd.s32 %s30, 1
    %s38 = ssub.s32 %s30, %s37
    %p39 = scmp.eq.s32.totalorder %s38, 0
    %s41 = sadd.s32 %s40, 1
    %s42 = scalar_select %p39, %s40, %s41
    %p45 = pneg %p39
    %p46 = scmp.eq.s32.totalorder %s30, 1
    %p47 = por %p45, %p46
    %p48 = scmp.ne.s32.totalorder %s40, %s43
    %p49 = scmp.eq.s32.totalorder %s30, 0
    %p50 = por %p48, %p49
    %p51 = scmp.ne.s32.totalorder %s40, %s43
    %p52 = scmp.eq.s32.totalorder %s35, 1
    %p53 = por %p51, %p52
    %p54 = scmp.ne.s32.totalorder %s43, %s44
    %p55 = scmp.eq.s32.totalorder %s35, 0
    %p56 = por %p54, %p55
    %p57 = scmp.ne.s32.totalorder %s43, %s44
    %p58 = scmp.eq.s32.totalorder %s36, 1
    %p59 = por %p57, %p58
    %p61 = scmp.ne.s32.totalorder %s44, %s60
    %p62 = scmp.eq.s32.totalorder %s36, 0
    %p63 = por %p61, %p62
    %s64 = ssub.s32 %s30, %s37
    %p65 = scmp.eq.s32.totalorder %s64, 0
    %s67 = sadd.s32 %s66, 1
    %s68 = scalar_select %p65, %s66, %s67
    %p71 = pneg %p65
    %p72 = scmp.eq.s32.totalorder %s30, 1
    %p73 = por %p71, %p72
    %p74 = scmp.ne.s32.totalorder %s66, %s69
    %p75 = scmp.eq.s32.totalorder %s30, 0
    %p76 = por %p74, %p75
    %p77 = scmp.ne.s32.totalorder %s66, %s69
    %p78 = scmp.eq.s32.totalorder %s35, 1
    %p79 = por %p77, %p78
    %p80 = scmp.ne.s32.totalorder %s69, %s70
    %p81 = scmp.eq.s32.totalorder %s35, 0
    %p82 = por %p80, %p81
    %p83 = scmp.ne.s32.totalorder %s69, %s70
    %p84 = scmp.eq.s32.totalorder %s36, 1
    %p85 = por %p83, %p84
    %p87 = scmp.ne.s32.totalorder %s70, %s86
    %p88 = scmp.eq.s32.totalorder %s36, 0
    %p89 = por %p87, %p88
    %s90 = ssub.s32 %s30, %s37
    %p91 = scmp.eq.s32.totalorder %s90, 0
    %s93 = sadd.s32 %s92, 1
    %s94 = scalar_select %p91, %s92, %s93
    %p97 = pneg %p91
    %p98 = scmp.eq.s32.totalorder %s30, 1
    %p99 = por %p97, %p98
    %p100 = scmp.ne.s32.totalorder %s92, %s95
    %p101 = scmp.eq.s32.totalorder %s30, 0
    %p102 = por %p100, %p101
    %p103 = scmp.ne.s32.totalorder %s92, %s95
    %p104 = scmp.eq.s32.totalorder %s35, 1
    %p105 = por %p103, %p104
    %p106 = scmp.ne.s32.totalorder %s95, %s96
    %p107 = scmp.eq.s32.totalorder %s35, 0
    %p108 = por %p106, %p107
    %p109 = scmp.ne.s32.totalorder %s95, %s96
    %p110 = scmp.eq.s32.totalorder %s36, 1
    %p111 = por %p109, %p110
    %p113 = scmp.ne.s32.totalorder %s96, %s112
    %p114 = scmp.eq.s32.totalorder %s36, 0
    %p115 = por %p113, %p114
    %s116 = ssub.s32 %s30, %s37
    %p117 = scmp.eq.s32.totalorder %s116, 0
    %s119 = sadd.s32 %s118, 1
    %s120 = scalar_select %p117, %s118, %s119
    %p123 = pneg %p117
    %p124 = scmp.eq.s32.totalorder %s30, 1
    %p125 = por %p123, %p124
    %p126 = scmp.ne.s32.totalorder %s118, %s121
    %p127 = scmp.eq.s32.totalorder %s30, 0
    %p128 = por %p126, %p127
    %p129 = scmp.ne.s32.totalorder %s118, %s121
    %p130 = scmp.eq.s32.totalorder %s35, 1
    %p131 = por %p129, %p130
    %p132 = scmp.ne.s32.totalorder %s121, %s122
    %p133 = scmp.eq.s32.totalorder %s35, 0
    %p134 = por %p132, %p133
    %p135 = scmp.ne.s32.totalorder %s121, %s122
    %p136 = scmp.eq.s32.totalorder %s36, 1
    %p137 = por %p135, %p136
    %p139 = scmp.ne.s32.totalorder %s122, %s138
    %p140 = scmp.eq.s32.totalorder %s36, 0
    %p141 = por %p139, %p140
    %s143 = sadd.s32 %s142, 1
    %p146 = scmp.eq.s32.totalorder %s30, 1
    %p147 = scmp.ne.s32.totalorder %s142, %s144
    %p148 = scmp.eq.s32.totalorder %s30, 0
    %p149 = por %p147, %p148
    %p150 = scmp.ne.s32.totalorder %s142, %s144
    %p151 = scmp.eq.s32.totalorder %s35, 1
    %p152 = por %p150, %p151
    %p153 = scmp.ne.s32.totalorder %s144, %s145
    %p154 = scmp.eq.s32.totalorder %s35, 0
    %p155 = por %p153, %p154
    %p156 = scmp.ne.s32.totalorder %s144, %s145
    %p157 = scmp.eq.s32.totalorder %s36, 1
    %p158 = por %p156, %p157
    %p160 = scmp.ne.s32.totalorder %s145, %s159
    %p161 = scmp.eq.s32.totalorder %s36, 0
    %p162 = por %p160, %p161
    %s164 = sadd.s32 %s163, 1
    %p167 = scmp.eq.s32.totalorder %s30, 1
    %p168 = scmp.ne.s32.totalorder %s163, %s165
    %p169 = scmp.eq.s32.totalorder %s30, 0
    %p170 = por %p168, %p169
    %p171 = scmp.ne.s32.totalorder %s163, %s165
    %p172 = scmp.eq.s32.totalorder %s35, 1
    %p173 = por %p171, %p172
    %p174 = scmp.ne.s32.totalorder %s165, %s166
    %p175 = scmp.eq.s32.totalorder %s35, 0
    %p176 = por %p174, %p175
    %p177 = scmp.ne.s32.totalorder %s165, %s166
    %p178 = scmp.eq.s32.totalorder %s36, 1
    %p179 = por %p177, %p178
    %p181 = scmp.ne.s32.totalorder %s166, %s180
    %p182 = scmp.eq.s32.totalorder %s36, 0
    %p183 = por %p181, %p182
    %s185 = sadd.s32 %s184, 1
    %p188 = scmp.eq.s32.totalorder %s30, 1
    %p189 = scmp.ne.s32.totalorder %s184, %s186
    %p190 = scmp.eq.s32.totalorder %s30, 0
    %p191 = por %p189, %p190
    %p192 = scmp.ne.s32.totalorder %s184, %s186
    %p193 = scmp.eq.s32.totalorder %s35, 1
    %p194 = por %p192, %p193
    %p195 = scmp.ne.s32.totalorder %s186, %s187
    %p196 = scmp.eq.s32.totalorder %s35, 0
    %p197 = por %p195, %p196
    %p198 = scmp.ne.s32.totalorder %s186, %s187
    %p199 = scmp.eq.s32.totalorder %s36, 1
    %p200 = por %p198, %p199
    %p202 = scmp.ne.s32.totalorder %s187, %s201
    %p203 = scmp.eq.s32.totalorder %s36, 0
    %p204 = por %p202, %p203
    %s206 = sadd.s32 %s205, 1
    %p209 = scmp.eq.s32.totalorder %s30, 1
    %p210 = scmp.ne.s32.totalorder %s205, %s207
    %p211 = scmp.eq.s32.totalorder %s30, 0
    %p212 = por %p210, %p211
    %p213 = scmp.ne.s32.totalorder %s205, %s207
    %p214 = scmp.eq.s32.totalorder %s35, 1
    %p215 = por %p213, %p214
    %p216 = scmp.ne.s32.totalorder %s207, %s208
    %p217 = scmp.eq.s32.totalorder %s35, 0
    %p218 = por %p216, %p217
    %p219 = scmp.ne.s32.totalorder %s207, %s208
    %p220 = scmp.eq.s32.totalorder %s36, 1
    %p221 = por %p219, %p220
    %p223 = scmp.ne.s32.totalorder %s208, %s222
    %p224 = scmp.eq.s32.totalorder %s36, 0
    %p225 = por %p223, %p224
    %s227 = sadd.s32 %s226, 1
    %p230 = scmp.eq.s32.totalorder %s30, 1
    %p231 = scmp.ne.s32.totalorder %s226, %s228
    %p232 = scmp.eq.s32.totalorder %s30, 0
    %p233 = por %p231, %p232
    %p234 = scmp.ne.s32.totalorder %s226, %s228
    %p235 = scmp.eq.s32.totalorder %s35, 1
    %p236 = por %p234, %p235
    %p237 = scmp.ne.s32.totalorder %s228, %s229
    %p238 = scmp.eq.s32.totalorder %s35, 0
    %p239 = por %p237, %p238
    %p240 = scmp.ne.s32.totalorder %s228, %s229
    %p241 = scmp.eq.s32.totalorder %s36, 1
    %p242 = por %p240, %p241
    %p244 = scmp.ne.s32.totalorder %s229, %s243
    %p245 = scmp.eq.s32.totalorder %s36, 0
    %p246 = por %p244, %p245
    %s248 = sadd.s32 %s247, 1
    %p251 = scmp.eq.s32.totalorder %s30, 1
    %p252 = scmp.ne.s32.totalorder %s247, %s249
    %p253 = scmp.eq.s32.totalorder %s30, 0
    %p254 = por %p252, %p253
    %p255 = scmp.ne.s32.totalorder %s247, %s249
    %p256 = scmp.eq.s32.totalorder %s35, 1
    %p257 = por %p255, %p256
    %p258 = scmp.ne.s32.totalorder %s249, %s250
    %p259 = scmp.eq.s32.totalorder %s35, 0
    %p260 = por %p258, %p259
    %p261 = scmp.ne.s32.totalorder %s249, %s250
    %p262 = scmp.eq.s32.totalorder %s36, 1
    %p263 = por %p261, %p262
    %p265 = scmp.ne.s32.totalorder %s250, %s264
    %p266 = scmp.eq.s32.totalorder %s36, 0
    %p267 = por %p265, %p266
    %s269 = sadd.s32 %s268, 1
    %p272 = scmp.eq.s32.totalorder %s30, 1
    %p273 = scmp.ne.s32.totalorder %s268, %s270
    %p274 = scmp.eq.s32.totalorder %s30, 0
    %p275 = por %p273, %p274
    %p276 = scmp.ne.s32.totalorder %s268, %s270
    %p277 = scmp.eq.s32.totalorder %s35, 1
    %p278 = por %p276, %p277
    %p279 = scmp.ne.s32.totalorder %s270, %s271
    %p280 = scmp.eq.s32.totalorder %s35, 0
    %p281 = por %p279, %p280
    %p282 = scmp.ne.s32.totalorder %s270, %s271
    %p283 = scmp.eq.s32.totalorder %s36, 1
    %p284 = por %p282, %p283
    %p286 = scmp.ne.s32.totalorder %s271, %s285
    %p287 = scmp.eq.s32.totalorder %s36, 0
    %p288 = por %p286, %p287
    %s290 = sadd.s32 %s289, 1
    %p293 = scmp.eq.s32.totalorder %s30, 1
    %p294 = scmp.ne.s32.totalorder %s289, %s291
    %p295 = scmp.eq.s32.totalorder %s30, 0
    %p296 = por %p294, %p295
    %p297 = scmp.ne.s32.totalorder %s289, %s291
    %p298 = scmp.eq.s32.totalorder %s35, 1
    %p299 = por %p297, %p298
    %p300 = scmp.ne.s32.totalorder %s291, %s292
    %p301 = scmp.eq.s32.totalorder %s35, 0
    %p302 = por %p300, %p301
    %p303 = scmp.ne.s32.totalorder %s291, %s292
    %p304 = scmp.eq.s32.totalorder %s36, 1
    %p305 = por %p303, %p304
    %p307 = scmp.ne.s32.totalorder %s292, %s306
    %p308 = scmp.eq.s32.totalorder %s36, 0
    %p309 = por %p307, %p308
    %s311 = sadd.s32 %s310, 1
    %p314 = scmp.eq.s32.totalorder %s30, 1
    %p315 = scmp.ne.s32.totalorder %s310, %s312
    %p316 = scmp.eq.s32.totalorder %s30, 0
    %p317 = por %p315, %p316
    %p318 = scmp.ne.s32.totalorder %s310, %s312
    %p319 = scmp.eq.s32.totalorder %s35, 1
    %p320 = por %p318, %p319
    %p321 = scmp.ne.s32.totalorder %s312, %s313
    %p322 = scmp.eq.s32.totalorder %s35, 0
    %p323 = por %p321, %p322
    %p324 = scmp.ne.s32.totalorder %s312, %s313
    %p325 = scmp.eq.s32.totalorder %s36, 1
    %p326 = por %p324, %p325
    %p328 = scmp.ne.s32.totalorder %s313, %s327
    %p329 = scmp.eq.s32.totalorder %s36, 0
    %p330 = por %p328, %p329
    %s332 = sadd.s32 %s331, 1
    %p335 = scmp.eq.s32.totalorder %s30, 1
    %p336 = scmp.ne.s32.totalorder %s331, %s333
    %p337 = scmp.eq.s32.totalorder %s30, 0
    %p338 = por %p336, %p337
    %p339 = scmp.ne.s32.totalorder %s331, %s333
    %p340 = scmp.eq.s32.totalorder %s35, 1
    %p341 = por %p339, %p340
    %p342 = scmp.ne.s32.totalorder %s333, %s334
    %p343 = scmp.eq.s32.totalorder %s35, 0
    %p344 = por %p342, %p343
    %p345 = scmp.ne.s32.totalorder %s333, %s334
    %p346 = scmp.eq.s32.totalorder %s36, 1
    %p347 = por %p345, %p346
    %p349 = scmp.ne.s32.totalorder %s334, %s348
    %p350 = scmp.eq.s32.totalorder %s36, 0
    %p351 = por %p349, %p350
    %s353 = sadd.s32 %s352, 1
    %p356 = scmp.eq.s32.totalorder %s30, 1
    %p357 = scmp.ne.s32.totalorder %s352, %s354
    %p358 = scmp.eq.s32.totalorder %s30, 0
    %p359 = por %p357, %p358
    %p360 = scmp.ne.s32.totalorder %s352, %s354
    %p361 = scmp.eq.s32.totalorder %s35, 1
    %p362 = por %p360, %p361
    %p363 = scmp.ne.s32.totalorder %s354, %s355
    %p364 = scmp.eq.s32.totalorder %s35, 0
    %p365 = por %p363, %p364
    %p366 = scmp.ne.s32.totalorder %s354, %s355
    %p367 = scmp.eq.s32.totalorder %s36, 1
    %p368 = por %p366, %p367
    %p370 = scmp.ne.s32.totalorder %s355, %s369
    %p371 = scmp.eq.s32.totalorder %s36, 0
    %p372 = por %p370, %p371
    %s374 = sadd.s32 %s373, 1
    %p377 = scmp.eq.s32.totalorder %s30, 1
    %p378 = scmp.ne.s32.totalorder %s373, %s375
    %p379 = scmp.eq.s32.totalorder %s30, 0
    %p380 = por %p378, %p379
    %p381 = scmp.ne.s32.totalorder %s373, %s375
    %p382 = scmp.eq.s32.totalorder %s35, 1
    %p383 = por %p381, %p382
    %p384 = scmp.ne.s32.totalorder %s375, %s376
    %p385 = scmp.eq.s32.totalorder %s35, 0
    %p386 = por %p384, %p385
    %p387 = scmp.ne.s32.totalorder %s375, %s376
    %p388 = scmp.eq.s32.totalorder %s36, 1
    %p389 = por %p387, %p388
    %p391 = scmp.ne.s32.totalorder %s376, %s390
    %p392 = scmp.eq.s32.totalorder %s36, 0
    %p393 = por %p391, %p392
    %s395 = sadd.s32 %s394, 1
    %p398 = scmp.eq.s32.totalorder %s30, 1
    %p399 = scmp.ne.s32.totalorder %s394, %s396
    %p400 = scmp.eq.s32.totalorder %s30, 0
    %p401 = por %p399, %p400
    %p402 = scmp.ne.s32.totalorder %s394, %s396
    %p403 = scmp.eq.s32.totalorder %s35, 1
    %p404 = por %p402, %p403
    %p405 = scmp.ne.s32.totalorder %s396, %s397
    %p406 = scmp.eq.s32.totalorder %s35, 0
    %p407 = por %p405, %p406
    %p408 = scmp.ne.s32.totalorder %s396, %s397
    %p409 = scmp.eq.s32.totalorder %s36, 1
    %p410 = por %p408, %p409
    %p412 = scmp.ne.s32.totalorder %s397, %s411
    %p413 = scmp.eq.s32.totalorder %s36, 0
    %p414 = por %p412, %p413
    %s416 = sadd.s32 %s415, 1
    %p419 = scmp.eq.s32.totalorder %s30, 1
    %p420 = scmp.ne.s32.totalorder %s415, %s417
    %p421 = scmp.eq.s32.totalorder %s30, 0
    %p422 = por %p420, %p421
    %p423 = scmp.ne.s32.totalorder %s415, %s417
    %p424 = scmp.eq.s32.totalorder %s35, 1
    %p425 = por %p423, %p424
    %p426 = scmp.ne.s32.totalorder %s417, %s418
    %p427 = scmp.eq.s32.totalorder %s35, 0
    %p428 = por %p426, %p427
    %p429 = scmp.ne.s32.totalorder %s417, %s418
    %p430 = scmp.eq.s32.totalorder %s36, 1
    %p431 = por %p429, %p430
    %p433 = scmp.ne.s32.totalorder %s418, %s432
    %p434 = scmp.eq.s32.totalorder %s36, 0
    %p435 = por %p433, %p434
    %s437 = sadd.s32 %s436, 1
    %p440 = scmp.eq.s32.totalorder %s30, 1
    %p441 = scmp.ne.s32.totalorder %s436, %s438
    %p442 = scmp.eq.s32.totalorder %s30, 0
    %p443 = por %p441, %p442
    %p444 = scmp.ne.s32.totalorder %s436, %s438
    %p445 = scmp.eq.s32.totalorder %s35, 1
    %p446 = por %p444, %p445
    %p447 = scmp.ne.s32.totalorder %s438, %s439
    %p448 = scmp.eq.s32.totalorder %s35, 0
    %p449 = por %p447, %p448
    %p450 = scmp.ne.s32.totalorder %s438, %s439
    %p451 = scmp.eq.s32.totalorder %s36, 1
    %p452 = por %p450, %p451
    %p454 = scmp.ne.s32.totalorder %s439, %s453
    %p455 = scmp.eq.s32.totalorder %s36, 0
    %p456 = por %p454, %p455
    %s458 = sadd.s32 %s457, 1
    %p461 = scmp.eq.s32.totalorder %s30, 1
    %p462 = scmp.ne.s32.totalorder %s457, %s459
    %p463 = scmp.eq.s32.totalorder %s30, 0
    %p464 = por %p462, %p463
    %p465 = scmp.ne.s32.totalorder %s457, %s459
    %p466 = scmp.eq.s32.totalorder %s35, 1
    %p467 = por %p465, %p466
    %p468 = scmp.ne.s32.totalorder %s459, %s460
    %p469 = scmp.eq.s32.totalorder %s35, 0
    %p470 = por %p468, %p469
    %p471 = scmp.ne.s32.totalorder %s459, %s460
    %p472 = scmp.eq.s32.totalorder %s36, 1
    %p473 = por %p471, %p472
    %p475 = scmp.ne.s32.totalorder %s460, %s474
    %p476 = scmp.eq.s32.totalorder %s36, 0
    %p477 = por %p475, %p476
    %s479 = sadd.s32 %s478, 1
    %p482 = scmp.eq.s32.totalorder %s30, 1
    %p483 = scmp.ne.s32.totalorder %s478, %s480
    %p484 = scmp.eq.s32.totalorder %s30, 0
    %p485 = por %p483, %p484
    %p486 = scmp.ne.s32.totalorder %s478, %s480
    %p487 = scmp.eq.s32.totalorder %s35, 1
    %p488 = por %p486, %p487
    %p489 = scmp.ne.s32.totalorder %s480, %s481
    %p490 = scmp.eq.s32.totalorder %s35, 0
    %p491 = por %p489, %p490
    %p492 = scmp.ne.s32.totalorder %s480, %s481
    %p493 = scmp.eq.s32.totalorder %s36, 1
    %p494 = por %p492, %p493
    %p496 = scmp.ne.s32.totalorder %s481, %s495
    %p497 = scmp.eq.s32.totalorder %s36, 0
    %p498 = por %p496, %p497
    %s500 = sadd.s32 %s499, 1
    %p503 = scmp.eq.s32.totalorder %s30, 1
    %p504 = scmp.ne.s32.totalorder %s499, %s501
    %p505 = scmp.eq.s32.totalorder %s30, 0
    %p506 = por %p504, %p505
    %p507 = scmp.ne.s32.totalorder %s499, %s501
    %p508 = scmp.eq.s32.totalorder %s35, 1
    %p509 = por %p507, %p508
    %p510 = scmp.ne.s32.totalorder %s501, %s502
    %p511 = scmp.eq.s32.totalorder %s35, 0
    %p512 = por %p510, %p511
    %p513 = scmp.ne.s32.totalorder %s501, %s502
    %p514 = scmp.eq.s32.totalorder %s36, 1
    %p515 = por %p513, %p514
    %p517 = scmp.ne.s32.totalorder %s502, %s516
    %p518 = scmp.eq.s32.totalorder %s36, 0
    %p519 = por %p517, %p518
    %s521 = sadd.s32 %s520, 1
    %p524 = scmp.eq.s32.totalorder %s30, 1
    %p525 = scmp.ne.s32.totalorder %s520, %s522
    %p526 = scmp.eq.s32.totalorder %s30, 0
    %p527 = por %p525, %p526
    %p528 = scmp.ne.s32.totalorder %s520, %s522
    %p529 = scmp.eq.s32.totalorder %s35, 1
    %p530 = por %p528, %p529
    %p531 = scmp.ne.s32.totalorder %s522, %s523
    %p532 = scmp.eq.s32.totalorder %s35, 0
    %p533 = por %p531, %p532
    %p534 = scmp.ne.s32.totalorder %s522, %s523
    %p535 = scmp.eq.s32.totalorder %s36, 1
    %p536 = por %p534, %p535
    %p538 = scmp.ne.s32.totalorder %s523, %s537
    %p539 = scmp.eq.s32.totalorder %s36, 0
    %p540 = por %p538, %p539
    %s542 = sadd.s32 %s541, 1
    %p545 = scmp.eq.s32.totalorder %s30, 1
    %p546 = scmp.ne.s32.totalorder %s541, %s543
    %p547 = scmp.eq.s32.totalorder %s30, 0
    %p548 = por %p546, %p547
    %p549 = scmp.ne.s32.totalorder %s541, %s543
    %p550 = scmp.eq.s32.totalorder %s35, 1
    %p551 = por %p549, %p550
    %p552 = scmp.ne.s32.totalorder %s543, %s544
    %p553 = scmp.eq.s32.totalorder %s35, 0
    %p554 = por %p552, %p553
    %p555 = scmp.ne.s32.totalorder %s543, %s544
    %p556 = scmp.eq.s32.totalorder %s36, 1
    %p557 = por %p555, %p556
    %p559 = scmp.ne.s32.totalorder %s544, %s558
    %p560 = scmp.eq.s32.totalorder %s36, 0
    %p561 = por %p559, %p560
    %s562 = ssub.s32 %s30, %s37
    %p563 = scmp.eq.s32.totalorder %s562, 0
    %s565 = sadd.s32 %s564, 1
    %s566 = scalar_select %p563, %s564, %s565
    %p569 = pneg %p563
    %p570 = scmp.eq.s32.totalorder %s30, 1
    %p571 = por %p569, %p570
    %p572 = scmp.ne.s32.totalorder %s564, %s567
    %p573 = scmp.eq.s32.totalorder %s30, 0
    %p574 = por %p572, %p573
    %p575 = scmp.ne.s32.totalorder %s564, %s567
    %p576 = scmp.eq.s32.totalorder %s35, 1
    %p577 = por %p575, %p576
    %p578 = scmp.ne.s32.totalorder %s567, %s568
    %p579 = scmp.eq.s32.totalorder %s35, 0
    %p580 = por %p578, %p579
    %p581 = scmp.ne.s32.totalorder %s567, %s568
    %p582 = scmp.eq.s32.totalorder %s36, 1
    %p583 = por %p581, %p582
    %p585 = scmp.ne.s32.totalorder %s568, %s584
    %p586 = scmp.eq.s32.totalorder %s36, 0
    %p587 = por %p585, %p586
    %p588 = scmp.le.s32.totalorder 1, %s30
    %p589 = scmp.lt.s32.totalorder %s30, 3
    %p590 = pnand %p588, %p589
    %p591 = pneg %p590
    // Predicated region
    $region9: #{decoder_forward.3} parent=5 // pred_check
      _
    $region10: #{decoder_forward.3} parent=5 // pred_check_branch
      %593 = sbr.rel (%p590) target = $region12
    $region11: #{decoder_forward.3} parent=5 // pred_region
      %s594 = ssub.s32 %s30, 1
      // Predicated region
      $region13: #{decoder_forward.3} parent=11 // pred_check
        %p595 = pneg %p155
      $region14: #{decoder_forward.3} parent=11 // pred_check_branch
        %597 = sbr.rel (%p595) target = $region16
      $region15: #{decoder_forward.3} parent=11 // pred_region
        _
      $region16: #{decoder_forward.3} parent=11 // pred_fallthru
        _
      // Predicated region
      $region17: #{decoder_forward.3} parent=11 // pred_check
        %p598 = pneg %p176
      $region18: #{decoder_forward.3} parent=11 // pred_check_branch
        %600 = sbr.rel (%p598) target = $region20
      $region19: #{decoder_forward.3} parent=11 // pred_region
        _
      $region20: #{decoder_forward.3} parent=11 // pred_fallthru
        _
      // Predicated region
      $region21: #{decoder_forward.3} parent=11 // pred_check
        %p601 = pneg %p197
      $region22: #{decoder_forward.3} parent=11 // pred_check_branch
        %603 = sbr.rel (%p601) target = $region24
      $region23: #{decoder_forward.3} parent=11 // pred_region
        _
      $region24: #{decoder_forward.3} parent=11 // pred_fallthru
        _
      // Predicated region
      $region25: #{decoder_forward.3} parent=11 // pred_check
        %p604 = pneg %p218
      $region26: #{decoder_forward.3} parent=11 // pred_check_branch
        %606 = sbr.rel (%p604) target = $region28
      $region27: #{decoder_forward.3} parent=11 // pred_region
        _
      $region28: #{decoder_forward.3} parent=11 // pred_fallthru
        _
      // Predicated region
      $region29: #{decoder_forward.3} parent=11 // pred_check
        %p607 = pneg %p239
      $region30: #{decoder_forward.3} parent=11 // pred_check_branch
        %609 = sbr.rel (%p607) target = $region32
      $region31: #{decoder_forward.3} parent=11 // pred_region
        _
      $region32: #{decoder_forward.3} parent=11 // pred_fallthru
        _
      // Predicated region
      $region33: #{decoder_forward.3} parent=11 // pred_check
        %p610 = pneg %p260
      $region34: #{decoder_forward.3} parent=11 // pred_check_branch
        %612 = sbr.rel (%p610) target = $region36
      $region35: #{decoder_forward.3} parent=11 // pred_region
        _
      $region36: #{decoder_forward.3} parent=11 // pred_fallthru
        _
      // Predicated region
      $region37: #{decoder_forward.3} parent=11 // pred_check
        %p613 = pneg %p281
      $region38: #{decoder_forward.3} parent=11 // pred_check_branch
        %615 = sbr.rel (%p613) target = $region40
      $region39: #{decoder_forward.3} parent=11 // pred_region
        _
      $region40: #{decoder_forward.3} parent=11 // pred_fallthru
        _
      // Predicated region
      $region41: #{decoder_forward.3} parent=11 // pred_check
        %p616 = pneg %p302
      $region42: #{decoder_forward.3} parent=11 // pred_check_branch
        %618 = sbr.rel (%p616) target = $region44
      $region43: #{decoder_forward.3} parent=11 // pred_region
        _
      $region44: #{decoder_forward.3} parent=11 // pred_fallthru
        _
      // Predicated region
      $region45: #{decoder_forward.3} parent=11 // pred_check
        %p619 = pneg %p323
      $region46: #{decoder_forward.3} parent=11 // pred_check_branch
        %621 = sbr.rel (%p619) target = $region48
      $region47: #{decoder_forward.3} parent=11 // pred_region
        _
      $region48: #{decoder_forward.3} parent=11 // pred_fallthru
        _
      // Predicated region
      $region49: #{decoder_forward.3} parent=11 // pred_check
        %p622 = pneg %p344
      $region50: #{decoder_forward.3} parent=11 // pred_check_branch
        %624 = sbr.rel (%p622) target = $region52
      $region51: #{decoder_forward.3} parent=11 // pred_region
        _
      $region52: #{decoder_forward.3} parent=11 // pred_fallthru
        _
      // Predicated region
      $region53: #{decoder_forward.3} parent=11 // pred_check
        %p625 = pneg %p365
      $region54: #{decoder_forward.3} parent=11 // pred_check_branch
        %627 = sbr.rel (%p625) target = $region56
      $region55: #{decoder_forward.3} parent=11 // pred_region
        _
      $region56: #{decoder_forward.3} parent=11 // pred_fallthru
        _
      // Predicated region
      $region57: #{decoder_forward.3} parent=11 // pred_check
        %p628 = pneg %p386
      $region58: #{decoder_forward.3} parent=11 // pred_check_branch
        %630 = sbr.rel (%p628) target = $region60
      $region59: #{decoder_forward.3} parent=11 // pred_region
        _
      $region60: #{decoder_forward.3} parent=11 // pred_fallthru
        _
      // Predicated region
      $region61: #{decoder_forward.3} parent=11 // pred_check
        %p631 = pneg %p407
      $region62: #{decoder_forward.3} parent=11 // pred_check_branch
        %633 = sbr.rel (%p631) target = $region64
      $region63: #{decoder_forward.3} parent=11 // pred_region
        _
      $region64: #{decoder_forward.3} parent=11 // pred_fallthru
        _
      // Predicated region
      $region65: #{decoder_forward.3} parent=11 // pred_check
        %p634 = pneg %p428
      $region66: #{decoder_forward.3} parent=11 // pred_check_branch
        %636 = sbr.rel (%p634) target = $region68
      $region67: #{decoder_forward.3} parent=11 // pred_region
        _
      $region68: #{decoder_forward.3} parent=11 // pred_fallthru
        _
      // Predicated region
      $region69: #{decoder_forward.3} parent=11 // pred_check
        %p637 = pneg %p449
      $region70: #{decoder_forward.3} parent=11 // pred_check_branch
        %639 = sbr.rel (%p637) target = $region72
      $region71: #{decoder_forward.3} parent=11 // pred_region
        _
      $region72: #{decoder_forward.3} parent=11 // pred_fallthru
        _
      // Predicated region
      $region73: #{decoder_forward.3} parent=11 // pred_check
        %p640 = pneg %p470
      $region74: #{decoder_forward.3} parent=11 // pred_check_branch
        %642 = sbr.rel (%p640) target = $region76
      $region75: #{decoder_forward.3} parent=11 // pred_region
        _
      $region76: #{decoder_forward.3} parent=11 // pred_fallthru
        _
      // Predicated region
      $region77: #{decoder_forward.3} parent=11 // pred_check
        %p643 = pneg %p491
      $region78: #{decoder_forward.3} parent=11 // pred_check_branch
        %645 = sbr.rel (%p643) target = $region80
      $region79: #{decoder_forward.3} parent=11 // pred_region
        _
      $region80: #{decoder_forward.3} parent=11 // pred_fallthru
        _
      // Predicated region
      $region81: #{decoder_forward.3} parent=11 // pred_check
        %p646 = pneg %p512
      $region82: #{decoder_forward.3} parent=11 // pred_check_branch
        %648 = sbr.rel (%p646) target = $region84
      $region83: #{decoder_forward.3} parent=11 // pred_region
        _
      $region84: #{decoder_forward.3} parent=11 // pred_fallthru
        _
      // Predicated region
      $region85: #{decoder_forward.3} parent=11 // pred_check
        %p649 = pneg %p533
      $region86: #{decoder_forward.3} parent=11 // pred_check_branch
        %651 = sbr.rel (%p649) target = $region88
      $region87: #{decoder_forward.3} parent=11 // pred_region
        _
      $region88: #{decoder_forward.3} parent=11 // pred_fallthru
        _
      // Predicated region
      $region89: #{decoder_forward.3} parent=11 // pred_check
        %p652 = pneg %p554
      $region90: #{decoder_forward.3} parent=11 // pred_check_branch
        %654 = sbr.rel (%p652) target = $region92
      $region91: #{decoder_forward.3} parent=11 // pred_region
        _
      $region92: #{decoder_forward.3} parent=11 // pred_fallthru
        _
    $region12: #{decoder_forward.3} parent=5 // pred_fallthru
      _
    %p655 = scmp.lt.s32.totalorder %s30, 2
    // Predicated region
    $region93: #{decoder_forward.3} parent=5 // pred_check
      %p656 = pneg %p655
    $region94: #{decoder_forward.3} parent=5 // pred_check_branch
      %658 = sbr.rel (%p656) target = $region96
    $region95: #{decoder_forward.3} parent=5 // pred_region
      // Predicated region
      $region97: #{decoder_forward.3} parent=95 // pred_check
        %p659 = pneg %p50
      $region98: #{decoder_forward.3} parent=95 // pred_check_branch
        %661 = sbr.rel (%p659) target = $region100
      $region99: #{decoder_forward.3} parent=95 // pred_region
        %p662 = scmp.lt.s32.totalorder %s30, 1
        %s663 = scalar_select %p662, %s30, 1
        %s664 = smul.addr %s663, 4
        %s665 = scalar_lea.vmem %s0, %s664
      $region100: #{decoder_forward.3} parent=95 // pred_fallthru
        _
      // Predicated region
      $region101: #{decoder_forward.3} parent=95 // pred_check
        %p666 = pneg %p76
      $region102: #{decoder_forward.3} parent=95 // pred_check_branch
        %668 = sbr.rel (%p666) target = $region104
      $region103: #{decoder_forward.3} parent=95 // pred_region
        %p669 = scmp.lt.s32.totalorder %s30, 1
        %s670 = scalar_select %p669, %s30, 1
        %s671 = smul.addr %s670, 4
        %s672 = scalar_lea.vmem %s1, %s671
      $region104: #{decoder_forward.3} parent=95 // pred_fallthru
        _
      // Predicated region
      $region105: #{decoder_forward.3} parent=95 // pred_check
        %p673 = pneg %p102
      $region106: #{decoder_forward.3} parent=95 // pred_check_branch
        %675 = sbr.rel (%p673) target = $region108
      $region107: #{decoder_forward.3} parent=95 // pred_region
        %p676 = scmp.lt.s32.totalorder %s30, 1
        %s677 = scalar_select %p676, %s30, 1
        %s678 = smul.addr %s677, 8
        %s679 = scalar_lea.vmem %s2, %s678
      $region108: #{decoder_forward.3} parent=95 // pred_fallthru
        _
      // Predicated region
      $region109: #{decoder_forward.3} parent=95 // pred_check
        %p680 = pneg %p128
      $region110: #{decoder_forward.3} parent=95 // pred_check_branch
        %682 = sbr.rel (%p680) target = $region112
      $region111: #{decoder_forward.3} parent=95 // pred_region
        %p683 = scmp.lt.s32.totalorder %s30, 1
        %s684 = scalar_select %p683, %s30, 1
        %s685 = smul.addr %s684, 8
        %s686 = scalar_lea.vmem %s3, %s685
      $region112: #{decoder_forward.3} parent=95 // pred_fallthru
        _
    $region96: #{decoder_forward.3} parent=5 // pred_fallthru
      _
    %p687 = scmp.le.s32.totalorder 1, %s30
    %p688 = scmp.lt.s32.totalorder %s30, 3
    %p689 = pnand %p687, %p688
    %p690 = pneg %p689
    // Predicated region
    $region113: #{decoder_forward.3} parent=5 // pred_check
      _
    $region114: #{decoder_forward.3} parent=5 // pred_check_branch
      %692 = sbr.rel (%p689) target = $region116
    $region115: #{decoder_forward.3} parent=5 // pred_region
      %s693 = ssub.s32 %s30, 1
      %p694 = scmp.lt.s32.totalorder %s35, 1
      %s695 = scalar_select %p694, %s35, 1
      %s696 = smul.addr %s695, 4
      %s697 = scalar_lea.vmem %s0, %s696
      %p698 = pneg %p56
      %p699 = pneg %p53
      %p700 = scmp.lt.s32.totalorder %s35, 1
      %s701 = scalar_select %p700, %s35, 1
      %s702 = smul.addr %s701, 4
      %s703 = scalar_lea.vmem %s1, %s702
      %p704 = pneg %p82
      %p705 = pneg %p79
      %p706 = scmp.lt.s32.totalorder %s35, 1
      %s707 = scalar_select %p706, %s35, 1
      %s708 = smul.addr %s707, 8
      %s709 = scalar_lea.vmem %s2, %s708
      %p710 = pneg %p108
      %p711 = pneg %p105
      %p712 = scmp.lt.s32.totalorder %s35, 1
      %s713 = scalar_select %p712, %s35, 1
      %s714 = smul.addr %s713, 8
      %s715 = scalar_lea.vmem %s3, %s714
      %p716 = pneg %p134
      %p717 = pneg %p131
      %p718 = pneg %p155
      %p719 = pneg %p152
      %p720 = pneg %p176
      %p721 = pneg %p173
      %p722 = pneg %p197
      %p723 = pneg %p194
      %p724 = pneg %p218
      %p725 = pneg %p215
      %p726 = pneg %p239
      %p727 = pneg %p236
      %p728 = pneg %p260
      %p729 = pneg %p257
      %p730 = pneg %p281
      %p731 = pneg %p278
      %p732 = pneg %p302
      %p733 = pneg %p299
      %p734 = pneg %p323
      %p735 = pneg %p320
      %p736 = pneg %p344
      %p737 = pneg %p341
      %p738 = pneg %p365
      %p739 = pneg %p362
      %p740 = pneg %p386
      %p741 = pneg %p383
      %p742 = pneg %p407
      %p743 = pneg %p404
      %p744 = pneg %p428
      %p745 = pneg %p425
      %p746 = pneg %p449
      %p747 = pneg %p446
      %p748 = pneg %p470
      %p749 = pneg %p467
      %p750 = pneg %p491
      %p751 = pneg %p488
      %p752 = pneg %p512
      %p753 = pneg %p509
      %p754 = pneg %p533
      %p755 = pneg %p530
      %p756 = pneg %p554
      %p757 = pneg %p551
      %p758 = pneg %p580
      %p759 = pneg %p577
      %p760 = scmp.lt.s32.totalorder %s35, 1
      %s761 = scalar_select %p760, %s35, 1
      %s762 = smul.addr %s761, 4
      %s763 = scalar_lea.vmem %s24, %s762
      %p764 = scmp.lt.s32.totalorder %s35, 1
      %s765 = scalar_select %p764, %s35, 1
      %s766 = smul.addr %s765, 4
      %s767 = scalar_lea.vmem %s0, %s766
      %p768 = scmp.lt.s32.totalorder %s35, 1
      %s769 = scalar_select %p768, %s35, 1
      %s770 = smul.addr %s769, 4
      %s771 = scalar_lea.vmem %s1, %s770
      %p772 = scmp.lt.s32.totalorder %s35, 1
      %s773 = scalar_select %p772, %s35, 1
      %s774 = smul.addr %s773, 8
      %s775 = scalar_lea.vmem %s2, %s774
      %p776 = scmp.lt.s32.totalorder %s35, 1
      %s777 = scalar_select %p776, %s35, 1
      %s778 = smul.addr %s777, 8
      %s779 = scalar_lea.vmem %s3, %s778
      %p780 = scmp.lt.s32.totalorder %s35, 1
      %s781 = scalar_select %p780, %s35, 1
      %s782 = smul.addr %s781, 4
      %s783 = scalar_lea.vmem %s24, %s782
      %v785 = vld [vmem:[%s767] sm:$0xf]
      %v786 = vld [vmem:[%s771] sm:$0xf]
      %v787 = vld [vmem:[%s4] sm:$0xf]
      %v788 = vld [vmem:[%s4 + $0x4] sm:$0xf]
      %v789 = vld [vmem:[%s4 + $0x8] sm:$0xf]
      %v790 = vld [vmem:[%s4 + $0xc] sm:$0xf]
      %v791 = vld [vmem:[%s5] sm:$0x1]
      %v793 = vlaneseq
      %v794 = vshrl.u32 %v793, 7
      %v795 = vsub.s32 0, %v794
      %v796 = vrot.slane %v791, %v795
      %v802 = vunpack.c.l.b16 %v787
      %v803 = vunpack.c.l.b16 %v788
      %v804 = vunpack.c.l.b16 %v789
      %v805 = vunpack.c.l.b16 %v790
      %v806 = vpack.c.b16 %v803, %v802
      %v807 = vpack.c.b16 %v805, %v804
      %vm810 = vcmask 261120
      %v812 = vsel %vm810, %v785, 0
      %814 = vmatprep.subr.bf16.mxu0 0
      %815 = vmatpush1.bf16.msra.mxu0 %v806
      %816 = vmatprep.subr.bf16.mxu0 0
      %817 = vmatpush1.bf16.msra.mxu0 %v807
      %818 = vmatprep.subr.bf16.mxu0 0
      %819 = vmatpush1.bf16.msra.mxu0 0
      %820 = vmatprep.subr.bf16.mxu0 0
      %821 = vmatpush1.bf16.msra.mxu0 0
      %822 = vmatprep.subr.bf16.mxu0 0
      %823 = vmatpush1.bf16.msra.mxu0 0
      %824 = vmatprep.subr.bf16.mxu0 0
      %825 = vmatpush1.bf16.msra.mxu0 0
      %826 = vmatprep.subr.bf16.mxu0 0
      %827 = vmatpush1.bf16.msra.mxu0 0
      %828 = vmatprep.subr.bf16.mxu0 0
      %829 = vmatpush1.bf16.msra.mxu0 0
      %830 = vmatprep.subr.bf16.mxu0 0
      %831 = vmatpush1.bf16.msra.mxu0 0
      %832 = vmatprep.subr.bf16.mxu0 0
      %833 = vmatpush1.bf16.msra.mxu0 0
      %834 = vmatprep.subr.bf16.mxu0 0
      %835 = vmatpush1.bf16.msra.mxu0 0
      %836 = vmatprep.subr.bf16.mxu0 0
      %837 = vmatpush1.bf16.msra.mxu0 0
      %838 = vmatprep.subr.bf16.mxu0 0
      %839 = vmatpush1.bf16.msra.mxu0 0
      %840 = vmatprep.subr.bf16.mxu0 0
      %841 = vmatpush1.bf16.msra.mxu0 0
      %842 = vmatprep.subr.bf16.mxu0 0
      %843 = vmatpush1.bf16.msra.mxu0 0
      %844 = vmatprep.subr.bf16.mxu0 0
      %845 = vmatpush1.bf16.msra.mxu0 0
      %846 = vmatprep.mubr.bf16.mxu0 0
      %847 = vmatmul.mubr.bf16.gmra.mrb[0].mxu0 %v812
      %v848 = vpop.f32.mrb[0].mxu0
      %v849 = vadd.f32 %v796, %v848
      %v850 = vpop.f32.mrb[0].mxu0
      %v851 = vpop.f32.mrb[0].mxu0
      %v852 = vpop.f32.mrb[0].mxu0
      %853 = vdwg.mxu0
      %v854 = vpack.c.bf16 %v849, %v849
      %v855 = vld [vmem:[%s775] sm:$0xff]
      %v856 = vld [vmem:[%s6] sm:$0xf]
      %v857 = vld [vmem:[%s6 + $0x4] sm:$0xf]
      %v858 = vld [vmem:[%s6 + $0x8] sm:$0xf]
      %v859 = vld [vmem:[%s6 + $0xc] sm:$0xf]
      %861 = vrot.lane.b32.xlu0 %v854, 96
      %v862 = vpop.permute.xlu0 %861
      %vm863 = vcmask 64512
      %v865 = vsel %vm863, %v854, 0
      %v868 = vsel %vm863, %v862, 0
      %870 = vmatprep.subr.bf16.mxu0 0
      %871 = vmatpush1.bf16.xpose.msra.mxu0 %v868
      %872 = vmatprep.subr.bf16.mxu0 0
      %873 = vmatpush1.bf16.xpose.msra.mxu0 0
      %874 = vmatprep.subr.bf16.mxu0 0
      %875 = vmatpush1.bf16.xpose.msra.mxu0 0
      %876 = vmatprep.subr.bf16.mxu0 0
      %877 = vmatpush1.bf16.xpose.msra.mxu0 0
      %878 = vmatprep.subr.bf16.mxu0 0
      %879 = vmatpush1.bf16.xpose.msra.mxu0 0
      %880 = vmatprep.subr.bf16.mxu0 0
      %881 = vmatpush1.bf16.xpose.msra.mxu0 0
      %882 = vmatprep.subr.bf16.mxu0 0
      %883 = vmatpush1.bf16.xpose.msra.mxu0 0
      %884 = vmatprep.subr.bf16.mxu0 0
      %885 = vmatpush1.bf16.xpose.msra.mxu0 0
      %886 = vmatprep.subr.bf16.mxu0 0
      %887 = vmatpush1.bf16.xpose.msra.mxu0 0
      %888 = vmatprep.subr.bf16.mxu0 0
      %889 = vmatpush1.bf16.xpose.msra.mxu0 0
      %890 = vmatprep.subr.bf16.mxu0 0
      %891 = vmatpush1.bf16.xpose.msra.mxu0 0
      %892 = vmatprep.subr.bf16.mxu0 0
      %893 = vmatpush1.bf16.xpose.msra.mxu0 0
      %894 = vmatprep.subr.bf16.mxu0 0
      %895 = vmatpush1.bf16.xpose.msra.mxu0 0
      %896 = vmatprep.subr.bf16.mxu0 0
      %897 = vmatpush1.bf16.xpose.msra.mxu0 0
      %898 = vmatprep.subr.bf16.mxu0 0
      %899 = vmatpush1.bf16.xpose.msra.mxu0 0
      %900 = vmatprep.subr.bf16.mxu0 0
      %901 = vmatpush1.bf16.xpose.msra.mxu0 0
      %902 = vmatprep.mubr.bf16.mxu0 0
      %903 = vmatmul.mubr.bf16.gmra.mrb[0].mxu0 %v865
      %v904 = vpop.f32.mrb[0].mxu0
      %v905 = vadd.f32 0.0, %v904
      %v906 = vpop.f32.mrb[0].mxu0
      %v907 = vpop.f32.mrb[0].mxu0
      %v908 = vpop.f32.mrb[0].mxu0
      %909 = vdwg.mxu0
      %v910 = vmul.f32 %v905, 0.35355338
      %v911 = vadd.f32 %v910, %v855
      %v912 = vsel %vm863, %v911, -inf
      %913 = vmax.xlane.f32.xlu0 %v912
      %v914 = vpop.xlane.xlu0 %913
      %v915 = vsub.f32 %v911, %v914
      %v916 = vmul.f32 %v915, 1.442695
      %v917 = vpow.pop %v916
      %v918 = vsel %vm863, %v917, 0.0
      %919 = vadd.xlane.f32.xlu0 %v918
      %v920 = vpop.xlane.xlu0 %919
      %v921 = vrcp.pop %v920
      %v922 = vmul.f32 %v917, %v921
      %v923 = vpack.c.bf16 %v922, %v922
      %924 = vrot.lane.b32.xlu0 %v854, 64
      %v925 = vpop.permute.xlu0 %924
      %v927 = vsel %vm863, %v923, 0
      %vm929 = vcmask 1043456
      %v931 = vsel %vm929, %v925, 0
      %933 = vmatprep.subr.bf16.mxu0 0
      %934 = vmatpush1.bf16.msra.mxu0 %v931
      %935 = vmatprep.subr.bf16.mxu0 0
      %936 = vmatpush1.bf16.msra.mxu0 0
      %937 = vmatprep.subr.bf16.mxu0 0
      %938 = vmatpush1.bf16.msra.mxu0 0
      %939 = vmatprep.subr.bf16.mxu0 0
      %940 = vmatpush1.bf16.msra.mxu0 0
      %941 = vmatprep.subr.bf16.mxu0 0
      %942 = vmatpush1.bf16.msra.mxu0 0
      %943 = vmatprep.subr.bf16.mxu0 0
      %944 = vmatpush1.bf16.msra.mxu0 0
      %945 = vmatprep.subr.bf16.mxu0 0
      %946 = vmatpush1.bf16.msra.mxu0 0
      %947 = vmatprep.subr.bf16.mxu0 0
      %948 = vmatpush1.bf16.msra.mxu0 0
      %949 = vmatprep.subr.bf16.mxu0 0
      %950 = vmatpush1.bf16.msra.mxu0 0
      %951 = vmatprep.subr.bf16.mxu0 0
      %952 = vmatpush1.bf16.msra.mxu0 0
      %953 = vmatprep.subr.bf16.mxu0 0
      %954 = vmatpush1.bf16.msra.mxu0 0
      %955 = vmatprep.subr.bf16.mxu0 0
      %956 = vmatpush1.bf16.msra.mxu0 0
      %957 = vmatprep.subr.bf16.mxu0 0
      %958 = vmatpush1.bf16.msra.mxu0 0
      %959 = vmatprep.subr.bf16.mxu0 0
      %960 = vmatpush1.bf16.msra.mxu0 0
      %961 = vmatprep.subr.bf16.mxu0 0
      %962 = vmatpush1.bf16.msra.mxu0 0
      %963 = vmatprep.subr.bf16.mxu0 0
      %964 = vmatpush1.bf16.msra.mxu0 0
      %965 = vmatprep.mubr.bf16.mxu0 0
      %966 = vmatmul.mubr.bf16.gmra.mrb[0].mxu0 %v927
      %v967 = vpop.f32.mrb[0].mxu0
      %v968 = vadd.f32 0.0, %v967
      %v969 = vpop.f32.mrb[0].mxu0
      %v970 = vpop.f32.mrb[0].mxu0
      %v971 = vpop.f32.mrb[0].mxu0
      %972 = vdwg.mxu0
      %v973 = vpack.c.bf16 %v968, %v968
      %974 = vrot.lane.b32.xlu0 %v854, 120
      %v975 = vpop.permute.xlu0 %974
      %976 = vrot.lane.b32.xlu0 %v854, 88
      %v977 = vpop.permute.xlu0 %976
      %v979 = vsel %vm863, %v975, 0
      %v982 = vsel %vm863, %v977, 0
      %984 = vmatprep.subr.bf16.mxu0 0
      %985 = vmatpush1.bf16.xpose.msra.mxu0 %v982
      %986 = vmatprep.subr.bf16.mxu0 0
      %987 = vmatpush1.bf16.xpose.msra.mxu0 0
      %988 = vmatprep.subr.bf16.mxu0 0
      %989 = vmatpush1.bf16.xpose.msra.mxu0 0
      %990 = vmatprep.subr.bf16.mxu0 0
      %991 = vmatpush1.bf16.xpose.msra.mxu0 0
      %992 = vmatprep.subr.bf16.mxu0 0
      %993 = vmatpush1.bf16.xpose.msra.mxu0 0
      %994 = vmatprep.subr.bf16.mxu0 0
      %995 = vmatpush1.bf16.xpose.msra.mxu0 0
      %996 = vmatprep.subr.bf16.mxu0 0
      %997 = vmatpush1.bf16.xpose.msra.mxu0 0
      %998 = vmatprep.subr.bf16.mxu0 0
      %999 = vmatpush1.bf16.xpose.msra.mxu0 0
      %1000 = vmatprep.subr.bf16.mxu0 0
      %1001 = vmatpush1.bf16.xpose.msra.mxu0 0
      %1002 = vmatprep.subr.bf16.mxu0 0
      %1003 = vmatpush1.bf16.xpose.msra.mxu0 0
      %1004 = vmatprep.subr.bf16.mxu0 0
      %1005 = vmatpush1.bf16.xpose.msra.mxu0 0
      %1006 = vmatprep.subr.bf16.mxu0 0
      %1007 = vmatpush1.bf16.xpose.msra.mxu0 0
      %1008 = vmatprep.subr.bf16.mxu0 0
      %1009 = vmatpush1.bf16.xpose.msra.mxu0 0
      %1010 = vmatprep.subr.bf16.mxu0 0
      %1011 = vmatpush1.bf16.xpose.msra.mxu0 0
      %1012 = vmatprep.subr.bf16.mxu0 0
      %1013 = vmatpush1.bf16.xpose.msra.mxu0 0
      %1014 = vmatprep.subr.bf16.mxu0 0
      %1015 = vmatpush1.bf16.xpose.msra.mxu0 0
      %1016 = vmatprep.mubr.bf16.mxu0 0
      %1017 = vmatmul.mubr.bf16.gmra.mrb[0].mxu0 %v979
      %v1018 = vpop.f32.mrb[0].mxu0
      %v1019 = vadd.f32 0.0, %v1018
      %v1020 = vpop.f32.mrb[0].mxu0
      %v1021 = vpop.f32.mrb[0].mxu0
      %v1022 = vpop.f32.mrb[0].mxu0
      %1023 = vdwg.mxu0
      %v1024 = vmul.f32 %v1019, 0.35355338
      %v1025 = vadd.f32 %v1024, %v855
      %v1026 = vsel %vm863, %v1025, -inf
      %1027 = vmax.xlane.f32.xlu0 %v1026
      %v1028 = vpop.xlane.xlu0 %1027
      %v1029 = vsub.f32 %v1025, %v1028
      %v1030 = vmul.f32 %v1029, 1.442695
      %v1031 = vpow.pop %v1030
      %v1032 = vsel %vm863, %v1031, 0.0
      %1033 = vadd.xlane.f32.xlu0 %v1032
      %v1034 = vpop.xlane.xlu0 %1033
      %v1035 = vrcp.pop %v1034
      %v1036 = vmul.f32 %v1031, %v1035
      %v1037 = vpack.c.bf16 %v1036, %v1036
      %1038 = vrot.lane.b32.xlu0 %v854, 56
      %v1039 = vpop.permute.xlu0 %1038
      %v1041 = vsel %vm863, %v1037, 0
      %v1044 = vsel %vm929, %v1039, 0
      %1046 = vmatprep.subr.bf16.mxu0 0
      %1047 = vmatpush1.bf16.msra.mxu0 %v1044
      %1048 = vmatprep.subr.bf16.mxu0 0
      %1049 = vmatpush1.bf16.msra.mxu0 0
      %1050 = vmatprep.subr.bf16.mxu0 0
      %1051 = vmatpush1.bf16.msra.mxu0 0
      %1052 = vmatprep.subr.bf16.mxu0 0
      %1053 = vmatpush1.bf16.msra.mxu0 0
      %1054 = vmatprep.subr.bf16.mxu0 0
      %1055 = vmatpush1.bf16.msra.mxu0 0
      %1056 = vmatprep.subr.bf16.mxu0 0
      %1057 = vmatpush1.bf16.msra.mxu0 0
      %1058 = vmatprep.subr.bf16.mxu0 0
      %1059 = vmatpush1.bf16.msra.mxu0 0
      %1060 = vmatprep.subr.bf16.mxu0 0
      %1061 = vmatpush1.bf16.msra.mxu0 0
      %1062 = vmatprep.subr.bf16.mxu0 0
      %1063 = vmatpush1.bf16.msra.mxu0 0
      %1064 = vmatprep.subr.bf16.mxu0 0
      %1065 = vmatpush1.bf16.msra.mxu0 0
      %1066 = vmatprep.subr.bf16.mxu0 0
      %1067 = vmatpush1.bf16.msra.mxu0 0
      %1068 = vmatprep.subr.bf16.mxu0 0
      %1069 = vmatpush1.bf16.msra.mxu0 0
      %1070 = vmatprep.subr.bf16.mxu0 0
      %1071 = vmatpush1.bf16.msra.mxu0 0
      %1072 = vmatprep.subr.bf16.mxu0 0
      %1073 = vmatpush1.bf16.msra.mxu0 0
      %1074 = vmatprep.subr.bf16.mxu0 0
      %1075 = vmatpush1.bf16.msra.mxu0 0
      %1076 = vmatprep.subr.bf16.mxu0 0
      %1077 = vmatpush1.bf16.msra.mxu0 0
      %1078 = vmatprep.mubr.bf16.mxu0 0
      %1079 = vmatmul.mubr.bf16.gmra.mrb[0].mxu0 %v1041
      %v1080 = vpop.f32.mrb[0].mxu0
      %v1081 = vadd.f32 0.0, %v1080
      %v1082 = vpop.f32.mrb[0].mxu0
      %v1083 = vpop.f32.mrb[0].mxu0
      %v1084 = vpop.f32.mrb[0].mxu0
      %1085 = vdwg.mxu0
      %v1086 = vpack.c.bf16 %v1081, %v1081
      %v1088 = vsel %vm863, %v1086, 0
      %v1091 = vsel %vm929, %v857, 0
      %1093 = vmatprep.subr.bf16.mxu0 0
      %1094 = vmatpush1.bf16.msra.mxu0 %v1091
      %1095 = vmatprep.subr.bf16.mxu0 0
      %1096 = vmatpush1.bf16.msra.mxu0 0
      %1097 = vmatprep.subr.bf16.mxu0 0
      %1098 = vmatpush1.bf16.msra.mxu0 0
      %1099 = vmatprep.subr.bf16.mxu0 0
      %1100 = vmatpush1.bf16.msra.mxu0 0
      %1101 = vmatprep.subr.bf16.mxu0 0
      %1102 = vmatpush1.bf16.msra.mxu0 0
      %1103 = vmatprep.subr.bf16.mxu0 0
      %1104 = vmatpush1.bf16.msra.mxu0 0
      %1105 = vmatprep.subr.bf16.mxu0 0
      %1106 = vmatpush1.bf16.msra.mxu0 0
      %1107 = vmatprep.subr.bf16.mxu0 0
      %1108 = vmatpush1.bf16.msra.mxu0 0
      %1109 = vmatprep.subr.bf16.mxu0 0
      %1110 = vmatpush1.bf16.msra.mxu0 0
      %1111 = vmatprep.subr.bf16.mxu0 0
      %1112 = vmatpush1.bf16.msra.mxu0 0
      %1113 = vmatprep.subr.bf16.mxu0 0
      %1114 = vmatpush1.bf16.msra.mxu0 0
      %1115 = vmatprep.subr.bf16.mxu0 0
      %1116 = vmatpush1.bf16.msra.mxu0 0
      %1117 = vmatprep.subr.bf16.mxu0 0
      %1118 = vmatpush1.bf16.msra.mxu0 0
      %1119 = vmatprep.subr.bf16.mxu0 0
      %1120 = vmatpush1.bf16.msra.mxu0 0
      %1121 = vmatprep.subr.bf16.mxu0 0
      %1122 = vmatpush1.bf16.msra.mxu0 0
      %1123 = vmatprep.subr.bf16.mxu0 0
      %1124 = vmatpush1.bf16.msra.mxu0 0
      %1125 = vmatprep.mubr.bf16.mxu0 0
      %1126 = vmatmul.mubr.bf16.gmra.mrb[0].mxu0 %v1088
      %v1127 = vpop.f32.mrb[0].mxu0
      %v1128 = vadd.f32 0.0, %v1127
      %v1129 = vpop.f32.mrb[0].mxu0
      %v1130 = vpop.f32.mrb[0].mxu0
      %v1131 = vpop.f32.mrb[0].mxu0
      %1132 = vdwg.mxu0
      %v1134 = vsel %vm863, %v973, 0
      %v1137 = vsel %vm929, %v856, 0
      %1139 = vmatprep.subr.bf16.mxu0 0
      %1140 = vmatpush1.bf16.msra.mxu0 %v1137
      %1141 = vmatprep.subr.bf16.mxu0 0
      %1142 = vmatpush1.bf16.msra.mxu0 0
      %1143 = vmatprep.subr.bf16.mxu0 0
      %1144 = vmatpush1.bf16.msra.mxu0 0
      %1145 = vmatprep.subr.bf16.mxu0 0
      %1146 = vmatpush1.bf16.msra.mxu0 0
      %1147 = vmatprep.subr.bf16.mxu0 0
      %1148 = vmatpush1.bf16.msra.mxu0 0
      %1149 = vmatprep.subr.bf16.mxu0 0
      %1150 = vmatpush1.bf16.msra.mxu0 0
      %1151 = vmatprep.subr.bf16.mxu0 0
      %1152 = vmatpush1.bf16.msra.mxu0 0
      %1153 = vmatprep.subr.bf16.mxu0 0
      %1154 = vmatpush1.bf16.msra.mxu0 0
      %1155 = vmatprep.subr.bf16.mxu0 0
      %1156 = vmatpush1.bf16.msra.mxu0 0
      %1157 = vmatprep.subr.bf16.mxu0 0
      %1158 = vmatpush1.bf16.msra.mxu0 0
      %1159 = vmatprep.subr.bf16.mxu0 0
      %1160 = vmatpush1.bf16.msra.mxu0 0
      %1161 = vmatprep.subr.bf16.mxu0 0
      %1162 = vmatpush1.bf16.msra.mxu0 0
      %1163 = vmatprep.subr.bf16.mxu0 0
      %1164 = vmatpush1.bf16.msra.mxu0 0
      %1165 = vmatprep.subr.bf16.mxu0 0
      %1166 = vmatpush1.bf16.msra.mxu0 0
      %1167 = vmatprep.subr.bf16.mxu0 0
      %1168 = vmatpush1.bf16.msra.mxu0 0
      %1169 = vmatprep.subr.bf16.mxu0 0
      %1170 = vmatpush1.bf16.msra.mxu0 0
      %1171 = vmatprep.mubr.bf16.mxu0 0
      %1172 = vmatmul.mubr.bf16.gmra.mrb[0].mxu0 %v1134
      %v1173 = vpop.f32.mrb[0].mxu0
      %v1174 = vadd.f32 %v1128, %v1173
      %v1175 = vpop.f32.mrb[0].mxu0
      %v1176 = vpop.f32.mrb[0].mxu0
      %v1177 = vpop.f32.mrb[0].mxu0
      %1178 = vdwg.mxu0
      %1179 = vrot.lane.b32.xlu0 %v854, 112
      %v1180 = vpop.permute.xlu0 %1179
      %1181 = vrot.lane.b32.xlu0 %v854, 80
      %v1182 = vpop.permute.xlu0 %1181
      %v1184 = vsel %vm863, %v1180, 0
      %v1187 = vsel %vm863, %v1182, 0
      %1189 = vmatprep.subr.bf16.mxu0 0
      %1190 = vmatpush1.bf16.xpose.msra.mxu0 %v1187
      %1191 = vmatprep.subr.bf16.mxu0 0
      %1192 = vmatpush1.bf16.xpose.msra.mxu0 0
      %1193 = vmatprep.subr.bf16.mxu0 0
      %1194 = vmatpush1.bf16.xpose.msra.mxu0 0
      %1195 = vmatprep.subr.bf16.mxu0 0
      %1196 = vmatpush1.bf16.xpose.msra.mxu0 0
      %1197 = vmatprep.subr.bf16.mxu0 0
      %1198 = vmatpush1.bf16.xpose.msra.mxu0 0
      %1199 = vmatprep.subr.bf16.mxu0 0
      %1200 = vmatpush1.bf16.xpose.msra.mxu0 0
      %1201 = vmatprep.subr.bf16.mxu0 0
      %1202 = vmatpush1.bf16.xpose.msra.mxu0 0
      %1203 = vmatprep.subr.bf16.mxu0 0
      %1204 = vmatpush1.bf16.xpose.msra.mxu0 0
      %1205 = vmatprep.subr.bf16.mxu0 0
      %1206 = vmatpush1.bf16.xpose.msra.mxu0 0
      %1207 = vmatprep.subr.bf16.mxu0 0
      %1208 = vmatpush1.bf16.xpose.msra.mxu0 0
      %1209 = vmatprep.subr.bf16.mxu0 0
      %1210 = vmatpush1.bf16.xpose.msra.mxu0 0
      %1211 = vmatprep.subr.bf16.mxu0 0
      %1212 = vmatpush1.bf16.xpose.msra.mxu0 0
      %1213 = vmatprep.subr.bf16.mxu0 0
      %1214 = vmatpush1.bf16.xpose.msra.mxu0 0
      %1215 = vmatprep.subr.bf16.mxu0 0
      %1216 = vmatpush1.bf16.xpose.msra.mxu0 0
      %1217 = vmatprep.subr.bf16.mxu0 0
      %1218 = vmatpush1.bf16.xpose.msra.mxu0 0
      %1219 = vmatprep.subr.bf16.mxu0 0
      %1220 = vmatpush1.bf16.xpose.msra.mxu0 0
      %1221 = vmatprep.mubr.bf16.mxu0 0
      %1222 = vmatmul.mubr.bf16.gmra.mrb[0].mxu0 %v1184
      %v1223 = vpop.f32.mrb[0].mxu0
      %v1224 = vadd.f32 0.0, %v1223
      %v1225 = vpop.f32.mrb[0].mxu0
      %v1226 = vpop.f32.mrb[0].mxu0
      %v1227 = vpop.f32.mrb[0].mxu0
      %1228 = vdwg.mxu0
      %v1229 = vmul.f32 %v1224, 0.35355338
      %v1230 = vadd.f32 %v1229, %v855
      %v1231 = vsel %vm863, %v1230, -inf
      %1232 = vmax.xlane.f32.xlu0 %v1231
      %v1233 = vpop.xlane.xlu0 %1232
      %v1234 = vsub.f32 %v1230, %v1233
      %v1235 = vmul.f32 %v1234, 1.442695
      %v1236 = vpow.pop %v1235
      %v1237 = vsel %vm863, %v1236, 0.0
      %1238 = vadd.xlane.f32.xlu0 %v1237
      %v1239 = vpop.xlane.xlu0 %1238
      %v1240 = vrcp.pop %v1239
      %v1241 = vmul.f32 %v1236, %v1240
      %v1242 = vpack.c.bf16 %v1241, %v1241
      %1243 = vrot.lane.b32.xlu0 %v854, 48
      %v1244 = vpop.permute.xlu0 %1243
      %v1246 = vsel %vm863, %v1242, 0
      %v1249 = vsel %vm929, %v1244, 0
      %1251 = vmatprep.subr.bf16.mxu0 0
      %1252 = vmatpush1.bf16.msra.mxu0 %v1249
      %1253 = vmatprep.subr.bf16.mxu0 0
      %1254 = vmatpush1.bf16.msra.mxu0 0
      %1255 = vmatprep.subr.bf16.mxu0 0
      %1256 = vmatpush1.bf16.msra.mxu0 0
      %1257 = vmatprep.subr.bf16.mxu0 0
      %1258 = vmatpush1.bf16.msra.mxu0 0
      %1259 = vmatprep.subr.bf16.mxu0 0
      %1260 = vmatpush1.bf16.msra.mxu0 0
      %1261 = vmatprep.subr.bf16.mxu0 0
      %1262 = vmatpush1.bf16.msra.mxu0 0
      %1263 = vmatprep.subr.bf16.mxu0 0
      %1264 = vmatpush1.bf16.msra.mxu0 0
      %1265 = vmatprep.subr.bf16.mxu0 0
      %1266 = vmatpush1.bf16.msra.mxu0 0
      %1267 = vmatprep.subr.bf16.mxu0 0
      %1268 = vmatpush1.bf16.msra.mxu0 0
      %1269 = vmatprep.subr.bf16.mxu0 0
      %1270 = vmatpush1.bf16.msra.mxu0 0
      %1271 = vmatprep.subr.bf16.mxu0 0
      %1272 = vmatpush1.bf16.msra.mxu0 0
      %1273 = vmatprep.subr.bf16.mxu0 0
      %1274 = vmatpush1.bf16.msra.mxu0 0
      %1275 = vmatprep.subr.bf16.mxu0 0
      %1276 = vmatpush1.bf16.msra.mxu0 0
      %1277 = vmatprep.subr.bf16.mxu0 0
      %1278 = vmatpush1.bf16.msra.mxu0 0
      %1279 = vmatprep.subr.bf16.mxu0 0
      %1280 = vmatpush1.bf16.msra.mxu0 0
      %1281 = vmatprep.subr.bf16.mxu0 0
      %1282 = vmatpush1.bf16.msra.mxu0 0
      %1283 = vmatprep.mubr.bf16.mxu0 0
      %1284 = vmatmul.mubr.bf16.gmra.mrb[0].mxu0 %v1246
      %v1285 = vpop.f32.mrb[0].mxu0
      %v1286 = vadd.f32 0.0, %v1285
      %v1287 = vpop.f32.mrb[0].mxu0
      %v1288 = vpop.f32.mrb[0].mxu0
      %v1289 = vpop.f32.mrb[0].mxu0
      %1290 = vdwg.mxu0
      %v1291 = vpack.c.bf16 %v1286, %v1286
      %v1293 = vsel %vm863, %v1291, 0
      %v1296 = vsel %vm929, %v858, 0
      %1298 = vmatprep.subr.bf16.mxu0 0
      %1299 = vmatpush1.bf16.msra.mxu0 %v1296
      %1300 = vmatprep.subr.bf16.mxu0 0
      %1301 = vmatpush1.bf16.msra.mxu0 0
      %1302 = vmatprep.subr.bf16.mxu0 0
      %1303 = vmatpush1.bf16.msra.mxu0 0
      %1304 = vmatprep.subr.bf16.mxu0 0
      %1305 = vmatpush1.bf16.msra.mxu0 0
      %1306 = vmatprep.subr.bf16.mxu0 0
      %1307 = vmatpush1.bf16.msra.mxu0 0
      %1308 = vmatprep.subr.bf16.mxu0 0
      %1309 = vmatpush1.bf16.msra.mxu0 0
      %1310 = vmatprep.subr.bf16.mxu0 0
      %1311 = vmatpush1.bf16.msra.mxu0 0
      %1312 = vmatprep.subr.bf16.mxu0 0
      %1313 = vmatpush1.bf16.msra.mxu0 0
      %1314 = vmatprep.subr.bf16.mxu0 0
      %1315 = vmatpush1.bf16.msra.mxu0 0
      %1316 = vmatprep.subr.bf16.mxu0 0
      %1317 = vmatpush1.bf16.msra.mxu0 0
      %1318 = vmatprep.subr.bf16.mxu0 0
      %1319 = vmatpush1.bf16.msra.mxu0 0
      %1320 = vmatprep.subr.bf16.mxu0 0
      %1321 = vmatpush1.bf16.msra.mxu0 0
      %1322 = vmatprep.subr.bf16.mxu0 0
      %1323 = vmatpush1.bf16.msra.mxu0 0
      %1324 = vmatprep.subr.bf16.mxu0 0
      %1325 = vmatpush1.bf16.msra.mxu0 0
      %1326 = vmatprep.subr.bf16.mxu0 0
      %1327 = vmatpush1.bf16.msra.mxu0 0
      %1328 = vmatprep.subr.bf16.mxu0 0
      %1329 = vmatpush1.bf16.msra.mxu0 0
      %1330 = vmatprep.mubr.bf16.mxu0 0
      %1331 = vmatmul.mubr.bf16.gmra.mrb[0].mxu0 %v1293
      %v1332 = vpop.f32.mrb[0].mxu0
      %v1333 = vadd.f32 0.0, %v1332
      %v1334 = vpop.f32.mrb[0].mxu0
      %v1335 = vpop.f32.mrb[0].mxu0
      %v1336 = vpop.f32.mrb[0].mxu0
      %1337 = vdwg.mxu0
      %v1338 = vadd.f32 %v1174, %v1333
      %1339 = vrot.lane.b32.xlu0 %v854, 104
      %v1340 = vpop.permute.xlu0 %1339
      %1341 = vrot.lane.b32.xlu0 %v854, 72
      %v1342 = vpop.permute.xlu0 %1341
      %v1344 = vsel %vm863, %v1340, 0
      %v1347 = vsel %vm863, %v1342, 0
      %1349 = vmatprep.subr.bf16.mxu0 0
      %1350 = vmatpush1.bf16.xpose.msra.mxu0 %v1347
      %1351 = vmatprep.subr.bf16.mxu0 0
      %1352 = vmatpush1.bf16.xpose.msra.mxu0 0
      %1353 = vmatprep.subr.bf16.mxu0 0
      %1354 = vmatpush1.bf16.xpose.msra.mxu0 0
      %1355 = vmatprep.subr.bf16.mxu0 0
      %1356 = vmatpush1.bf16.xpose.msra.mxu0 0
      %1357 = vmatprep.subr.bf16.mxu0 0
      %1358 = vmatpush1.bf16.xpose.msra.mxu0 0
      %1359 = vmatprep.subr.bf16.mxu0 0
      %1360 = vmatpush1.bf16.xpose.msra.mxu0 0
      %1361 = vmatprep.subr.bf16.mxu0 0
      %1362 = vmatpush1.bf16.xpose.msra.mxu0 0
      %1363 = vmatprep.subr.bf16.mxu0 0
      %1364 = vmatpush1.bf16.xpose.msra.mxu0 0
      %1365 = vmatprep.subr.bf16.mxu0 0
      %1366 = vmatpush1.bf16.xpose.msra.mxu0 0
      %1367 = vmatprep.subr.bf16.mxu0 0
      %1368 = vmatpush1.bf16.xpose.msra.mxu0 0
      %1369 = vmatprep.subr.bf16.mxu0 0
      %1370 = vmatpush1.bf16.xpose.msra.mxu0 0
      %1371 = vmatprep.subr.bf16.mxu0 0
      %1372 = vmatpush1.bf16.xpose.msra.mxu0 0
      %1373 = vmatprep.subr.bf16.mxu0 0
      %1374 = vmatpush1.bf16.xpose.msra.mxu0 0
      %1375 = vmatprep.subr.bf16.mxu0 0
      %1376 = vmatpush1.bf16.xpose.msra.mxu0 0
      %1377 = vmatprep.subr.bf16.mxu0 0
      %1378 = vmatpush1.bf16.xpose.msra.mxu0 0
      %1379 = vmatprep.subr.bf16.mxu0 0
      %1380 = vmatpush1.bf16.xpose.msra.mxu0 0
      %1381 = vmatprep.mubr.bf16.mxu0 0
      %1382 = vmatmul.mubr.bf16.gmra.mrb[0].mxu0 %v1344
      %v1383 = vpop.f32.mrb[0].mxu0
      %v1384 = vadd.f32 0.0, %v1383
      %v1385 = vpop.f32.mrb[0].mxu0
      %v1386 = vpop.f32.mrb[0].mxu0
      %v1387 = vpop.f32.mrb[0].mxu0
      %1388 = vdwg.mxu0
      %v1389 = vmul.f32 %v1384, 0.35355338
      %v1390 = vadd.f32 %v1389, %v855
      %v1391 = vsel %vm863, %v1390, -inf
      %1392 = vmax.xlane.f32.xlu0 %v1391
      %v1393 = vpop.xlane.xlu0 %1392
      %v1394 = vsub.f32 %v1390, %v1393
      %v1395 = vmul.f32 %v1394, 1.442695
      %v1396 = vpow.pop %v1395
      %v1397 = vsel %vm863, %v1396, 0.0
      %1398 = vadd.xlane.f32.xlu0 %v1397
      %v1399 = vpop.xlane.xlu0 %1398
      %v1400 = vrcp.pop %v1399
      %v1401 = vmul.f32 %v1396, %v1400
      %v1402 = vpack.c.bf16 %v1401, %v1401
      %1403 = vrot.lane.b32.xlu0 %v854, 40
      %v1404 = vpop.permute.xlu0 %1403
      %v1406 = vsel %vm863, %v1402, 0
      %v1409 = vsel %vm929, %v1404, 0
      %1411 = vmatprep.subr.bf16.mxu0 0
      %1412 = vmatpush1.bf16.msra.mxu0 %v1409
      %1413 = vmatprep.subr.bf16.mxu0 0
      %1414 = vmatpush1.bf16.msra.mxu0 0
      %1415 = vmatprep.subr.bf16.mxu0 0
      %1416 = vmatpush1.bf16.msra.mxu0 0
      %1417 = vmatprep.subr.bf16.mxu0 0
      %1418 = vmatpush1.bf16.msra.mxu0 0
      %1419 = vmatprep.subr.bf16.mxu0 0
      %1420 = vmatpush1.bf16.msra.mxu0 0
      %1421 = vmatprep.subr.bf16.mxu0 0
      %1422 = vmatpush1.bf16.msra.mxu0 0
      %1423 = vmatprep.subr.bf16.mxu0 0
      %1424 = vmatpush1.bf16.msra.mxu0 0
      %1425 = vmatprep.subr.bf16.mxu0 0
      %1426 = vmatpush1.bf16.msra.mxu0 0
      %1427 = vmatprep.subr.bf16.mxu0 0
      %1428 = vmatpush1.bf16.msra.mxu0 0
      %1429 = vmatprep.subr.bf16.mxu0 0
      %1430 = vmatpush1.bf16.msra.mxu0 0
      %1431 = vmatprep.subr.bf16.mxu0 0
      %1432 = vmatpush1.bf16.msra.mxu0 0
      %1433 = vmatprep.subr.bf16.mxu0 0
      %1434 = vmatpush1.bf16.msra.mxu0 0
      %1435 = vmatprep.subr.bf16.mxu0 0
      %1436 = vmatpush1.bf16.msra.mxu0 0
      %1437 = vmatprep.subr.bf16.mxu0 0
      %1438 = vmatpush1.bf16.msra.mxu0 0
      %1439 = vmatprep.subr.bf16.mxu0 0
      %1440 = vmatpush1.bf16.msra.mxu0 0
      %1441 = vmatprep.subr.bf16.mxu0 0
      %1442 = vmatpush1.bf16.msra.mxu0 0
      %1443 = vmatprep.mubr.bf16.mxu0 0
      %1444 = vmatmul.mubr.bf16.gmra.mrb[0].mxu0 %v1406
      %v1445 = vpop.f32.mrb[0].mxu0
      %v1446 = vadd.f32 0.0, %v1445
      %v1447 = vpop.f32.mrb[0].mxu0
      %v1448 = vpop.f32.mrb[0].mxu0
      %v1449 = vpop.f32.mrb[0].mxu0
      %1450 = vdwg.mxu0
      %v1451 = vpack.c.bf16 %v1446, %v1446
      %v1453 = vsel %vm863, %v1451, 0
      %v1456 = vsel %vm929, %v859, 0
      %1458 = vmatprep.subr.bf16.mxu0 0
      %1459 = vmatpush1.bf16.msra.mxu0 %v1456
      %1460 = vmatprep.subr.bf16.mxu0 0
      %1461 = vmatpush1.bf16.msra.mxu0 0
      %1462 = vmatprep.subr.bf16.mxu0 0
      %1463 = vmatpush1.bf16.msra.mxu0 0
      %1464 = vmatprep.subr.bf16.mxu0 0
      %1465 = vmatpush1.bf16.msra.mxu0 0
      %1466 = vmatprep.subr.bf16.mxu0 0
      %1467 = vmatpush1.bf16.msra.mxu0 0
      %1468 = vmatprep.subr.bf16.mxu0 0
      %1469 = vmatpush1.bf16.msra.mxu0 0
      %1470 = vmatprep.subr.bf16.mxu0 0
      %1471 = vmatpush1.bf16.msra.mxu0 0
      %1472 = vmatprep.subr.bf16.mxu0 0
      %1473 = vmatpush1.bf16.msra.mxu0 0
      %1474 = vmatprep.subr.bf16.mxu0 0
      %1475 = vmatpush1.bf16.msra.mxu0 0
      %1476 = vmatprep.subr.bf16.mxu0 0
      %1477 = vmatpush1.bf16.msra.mxu0 0
      %1478 = vmatprep.subr.bf16.mxu0 0
      %1479 = vmatpush1.bf16.msra.mxu0 0
      %1480 = vmatprep.subr.bf16.mxu0 0
      %1481 = vmatpush1.bf16.msra.mxu0 0
      %1482 = vmatprep.subr.bf16.mxu0 0
      %1483 = vmatpush1.bf16.msra.mxu0 0
      %1484 = vmatprep.subr.bf16.mxu0 0
      %1485 = vmatpush1.bf16.msra.mxu0 0
      %1486 = vmatprep.subr.bf16.mxu0 0
      %1487 = vmatpush1.bf16.msra.mxu0 0
      %1488 = vmatprep.subr.bf16.mxu0 0
      %1489 = vmatpush1.bf16.msra.mxu0 0
      %1490 = vmatprep.mubr.bf16.mxu0 0
      %1491 = vmatmul.mubr.bf16.gmra.mrb[0].mxu0 %v1453
      %v1492 = vpop.f32.mrb[0].mxu0
      %v1493 = vadd.f32 0.0, %v1492
      %v1494 = vpop.f32.mrb[0].mxu0
      %v1495 = vpop.f32.mrb[0].mxu0
      %v1496 = vpop.f32.mrb[0].mxu0
      %1497 = vdwg.mxu0
      %v1498 = vadd.f32 %v1338, %v1493
      %v1499 = vld [vmem:[%s7] sm:$0x1]
      %v1501 = vlaneseq
      %v1502 = vshrl.u32 %v1501, 7
      %v1503 = vsub.s32 0, %v1502
      %v1504 = vrot.slane %v1499, %v1503
      %v1506 = vadd.f32 %v1498, %v1504
      %v1507 = vunpack.c.l.bf16 %v785
      %v1508 = vadd.f32 %v1507, %v1506
      %v1509 = vsel %vm810, %v1508, 0.0
      %1510 = vadd.xlane.f32.xlu0 %v1509
      %v1511 = vpop.xlane.xlu0 %1510
      %v1512 = vrcp.pop 32.0
      %v1513 = vmul.f32 %v1511, %v1512
      %v1514 = vsub.f32 %v1508, %v1513
      %v1515 = vmul.f32 %v1514, %v1514
      %v1516 = vsel %vm810, %v1515, 0.0
      %1517 = vadd.xlane.f32.xlu0 %v1516
      %v1518 = vpop.xlane.xlu0 %1517
      %v1519 = vmul.f32 %v1518, %v1512
      %v1520 = vadd.f32 %v1519, 1e-05
      %v1521 = vrsqrt.pop %v1520
      %v1522 = vmul.f32 %v1514, %v1521
      %v1523 = vld [vmem:[%s8] sm:$0x1]
      %v1525 = vlaneseq
      %v1526 = vshrl.u32 %v1525, 7
      %v1527 = vsub.s32 0, %v1526
      %v1528 = vrot.slane %v1523, %v1527
      %v1530 = vmul.f32 %v1522, %v1528
      %v1531 = vld [vmem:[%s9] sm:$0x1]
      %v1533 = vlaneseq
      %v1534 = vshrl.u32 %v1533, 7
      %v1535 = vsub.s32 0, %v1534
      %v1536 = vrot.slane %v1531, %v1535
      %v1538 = vadd.f32 %v1530, %v1536
      %v1539 = vpack.c.bf16 %v1538, %v1538
      %v1540 = vld [vmem:[%s10] sm:$0xf]
      %v1541 = vld [vmem:[%s10 + $0x4] sm:$0xf]
      %v1542 = vld [vmem:[%s10 + $0x8] sm:$0xf]
      %v1543 = vld [vmem:[%s10 + $0xc] sm:$0xf]
      %v1544 = vld [vmem:[%s11] sm:$0x1]
      %v1546 = vlaneseq
      %v1547 = vshrl.u32 %v1546, 7
      %v1548 = vsub.s32 0, %v1547
      %v1549 = vrot.slane %v1544, %v1548
      %v1555 = vunpack.c.l.b16 %v1540
      %v1556 = vunpack.c.l.b16 %v1541
      %v1557 = vunpack.c.l.b16 %v1542
      %v1558 = vunpack.c.l.b16 %v1543
      %v1559 = vpack.c.b16 %v1556, %v1555
      %v1560 = vpack.c.b16 %v1558, %v1557
      %v1564 = vsel %vm810, %v1539, 0
      %1566 = vmatprep.subr.bf16.mxu0 0
      %1567 = vmatpush1.bf16.msra.mxu0 %v1559
      %1568 = vmatprep.subr.bf16.mxu0 0
      %1569 = vmatpush1.bf16.msra.mxu0 %v1560
      %1570 = vmatprep.subr.bf16.mxu0 0
      %1571 = vmatpush1.bf16.msra.mxu0 0
      %1572 = vmatprep.subr.bf16.mxu0 0
      %1573 = vmatpush1.bf16.msra.mxu0 0
      %1574 = vmatprep.subr.bf16.mxu0 0
      %1575 = vmatpush1.bf16.msra.mxu0 0
      %1576 = vmatprep.subr.bf16.mxu0 0
      %1577 = vmatpush1.bf16.msra.mxu0 0
      %1578 = vmatprep.subr.bf16.mxu0 0
      %1579 = vmatpush1.bf16.msra.mxu0 0
      %1580 = vmatprep.subr.bf16.mxu0 0
      %1581 = vmatpush1.bf16.msra.mxu0 0
      %1582 = vmatprep.subr.bf16.mxu0 0
      %1583 = vmatpush1.bf16.msra.mxu0 0
      %1584 = vmatprep.subr.bf16.mxu0 0
      %1585 = vmatpush1.bf16.msra.mxu0 0
      %1586 = vmatprep.subr.bf16.mxu0 0
      %1587 = vmatpush1.bf16.msra.mxu0 0
      %1588 = vmatprep.subr.bf16.mxu0 0
      %1589 = vmatpush1.bf16.msra.mxu0 0
      %1590 = vmatprep.subr.bf16.mxu0 0
      %1591 = vmatpush1.bf16.msra.mxu0 0
      %1592 = vmatprep.subr.bf16.mxu0 0
      %1593 = vmatpush1.bf16.msra.mxu0 0
      %1594 = vmatprep.subr.bf16.mxu0 0
      %1595 = vmatpush1.bf16.msra.mxu0 0
      %1596 = vmatprep.subr.bf16.mxu0 0
      %1597 = vmatpush1.bf16.msra.mxu0 0
      %1598 = vmatprep.mubr.bf16.mxu0 0
      %1599 = vmatmul.mubr.bf16.gmra.mrb[0].mxu0 %v1564
      %v1600 = vpop.f32.mrb[0].mxu0
      %v1601 = vadd.f32 %v1549, %v1600
      %v1602 = vpop.f32.mrb[0].mxu0
      %v1603 = vpop.f32.mrb[0].mxu0
      %v1604 = vpop.f32.mrb[0].mxu0
      %1605 = vdwg.mxu0
      %v1606 = vpack.c.bf16 %v1601, %v1601
      %v1607 = vld [vmem:[%s12] sm:$0xf]
      %v1608 = vld [vmem:[%s12 + $0x4] sm:$0xf]
      %v1609 = vld [vmem:[%s12 + $0x8] sm:$0xf]
      %v1610 = vld [vmem:[%s12 + $0xc] sm:$0xf]
      %v1611 = vld [vmem:[%s13] sm:$0x1]
      %v1613 = vlaneseq
      %v1614 = vshrl.u32 %v1613, 7
      %v1615 = vsub.s32 0, %v1614
      %v1616 = vrot.slane %v1611, %v1615
      %v1622 = vunpack.c.l.b16 %v1607
      %v1623 = vunpack.c.l.b16 %v1608
      %v1624 = vunpack.c.l.b16 %v1609
      %v1625 = vunpack.c.l.b16 %v1610
      %v1626 = vpack.c.b16 %v1623, %v1622
      %v1627 = vpack.c.b16 %v1625, %v1624
      %v1631 = vsel %vm810, %v786, 0
      %1633 = vmatprep.subr.bf16.mxu0 0
      %1634 = vmatpush1.bf16.msra.mxu0 %v1626
      %1635 = vmatprep.subr.bf16.mxu0 0
      %1636 = vmatpush1.bf16.msra.mxu0 %v1627
      %1637 = vmatprep.subr.bf16.mxu0 0
      %1638 = vmatpush1.bf16.msra.mxu0 0
      %1639 = vmatprep.subr.bf16.mxu0 0
      %1640 = vmatpush1.bf16.msra.mxu0 0
      %1641 = vmatprep.subr.bf16.mxu0 0
      %1642 = vmatpush1.bf16.msra.mxu0 0
      %1643 = vmatprep.subr.bf16.mxu0 0
      %1644 = vmatpush1.bf16.msra.mxu0 0
      %1645 = vmatprep.subr.bf16.mxu0 0
      %1646 = vmatpush1.bf16.msra.mxu0 0
      %1647 = vmatprep.subr.bf16.mxu0 0
      %1648 = vmatpush1.bf16.msra.mxu0 0
      %1649 = vmatprep.subr.bf16.mxu0 0
      %1650 = vmatpush1.bf16.msra.mxu0 0
      %1651 = vmatprep.subr.bf16.mxu0 0
      %1652 = vmatpush1.bf16.msra.mxu0 0
      %1653 = vmatprep.subr.bf16.mxu0 0
      %1654 = vmatpush1.bf16.msra.mxu0 0
      %1655 = vmatprep.subr.bf16.mxu0 0
      %1656 = vmatpush1.bf16.msra.mxu0 0
      %1657 = vmatprep.subr.bf16.mxu0 0
      %1658 = vmatpush1.bf16.msra.mxu0 0
      %1659 = vmatprep.subr.bf16.mxu0 0
      %1660 = vmatpush1.bf16.msra.mxu0 0
      %1661 = vmatprep.subr.bf16.mxu0 0
      %1662 = vmatpush1.bf16.msra.mxu0 0
      %1663 = vmatprep.subr.bf16.mxu0 0
      %1664 = vmatpush1.bf16.msra.mxu0 0
      %1665 = vmatprep.mubr.bf16.mxu0 0
      %1666 = vmatmul.mubr.bf16.gmra.mrb[0].mxu0 %v1631
      %v1667 = vpop.f32.mrb[0].mxu0
      %v1668 = vadd.f32 %v1616, %v1667
      %v1669 = vpop.f32.mrb[0].mxu0
      %v1670 = vpop.f32.mrb[0].mxu0
      %v1671 = vpop.f32.mrb[0].mxu0
      %1672 = vdwg.mxu0
      %v1673 = vpack.c.bf16 %v1668, %v1668
      %v1674 = vld [vmem:[%s779] sm:$0xff]
      %v1675 = vld [vmem:[%s14] sm:$0xf]
      %v1676 = vld [vmem:[%s14 + $0x4] sm:$0xf]
      %v1677 = vld [vmem:[%s14 + $0x8] sm:$0xf]
      %v1678 = vld [vmem:[%s14 + $0xc] sm:$0xf]
      %v1680 = vsel %vm863, %v1606, 0
      %v1683 = vsel %vm863, %v1673, 0
      %1685 = vmatprep.subr.bf16.mxu0 0
      %1686 = vmatpush1.bf16.xpose.msra.mxu0 %v1683
      %1687 = vmatprep.subr.bf16.mxu0 0
      %1688 = vmatpush1.bf16.xpose.msra.mxu0 0
      %1689 = vmatprep.subr.bf16.mxu0 0
      %1690 = vmatpush1.bf16.xpose.msra.mxu0 0
      %1691 = vmatprep.subr.bf16.mxu0 0
      %1692 = vmatpush1.bf16.xpose.msra.mxu0 0
      %1693 = vmatprep.subr.bf16.mxu0 0
      %1694 = vmatpush1.bf16.xpose.msra.mxu0 0
      %1695 = vmatprep.subr.bf16.mxu0 0
      %1696 = vmatpush1.bf16.xpose.msra.mxu0 0
      %1697 = vmatprep.subr.bf16.mxu0 0
      %1698 = vmatpush1.bf16.xpose.msra.mxu0 0
      %1699 = vmatprep.subr.bf16.mxu0 0
      %1700 = vmatpush1.bf16.xpose.msra.mxu0 0
      %1701 = vmatprep.subr.bf16.mxu0 0
      %1702 = vmatpush1.bf16.xpose.msra.mxu0 0
      %1703 = vmatprep.subr.bf16.mxu0 0
      %1704 = vmatpush1.bf16.xpose.msra.mxu0 0
      %1705 = vmatprep.subr.bf16.mxu0 0
      %1706 = vmatpush1.bf16.xpose.msra.mxu0 0
      %1707 = vmatprep.subr.bf16.mxu0 0
      %1708 = vmatpush1.bf16.xpose.msra.mxu0 0
      %1709 = vmatprep.subr.bf16.mxu0 0
      %1710 = vmatpush1.bf16.xpose.msra.mxu0 0
      %1711 = vmatprep.subr.bf16.mxu0 0
      %1712 = vmatpush1.bf16.xpose.msra.mxu0 0
      %1713 = vmatprep.subr.bf16.mxu0 0
      %1714 = vmatpush1.bf16.xpose.msra.mxu0 0
      %1715 = vmatprep.subr.bf16.mxu0 0
      %1716 = vmatpush1.bf16.xpose.msra.mxu0 0
      %1717 = vmatprep.mubr.bf16.mxu0 0
      %1718 = vmatmul.mubr.bf16.gmra.mrb[0].mxu0 %v1680
      %v1719 = vpop.f32.mrb[0].mxu0
      %v1720 = vadd.f32 0.0, %v1719
      %v1721 = vpop.f32.mrb[0].mxu0
      %v1722 = vpop.f32.mrb[0].mxu0
      %v1723 = vpop.f32.mrb[0].mxu0
      %1724 = vdwg.mxu0
      %v1725 = vmul.f32 %v1720, 0.35355338
      %v1726 = vadd.f32 %v1725, %v1674
      %v1727 = vsel %vm863, %v1726, -inf
      %1728 = vmax.xlane.f32.xlu0 %v1727
      %v1729 = vpop.xlane.xlu0 %1728
      %v1730 = vsub.f32 %v1726, %v1729
      %v1731 = vmul.f32 %v1730, 1.442695
      %v1732 = vpow.pop %v1731
      %v1733 = vsel %vm863, %v1732, 0.0
      %1734 = vadd.xlane.f32.xlu0 %v1733
      %v1735 = vpop.xlane.xlu0 %1734
      %v1736 = vrcp.pop %v1735
      %v1737 = vmul.f32 %v1732, %v1736
      %v1738 = vpack.c.bf16 %v1737, %v1737
      %1740 = vrot.lane.b32.xlu0 %v1673, 96
      %v1741 = vpop.permute.xlu0 %1740
      %v1743 = vsel %vm863, %v1738, 0
      %v1746 = vsel %vm929, %v1741, 0
      %1748 = vmatprep.subr.bf16.mxu0 0
      %1749 = vmatpush1.bf16.msra.mxu0 %v1746
      %1750 = vmatprep.subr.bf16.mxu0 0
      %1751 = vmatpush1.bf16.msra.mxu0 0
      %1752 = vmatprep.subr.bf16.mxu0 0
      %1753 = vmatpush1.bf16.msra.mxu0 0
      %1754 = vmatprep.subr.bf16.mxu0 0
      %1755 = vmatpush1.bf16.msra.mxu0 0
      %1756 = vmatprep.subr.bf16.mxu0 0
      %1757 = vmatpush1.bf16.msra.mxu0 0
      %1758 = vmatprep.subr.bf16.mxu0 0
      %1759 = vmatpush1.bf16.msra.mxu0 0
      %1760 = vmatprep.subr.bf16.mxu0 0
      %1761 = vmatpush1.bf16.msra.mxu0 0
      %1762 = vmatprep.subr.bf16.mxu0 0
      %1763 = vmatpush1.bf16.msra.mxu0 0
      %1764 = vmatprep.subr.bf16.mxu0 0
      %1765 = vmatpush1.bf16.msra.mxu0 0
      %1766 = vmatprep.subr.bf16.mxu0 0
      %1767 = vmatpush1.bf16.msra.mxu0 0
      %1768 = vmatprep.subr.bf16.mxu0 0
      %1769 = vmatpush1.bf16.msra.mxu0 0
      %1770 = vmatprep.subr.bf16.mxu0 0
      %1771 = vmatpush1.bf16.msra.mxu0 0
      %1772 = vmatprep.subr.bf16.mxu0 0
      %1773 = vmatpush1.bf16.msra.mxu0 0
      %1774 = vmatprep.subr.bf16.mxu0 0
      %1775 = vmatpush1.bf16.msra.mxu0 0
      %1776 = vmatprep.subr.bf16.mxu0 0
      %1777 = vmatpush1.bf16.msra.mxu0 0
      %1778 = vmatprep.subr.bf16.mxu0 0
      %1779 = vmatpush1.bf16.msra.mxu0 0
      %1780 = vmatprep.mubr.bf16.mxu0 0
      %1781 = vmatmul.mubr.bf16.gmra.mrb[0].mxu0 %v1743
      %v1782 = vpop.f32.mrb[0].mxu0
      %v1783 = vadd.f32 0.0, %v1782
      %v1784 = vpop.f32.mrb[0].mxu0
      %v1785 = vpop.f32.mrb[0].mxu0
      %v1786 = vpop.f32.mrb[0].mxu0
      %1787 = vdwg.mxu0
      %v1788 = vpack.c.bf16 %v1783, %v1783
      %1790 = vrot.lane.b32.xlu0 %v1606, 120
      %v1791 = vpop.permute.xlu0 %1790
      %1792 = vrot.lane.b32.xlu0 %v1673, 120
      %v1793 = vpop.permute.xlu0 %1792
      %v1795 = vsel %vm863, %v1791, 0
      %v1798 = vsel %vm863, %v1793, 0
      %1800 = vmatprep.subr.bf16.mxu0 0
      %1801 = vmatpush1.bf16.xpose.msra.mxu0 %v1798
      %1802 = vmatprep.subr.bf16.mxu0 0
      %1803 = vmatpush1.bf16.xpose.msra.mxu0 0
      %1804 = vmatprep.subr.bf16.mxu0 0
      %1805 = vmatpush1.bf16.xpose.msra.mxu0 0
      %1806 = vmatprep.subr.bf16.mxu0 0
      %1807 = vmatpush1.bf16.xpose.msra.mxu0 0
      %1808 = vmatprep.subr.bf16.mxu0 0
      %1809 = vmatpush1.bf16.xpose.msra.mxu0 0
      %1810 = vmatprep.subr.bf16.mxu0 0
      %1811 = vmatpush1.bf16.xpose.msra.mxu0 0
      %1812 = vmatprep.subr.bf16.mxu0 0
      %1813 = vmatpush1.bf16.xpose.msra.mxu0 0
      %1814 = vmatprep.subr.bf16.mxu0 0
      %1815 = vmatpush1.bf16.xpose.msra.mxu0 0
      %1816 = vmatprep.subr.bf16.mxu0 0
      %1817 = vmatpush1.bf16.xpose.msra.mxu0 0
      %1818 = vmatprep.subr.bf16.mxu0 0
      %1819 = vmatpush1.bf16.xpose.msra.mxu0 0
      %1820 = vmatprep.subr.bf16.mxu0 0
      %1821 = vmatpush1.bf16.xpose.msra.mxu0 0
      %1822 = vmatprep.subr.bf16.mxu0 0
      %1823 = vmatpush1.bf16.xpose.msra.mxu0 0
      %1824 = vmatprep.subr.bf16.mxu0 0
      %1825 = vmatpush1.bf16.xpose.msra.mxu0 0
      %1826 = vmatprep.subr.bf16.mxu0 0
      %1827 = vmatpush1.bf16.xpose.msra.mxu0 0
      %1828 = vmatprep.subr.bf16.mxu0 0
      %1829 = vmatpush1.bf16.xpose.msra.mxu0 0
      %1830 = vmatprep.subr.bf16.mxu0 0
      %1831 = vmatpush1.bf16.xpose.msra.mxu0 0
      %1832 = vmatprep.mubr.bf16.mxu0 0
      %1833 = vmatmul.mubr.bf16.gmra.mrb[0].mxu0 %v1795
      %v1834 = vpop.f32.mrb[0].mxu0
      %v1835 = vadd.f32 0.0, %v1834
      %v1836 = vpop.f32.mrb[0].mxu0
      %v1837 = vpop.f32.mrb[0].mxu0
      %v1838 = vpop.f32.mrb[0].mxu0
      %1839 = vdwg.mxu0
      %v1840 = vmul.f32 %v1835, 0.35355338
      %v1841 = vadd.f32 %v1840, %v1674
      %v1842 = vsel %vm863, %v1841, -inf
      %1843 = vmax.xlane.f32.xlu0 %v1842
      %v1844 = vpop.xlane.xlu0 %1843
      %v1845 = vsub.f32 %v1841, %v1844
      %v1846 = vmul.f32 %v1845, 1.442695
      %v1847 = vpow.pop %v1846
      %v1848 = vsel %vm863, %v1847, 0.0
      %1849 = vadd.xlane.f32.xlu0 %v1848
      %v1850 = vpop.xlane.xlu0 %1849
      %v1851 = vrcp.pop %v1850
      %v1852 = vmul.f32 %v1847, %v1851
      %v1853 = vpack.c.bf16 %v1852, %v1852
      %1854 = vrot.lane.b32.xlu0 %v1673, 88
      %v1855 = vpop.permute.xlu0 %1854
      %v1857 = vsel %vm863, %v1853, 0
      %v1860 = vsel %vm929, %v1855, 0
      %1862 = vmatprep.subr.bf16.mxu0 0
      %1863 = vmatpush1.bf16.msra.mxu0 %v1860
      %1864 = vmatprep.subr.bf16.mxu0 0
      %1865 = vmatpush1.bf16.msra.mxu0 0
      %1866 = vmatprep.subr.bf16.mxu0 0
      %1867 = vmatpush1.bf16.msra.mxu0 0
      %1868 = vmatprep.subr.bf16.mxu0 0
      %1869 = vmatpush1.bf16.msra.mxu0 0
      %1870 = vmatprep.subr.bf16.mxu0 0
      %1871 = vmatpush1.bf16.msra.mxu0 0
      %1872 = vmatprep.subr.bf16.mxu0 0
      %1873 = vmatpush1.bf16.msra.mxu0 0
      %1874 = vmatprep.subr.bf16.mxu0 0
      %1875 = vmatpush1.bf16.msra.mxu0 0
      %1876 = vmatprep.subr.bf16.mxu0 0
      %1877 = vmatpush1.bf16.msra.mxu0 0
      %1878 = vmatprep.subr.bf16.mxu0 0
      %1879 = vmatpush1.bf16.msra.mxu0 0
      %1880 = vmatprep.subr.bf16.mxu0 0
      %1881 = vmatpush1.bf16.msra.mxu0 0
      %1882 = vmatprep.subr.bf16.mxu0 0
      %1883 = vmatpush1.bf16.msra.mxu0 0
      %1884 = vmatprep.subr.bf16.mxu0 0
      %1885 = vmatpush1.bf16.msra.mxu0 0
      %1886 = vmatprep.subr.bf16.mxu0 0
      %1887 = vmatpush1.bf16.msra.mxu0 0
      %1888 = vmatprep.subr.bf16.mxu0 0
      %1889 = vmatpush1.bf16.msra.mxu0 0
      %1890 = vmatprep.subr.bf16.mxu0 0
      %1891 = vmatpush1.bf16.msra.mxu0 0
      %1892 = vmatprep.subr.bf16.mxu0 0
      %1893 = vmatpush1.bf16.msra.mxu0 0
      %1894 = vmatprep.mubr.bf16.mxu0 0
      %1895 = vmatmul.mubr.bf16.gmra.mrb[0].mxu0 %v1857
      %v1896 = vpop.f32.mrb[0].mxu0
      %v1897 = vadd.f32 0.0, %v1896
      %v1898 = vpop.f32.mrb[0].mxu0
      %v1899 = vpop.f32.mrb[0].mxu0
      %v1900 = vpop.f32.mrb[0].mxu0
      %1901 = vdwg.mxu0
      %v1902 = vpack.c.bf16 %v1897, %v1897
      %v1904 = vsel %vm863, %v1902, 0
      %v1907 = vsel %vm929, %v1676, 0
      %1909 = vmatprep.subr.bf16.mxu0 0
      %1910 = vmatpush1.bf16.msra.mxu0 %v1907
      %1911 = vmatprep.subr.bf16.mxu0 0
      %1912 = vmatpush1.bf16.msra.mxu0 0
      %1913 = vmatprep.subr.bf16.mxu0 0
      %1914 = vmatpush1.bf16.msra.mxu0 0
      %1915 = vmatprep.subr.bf16.mxu0 0
      %1916 = vmatpush1.bf16.msra.mxu0 0
      %1917 = vmatprep.subr.bf16.mxu0 0
      %1918 = vmatpush1.bf16.msra.mxu0 0
      %1919 = vmatprep.subr.bf16.mxu0 0
      %1920 = vmatpush1.bf16.msra.mxu0 0
      %1921 = vmatprep.subr.bf16.mxu0 0
      %1922 = vmatpush1.bf16.msra.mxu0 0
      %1923 = vmatprep.subr.bf16.mxu0 0
      %1924 = vmatpush1.bf16.msra.mxu0 0
      %1925 = vmatprep.subr.bf16.mxu0 0
      %1926 = vmatpush1.bf16.msra.mxu0 0
      %1927 = vmatprep.subr.bf16.mxu0 0
      %1928 = vmatpush1.bf16.msra.mxu0 0
      %1929 = vmatprep.subr.bf16.mxu0 0
      %1930 = vmatpush1.bf16.msra.mxu0 0
      %1931 = vmatprep.subr.bf16.mxu0 0
      %1932 = vmatpush1.bf16.msra.mxu0 0
      %1933 = vmatprep.subr.bf16.mxu0 0
      %1934 = vmatpush1.bf16.msra.mxu0 0
      %1935 = vmatprep.subr.bf16.mxu0 0
      %1936 = vmatpush1.bf16.msra.mxu0 0
      %1937 = vmatprep.subr.bf16.mxu0 0
      %1938 = vmatpush1.bf16.msra.mxu0 0
      %1939 = vmatprep.subr.bf16.mxu0 0
      %1940 = vmatpush1.bf16.msra.mxu0 0
      %1941 = vmatprep.mubr.bf16.mxu0 0
      %1942 = vmatmul.mubr.bf16.gmra.mrb[0].mxu0 %v1904
      %v1943 = vpop.f32.mrb[0].mxu0
      %v1944 = vadd.f32 0.0, %v1943
      %v1945 = vpop.f32.mrb[0].mxu0
      %v1946 = vpop.f32.mrb[0].mxu0
      %v1947 = vpop.f32.mrb[0].mxu0
      %1948 = vdwg.mxu0
      %v1950 = vsel %vm863, %v1788, 0
      %v1953 = vsel %vm929, %v1675, 0
      %1955 = vmatprep.subr.bf16.mxu0 0
      %1956 = vmatpush1.bf16.msra.mxu0 %v1953
      %1957 = vmatprep.subr.bf16.mxu0 0
      %1958 = vmatpush1.bf16.msra.mxu0 0
      %1959 = vmatprep.subr.bf16.mxu0 0
      %1960 = vmatpush1.bf16.msra.mxu0 0
      %1961 = vmatprep.subr.bf16.mxu0 0
      %1962 = vmatpush1.bf16.msra.mxu0 0
      %1963 = vmatprep.subr.bf16.mxu0 0
      %1964 = vmatpush1.bf16.msra.mxu0 0
      %1965 = vmatprep.subr.bf16.mxu0 0
      %1966 = vmatpush1.bf16.msra.mxu0 0
      %1967 = vmatprep.subr.bf16.mxu0 0
      %1968 = vmatpush1.bf16.msra.mxu0 0
      %1969 = vmatprep.subr.bf16.mxu0 0
      %1970 = vmatpush1.bf16.msra.mxu0 0
      %1971 = vmatprep.subr.bf16.mxu0 0
      %1972 = vmatpush1.bf16.msra.mxu0 0
      %1973 = vmatprep.subr.bf16.mxu0 0
      %1974 = vmatpush1.bf16.msra.mxu0 0
      %1975 = vmatprep.subr.bf16.mxu0 0
      %1976 = vmatpush1.bf16.msra.mxu0 0
      %1977 = vmatprep.subr.bf16.mxu0 0
      %1978 = vmatpush1.bf16.msra.mxu0 0
      %1979 = vmatprep.subr.bf16.mxu0 0
      %1980 = vmatpush1.bf16.msra.mxu0 0
      %1981 = vmatprep.subr.bf16.mxu0 0
      %1982 = vmatpush1.bf16.msra.mxu0 0
      %1983 = vmatprep.subr.bf16.mxu0 0
      %1984 = vmatpush1.bf16.msra.mxu0 0
      %1985 = vmatprep.subr.bf16.mxu0 0
      %1986 = vmatpush1.bf16.msra.mxu0 0
      %1987 = vmatprep.mubr.bf16.mxu0 0
      %1988 = vmatmul.mubr.bf16.gmra.mrb[0].mxu0 %v1950
      %v1989 = vpop.f32.mrb[0].mxu0
      %v1990 = vadd.f32 %v1944, %v1989
      %v1991 = vpop.f32.mrb[0].mxu0
      %v1992 = vpop.f32.mrb[0].mxu0
      %v1993 = vpop.f32.mrb[0].mxu0
      %1994 = vdwg.mxu0
      %1995 = vrot.lane.b32.xlu0 %v1606, 112
      %v1996 = vpop.permute.xlu0 %1995
      %1997 = vrot.lane.b32.xlu0 %v1673, 112
      %v1998 = vpop.permute.xlu0 %1997
      %v2000 = vsel %vm863, %v1996, 0
      %v2003 = vsel %vm863, %v1998, 0
      %2005 = vmatprep.subr.bf16.mxu0 0
      %2006 = vmatpush1.bf16.xpose.msra.mxu0 %v2003
      %2007 = vmatprep.subr.bf16.mxu0 0
      %2008 = vmatpush1.bf16.xpose.msra.mxu0 0
      %2009 = vmatprep.subr.bf16.mxu0 0
      %2010 = vmatpush1.bf16.xpose.msra.mxu0 0
      %2011 = vmatprep.subr.bf16.mxu0 0
      %2012 = vmatpush1.bf16.xpose.msra.mxu0 0
      %2013 = vmatprep.subr.bf16.mxu0 0
      %2014 = vmatpush1.bf16.xpose.msra.mxu0 0
      %2015 = vmatprep.subr.bf16.mxu0 0
      %2016 = vmatpush1.bf16.xpose.msra.mxu0 0
      %2017 = vmatprep.subr.bf16.mxu0 0
      %2018 = vmatpush1.bf16.xpose.msra.mxu0 0
      %2019 = vmatprep.subr.bf16.mxu0 0
      %2020 = vmatpush1.bf16.xpose.msra.mxu0 0
      %2021 = vmatprep.subr.bf16.mxu0 0
      %2022 = vmatpush1.bf16.xpose.msra.mxu0 0
      %2023 = vmatprep.subr.bf16.mxu0 0
      %2024 = vmatpush1.bf16.xpose.msra.mxu0 0
      %2025 = vmatprep.subr.bf16.mxu0 0
      %2026 = vmatpush1.bf16.xpose.msra.mxu0 0
      %2027 = vmatprep.subr.bf16.mxu0 0
      %2028 = vmatpush1.bf16.xpose.msra.mxu0 0
      %2029 = vmatprep.subr.bf16.mxu0 0
      %2030 = vmatpush1.bf16.xpose.msra.mxu0 0
      %2031 = vmatprep.subr.bf16.mxu0 0
      %2032 = vmatpush1.bf16.xpose.msra.mxu0 0
      %2033 = vmatprep.subr.bf16.mxu0 0
      %2034 = vmatpush1.bf16.xpose.msra.mxu0 0
      %2035 = vmatprep.subr.bf16.mxu0 0
      %2036 = vmatpush1.bf16.xpose.msra.mxu0 0
      %2037 = vmatprep.mubr.bf16.mxu0 0
      %2038 = vmatmul.mubr.bf16.gmra.mrb[0].mxu0 %v2000
      %v2039 = vpop.f32.mrb[0].mxu0
      %v2040 = vadd.f32 0.0, %v2039
      %v2041 = vpop.f32.mrb[0].mxu0
      %v2042 = vpop.f32.mrb[0].mxu0
      %v2043 = vpop.f32.mrb[0].mxu0
      %2044 = vdwg.mxu0
      %v2045 = vmul.f32 %v2040, 0.35355338
      %v2046 = vadd.f32 %v2045, %v1674
      %v2047 = vsel %vm863, %v2046, -inf
      %2048 = vmax.xlane.f32.xlu0 %v2047
      %v2049 = vpop.xlane.xlu0 %2048
      %v2050 = vsub.f32 %v2046, %v2049
      %v2051 = vmul.f32 %v2050, 1.442695
      %v2052 = vpow.pop %v2051
      %v2053 = vsel %vm863, %v2052, 0.0
      %2054 = vadd.xlane.f32.xlu0 %v2053
      %v2055 = vpop.xlane.xlu0 %2054
      %v2056 = vrcp.pop %v2055
      %v2057 = vmul.f32 %v2052, %v2056
      %v2058 = vpack.c.bf16 %v2057, %v2057
      %2059 = vrot.lane.b32.xlu0 %v1673, 80
      %v2060 = vpop.permute.xlu0 %2059
      %v2062 = vsel %vm863, %v2058, 0
      %v2065 = vsel %vm929, %v2060, 0
      %2067 = vmatprep.subr.bf16.mxu0 0
      %2068 = vmatpush1.bf16.msra.mxu0 %v2065
      %2069 = vmatprep.subr.bf16.mxu0 0
      %2070 = vmatpush1.bf16.msra.mxu0 0
      %2071 = vmatprep.subr.bf16.mxu0 0
      %2072 = vmatpush1.bf16.msra.mxu0 0
      %2073 = vmatprep.subr.bf16.mxu0 0
      %2074 = vmatpush1.bf16.msra.mxu0 0
      %2075 = vmatprep.subr.bf16.mxu0 0
      %2076 = vmatpush1.bf16.msra.mxu0 0
      %2077 = vmatprep.subr.bf16.mxu0 0
      %2078 = vmatpush1.bf16.msra.mxu0 0
      %2079 = vmatprep.subr.bf16.mxu0 0
      %2080 = vmatpush1.bf16.msra.mxu0 0
      %2081 = vmatprep.subr.bf16.mxu0 0
      %2082 = vmatpush1.bf16.msra.mxu0 0
      %2083 = vmatprep.subr.bf16.mxu0 0
      %2084 = vmatpush1.bf16.msra.mxu0 0
      %2085 = vmatprep.subr.bf16.mxu0 0
      %2086 = vmatpush1.bf16.msra.mxu0 0
      %2087 = vmatprep.subr.bf16.mxu0 0
      %2088 = vmatpush1.bf16.msra.mxu0 0
      %2089 = vmatprep.subr.bf16.mxu0 0
      %2090 = vmatpush1.bf16.msra.mxu0 0
      %2091 = vmatprep.subr.bf16.mxu0 0
      %2092 = vmatpush1.bf16.msra.mxu0 0
      %2093 = vmatprep.subr.bf16.mxu0 0
      %2094 = vmatpush1.bf16.msra.mxu0 0
      %2095 = vmatprep.subr.bf16.mxu0 0
      %2096 = vmatpush1.bf16.msra.mxu0 0
      %2097 = vmatprep.subr.bf16.mxu0 0
      %2098 = vmatpush1.bf16.msra.mxu0 0
      %2099 = vmatprep.mubr.bf16.mxu0 0
      %2100 = vmatmul.mubr.bf16.gmra.mrb[0].mxu0 %v2062
      %v2101 = vpop.f32.mrb[0].mxu0
      %v2102 = vadd.f32 0.0, %v2101
      %v2103 = vpop.f32.mrb[0].mxu0
      %v2104 = vpop.f32.mrb[0].mxu0
      %v2105 = vpop.f32.mrb[0].mxu0
      %2106 = vdwg.mxu0
      %v2107 = vpack.c.bf16 %v2102, %v2102
      %v2109 = vsel %vm863, %v2107, 0
      %v2112 = vsel %vm929, %v1677, 0
      %2114 = vmatprep.subr.bf16.mxu0 0
      %2115 = vmatpush1.bf16.msra.mxu0 %v2112
      %2116 = vmatprep.subr.bf16.mxu0 0
      %2117 = vmatpush1.bf16.msra.mxu0 0
      %2118 = vmatprep.subr.bf16.mxu0 0
      %2119 = vmatpush1.bf16.msra.mxu0 0
      %2120 = vmatprep.subr.bf16.mxu0 0
      %2121 = vmatpush1.bf16.msra.mxu0 0
      %2122 = vmatprep.subr.bf16.mxu0 0
      %2123 = vmatpush1.bf16.msra.mxu0 0
      %2124 = vmatprep.subr.bf16.mxu0 0
      %2125 = vmatpush1.bf16.msra.mxu0 0
      %2126 = vmatprep.subr.bf16.mxu0 0
      %2127 = vmatpush1.bf16.msra.mxu0 0
      %2128 = vmatprep.subr.bf16.mxu0 0
      %2129 = vmatpush1.bf16.msra.mxu0 0
      %2130 = vmatprep.subr.bf16.mxu0 0
      %2131 = vmatpush1.bf16.msra.mxu0 0
      %2132 = vmatprep.subr.bf16.mxu0 0
      %2133 = vmatpush1.bf16.msra.mxu0 0
      %2134 = vmatprep.subr.bf16.mxu0 0
      %2135 = vmatpush1.bf16.msra.mxu0 0
      %2136 = vmatprep.subr.bf16.mxu0 0
      %2137 = vmatpush1.bf16.msra.mxu0 0
      %2138 = vmatprep.subr.bf16.mxu0 0
      %2139 = vmatpush1.bf16.msra.mxu0 0
      %2140 = vmatprep.subr.bf16.mxu0 0
      %2141 = vmatpush1.bf16.msra.mxu0 0
      %2142 = vmatprep.subr.bf16.mxu0 0
      %2143 = vmatpush1.bf16.msra.mxu0 0
      %2144 = vmatprep.subr.bf16.mxu0 0
      %2145 = vmatpush1.bf16.msra.mxu0 0
      %2146 = vmatprep.mubr.bf16.mxu0 0
      %2147 = vmatmul.mubr.bf16.gmra.mrb[0].mxu0 %v2109
      %v2148 = vpop.f32.mrb[0].mxu0
      %v2149 = vadd.f32 0.0, %v2148
      %v2150 = vpop.f32.mrb[0].mxu0
      %v2151 = vpop.f32.mrb[0].mxu0
      %v2152 = vpop.f32.mrb[0].mxu0
      %2153 = vdwg.mxu0
      %v2154 = vadd.f32 %v1990, %v2149
      %2155 = vrot.lane.b32.xlu0 %v1606, 104
      %v2156 = vpop.permute.xlu0 %2155
      %2157 = vrot.lane.b32.xlu0 %v1673, 104
      %v2158 = vpop.permute.xlu0 %2157
      %v2160 = vsel %vm863, %v2156, 0
      %v2163 = vsel %vm863, %v2158, 0
      %2165 = vmatprep.subr.bf16.mxu0 0
      %2166 = vmatpush1.bf16.xpose.msra.mxu0 %v2163
      %2167 = vmatprep.subr.bf16.mxu0 0
      %2168 = vmatpush1.bf16.xpose.msra.mxu0 0
      %2169 = vmatprep.subr.bf16.mxu0 0
      %2170 = vmatpush1.bf16.xpose.msra.mxu0 0
      %2171 = vmatprep.subr.bf16.mxu0 0
      %2172 = vmatpush1.bf16.xpose.msra.mxu0 0
      %2173 = vmatprep.subr.bf16.mxu0 0
      %2174 = vmatpush1.bf16.xpose.msra.mxu0 0
      %2175 = vmatprep.subr.bf16.mxu0 0
      %2176 = vmatpush1.bf16.xpose.msra.mxu0 0
      %2177 = vmatprep.subr.bf16.mxu0 0
      %2178 = vmatpush1.bf16.xpose.msra.mxu0 0
      %2179 = vmatprep.subr.bf16.mxu0 0
      %2180 = vmatpush1.bf16.xpose.msra.mxu0 0
      %2181 = vmatprep.subr.bf16.mxu0 0
      %2182 = vmatpush1.bf16.xpose.msra.mxu0 0
      %2183 = vmatprep.subr.bf16.mxu0 0
      %2184 = vmatpush1.bf16.xpose.msra.mxu0 0
      %2185 = vmatprep.subr.bf16.mxu0 0
      %2186 = vmatpush1.bf16.xpose.msra.mxu0 0
      %2187 = vmatprep.subr.bf16.mxu0 0
      %2188 = vmatpush1.bf16.xpose.msra.mxu0 0
      %2189 = vmatprep.subr.bf16.mxu0 0
      %2190 = vmatpush1.bf16.xpose.msra.mxu0 0
      %2191 = vmatprep.subr.bf16.mxu0 0
      %2192 = vmatpush1.bf16.xpose.msra.mxu0 0
      %2193 = vmatprep.subr.bf16.mxu0 0
      %2194 = vmatpush1.bf16.xpose.msra.mxu0 0
      %2195 = vmatprep.subr.bf16.mxu0 0
      %2196 = vmatpush1.bf16.xpose.msra.mxu0 0
      %2197 = vmatprep.mubr.bf16.mxu0 0
      %2198 = vmatmul.mubr.bf16.gmra.mrb[0].mxu0 %v2160
      %v2199 = vpop.f32.mrb[0].mxu0
      %v2200 = vadd.f32 0.0, %v2199
      %v2201 = vpop.f32.mrb[0].mxu0
      %v2202 = vpop.f32.mrb[0].mxu0
      %v2203 = vpop.f32.mrb[0].mxu0
      %2204 = vdwg.mxu0
      %v2205 = vmul.f32 %v2200, 0.35355338
      %v2206 = vadd.f32 %v2205, %v1674
      %v2207 = vsel %vm863, %v2206, -inf
      %2208 = vmax.xlane.f32.xlu0 %v2207
      %v2209 = vpop.xlane.xlu0 %2208
      %v2210 = vsub.f32 %v2206, %v2209
      %v2211 = vmul.f32 %v2210, 1.442695
      %v2212 = vpow.pop %v2211
      %v2213 = vsel %vm863, %v2212, 0.0
      %2214 = vadd.xlane.f32.xlu0 %v2213
      %v2215 = vpop.xlane.xlu0 %2214
      %v2216 = vrcp.pop %v2215
      %v2217 = vmul.f32 %v2212, %v2216
      %v2218 = vpack.c.bf16 %v2217, %v2217
      %2219 = vrot.lane.b32.xlu0 %v1673, 72
      %v2220 = vpop.permute.xlu0 %2219
      %v2222 = vsel %vm863, %v2218, 0
      %v2225 = vsel %vm929, %v2220, 0
      %2227 = vmatprep.subr.bf16.mxu0 0
      %2228 = vmatpush1.bf16.msra.mxu0 %v2225
      %2229 = vmatprep.subr.bf16.mxu0 0
      %2230 = vmatpush1.bf16.msra.mxu0 0
      %2231 = vmatprep.subr.bf16.mxu0 0
      %2232 = vmatpush1.bf16.msra.mxu0 0
      %2233 = vmatprep.subr.bf16.mxu0 0
      %2234 = vmatpush1.bf16.msra.mxu0 0
      %2235 = vmatprep.subr.bf16.mxu0 0
      %2236 = vmatpush1.bf16.msra.mxu0 0
      %2237 = vmatprep.subr.bf16.mxu0 0
      %2238 = vmatpush1.bf16.msra.mxu0 0
      %2239 = vmatprep.subr.bf16.mxu0 0
      %2240 = vmatpush1.bf16.msra.mxu0 0
      %2241 = vmatprep.subr.bf16.mxu0 0
      %2242 = vmatpush1.bf16.msra.mxu0 0
      %2243 = vmatprep.subr.bf16.mxu0 0
      %2244 = vmatpush1.bf16.msra.mxu0 0
      %2245 = vmatprep.subr.bf16.mxu0 0
      %2246 = vmatpush1.bf16.msra.mxu0 0
      %2247 = vmatprep.subr.bf16.mxu0 0
      %2248 = vmatpush1.bf16.msra.mxu0 0
      %2249 = vmatprep.subr.bf16.mxu0 0
      %2250 = vmatpush1.bf16.msra.mxu0 0
      %2251 = vmatprep.subr.bf16.mxu0 0
      %2252 = vmatpush1.bf16.msra.mxu0 0
      %2253 = vmatprep.subr.bf16.mxu0 0
      %2254 = vmatpush1.bf16.msra.mxu0 0
      %2255 = vmatprep.subr.bf16.mxu0 0
      %2256 = vmatpush1.bf16.msra.mxu0 0
      %2257 = vmatprep.subr.bf16.mxu0 0
      %2258 = vmatpush1.bf16.msra.mxu0 0
      %2259 = vmatprep.mubr.bf16.mxu0 0
      %2260 = vmatmul.mubr.bf16.gmra.mrb[0].mxu0 %v2222
      %v2261 = vpop.f32.mrb[0].mxu0
      %v2262 = vadd.f32 0.0, %v2261
      %v2263 = vpop.f32.mrb[0].mxu0
      %v2264 = vpop.f32.mrb[0].mxu0
      %v2265 = vpop.f32.mrb[0].mxu0
      %2266 = vdwg.mxu0
      %v2267 = vpack.c.bf16 %v2262, %v2262
      %v2269 = vsel %vm863, %v2267, 0
      %v2272 = vsel %vm929, %v1678, 0
      %2274 = vmatprep.subr.bf16.mxu0 0
      %2275 = vmatpush1.bf16.msra.mxu0 %v2272
      %2276 = vmatprep.subr.bf16.mxu0 0
      %2277 = vmatpush1.bf16.msra.mxu0 0
      %2278 = vmatprep.subr.bf16.mxu0 0
      %2279 = vmatpush1.bf16.msra.mxu0 0
      %2280 = vmatprep.subr.bf16.mxu0 0
      %2281 = vmatpush1.bf16.msra.mxu0 0
      %2282 = vmatprep.subr.bf16.mxu0 0
      %2283 = vmatpush1.bf16.msra.mxu0 0
      %2284 = vmatprep.subr.bf16.mxu0 0
      %2285 = vmatpush1.bf16.msra.mxu0 0
      %2286 = vmatprep.subr.bf16.mxu0 0
      %2287 = vmatpush1.bf16.msra.mxu0 0
      %2288 = vmatprep.subr.bf16.mxu0 0
      %2289 = vmatpush1.bf16.msra.mxu0 0
      %2290 = vmatprep.subr.bf16.mxu0 0
      %2291 = vmatpush1.bf16.msra.mxu0 0
      %2292 = vmatprep.subr.bf16.mxu0 0
      %2293 = vmatpush1.bf16.msra.mxu0 0
      %2294 = vmatprep.subr.bf16.mxu0 0
      %2295 = vmatpush1.bf16.msra.mxu0 0
      %2296 = vmatprep.subr.bf16.mxu0 0
      %2297 = vmatpush1.bf16.msra.mxu0 0
      %2298 = vmatprep.subr.bf16.mxu0 0
      %2299 = vmatpush1.bf16.msra.mxu0 0
      %2300 = vmatprep.subr.bf16.mxu0 0
      %2301 = vmatpush1.bf16.msra.mxu0 0
      %2302 = vmatprep.subr.bf16.mxu0 0
      %2303 = vmatpush1.bf16.msra.mxu0 0
      %2304 = vmatprep.subr.bf16.mxu0 0
      %2305 = vmatpush1.bf16.msra.mxu0 0
      %2306 = vmatprep.mubr.bf16.mxu0 0
      %2307 = vmatmul.mubr.bf16.gmra.mrb[0].mxu0 %v2269
      %v2308 = vpop.f32.mrb[0].mxu0
      %v2309 = vadd.f32 0.0, %v2308
      %v2310 = vpop.f32.mrb[0].mxu0
      %v2311 = vpop.f32.mrb[0].mxu0
      %v2312 = vpop.f32.mrb[0].mxu0
      %2313 = vdwg.mxu0
      %v2314 = vadd.f32 %v2154, %v2309
      %v2315 = vld [vmem:[%s15] sm:$0x1]
      %v2317 = vlaneseq
      %v2318 = vshrl.u32 %v2317, 7
      %v2319 = vsub.s32 0, %v2318
      %v2320 = vrot.slane %v2315, %v2319
      %v2322 = vadd.f32 %v2314, %v2320
      %v2323 = vadd.f32 %v1538, %v2322
      %v2324 = vsel %vm810, %v2323, 0.0
      %2325 = vadd.xlane.f32.xlu0 %v2324
      %v2326 = vpop.xlane.xlu0 %2325
      %v2327 = vmul.f32 %v2326, %v1512
      %v2328 = vsub.f32 %v2323, %v2327
      %v2329 = vmul.f32 %v2328, %v2328
      %v2330 = vsel %vm810, %v2329, 0.0
      %2331 = vadd.xlane.f32.xlu0 %v2330
      %v2332 = vpop.xlane.xlu0 %2331
      %v2333 = vmul.f32 %v2332, %v1512
      %v2334 = vadd.f32 %v2333, 1e-05
      %v2335 = vrsqrt.pop %v2334
      %v2336 = vmul.f32 %v2328, %v2335
      %v2337 = vld [vmem:[%s16] sm:$0x1]
      %v2339 = vlaneseq
      %v2340 = vshrl.u32 %v2339, 7
      %v2341 = vsub.s32 0, %v2340
      %v2342 = vrot.slane %v2337, %v2341
      %v2344 = vmul.f32 %v2336, %v2342
      %v2345 = vld [vmem:[%s17] sm:$0x1]
      %v2347 = vlaneseq
      %v2348 = vshrl.u32 %v2347, 7
      %v2349 = vsub.s32 0, %v2348
      %v2350 = vrot.slane %v2345, %v2349
      %v2352 = vadd.f32 %v2344, %v2350
      %v2353 = vpack.c.bf16 %v2352, %v2352
      %v2354 = vld [vmem:[%s18] sm:$0xf]
      %v2355 = vld [vmem:[%s18 + $0x4] sm:$0xf]
      %v2356 = vld [vmem:[%s18 + $0x8] sm:$0xf]
      %v2357 = vld [vmem:[%s18 + $0xc] sm:$0xf]
      %v2358 = vld [vmem:[%s19] sm:$0x1]
      %v2360 = vlaneseq
      %v2361 = vshrl.u32 %v2360, 7
      %v2362 = vsub.s32 0, %v2361
      %v2363 = vrot.slane %v2358, %v2362
      %v2369 = vunpack.c.l.b16 %v2354
      %v2370 = vunpack.c.l.b16 %v2355
      %v2371 = vunpack.c.l.b16 %v2356
      %v2372 = vunpack.c.l.b16 %v2357
      %v2373 = vpack.c.b16 %v2370, %v2369
      %v2374 = vpack.c.b16 %v2372, %v2371
      %v2378 = vsel %vm810, %v2353, 0
      %2380 = vmatprep.subr.bf16.mxu0 0
      %2381 = vmatpush1.bf16.msra.mxu0 %v2373
      %2382 = vmatprep.subr.bf16.mxu0 0
      %2383 = vmatpush1.bf16.msra.mxu0 %v2374
      %2384 = vmatprep.subr.bf16.mxu0 0
      %2385 = vmatpush1.bf16.msra.mxu0 0
      %2386 = vmatprep.subr.bf16.mxu0 0
      %2387 = vmatpush1.bf16.msra.mxu0 0
      %2388 = vmatprep.subr.bf16.mxu0 0
      %2389 = vmatpush1.bf16.msra.mxu0 0
      %2390 = vmatprep.subr.bf16.mxu0 0
      %2391 = vmatpush1.bf16.msra.mxu0 0
      %2392 = vmatprep.subr.bf16.mxu0 0
      %2393 = vmatpush1.bf16.msra.mxu0 0
      %2394 = vmatprep.subr.bf16.mxu0 0
      %2395 = vmatpush1.bf16.msra.mxu0 0
      %2396 = vmatprep.subr.bf16.mxu0 0
      %2397 = vmatpush1.bf16.msra.mxu0 0
      %2398 = vmatprep.subr.bf16.mxu0 0
      %2399 = vmatpush1.bf16.msra.mxu0 0
      %2400 = vmatprep.subr.bf16.mxu0 0
      %2401 = vmatpush1.bf16.msra.mxu0 0
      %2402 = vmatprep.subr.bf16.mxu0 0
      %2403 = vmatpush1.bf16.msra.mxu0 0
      %2404 = vmatprep.subr.bf16.mxu0 0
      %2405 = vmatpush1.bf16.msra.mxu0 0
      %2406 = vmatprep.subr.bf16.mxu0 0
      %2407 = vmatpush1.bf16.msra.mxu0 0
      %2408 = vmatprep.subr.bf16.mxu0 0
      %2409 = vmatpush1.bf16.msra.mxu0 0
      %2410 = vmatprep.subr.bf16.mxu0 0
      %2411 = vmatpush1.bf16.msra.mxu0 0
      %2412 = vmatprep.mubr.bf16.mxu0 0
      %2413 = vmatmul.mubr.bf16.gmra.mrb[0].mxu0 %v2378
      %v2414 = vpop.f32.mrb[0].mxu0
      %v2415 = vadd.f32 %v2363, %v2414
      %v2416 = vpop.f32.mrb[0].mxu0
      %v2417 = vpop.f32.mrb[0].mxu0
      %v2418 = vpop.f32.mrb[0].mxu0
      %2419 = vdwg.mxu0
      %v2420 = vmax.f32 %v2415, 0.0
      %v2421 = vpack.c.bf16 %v2420, %v2420
      %v2422 = vld [vmem:[%s20] sm:$0xf]
      %v2423 = vld [vmem:[%s20 + $0x4] sm:$0xf]
      %v2424 = vld [vmem:[%s20 + $0x8] sm:$0xf]
      %v2425 = vld [vmem:[%s20 + $0xc] sm:$0xf]
      %v2426 = vld [vmem:[%s20 + $0x10] sm:$0xf]
      %v2427 = vld [vmem:[%s20 + $0x14] sm:$0xf]
      %v2428 = vld [vmem:[%s20 + $0x18] sm:$0xf]
      %v2429 = vld [vmem:[%s20 + $0x1c] sm:$0xf]
      %v2430 = vld [vmem:[%s21] sm:$0x1]
      %v2432 = vlaneseq
      %v2433 = vshrl.u32 %v2432, 7
      %v2434 = vsub.s32 0, %v2433
      %v2435 = vrot.slane %v2430, %v2434
      %v2445 = vunpack.c.l.b16 %v2422
      %v2446 = vunpack.c.l.b16 %v2423
      %v2447 = vunpack.c.l.b16 %v2424
      %v2448 = vunpack.c.l.b16 %v2425
      %v2449 = vunpack.c.l.b16 %v2426
      %v2450 = vunpack.c.l.b16 %v2427
      %v2451 = vunpack.c.l.b16 %v2428
      %v2452 = vunpack.c.l.b16 %v2429
      %v2453 = vpack.c.b16 %v2446, %v2445
      %v2454 = vpack.c.b16 %v2448, %v2447
      %v2455 = vpack.c.b16 %v2450, %v2449
      %v2456 = vpack.c.b16 %v2452, %v2451
      %vm2461 = vcmask 523264
      %v2463 = vsel %vm2461, %v2421, 0
      %2465 = vmatprep.subr.bf16.mxu0 0
      %2466 = vmatpush1.bf16.msra.mxu0 %v2453
      %2467 = vmatprep.subr.bf16.mxu0 0
      %2468 = vmatpush1.bf16.msra.mxu0 %v2454
      %2469 = vmatprep.subr.bf16.mxu0 0
      %2470 = vmatpush1.bf16.msra.mxu0 %v2455
      %2471 = vmatprep.subr.bf16.mxu0 0
      %2472 = vmatpush1.bf16.msra.mxu0 %v2456
      %2473 = vmatprep.subr.bf16.mxu0 0
      %2474 = vmatpush1.bf16.msra.mxu0 0
      %2475 = vmatprep.subr.bf16.mxu0 0
      %2476 = vmatpush1.bf16.msra.mxu0 0
      %2477 = vmatprep.subr.bf16.mxu0 0
      %2478 = vmatpush1.bf16.msra.mxu0 0
      %2479 = vmatprep.subr.bf16.mxu0 0
      %2480 = vmatpush1.bf16.msra.mxu0 0
      %2481 = vmatprep.subr.bf16.mxu0 0
      %2482 = vmatpush1.bf16.msra.mxu0 0
      %2483 = vmatprep.subr.bf16.mxu0 0
      %2484 = vmatpush1.bf16.msra.mxu0 0
      %2485 = vmatprep.subr.bf16.mxu0 0
      %2486 = vmatpush1.bf16.msra.mxu0 0
      %2487 = vmatprep.subr.bf16.mxu0 0
      %2488 = vmatpush1.bf16.msra.mxu0 0
      %2489 = vmatprep.subr.bf16.mxu0 0
      %2490 = vmatpush1.bf16.msra.mxu0 0
      %2491 = vmatprep.subr.bf16.mxu0 0
      %2492 = vmatpush1.bf16.msra.mxu0 0
      %2493 = vmatprep.subr.bf16.mxu0 0
      %2494 = vmatpush1.bf16.msra.mxu0 0
      %2495 = vmatprep.subr.bf16.mxu0 0
      %2496 = vmatpush1.bf16.msra.mxu0 0
      %2497 = vmatprep.mubr.bf16.mxu0 0
      %2498 = vmatmul.mubr.bf16.gmra.mrb[0].mxu0 %v2463
      %v2499 = vpop.f32.mrb[0].mxu0
      %v2500 = vadd.f32 %v2435, %v2499
      %v2501 = vpop.f32.mrb[0].mxu0
      %v2502 = vpop.f32.mrb[0].mxu0
      %v2503 = vpop.f32.mrb[0].mxu0
      %2504 = vdwg.mxu0
      %v2505 = vadd.f32 %v2352, %v2500
      %v2506 = vsel %vm810, %v2505, 0.0
      %2507 = vadd.xlane.f32.xlu0 %v2506
      %v2508 = vpop.xlane.xlu0 %2507
      %v2509 = vmul.f32 %v2508, %v1512
      %v2510 = vsub.f32 %v2505, %v2509
      %v2511 = vmul.f32 %v2510, %v2510
      %v2512 = vsel %vm810, %v2511, 0.0
      %2513 = vadd.xlane.f32.xlu0 %v2512
      %v2514 = vpop.xlane.xlu0 %2513
      %v2515 = vmul.f32 %v2514, %v1512
      %v2516 = vadd.f32 %v2515, 1e-05
      %v2517 = vrsqrt.pop %v2516
      %v2518 = vmul.f32 %v2510, %v2517
      %v2519 = vld [vmem:[%s22] sm:$0x1]
      %v2521 = vlaneseq
      %v2522 = vshrl.u32 %v2521, 7
      %v2523 = vsub.s32 0, %v2522
      %v2524 = vrot.slane %v2519, %v2523
      %v2526 = vmul.f32 %v2518, %v2524
      %v2527 = vld [vmem:[%s23] sm:$0x1]
      %v2529 = vlaneseq
      %v2530 = vshrl.u32 %v2529, 7
      %v2531 = vsub.s32 0, %v2530
      %v2532 = vrot.slane %v2527, %v2531
      %v2534 = vadd.f32 %v2526, %v2532
      %v2535 = vpack.c.bf16 %v2534, %v2534
      %vm2536 = vcmask 257024
      %2537 = vst.msk [vmem:[%s783] sm:$0xf] %vm2536, %v2535
      %p2538 = scmp.lt.s32.totalorder %s35, 1
      %s2539 = scalar_select %p2538, %s35, 1
      %s2540 = smul.addr %s2539, 4
      %s2541 = scalar_lea.vmem %s24, %s2540
      // Predicated region
      $region117: #{decoder_forward.3} parent=115 // pred_check
        %p2542 = pneg %p577
      $region118: #{decoder_forward.3} parent=115 // pred_check_branch
        %2544 = sbr.rel (%p2542) target = $region120
      $region119: #{decoder_forward.3} parent=115 // pred_region
        _
      $region120: #{decoder_forward.3} parent=115 // pred_fallthru
        _
    $region116: #{decoder_forward.3} parent=5 // pred_fallthru
      _
    %p2545 = scmp.le.s32.totalorder 2, %s30
    // Predicated region
    $region121: #{decoder_forward.3} parent=5 // pred_check
      %p2546 = pneg %p2545
    $region122: #{decoder_forward.3} parent=5 // pred_check_branch
      %2548 = sbr.rel (%p2546) target = $region124
    $region123: #{decoder_forward.3} parent=5 // pred_region
      %s2549 = ssub.s32 %s30, 2
      // Predicated region
      $region125: #{decoder_forward.3} parent=123 // pred_check
        %p2550 = pneg %p583
      $region126: #{decoder_forward.3} parent=123 // pred_check_branch
        %2552 = sbr.rel (%p2550) target = $region128
      $region127: #{decoder_forward.3} parent=123 // pred_region
        %p2553 = scmp.lt.s32.totalorder %s36, 1
        %s2554 = scalar_select %p2553, %s36, 1
        %s2555 = smul.addr %s2554, 4
        %s2556 = scalar_lea.vmem %s24, %s2555
      $region128: #{decoder_forward.3} parent=123 // pred_fallthru
        _
    $region124: #{decoder_forward.3} parent=5 // pred_fallthru
      _
  $region6: #{decoder_forward.3} parent=0 // loop_footer
    %s34 = sadd.s32 1, %s30
  $region7: #{decoder_forward.3} parent=0 // loop_footer_branch
    %29 = sbr.rel target = $region3
  $region8: #{decoder_forward.3} parent=0 // loop_exit
    _

// kernel: decoder_forward.4
$region0: #{decoder_forward.4}
  #allocation0 [shape = 'u32[]', space=smem, size = 0x4, offset = 0x4, fixed_abs, tag = 'smem constant byte address 0x4 - core index']
  #allocation1 [shape = 'u32[144,128]{1,0:T(1,128)}', space=vmem, size = 0x12000, scoped, tag = 'internal scratch']
  %s0 = inlined_call_operand.vmem [shape: bf16[2,8,32], index: 0, kind: input, shape index: {}]
  %s1 = inlined_call_operand.vmem [shape: bf16[2,8,32], index: 1, kind: input, shape index: {}]
  %s2 = inlined_call_operand.vmem [shape: f32[2,8,8], index: 2, kind: input, shape index: {}]
  %s3 = inlined_call_operand.vmem [shape: f32[2,8,8], index: 3, kind: input, shape index: {}]
  %s4 = inlined_call_operand.vmem [shape: bf16[32,96], index: 4, kind: input, shape index: {}]
  %s5 = inlined_call_operand.vmem [shape: f32[1,96], index: 5, kind: input, shape index: {}]
  %s6 = inlined_call_operand.vmem [shape: bf16[32,32], index: 6, kind: input, shape index: {}]
  %s7 = inlined_call_operand.vmem [shape: f32[1,32], index: 7, kind: input, shape index: {}]
  %s8 = inlined_call_operand.vmem [shape: f32[1,32], index: 8, kind: input, shape index: {}]
  %s9 = inlined_call_operand.vmem [shape: f32[1,32], index: 9, kind: input, shape index: {}]
  %s10 = inlined_call_operand.vmem [shape: bf16[32,32], index: 10, kind: input, shape index: {}]
  %s11 = inlined_call_operand.vmem [shape: f32[1,32], index: 11, kind: input, shape index: {}]
  %s12 = inlined_call_operand.vmem [shape: bf16[32,64], index: 12, kind: input, shape index: {}]
  %s13 = inlined_call_operand.vmem [shape: f32[1,64], index: 13, kind: input, shape index: {}]
  %s14 = inlined_call_operand.vmem [shape: bf16[32,32], index: 14, kind: input, shape index: {}]
  %s15 = inlined_call_operand.vmem [shape: f32[1,32], index: 15, kind: input, shape index: {}]
  %s16 = inlined_call_operand.vmem [shape: f32[1,32], index: 16, kind: input, shape index: {}]
  %s17 = inlined_call_operand.vmem [shape: f32[1,32], index: 17, kind: input, shape index: {}]
  %s18 = inlined_call_operand.vmem [shape: bf16[32,64], index: 18, kind: input, shape index: {}]
  %s19 = inlined_call_operand.vmem [shape: f32[1,64], index: 19, kind: input, shape index: {}]
  %s20 = inlined_call_operand.vmem [shape: bf16[64,32], index: 20, kind: input, shape index: {}]
  %s21 = inlined_call_operand.vmem [shape: f32[1,32], index: 21, kind: input, shape index: {}]
  %s22 = inlined_call_operand.vmem [shape: f32[1,32], index: 22, kind: input, shape index: {}]
  %s23 = inlined_call_operand.hbm [shape: f32[1,32], index: 23, kind: input, shape index: {}]
  %s24 = inlined_call_operand.vmem [shape: bf16[2,8,32], index: 24, kind: output, shape index: {}]
  %s25 = sld [smem:[#allocation0]]
  $region133: #{decoder_forward.4} parent=0
    _
  %s27 = ssub.s32 1, %s25
  %s28 = scalar_select 0, %s27, %s25
  $region1: #{decoder_forward.4} parent=0
    #allocation2 [shape = 'u8[512]{0}', space=vmem, size = 0x400, scoped, tag = 'input window, operand 23, single buffered']
    #allocation3 [shape = 's32[2]{0}', space=sflag, size = 0x8, scoped, tag = 'scoped memory for decoder_forward.4']
    %29 = vsyncpa [#allocation3], 0
    loop: start=0, step=1, limit=4
    $region2: #{decoder_forward.4} parent=1 // loop_pre_header
      _
    $region3: #{decoder_forward.4} parent=1 // loop_header
      %s31 = sphi 0, %s35
      %p32 = scmp.ge.s32.totalorder %s31, 4
      %s41 = sphi 0, %s43
      %s44 = sphi 0, %s41
      %s45 = sphi 0, %s44
      %s61 = sphi 0, %s45
      %s67 = sphi 0, %s69
      %s70 = sphi 0, %s67
      %s71 = sphi 0, %s70
      %s87 = sphi 0, %s71
      %s93 = sphi 0, %s95
      %s96 = sphi 0, %s93
      %s97 = sphi 0, %s96
      %s113 = sphi 0, %s97
      %s119 = sphi 0, %s121
      %s122 = sphi 0, %s119
      %s123 = sphi 0, %s122
      %s139 = sphi 0, %s123
      %s143 = sphi 0, %s143
      %s145 = sphi 0, %s143
      %s146 = sphi 0, %s145
      %s160 = sphi 0, %s146
      %s164 = sphi 0, %s164
      %s166 = sphi 0, %s164
      %s167 = sphi 0, %s166
      %s181 = sphi 0, %s167
      %s185 = sphi 0, %s185
      %s187 = sphi 0, %s185
      %s188 = sphi 0, %s187
      %s202 = sphi 0, %s188
      %s206 = sphi 0, %s206
      %s208 = sphi 0, %s206
      %s209 = sphi 0, %s208
      %s223 = sphi 0, %s209
      %s227 = sphi 0, %s227
      %s229 = sphi 0, %s227
      %s230 = sphi 0, %s229
      %s244 = sphi 0, %s230
      %s248 = sphi 0, %s248
      %s250 = sphi 0, %s248
      %s251 = sphi 0, %s250
      %s265 = sphi 0, %s251
      %s269 = sphi 0, %s269
      %s271 = sphi 0, %s269
      %s272 = sphi 0, %s271
      %s286 = sphi 0, %s272
      %s290 = sphi 0, %s290
      %s292 = sphi 0, %s290
      %s293 = sphi 0, %s292
      %s307 = sphi 0, %s293
      %s311 = sphi 0, %s311
      %s313 = sphi 0, %s311
      %s314 = sphi 0, %s313
      %s328 = sphi 0, %s314
      %s332 = sphi 0, %s332
      %s334 = sphi 0, %s332
      %s335 = sphi 0, %s334
      %s349 = sphi 0, %s335
      %s353 = sphi 0, %s353
      %s355 = sphi 0, %s353
      %s356 = sphi 0, %s355
      %s370 = sphi 0, %s356
      %s374 = sphi 0, %s374
      %s376 = sphi 0, %s374
      %s377 = sphi 0, %s376
      %s391 = sphi 0, %s377
      %s395 = sphi 0, %s395
      %s397 = sphi 0, %s395
      %s398 = sphi 0, %s397
      %s412 = sphi 0, %s398
      %s416 = sphi 0, %s416
      %s418 = sphi 0, %s416
      %s419 = sphi 0, %s418
      %s433 = sphi 0, %s419
      %s437 = sphi 0, %s437
      %s439 = sphi 0, %s437
      %s440 = sphi 0, %s439
      %s454 = sphi 0, %s440
      %s458 = sphi 0, %s458
      %s460 = sphi 0, %s458
      %s461 = sphi 0, %s460
      %s475 = sphi 0, %s461
      %s479 = sphi 0, %s479
      %s481 = sphi 0, %s479
      %s482 = sphi 0, %s481
      %s496 = sphi 0, %s482
      %s500 = sphi 0, %s500
      %s502 = sphi 0, %s500
      %s503 = sphi 0, %s502
      %s517 = sphi 0, %s503
      %s521 = sphi 0, %s521
      %s523 = sphi 0, %s521
      %s524 = sphi 0, %s523
      %s538 = sphi 0, %s524
      %s542 = sphi 0, %s542
      %s544 = sphi 0, %s542
      %s545 = sphi 0, %s544
      %s559 = sphi 0, %s545
      %s565 = sphi 0, %s567
      %s568 = sphi 0, %s565
      %s569 = sphi 0, %s568
      %s585 = sphi 0, %s569
    $region4: #{decoder_forward.4} parent=1 // loop_header_branch
      %34 = sbr.rel (%p32) target = $region8
    $region5: #{decoder_forward.4} parent=1 // loop_body
      %s36 = ssub.s32 %s31, 1
      %s37 = ssub.s32 %s31, 2
      %s38 = sadd.s32 %s31, 1
      %s39 = ssub.s32 %s31, %s38
      %p40 = scmp.eq.s32.totalorder %s39, 0
      %s42 = sadd.s32 %s41, 1
      %s43 = scalar_select %p40, %s41, %s42
      %p46 = pneg %p40
      %p47 = scmp.eq.s32.totalorder %s31, 1
      %p48 = por %p46, %p47
      %p49 = scmp.ne.s32.totalorder %s41, %s44
      %p50 = scmp.eq.s32.totalorder %s31, 0
      %p51 = por %p49, %p50
      %p52 = scmp.ne.s32.totalorder %s41, %s44
      %p53 = scmp.eq.s32.totalorder %s36, 1
      %p54 = por %p52, %p53
      %p55 = scmp.ne.s32.totalorder %s44, %s45
      %p56 = scmp.eq.s32.totalorder %s36, 0
      %p57 = por %p55, %p56
      %p58 = scmp.ne.s32.totalorder %s44, %s45
      %p59 = scmp.eq.s32.totalorder %s37, 1
      %p60 = por %p58, %p59
      %p62 = scmp.ne.s32.totalorder %s45, %s61
      %p63 = scmp.eq.s32.totalorder %s37, 0
      %p64 = por %p62, %p63
      %s65 = ssub.s32 %s31, %s38
      %p66 = scmp.eq.s32.totalorder %s65, 0
      %s68 = sadd.s32 %s67, 1
      %s69 = scalar_select %p66, %s67, %s68
      %p72 = pneg %p66
      %p73 = scmp.eq.s32.totalorder %s31, 1
      %p74 = por %p72, %p73
      %p75 = scmp.ne.s32.totalorder %s67, %s70
      %p76 = scmp.eq.s32.totalorder %s31, 0
      %p77 = por %p75, %p76
      %p78 = scmp.ne.s32.totalorder %s67, %s70
      %p79 = scmp.eq.s32.totalorder %s36, 1
      %p80 = por %p78, %p79
      %p81 = scmp.ne.s32.totalorder %s70, %s71
      %p82 = scmp.eq.s32.totalorder %s36, 0
      %p83 = por %p81, %p82
      %p84 = scmp.ne.s32.totalorder %s70, %s71
      %p85 = scmp.eq.s32.totalorder %s37, 1
      %p86 = por %p84, %p85
      %p88 = scmp.ne.s32.totalorder %s71, %s87
      %p89 = scmp.eq.s32.totalorder %s37, 0
      %p90 = por %p88, %p89
      %s91 = ssub.s32 %s31, %s38
      %p92 = scmp.eq.s32.totalorder %s91, 0
      %s94 = sadd.s32 %s93, 1
      %s95 = scalar_select %p92, %s93, %s94
      %p98 = pneg %p92
      %p99 = scmp.eq.s32.totalorder %s31, 1
      %p100 = por %p98, %p99
      %p101 = scmp.ne.s32.totalorder %s93, %s96
      %p102 = scmp.eq.s32.totalorder %s31, 0
      %p103 = por %p101, %p102
      %p104 = scmp.ne.s32.totalorder %s93, %s96
      %p105 = scmp.eq.s32.totalorder %s36, 1
      %p106 = por %p104, %p105
      %p107 = scmp.ne.s32.totalorder %s96, %s97
      %p108 = scmp.eq.s32.totalorder %s36, 0
      %p109 = por %p107, %p108
      %p110 = scmp.ne.s32.totalorder %s96, %s97
      %p111 = scmp.eq.s32.totalorder %s37, 1
      %p112 = por %p110, %p111
      %p114 = scmp.ne.s32.totalorder %s97, %s113
      %p115 = scmp.eq.s32.totalorder %s37, 0
      %p116 = por %p114, %p115
      %s117 = ssub.s32 %s31, %s38
      %p118 = scmp.eq.s32.totalorder %s117, 0
      %s120 = sadd.s32 %s119, 1
      %s121 = scalar_select %p118, %s119, %s120
      %p124 = pneg %p118
      %p125 = scmp.eq.s32.totalorder %s31, 1
      %p126 = por %p124, %p125
      %p127 = scmp.ne.s32.totalorder %s119, %s122
      %p128 = scmp.eq.s32.totalorder %s31, 0
      %p129 = por %p127, %p128
      %p130 = scmp.ne.s32.totalorder %s119, %s122
      %p131 = scmp.eq.s32.totalorder %s36, 1
      %p132 = por %p130, %p131
      %p133 = scmp.ne.s32.totalorder %s122, %s123
      %p134 = scmp.eq.s32.totalorder %s36, 0
      %p135 = por %p133, %p134
      %p136 = scmp.ne.s32.totalorder %s122, %s123
      %p137 = scmp.eq.s32.totalorder %s37, 1
      %p138 = por %p136, %p137
      %p140 = scmp.ne.s32.totalorder %s123, %s139
      %p141 = scmp.eq.s32.totalorder %s37, 0
      %p142 = por %p140, %p141
      %s144 = sadd.s32 %s143, 1
      %p147 = scmp.eq.s32.totalorder %s31, 1
      %p148 = scmp.ne.s32.totalorder %s143, %s145
      %p149 = scmp.eq.s32.totalorder %s31, 0
      %p150 = por %p148, %p149
      %p151 = scmp.ne.s32.totalorder %s143, %s145
      %p152 = scmp.eq.s32.totalorder %s36, 1
      %p153 = por %p151, %p152
      %p154 = scmp.ne.s32.totalorder %s145, %s146
      %p155 = scmp.eq.s32.totalorder %s36, 0
      %p156 = por %p154, %p155
      %p157 = scmp.ne.s32.totalorder %s145, %s146
      %p158 = scmp.eq.s32.totalorder %s37, 1
      %p159 = por %p157, %p158
      %p161 = scmp.ne.s32.totalorder %s146, %s160
      %p162 = scmp.eq.s32.totalorder %s37, 0
      %p163 = por %p161, %p162
      %s165 = sadd.s32 %s164, 1
      %p168 = scmp.eq.s32.totalorder %s31, 1
      %p169 = scmp.ne.s32.totalorder %s164, %s166
      %p170 = scmp.eq.s32.totalorder %s31, 0
      %p171 = por %p169, %p170
      %p172 = scmp.ne.s32.totalorder %s164, %s166
      %p173 = scmp.eq.s32.totalorder %s36, 1
      %p174 = por %p172, %p173
      %p175 = scmp.ne.s32.totalorder %s166, %s167
      %p176 = scmp.eq.s32.totalorder %s36, 0
      %p177 = por %p175, %p176
      %p178 = scmp.ne.s32.totalorder %s166, %s167
      %p179 = scmp.eq.s32.totalorder %s37, 1
      %p180 = por %p178, %p179
      %p182 = scmp.ne.s32.totalorder %s167, %s181
      %p183 = scmp.eq.s32.totalorder %s37, 0
      %p184 = por %p182, %p183
      %s186 = sadd.s32 %s185, 1
      %p189 = scmp.eq.s32.totalorder %s31, 1
      %p190 = scmp.ne.s32.totalorder %s185, %s187
      %p191 = scmp.eq.s32.totalorder %s31, 0
      %p192 = por %p190, %p191
      %p193 = scmp.ne.s32.totalorder %s185, %s187
      %p194 = scmp.eq.s32.totalorder %s36, 1
      %p195 = por %p193, %p194
      %p196 = scmp.ne.s32.totalorder %s187, %s188
      %p197 = scmp.eq.s32.totalorder %s36, 0
      %p198 = por %p196, %p197
      %p199 = scmp.ne.s32.totalorder %s187, %s188
      %p200 = scmp.eq.s32.totalorder %s37, 1
      %p201 = por %p199, %p200
      %p203 = scmp.ne.s32.totalorder %s188, %s202
      %p204 = scmp.eq.s32.totalorder %s37, 0
      %p205 = por %p203, %p204
      %s207 = sadd.s32 %s206, 1
      %p210 = scmp.eq.s32.totalorder %s31, 1
      %p211 = scmp.ne.s32.totalorder %s206, %s208
      %p212 = scmp.eq.s32.totalorder %s31, 0
      %p213 = por %p211, %p212
      %p214 = scmp.ne.s32.totalorder %s206, %s208
      %p215 = scmp.eq.s32.totalorder %s36, 1
      %p216 = por %p214, %p215
      %p217 = scmp.ne.s32.totalorder %s208, %s209
      %p218 = scmp.eq.s32.totalorder %s36, 0
      %p219 = por %p217, %p218
      %p220 = scmp.ne.s32.totalorder %s208, %s209
      %p221 = scmp.eq.s32.totalorder %s37, 1
      %p222 = por %p220, %p221
      %p224 = scmp.ne.s32.totalorder %s209, %s223
      %p225 = scmp.eq.s32.totalorder %s37, 0
      %p226 = por %p224, %p225
      %s228 = sadd.s32 %s227, 1
      %p231 = scmp.eq.s32.totalorder %s31, 1
      %p232 = scmp.ne.s32.totalorder %s227, %s229
      %p233 = scmp.eq.s32.totalorder %s31, 0
      %p234 = por %p232, %p233
      %p235 = scmp.ne.s32.totalorder %s227, %s229
      %p236 = scmp.eq.s32.totalorder %s36, 1
      %p237 = por %p235, %p236
      %p238 = scmp.ne.s32.totalorder %s229, %s230
      %p239 = scmp.eq.s32.totalorder %s36, 0
      %p240 = por %p238, %p239
      %p241 = scmp.ne.s32.totalorder %s229, %s230
      %p242 = scmp.eq.s32.totalorder %s37, 1
      %p243 = por %p241, %p242
      %p245 = scmp.ne.s32.totalorder %s230, %s244
      %p246 = scmp.eq.s32.totalorder %s37, 0
      %p247 = por %p245, %p246
      %s249 = sadd.s32 %s248, 1
      %p252 = scmp.eq.s32.totalorder %s31, 1
      %p253 = scmp.ne.s32.totalorder %s248, %s250
      %p254 = scmp.eq.s32.totalorder %s31, 0
      %p255 = por %p253, %p254
      %p256 = scmp.ne.s32.totalorder %s248, %s250
      %p257 = scmp.eq.s32.totalorder %s36, 1
      %p258 = por %p256, %p257
      %p259 = scmp.ne.s32.totalorder %s250, %s251
      %p260 = scmp.eq.s32.totalorder %s36, 0
      %p261 = por %p259, %p260
      %p262 = scmp.ne.s32.totalorder %s250, %s251
      %p263 = scmp.eq.s32.totalorder %s37, 1
      %p264 = por %p262, %p263
      %p266 = scmp.ne.s32.totalorder %s251, %s265
      %p267 = scmp.eq.s32.totalorder %s37, 0
      %p268 = por %p266, %p267
      %s270 = sadd.s32 %s269, 1
      %p273 = scmp.eq.s32.totalorder %s31, 1
      %p274 = scmp.ne.s32.totalorder %s269, %s271
      %p275 = scmp.eq.s32.totalorder %s31, 0
      %p276 = por %p274, %p275
      %p277 = scmp.ne.s32.totalorder %s269, %s271
      %p278 = scmp.eq.s32.totalorder %s36, 1
      %p279 = por %p277, %p278
      %p280 = scmp.ne.s32.totalorder %s271, %s272
      %p281 = scmp.eq.s32.totalorder %s36, 0
      %p282 = por %p280, %p281
      %p283 = scmp.ne.s32.totalorder %s271, %s272
      %p284 = scmp.eq.s32.totalorder %s37, 1
      %p285 = por %p283, %p284
      %p287 = scmp.ne.s32.totalorder %s272, %s286
      %p288 = scmp.eq.s32.totalorder %s37, 0
      %p289 = por %p287, %p288
      %s291 = sadd.s32 %s290, 1
      %p294 = scmp.eq.s32.totalorder %s31, 1
      %p295 = scmp.ne.s32.totalorder %s290, %s292
      %p296 = scmp.eq.s32.totalorder %s31, 0
      %p297 = por %p295, %p296
      %p298 = scmp.ne.s32.totalorder %s290, %s292
      %p299 = scmp.eq.s32.totalorder %s36, 1
      %p300 = por %p298, %p299
      %p301 = scmp.ne.s32.totalorder %s292, %s293
      %p302 = scmp.eq.s32.totalorder %s36, 0
      %p303 = por %p301, %p302
      %p304 = scmp.ne.s32.totalorder %s292, %s293
      %p305 = scmp.eq.s32.totalorder %s37, 1
      %p306 = por %p304, %p305
      %p308 = scmp.ne.s32.totalorder %s293, %s307
      %p309 = scmp.eq.s32.totalorder %s37, 0
      %p310 = por %p308, %p309
      %s312 = sadd.s32 %s311, 1
      %p315 = scmp.eq.s32.totalorder %s31, 1
      %p316 = scmp.ne.s32.totalorder %s311, %s313
      %p317 = scmp.eq.s32.totalorder %s31, 0
      %p318 = por %p316, %p317
      %p319 = scmp.ne.s32.totalorder %s311, %s313
      %p320 = scmp.eq.s32.totalorder %s36, 1
      %p321 = por %p319, %p320
      %p322 = scmp.ne.s32.totalorder %s313, %s314
      %p323 = scmp.eq.s32.totalorder %s36, 0
      %p324 = por %p322, %p323
      %p325 = scmp.ne.s32.totalorder %s313, %s314
      %p326 = scmp.eq.s32.totalorder %s37, 1
      %p327 = por %p325, %p326
      %p329 = scmp.ne.s32.totalorder %s314, %s328
      %p330 = scmp.eq.s32.totalorder %s37, 0
      %p331 = por %p329, %p330
      %s333 = sadd.s32 %s332, 1
      %p336 = scmp.eq.s32.totalorder %s31, 1
      %p337 = scmp.ne.s32.totalorder %s332, %s334
      %p338 = scmp.eq.s32.totalorder %s31, 0
      %p339 = por %p337, %p338
      %p340 = scmp.ne.s32.totalorder %s332, %s334
      %p341 = scmp.eq.s32.totalorder %s36, 1
      %p342 = por %p340, %p341
      %p343 = scmp.ne.s32.totalorder %s334, %s335
      %p344 = scmp.eq.s32.totalorder %s36, 0
      %p345 = por %p343, %p344
      %p346 = scmp.ne.s32.totalorder %s334, %s335
      %p347 = scmp.eq.s32.totalorder %s37, 1
      %p348 = por %p346, %p347
      %p350 = scmp.ne.s32.totalorder %s335, %s349
      %p351 = scmp.eq.s32.totalorder %s37, 0
      %p352 = por %p350, %p351
      %s354 = sadd.s32 %s353, 1
      %p357 = scmp.eq.s32.totalorder %s31, 1
      %p358 = scmp.ne.s32.totalorder %s353, %s355
      %p359 = scmp.eq.s32.totalorder %s31, 0
      %p360 = por %p358, %p359
      %p361 = scmp.ne.s32.totalorder %s353, %s355
      %p362 = scmp.eq.s32.totalorder %s36, 1
      %p363 = por %p361, %p362
      %p364 = scmp.ne.s32.totalorder %s355, %s356
      %p365 = scmp.eq.s32.totalorder %s36, 0
      %p366 = por %p364, %p365
      %p367 = scmp.ne.s32.totalorder %s355, %s356
      %p368 = scmp.eq.s32.totalorder %s37, 1
      %p369 = por %p367, %p368
      %p371 = scmp.ne.s32.totalorder %s356, %s370
      %p372 = scmp.eq.s32.totalorder %s37, 0
      %p373 = por %p371, %p372
      %s375 = sadd.s32 %s374, 1
      %p378 = scmp.eq.s32.totalorder %s31, 1
      %p379 = scmp.ne.s32.totalorder %s374, %s376
      %p380 = scmp.eq.s32.totalorder %s31, 0
      %p381 = por %p379, %p380
      %p382 = scmp.ne.s32.totalorder %s374, %s376
      %p383 = scmp.eq.s32.totalorder %s36, 1
      %p384 = por %p382, %p383
      %p385 = scmp.ne.s32.totalorder %s376, %s377
      %p386 = scmp.eq.s32.totalorder %s36, 0
      %p387 = por %p385, %p386
      %p388 = scmp.ne.s32.totalorder %s376, %s377
      %p389 = scmp.eq.s32.totalorder %s37, 1
      %p390 = por %p388, %p389
      %p392 = scmp.ne.s32.totalorder %s377, %s391
      %p393 = scmp.eq.s32.totalorder %s37, 0
      %p394 = por %p392, %p393
      %s396 = sadd.s32 %s395, 1
      %p399 = scmp.eq.s32.totalorder %s31, 1
      %p400 = scmp.ne.s32.totalorder %s395, %s397
      %p401 = scmp.eq.s32.totalorder %s31, 0
      %p402 = por %p400, %p401
      %p403 = scmp.ne.s32.totalorder %s395, %s397
      %p404 = scmp.eq.s32.totalorder %s36, 1
      %p405 = por %p403, %p404
      %p406 = scmp.ne.s32.totalorder %s397, %s398
      %p407 = scmp.eq.s32.totalorder %s36, 0
      %p408 = por %p406, %p407
      %p409 = scmp.ne.s32.totalorder %s397, %s398
      %p410 = scmp.eq.s32.totalorder %s37, 1
      %p411 = por %p409, %p410
      %p413 = scmp.ne.s32.totalorder %s398, %s412
      %p414 = scmp.eq.s32.totalorder %s37, 0
      %p415 = por %p413, %p414
      %s417 = sadd.s32 %s416, 1
      %p420 = scmp.eq.s32.totalorder %s31, 1
      %p421 = scmp.ne.s32.totalorder %s416, %s418
      %p422 = scmp.eq.s32.totalorder %s31, 0
      %p423 = por %p421, %p422
      %p424 = scmp.ne.s32.totalorder %s416, %s418
      %p425 = scmp.eq.s32.totalorder %s36, 1
      %p426 = por %p424, %p425
      %p427 = scmp.ne.s32.totalorder %s418, %s419
      %p428 = scmp.eq.s32.totalorder %s36, 0
      %p429 = por %p427, %p428
      %p430 = scmp.ne.s32.totalorder %s418, %s419
      %p431 = scmp.eq.s32.totalorder %s37, 1
      %p432 = por %p430, %p431
      %p434 = scmp.ne.s32.totalorder %s419, %s433
      %p435 = scmp.eq.s32.totalorder %s37, 0
      %p436 = por %p434, %p435
      %s438 = sadd.s32 %s437, 1
      %p441 = scmp.eq.s32.totalorder %s31, 1
      %p442 = scmp.ne.s32.totalorder %s437, %s439
      %p443 = scmp.eq.s32.totalorder %s31, 0
      %p444 = por %p442, %p443
      %p445 = scmp.ne.s32.totalorder %s437, %s439
      %p446 = scmp.eq.s32.totalorder %s36, 1
      %p447 = por %p445, %p446
      %p448 = scmp.ne.s32.totalorder %s439, %s440
      %p449 = scmp.eq.s32.totalorder %s36, 0
      %p450 = por %p448, %p449
      %p451 = scmp.ne.s32.totalorder %s439, %s440
      %p452 = scmp.eq.s32.totalorder %s37, 1
      %p453 = por %p451, %p452
      %p455 = scmp.ne.s32.totalorder %s440, %s454
      %p456 = scmp.eq.s32.totalorder %s37, 0
      %p457 = por %p455, %p456
      %s459 = sadd.s32 %s458, 1
      %p462 = scmp.eq.s32.totalorder %s31, 1
      %p463 = scmp.ne.s32.totalorder %s458, %s460
      %p464 = scmp.eq.s32.totalorder %s31, 0
      %p465 = por %p463, %p464
      %p466 = scmp.ne.s32.totalorder %s458, %s460
      %p467 = scmp.eq.s32.totalorder %s36, 1
      %p468 = por %p466, %p467
      %p469 = scmp.ne.s32.totalorder %s460, %s461
      %p470 = scmp.eq.s32.totalorder %s36, 0
      %p471 = por %p469, %p470
      %p472 = scmp.ne.s32.totalorder %s460, %s461
      %p473 = scmp.eq.s32.totalorder %s37, 1
      %p474 = por %p472, %p473
      %p476 = scmp.ne.s32.totalorder %s461, %s475
      %p477 = scmp.eq.s32.totalorder %s37, 0
      %p478 = por %p476, %p477
      %s480 = sadd.s32 %s479, 1
      %p483 = scmp.eq.s32.totalorder %s31, 1
      %p484 = scmp.ne.s32.totalorder %s479, %s481
      %p485 = scmp.eq.s32.totalorder %s31, 0
      %p486 = por %p484, %p485
      %p487 = scmp.ne.s32.totalorder %s479, %s481
      %p488 = scmp.eq.s32.totalorder %s36, 1
      %p489 = por %p487, %p488
      %p490 = scmp.ne.s32.totalorder %s481, %s482
      %p491 = scmp.eq.s32.totalorder %s36, 0
      %p492 = por %p490, %p491
      %p493 = scmp.ne.s32.totalorder %s481, %s482
      %p494 = scmp.eq.s32.totalorder %s37, 1
      %p495 = por %p493, %p494
      %p497 = scmp.ne.s32.totalorder %s482, %s496
      %p498 = scmp.eq.s32.totalorder %s37, 0
      %p499 = por %p497, %p498
      %s501 = sadd.s32 %s500, 1
      %p504 = scmp.eq.s32.totalorder %s31, 1
      %p505 = scmp.ne.s32.totalorder %s500, %s502
      %p506 = scmp.eq.s32.totalorder %s31, 0
      %p507 = por %p505, %p506
      %p508 = scmp.ne.s32.totalorder %s500, %s502
      %p509 = scmp.eq.s32.totalorder %s36, 1
      %p510 = por %p508, %p509
      %p511 = scmp.ne.s32.totalorder %s502, %s503
      %p512 = scmp.eq.s32.totalorder %s36, 0
      %p513 = por %p511, %p512
      %p514 = scmp.ne.s32.totalorder %s502, %s503
      %p515 = scmp.eq.s32.totalorder %s37, 1
      %p516 = por %p514, %p515
      %p518 = scmp.ne.s32.totalorder %s503, %s517
      %p519 = scmp.eq.s32.totalorder %s37, 0
      %p520 = por %p518, %p519
      %s522 = sadd.s32 %s521, 1
      %p525 = scmp.eq.s32.totalorder %s31, 1
      %p526 = scmp.ne.s32.totalorder %s521, %s523
      %p527 = scmp.eq.s32.totalorder %s31, 0
      %p528 = por %p526, %p527
      %p529 = scmp.ne.s32.totalorder %s521, %s523
      %p530 = scmp.eq.s32.totalorder %s36, 1
      %p531 = por %p529, %p530
      %p532 = scmp.ne.s32.totalorder %s523, %s524
      %p533 = scmp.eq.s32.totalorder %s36, 0
      %p534 = por %p532, %p533
      %p535 = scmp.ne.s32.totalorder %s523, %s524
      %p536 = scmp.eq.s32.totalorder %s37, 1
      %p537 = por %p535, %p536
      %p539 = scmp.ne.s32.totalorder %s524, %s538
      %p540 = scmp.eq.s32.totalorder %s37, 0
      %p541 = por %p539, %p540
      %s543 = sadd.s32 %s542, 1
      %p546 = scmp.eq.s32.totalorder %s31, 1
      %p547 = scmp.ne.s32.totalorder %s542, %s544
      %p548 = scmp.eq.s32.totalorder %s31, 0
      %p549 = por %p547, %p548
      %p550 = scmp.ne.s32.totalorder %s542, %s544
      %p551 = scmp.eq.s32.totalorder %s36, 1
      %p552 = por %p550, %p551
      %p553 = scmp.ne.s32.totalorder %s544, %s545
      %p554 = scmp.eq.s32.totalorder %s36, 0
      %p555 = por %p553, %p554
      %p556 = scmp.ne.s32.totalorder %s544, %s545
      %p557 = scmp.eq.s32.totalorder %s37, 1
      %p558 = por %p556, %p557
      %p560 = scmp.ne.s32.totalorder %s545, %s559
      %p561 = scmp.eq.s32.totalorder %s37, 0
      %p562 = por %p560, %p561
      %s563 = ssub.s32 %s31, %s38
      %p564 = scmp.eq.s32.totalorder %s563, 0
      %s566 = sadd.s32 %s565, 1
      %s567 = scalar_select %p564, %s565, %s566
      %p570 = pneg %p564
      %p571 = scmp.eq.s32.totalorder %s31, 1
      %p572 = por %p570, %p571
      %p573 = scmp.ne.s32.totalorder %s565, %s568
      %p574 = scmp.eq.s32.totalorder %s31, 0
      %p575 = por %p573, %p574
      %p576 = scmp.ne.s32.totalorder %s565, %s568
      %p577 = scmp.eq.s32.totalorder %s36, 1
      %p578 = por %p576, %p577
      %p579 = scmp.ne.s32.totalorder %s568, %s569
      %p580 = scmp.eq.s32.totalorder %s36, 0
      %p581 = por %p579, %p580
      %p582 = scmp.ne.s32.totalorder %s568, %s569
      %p583 = scmp.eq.s32.totalorder %s37, 1
      %p584 = por %p582, %p583
      %p586 = scmp.ne.s32.totalorder %s569, %s585
      %p587 = scmp.eq.s32.totalorder %s37, 0
      %p588 = por %p586, %p587
      %p589 = scmp.le.s32.totalorder 1, %s31
      %p590 = scmp.lt.s32.totalorder %s31, 3
      %p591 = pnand %p589, %p590
      %p592 = pneg %p591
      // Predicated region
      $region9: #{decoder_forward.4} parent=5 // pred_check
        _
      $region10: #{decoder_forward.4} parent=5 // pred_check_branch
        %594 = sbr.rel (%p591) target = $region12
      $region11: #{decoder_forward.4} parent=5 // pred_region
        %s595 = ssub.s32 %s31, 1
        // Predicated region
        $region13: #{decoder_forward.4} parent=11 // pred_check
          %p596 = pneg %p156
        $region14: #{decoder_forward.4} parent=11 // pred_check_branch
          %598 = sbr.rel (%p596) target = $region16
        $region15: #{decoder_forward.4} parent=11 // pred_region
          _
        $region16: #{decoder_forward.4} parent=11 // pred_fallthru
          _
        // Predicated region
        $region17: #{decoder_forward.4} parent=11 // pred_check
          %p599 = pneg %p177
        $region18: #{decoder_forward.4} parent=11 // pred_check_branch
          %601 = sbr.rel (%p599) target = $region20
        $region19: #{decoder_forward.4} parent=11 // pred_region
          _
        $region20: #{decoder_forward.4} parent=11 // pred_fallthru
          _
        // Predicated region
        $region21: #{decoder_forward.4} parent=11 // pred_check
          %p602 = pneg %p198
        $region22: #{decoder_forward.4} parent=11 // pred_check_branch
          %604 = sbr.rel (%p602) target = $region24
        $region23: #{decoder_forward.4} parent=11 // pred_region
          _
        $region24: #{decoder_forward.4} parent=11 // pred_fallthru
          _
        // Predicated region
        $region25: #{decoder_forward.4} parent=11 // pred_check
          %p605 = pneg %p219
        $region26: #{decoder_forward.4} parent=11 // pred_check_branch
          %607 = sbr.rel (%p605) target = $region28
        $region27: #{decoder_forward.4} parent=11 // pred_region
          _
        $region28: #{decoder_forward.4} parent=11 // pred_fallthru
          _
        // Predicated region
        $region29: #{decoder_forward.4} parent=11 // pred_check
          %p608 = pneg %p240
        $region30: #{decoder_forward.4} parent=11 // pred_check_branch
          %610 = sbr.rel (%p608) target = $region32
        $region31: #{decoder_forward.4} parent=11 // pred_region
          _
        $region32: #{decoder_forward.4} parent=11 // pred_fallthru
          _
        // Predicated region
        $region33: #{decoder_forward.4} parent=11 // pred_check
          %p611 = pneg %p261
        $region34: #{decoder_forward.4} parent=11 // pred_check_branch
          %613 = sbr.rel (%p611) target = $region36
        $region35: #{decoder_forward.4} parent=11 // pred_region
          _
        $region36: #{decoder_forward.4} parent=11 // pred_fallthru
          _
        // Predicated region
        $region37: #{decoder_forward.4} parent=11 // pred_check
          %p614 = pneg %p282
        $region38: #{decoder_forward.4} parent=11 // pred_check_branch
          %616 = sbr.rel (%p614) target = $region40
        $region39: #{decoder_forward.4} parent=11 // pred_region
          _
        $region40: #{decoder_forward.4} parent=11 // pred_fallthru
          _
        // Predicated region
        $region41: #{decoder_forward.4} parent=11 // pred_check
          %p617 = pneg %p303
        $region42: #{decoder_forward.4} parent=11 // pred_check_branch
          %619 = sbr.rel (%p617) target = $region44
        $region43: #{decoder_forward.4} parent=11 // pred_region
          _
        $region44: #{decoder_forward.4} parent=11 // pred_fallthru
          _
        // Predicated region
        $region45: #{decoder_forward.4} parent=11 // pred_check
          %p620 = pneg %p324
        $region46: #{decoder_forward.4} parent=11 // pred_check_branch
          %622 = sbr.rel (%p620) target = $region48
        $region47: #{decoder_forward.4} parent=11 // pred_region
          _
        $region48: #{decoder_forward.4} parent=11 // pred_fallthru
          _
        // Predicated region
        $region49: #{decoder_forward.4} parent=11 // pred_check
          %p623 = pneg %p345
        $region50: #{decoder_forward.4} parent=11 // pred_check_branch
          %625 = sbr.rel (%p623) target = $region52
        $region51: #{decoder_forward.4} parent=11 // pred_region
          _
        $region52: #{decoder_forward.4} parent=11 // pred_fallthru
          _
        // Predicated region
        $region53: #{decoder_forward.4} parent=11 // pred_check
          %p626 = pneg %p366
        $region54: #{decoder_forward.4} parent=11 // pred_check_branch
          %628 = sbr.rel (%p626) target = $region56
        $region55: #{decoder_forward.4} parent=11 // pred_region
          _
        $region56: #{decoder_forward.4} parent=11 // pred_fallthru
          _
        // Predicated region
        $region57: #{decoder_forward.4} parent=11 // pred_check
          %p629 = pneg %p387
        $region58: #{decoder_forward.4} parent=11 // pred_check_branch
          %631 = sbr.rel (%p629) target = $region60
        $region59: #{decoder_forward.4} parent=11 // pred_region
          _
        $region60: #{decoder_forward.4} parent=11 // pred_fallthru
          _
        // Predicated region
        $region61: #{decoder_forward.4} parent=11 // pred_check
          %p632 = pneg %p408
        $region62: #{decoder_forward.4} parent=11 // pred_check_branch
          %634 = sbr.rel (%p632) target = $region64
        $region63: #{decoder_forward.4} parent=11 // pred_region
          _
        $region64: #{decoder_forward.4} parent=11 // pred_fallthru
          _
        // Predicated region
        $region65: #{decoder_forward.4} parent=11 // pred_check
          %p635 = pneg %p429
        $region66: #{decoder_forward.4} parent=11 // pred_check_branch
          %637 = sbr.rel (%p635) target = $region68
        $region67: #{decoder_forward.4} parent=11 // pred_region
          _
        $region68: #{decoder_forward.4} parent=11 // pred_fallthru
          _
        // Predicated region
        $region69: #{decoder_forward.4} parent=11 // pred_check
          %p638 = pneg %p450
        $region70: #{decoder_forward.4} parent=11 // pred_check_branch
          %640 = sbr.rel (%p638) target = $region72
        $region71: #{decoder_forward.4} parent=11 // pred_region
          _
        $region72: #{decoder_forward.4} parent=11 // pred_fallthru
          _
        // Predicated region
        $region73: #{decoder_forward.4} parent=11 // pred_check
          %p641 = pneg %p471
        $region74: #{decoder_forward.4} parent=11 // pred_check_branch
          %643 = sbr.rel (%p641) target = $region76
        $region75: #{decoder_forward.4} parent=11 // pred_region
          _
        $region76: #{decoder_forward.4} parent=11 // pred_fallthru
          _
        // Predicated region
        $region77: #{decoder_forward.4} parent=11 // pred_check
          %p644 = pneg %p492
        $region78: #{decoder_forward.4} parent=11 // pred_check_branch
          %646 = sbr.rel (%p644) target = $region80
        $region79: #{decoder_forward.4} parent=11 // pred_region
          _
        $region80: #{decoder_forward.4} parent=11 // pred_fallthru
          _
        // Predicated region
        $region81: #{decoder_forward.4} parent=11 // pred_check
          %p647 = pneg %p513
        $region82: #{decoder_forward.4} parent=11 // pred_check_branch
          %649 = sbr.rel (%p647) target = $region84
        $region83: #{decoder_forward.4} parent=11 // pred_region
          _
        $region84: #{decoder_forward.4} parent=11 // pred_fallthru
          _
        // Predicated region
        $region85: #{decoder_forward.4} parent=11 // pred_check
          %p650 = pneg %p534
        $region86: #{decoder_forward.4} parent=11 // pred_check_branch
          %652 = sbr.rel (%p650) target = $region88
        $region87: #{decoder_forward.4} parent=11 // pred_region
          _
        $region88: #{decoder_forward.4} parent=11 // pred_fallthru
          _
        // Predicated region
        $region89: #{decoder_forward.4} parent=11 // pred_check
          %p653 = pneg %p555
        $region90: #{decoder_forward.4} parent=11 // pred_check_branch
          %655 = sbr.rel (%p653) target = $region92
        $region91: #{decoder_forward.4} parent=11 // pred_region
          %s657 = ssub.s32 16, 16
          %658 = vsyncadd [#allocation3], %s657
          %s660 = sshll.u32 [#allocation2], 4
          %s661 = int_to_ptr.vmem [resolvable:$true] %s660
          %663 = dma.hbm_to_vmem [thread:$0]  %s23, 16, %s661, [#allocation3]
        $region92: #{decoder_forward.4} parent=11 // pred_fallthru
          _
      $region12: #{decoder_forward.4} parent=5 // pred_fallthru
        _
      %p664 = scmp.lt.s32.totalorder %s31, 2
      // Predicated region
      $region93: #{decoder_forward.4} parent=5 // pred_check
        %p665 = pneg %p664
      $region94: #{decoder_forward.4} parent=5 // pred_check_branch
        %667 = sbr.rel (%p665) target = $region96
      $region95: #{decoder_forward.4} parent=5 // pred_region
        // Predicated region
        $region97: #{decoder_forward.4} parent=95 // pred_check
          %p668 = pneg %p51
        $region98: #{decoder_forward.4} parent=95 // pred_check_branch
          %670 = sbr.rel (%p668) target = $region100
        $region99: #{decoder_forward.4} parent=95 // pred_region
          %p671 = scmp.lt.s32.totalorder %s31, 1
          %s672 = scalar_select %p671, %s31, 1
          %s673 = smul.addr %s672, 4
          %s674 = scalar_lea.vmem %s0, %s673
        $region100: #{decoder_forward.4} parent=95 // pred_fallthru
          _
        // Predicated region
        $region101: #{decoder_forward.4} parent=95 // pred_check
          %p675 = pneg %p77
        $region102: #{decoder_forward.4} parent=95 // pred_check_branch
          %677 = sbr.rel (%p675) target = $region104
        $region103: #{decoder_forward.4} parent=95 // pred_region
          %p678 = scmp.lt.s32.totalorder %s31, 1
          %s679 = scalar_select %p678, %s31, 1
          %s680 = smul.addr %s679, 4
          %s681 = scalar_lea.vmem %s1, %s680
        $region104: #{decoder_forward.4} parent=95 // pred_fallthru
          _
        // Predicated region
        $region105: #{decoder_forward.4} parent=95 // pred_check
          %p682 = pneg %p103
        $region106: #{decoder_forward.4} parent=95 // pred_check_branch
          %684 = sbr.rel (%p682) target = $region108
        $region107: #{decoder_forward.4} parent=95 // pred_region
          %p685 = scmp.lt.s32.totalorder %s31, 1
          %s686 = scalar_select %p685, %s31, 1
          %s687 = smul.addr %s686, 8
          %s688 = scalar_lea.vmem %s2, %s687
        $region108: #{decoder_forward.4} parent=95 // pred_fallthru
          _
        // Predicated region
        $region109: #{decoder_forward.4} parent=95 // pred_check
          %p689 = pneg %p129
        $region110: #{decoder_forward.4} parent=95 // pred_check_branch
          %691 = sbr.rel (%p689) target = $region112
        $region111: #{decoder_forward.4} parent=95 // pred_region
          %p692 = scmp.lt.s32.totalorder %s31, 1
          %s693 = scalar_select %p692, %s31, 1
          %s694 = smul.addr %s693, 8
          %s695 = scalar_lea.vmem %s3, %s694
        $region112: #{decoder_forward.4} parent=95 // pred_fallthru
          _
      $region96: #{decoder_forward.4} parent=5 // pred_fallthru
        _
      %p696 = scmp.le.s32.totalorder 1, %s31
      %p697 = scmp.lt.s32.totalorder %s31, 3
      %p698 = pnand %p696, %p697
      %p699 = pneg %p698
      // Predicated region
      $region113: #{decoder_forward.4} parent=5 // pred_check
        _
      $region114: #{decoder_forward.4} parent=5 // pred_check_branch
        %701 = sbr.rel (%p698) target = $region116
      $region115: #{decoder_forward.4} parent=5 // pred_region
        %s702 = ssub.s32 %s31, 1
        // Predicated region
        $region117: #{decoder_forward.4} parent=115 // pred_check
          %p703 = pneg %p555
        $region118: #{decoder_forward.4} parent=115 // pred_check_branch
          %705 = sbr.rel (%p703) target = $region120
        $region119: #{decoder_forward.4} parent=115 // pred_region
          %706 = dma.done [#allocation3], 16
        $region120: #{decoder_forward.4} parent=115 // pred_fallthru
          _
        %p707 = scmp.lt.s32.totalorder %s36, 1
        %s708 = scalar_select %p707, %s36, 1
        %s709 = smul.addr %s708, 4
        %s710 = scalar_lea.vmem %s0, %s709
        %p711 = pneg %p57
        %p712 = pneg %p54
        %p713 = scmp.lt.s32.totalorder %s36, 1
        %s714 = scalar_select %p713, %s36, 1
        %s715 = smul.addr %s714, 4
        %s716 = scalar_lea.vmem %s1, %s715
        %p717 = pneg %p83
        %p718 = pneg %p80
        %p719 = scmp.lt.s32.totalorder %s36, 1
        %s720 = scalar_select %p719, %s36, 1
        %s721 = smul.addr %s720, 8
        %s722 = scalar_lea.vmem %s2, %s721
        %p723 = pneg %p109
        %p724 = pneg %p106
        %p725 = scmp.lt.s32.totalorder %s36, 1
        %s726 = scalar_select %p725, %s36, 1
        %s727 = smul.addr %s726, 8
        %s728 = scalar_lea.vmem %s3, %s727
        %p729 = pneg %p135
        %p730 = pneg %p132
        %p731 = pneg %p156
        %p732 = pneg %p153
        %p733 = pneg %p177
        %p734 = pneg %p174
        %p735 = pneg %p198
        %p736 = pneg %p195
        %p737 = pneg %p219
        %p738 = pneg %p216
        %p739 = pneg %p240
        %p740 = pneg %p237
        %p741 = pneg %p261
        %p742 = pneg %p258
        %p743 = pneg %p282
        %p744 = pneg %p279
        %p745 = pneg %p303
        %p746 = pneg %p300
        %p747 = pneg %p324
        %p748 = pneg %p321
        %p749 = pneg %p345
        %p750 = pneg %p342
        %p751 = pneg %p366
        %p752 = pneg %p363
        %p753 = pneg %p387
        %p754 = pneg %p384
        %p755 = pneg %p408
        %p756 = pneg %p405
        %p757 = pneg %p429
        %p758 = pneg %p426
        %p759 = pneg %p450
        %p760 = pneg %p447
        %p761 = pneg %p471
        %p762 = pneg %p468
        %p763 = pneg %p492
        %p764 = pneg %p489
        %p765 = pneg %p513
        %p766 = pneg %p510
        %p767 = pneg %p534
        %p768 = pneg %p531
        %p769 = pneg %p555
        %p770 = pneg %p552
        %p771 = pneg %p581
        %p772 = pneg %p578
        %p773 = scmp.lt.s32.totalorder %s36, 1
        %s774 = scalar_select %p773, %s36, 1
        %s775 = smul.addr %s774, 4
        %s776 = scalar_lea.vmem %s24, %s775
        %p777 = scmp.lt.s32.totalorder %s36, 1
        %s778 = scalar_select %p777, %s36, 1
        %s779 = smul.addr %s778, 4
        %s780 = scalar_lea.vmem %s0, %s779
        %p781 = scmp.lt.s32.totalorder %s36, 1
        %s782 = scalar_select %p781, %s36, 1
        %s783 = smul.addr %s782, 4
        %s784 = scalar_lea.vmem %s1, %s783
        %p785 = scmp.lt.s32.totalorder %s36, 1
        %s786 = scalar_select %p785, %s36, 1
        %s787 = smul.addr %s786, 8
        %s788 = scalar_lea.vmem %s2, %s787
        %p789 = scmp.lt.s32.totalorder %s36, 1
        %s790 = scalar_select %p789, %s36, 1
        %s791 = smul.addr %s790, 8
        %s792 = scalar_lea.vmem %s3, %s791
        %p793 = scmp.lt.s32.totalorder %s36, 1
        %s794 = scalar_select %p793, %s36, 1
        %s795 = smul.addr %s794, 4
        %s796 = scalar_lea.vmem %s24, %s795
        %v798 = vld [vmem:[%s780] sm:$0xf]
        %v799 = vld [vmem:[%s784] sm:$0xf]
        %v800 = vld [vmem:[%s4] sm:$0xf]
        %v801 = vld [vmem:[%s4 + $0x4] sm:$0xf]
        %v802 = vld [vmem:[%s4 + $0x8] sm:$0xf]
        %v803 = vld [vmem:[%s4 + $0xc] sm:$0xf]
        %v804 = vld [vmem:[%s5] sm:$0x1]
        %v806 = vlaneseq
        %v807 = vshrl.u32 %v806, 7
        %v808 = vsub.s32 0, %v807
        %v809 = vrot.slane %v804, %v808
        %v815 = vunpack.c.l.b16 %v800
        %v816 = vunpack.c.l.b16 %v801
        %v817 = vunpack.c.l.b16 %v802
        %v818 = vunpack.c.l.b16 %v803
        %v819 = vpack.c.b16 %v816, %v815
        %v820 = vpack.c.b16 %v818, %v817
        %vm823 = vcmask 261120
        %v825 = vsel %vm823, %v798, 0
        %827 = vmatprep.subr.bf16.mxu0 0
        %828 = vmatpush1.bf16.msra.mxu0 %v819
        %829 = vmatprep.subr.bf16.mxu0 0
        %830 = vmatpush1.bf16.msra.mxu0 %v820
        %831 = vmatprep.subr.bf16.mxu0 0
        %832 = vmatpush1.bf16.msra.mxu0 0
        %833 = vmatprep.subr.bf16.mxu0 0
        %834 = vmatpush1.bf16.msra.mxu0 0
        %835 = vmatprep.subr.bf16.mxu0 0
        %836 = vmatpush1.bf16.msra.mxu0 0
        %837 = vmatprep.subr.bf16.mxu0 0
        %838 = vmatpush1.bf16.msra.mxu0 0
        %839 = vmatprep.subr.bf16.mxu0 0
        %840 = vmatpush1.bf16.msra.mxu0 0
        %841 = vmatprep.subr.bf16.mxu0 0
        %842 = vmatpush1.bf16.msra.mxu0 0
        %843 = vmatprep.subr.bf16.mxu0 0
        %844 = vmatpush1.bf16.msra.mxu0 0
        %845 = vmatprep.subr.bf16.mxu0 0
        %846 = vmatpush1.bf16.msra.mxu0 0
        %847 = vmatprep.subr.bf16.mxu0 0
        %848 = vmatpush1.bf16.msra.mxu0 0
        %849 = vmatprep.subr.bf16.mxu0 0
        %850 = vmatpush1.bf16.msra.mxu0 0
        %851 = vmatprep.subr.bf16.mxu0 0
        %852 = vmatpush1.bf16.msra.mxu0 0
        %853 = vmatprep.subr.bf16.mxu0 0
        %854 = vmatpush1.bf16.msra.mxu0 0
        %855 = vmatprep.subr.bf16.mxu0 0
        %856 = vmatpush1.bf16.msra.mxu0 0
        %857 = vmatprep.subr.bf16.mxu0 0
        %858 = vmatpush1.bf16.msra.mxu0 0
        %859 = vmatprep.mubr.bf16.mxu0 0
        %860 = vmatmul.mubr.bf16.gmra.mrb[0].mxu0 %v825
        %v861 = vpop.f32.mrb[0].mxu0
        %v862 = vadd.f32 %v809, %v861
        %v863 = vpop.f32.mrb[0].mxu0
        %v864 = vpop.f32.mrb[0].mxu0
        %v865 = vpop.f32.mrb[0].mxu0
        %866 = vdwg.mxu0
        %v867 = vpack.c.bf16 %v862, %v862
        %v868 = vld [vmem:[%s788] sm:$0xff]
        %v869 = vld [vmem:[%s6] sm:$0xf]
        %v870 = vld [vmem:[%s6 + $0x4] sm:$0xf]
        %v871 = vld [vmem:[%s6 + $0x8] sm:$0xf]
        %v872 = vld [vmem:[%s6 + $0xc] sm:$0xf]
        %874 = vrot.lane.b32.xlu0 %v867, 96
        %v875 = vpop.permute.xlu0 %874
        %vm876 = vcmask 64512
        %v878 = vsel %vm876, %v867, 0
        %v881 = vsel %vm876, %v875, 0
        %883 = vmatprep.subr.bf16.mxu0 0
        %884 = vmatpush1.bf16.xpose.msra.mxu0 %v881
        %885 = vmatprep.subr.bf16.mxu0 0
        %886 = vmatpush1.bf16.xpose.msra.mxu0 0
        %887 = vmatprep.subr.bf16.mxu0 0
        %888 = vmatpush1.bf16.xpose.msra.mxu0 0
        %889 = vmatprep.subr.bf16.mxu0 0
        %890 = vmatpush1.bf16.xpose.msra.mxu0 0
        %891 = vmatprep.subr.bf16.mxu0 0
        %892 = vmatpush1.bf16.xpose.msra.mxu0 0
        %893 = vmatprep.subr.bf16.mxu0 0
        %894 = vmatpush1.bf16.xpose.msra.mxu0 0
        %895 = vmatprep.subr.bf16.mxu0 0
        %896 = vmatpush1.bf16.xpose.msra.mxu0 0
        %897 = vmatprep.subr.bf16.mxu0 0
        %898 = vmatpush1.bf16.xpose.msra.mxu0 0
        %899 = vmatprep.subr.bf16.mxu0 0
        %900 = vmatpush1.bf16.xpose.msra.mxu0 0
        %901 = vmatprep.subr.bf16.mxu0 0
        %902 = vmatpush1.bf16.xpose.msra.mxu0 0
        %903 = vmatprep.subr.bf16.mxu0 0
        %904 = vmatpush1.bf16.xpose.msra.mxu0 0
        %905 = vmatprep.subr.bf16.mxu0 0
        %906 = vmatpush1.bf16.xpose.msra.mxu0 0
        %907 = vmatprep.subr.bf16.mxu0 0
        %908 = vmatpush1.bf16.xpose.msra.mxu0 0
        %909 = vmatprep.subr.bf16.mxu0 0
        %910 = vmatpush1.bf16.xpose.msra.mxu0 0
        %911 = vmatprep.subr.bf16.mxu0 0
        %912 = vmatpush1.bf16.xpose.msra.mxu0 0
        %913 = vmatprep.subr.bf16.mxu0 0
        %914 = vmatpush1.bf16.xpose.msra.mxu0 0
        %915 = vmatprep.mubr.bf16.mxu0 0
        %916 = vmatmul.mubr.bf16.gmra.mrb[0].mxu0 %v878
        %v917 = vpop.f32.mrb[0].mxu0
        %v918 = vadd.f32 0.0, %v917
        %v919 = vpop.f32.mrb[0].mxu0
        %v920 = vpop.f32.mrb[0].mxu0
        %v921 = vpop.f32.mrb[0].mxu0
        %922 = vdwg.mxu0
        %v923 = vmul.f32 %v918, 0.35355338
        %v924 = vadd.f32 %v923, %v868
        %v925 = vsel %vm876, %v924, -inf
        %926 = vmax.xlane.f32.xlu0 %v925
        %v927 = vpop.xlane.xlu0 %926
        %v928 = vsub.f32 %v924, %v927
        %v929 = vmul.f32 %v928, 1.442695
        %v930 = vpow.pop %v929
        %v931 = vsel %vm876, %v930, 0.0
        %932 = vadd.xlane.f32.xlu0 %v931
        %v933 = vpop.xlane.xlu0 %932
        %v934 = vrcp.pop %v933
        %v935 = vmul.f32 %v930, %v934
        %v936 = vpack.c.bf16 %v935, %v935
        %937 = vrot.lane.b32.xlu0 %v867, 64
        %v938 = vpop.permute.xlu0 %937
        %v940 = vsel %vm876, %v936, 0
        %vm942 = vcmask 1043456
        %v944 = vsel %vm942, %v938, 0
        %946 = vmatprep.subr.bf16.mxu0 0
        %947 = vmatpush1.bf16.msra.mxu0 %v944
        %948 = vmatprep.subr.bf16.mxu0 0
        %949 = vmatpush1.bf16.msra.mxu0 0
        %950 = vmatprep.subr.bf16.mxu0 0
        %951 = vmatpush1.bf16.msra.mxu0 0
        %952 = vmatprep.subr.bf16.mxu0 0
        %953 = vmatpush1.bf16.msra.mxu0 0
        %954 = vmatprep.subr.bf16.mxu0 0
        %955 = vmatpush1.bf16.msra.mxu0 0
        %956 = vmatprep.subr.bf16.mxu0 0
        %957 = vmatpush1.bf16.msra.mxu0 0
        %958 = vmatprep.subr.bf16.mxu0 0
        %959 = vmatpush1.bf16.msra.mxu0 0
        %960 = vmatprep.subr.bf16.mxu0 0
        %961 = vmatpush1.bf16.msra.mxu0 0
        %962 = vmatprep.subr.bf16.mxu0 0
        %963 = vmatpush1.bf16.msra.mxu0 0
        %964 = vmatprep.subr.bf16.mxu0 0
        %965 = vmatpush1.bf16.msra.mxu0 0
        %966 = vmatprep.subr.bf16.mxu0 0
        %967 = vmatpush1.bf16.msra.mxu0 0
        %968 = vmatprep.subr.bf16.mxu0 0
        %969 = vmatpush1.bf16.msra.mxu0 0
        %970 = vmatprep.subr.bf16.mxu0 0
        %971 = vmatpush1.bf16.msra.mxu0 0
        %972 = vmatprep.subr.bf16.mxu0 0
        %973 = vmatpush1.bf16.msra.mxu0 0
        %974 = vmatprep.subr.bf16.mxu0 0
        %975 = vmatpush1.bf16.msra.mxu0 0
        %976 = vmatprep.subr.bf16.mxu0 0
        %977 = vmatpush1.bf16.msra.mxu0 0
        %978 = vmatprep.mubr.bf16.mxu0 0
        %979 = vmatmul.mubr.bf16.gmra.mrb[0].mxu0 %v940
        %v980 = vpop.f32.mrb[0].mxu0
        %v981 = vadd.f32 0.0, %v980
        %v982 = vpop.f32.mrb[0].mxu0
        %v983 = vpop.f32.mrb[0].mxu0
        %v984 = vpop.f32.mrb[0].mxu0
        %985 = vdwg.mxu0
        %v986 = vpack.c.bf16 %v981, %v981
        %987 = vrot.lane.b32.xlu0 %v867, 120
        %v988 = vpop.permute.xlu0 %987
        %989 = vrot.lane.b32.xlu0 %v867, 88
        %v990 = vpop.permute.xlu0 %989
        %v992 = vsel %vm876, %v988, 0
        %v995 = vsel %vm876, %v990, 0
        %997 = vmatprep.subr.bf16.mxu0 0
        %998 = vmatpush1.bf16.xpose.msra.mxu0 %v995
        %999 = vmatprep.subr.bf16.mxu0 0
        %1000 = vmatpush1.bf16.xpose.msra.mxu0 0
        %1001 = vmatprep.subr.bf16.mxu0 0
        %1002 = vmatpush1.bf16.xpose.msra.mxu0 0
        %1003 = vmatprep.subr.bf16.mxu0 0
        %1004 = vmatpush1.bf16.xpose.msra.mxu0 0
        %1005 = vmatprep.subr.bf16.mxu0 0
        %1006 = vmatpush1.bf16.xpose.msra.mxu0 0
        %1007 = vmatprep.subr.bf16.mxu0 0
        %1008 = vmatpush1.bf16.xpose.msra.mxu0 0
        %1009 = vmatprep.subr.bf16.mxu0 0
        %1010 = vmatpush1.bf16.xpose.msra.mxu0 0
        %1011 = vmatprep.subr.bf16.mxu0 0
        %1012 = vmatpush1.bf16.xpose.msra.mxu0 0
        %1013 = vmatprep.subr.bf16.mxu0 0
        %1014 = vmatpush1.bf16.xpose.msra.mxu0 0
        %1015 = vmatprep.subr.bf16.mxu0 0
        %1016 = vmatpush1.bf16.xpose.msra.mxu0 0
        %1017 = vmatprep.subr.bf16.mxu0 0
        %1018 = vmatpush1.bf16.xpose.msra.mxu0 0
        %1019 = vmatprep.subr.bf16.mxu0 0
        %1020 = vmatpush1.bf16.xpose.msra.mxu0 0
        %1021 = vmatprep.subr.bf16.mxu0 0
        %1022 = vmatpush1.bf16.xpose.msra.mxu0 0
        %1023 = vmatprep.subr.bf16.mxu0 0
        %1024 = vmatpush1.bf16.xpose.msra.mxu0 0
        %1025 = vmatprep.subr.bf16.mxu0 0
        %1026 = vmatpush1.bf16.xpose.msra.mxu0 0
        %1027 = vmatprep.subr.bf16.mxu0 0
        %1028 = vmatpush1.bf16.xpose.msra.mxu0 0
        %1029 = vmatprep.mubr.bf16.mxu0 0
        %1030 = vmatmul.mubr.bf16.gmra.mrb[0].mxu0 %v992
        %v1031 = vpop.f32.mrb[0].mxu0
        %v1032 = vadd.f32 0.0, %v1031
        %v1033 = vpop.f32.mrb[0].mxu0
        %v1034 = vpop.f32.mrb[0].mxu0
        %v1035 = vpop.f32.mrb[0].mxu0
        %1036 = vdwg.mxu0
        %v1037 = vmul.f32 %v1032, 0.35355338
        %v1038 = vadd.f32 %v1037, %v868
        %v1039 = vsel %vm876, %v1038, -inf
        %1040 = vmax.xlane.f32.xlu0 %v1039
        %v1041 = vpop.xlane.xlu0 %1040
        %v1042 = vsub.f32 %v1038, %v1041
        %v1043 = vmul.f32 %v1042, 1.442695
        %v1044 = vpow.pop %v1043
        %v1045 = vsel %vm876, %v1044, 0.0
        %1046 = vadd.xlane.f32.xlu0 %v1045
        %v1047 = vpop.xlane.xlu0 %1046
        %v1048 = vrcp.pop %v1047
        %v1049 = vmul.f32 %v1044, %v1048
        %v1050 = vpack.c.bf16 %v1049, %v1049
        %1051 = vrot.lane.b32.xlu0 %v867, 56
        %v1052 = vpop.permute.xlu0 %1051
        %v1054 = vsel %vm876, %v1050, 0
        %v1057 = vsel %vm942, %v1052, 0
        %1059 = vmatprep.subr.bf16.mxu0 0
        %1060 = vmatpush1.bf16.msra.mxu0 %v1057
        %1061 = vmatprep.subr.bf16.mxu0 0
        %1062 = vmatpush1.bf16.msra.mxu0 0
        %1063 = vmatprep.subr.bf16.mxu0 0
        %1064 = vmatpush1.bf16.msra.mxu0 0
        %1065 = vmatprep.subr.bf16.mxu0 0
        %1066 = vmatpush1.bf16.msra.mxu0 0
        %1067 = vmatprep.subr.bf16.mxu0 0
        %1068 = vmatpush1.bf16.msra.mxu0 0
        %1069 = vmatprep.subr.bf16.mxu0 0
        %1070 = vmatpush1.bf16.msra.mxu0 0
        %1071 = vmatprep.subr.bf16.mxu0 0
        %1072 = vmatpush1.bf16.msra.mxu0 0
        %1073 = vmatprep.subr.bf16.mxu0 0
        %1074 = vmatpush1.bf16.msra.mxu0 0
        %1075 = vmatprep.subr.bf16.mxu0 0
        %1076 = vmatpush1.bf16.msra.mxu0 0
        %1077 = vmatprep.subr.bf16.mxu0 0
        %1078 = vmatpush1.bf16.msra.mxu0 0
        %1079 = vmatprep.subr.bf16.mxu0 0
        %1080 = vmatpush1.bf16.msra.mxu0 0
        %1081 = vmatprep.subr.bf16.mxu0 0
        %1082 = vmatpush1.bf16.msra.mxu0 0
        %1083 = vmatprep.subr.bf16.mxu0 0
        %1084 = vmatpush1.bf16.msra.mxu0 0
        %1085 = vmatprep.subr.bf16.mxu0 0
        %1086 = vmatpush1.bf16.msra.mxu0 0
        %1087 = vmatprep.subr.bf16.mxu0 0
        %1088 = vmatpush1.bf16.msra.mxu0 0
        %1089 = vmatprep.subr.bf16.mxu0 0
        %1090 = vmatpush1.bf16.msra.mxu0 0
        %1091 = vmatprep.mubr.bf16.mxu0 0
        %1092 = vmatmul.mubr.bf16.gmra.mrb[0].mxu0 %v1054
        %v1093 = vpop.f32.mrb[0].mxu0
        %v1094 = vadd.f32 0.0, %v1093
        %v1095 = vpop.f32.mrb[0].mxu0
        %v1096 = vpop.f32.mrb[0].mxu0
        %v1097 = vpop.f32.mrb[0].mxu0
        %1098 = vdwg.mxu0
        %v1099 = vpack.c.bf16 %v1094, %v1094
        %v1101 = vsel %vm876, %v1099, 0
        %v1104 = vsel %vm942, %v870, 0
        %1106 = vmatprep.subr.bf16.mxu0 0
        %1107 = vmatpush1.bf16.msra.mxu0 %v1104
        %1108 = vmatprep.subr.bf16.mxu0 0
        %1109 = vmatpush1.bf16.msra.mxu0 0
        %1110 = vmatprep.subr.bf16.mxu0 0
        %1111 = vmatpush1.bf16.msra.mxu0 0
        %1112 = vmatprep.subr.bf16.mxu0 0
        %1113 = vmatpush1.bf16.msra.mxu0 0
        %1114 = vmatprep.subr.bf16.mxu0 0
        %1115 = vmatpush1.bf16.msra.mxu0 0
        %1116 = vmatprep.subr.bf16.mxu0 0
        %1117 = vmatpush1.bf16.msra.mxu0 0
        %1118 = vmatprep.subr.bf16.mxu0 0
        %1119 = vmatpush1.bf16.msra.mxu0 0
        %1120 = vmatprep.subr.bf16.mxu0 0
        %1121 = vmatpush1.bf16.msra.mxu0 0
        %1122 = vmatprep.subr.bf16.mxu0 0
        %1123 = vmatpush1.bf16.msra.mxu0 0
        %1124 = vmatprep.subr.bf16.mxu0 0
        %1125 = vmatpush1.bf16.msra.mxu0 0
        %1126 = vmatprep.subr.bf16.mxu0 0
        %1127 = vmatpush1.bf16.msra.mxu0 0
        %1128 = vmatprep.subr.bf16.mxu0 0
        %1129 = vmatpush1.bf16.msra.mxu0 0
        %1130 = vmatprep.subr.bf16.mxu0 0
        %1131 = vmatpush1.bf16.msra.mxu0 0
        %1132 = vmatprep.subr.bf16.mxu0 0
        %1133 = vmatpush1.bf16.msra.mxu0 0
        %1134 = vmatprep.subr.bf16.mxu0 0
        %1135 = vmatpush1.bf16.msra.mxu0 0
        %1136 = vmatprep.subr.bf16.mxu0 0
        %1137 = vmatpush1.bf16.msra.mxu0 0
        %1138 = vmatprep.mubr.bf16.mxu0 0
        %1139 = vmatmul.mubr.bf16.gmra.mrb[0].mxu0 %v1101
        %v1140 = vpop.f32.mrb[0].mxu0
        %v1141 = vadd.f32 0.0, %v1140
        %v1142 = vpop.f32.mrb[0].mxu0
        %v1143 = vpop.f32.mrb[0].mxu0
        %v1144 = vpop.f32.mrb[0].mxu0
        %1145 = vdwg.mxu0
        %v1147 = vsel %vm876, %v986, 0
        %v1150 = vsel %vm942, %v869, 0
        %1152 = vmatprep.subr.bf16.mxu0 0
        %1153 = vmatpush1.bf16.msra.mxu0 %v1150
        %1154 = vmatprep.subr.bf16.mxu0 0
        %1155 = vmatpush1.bf16.msra.mxu0 0
        %1156 = vmatprep.subr.bf16.mxu0 0
        %1157 = vmatpush1.bf16.msra.mxu0 0
        %1158 = vmatprep.subr.bf16.mxu0 0
        %1159 = vmatpush1.bf16.msra.mxu0 0
        %1160 = vmatprep.subr.bf16.mxu0 0
        %1161 = vmatpush1.bf16.msra.mxu0 0
        %1162 = vmatprep.subr.bf16.mxu0 0
        %1163 = vmatpush1.bf16.msra.mxu0 0
        %1164 = vmatprep.subr.bf16.mxu0 0
        %1165 = vmatpush1.bf16.msra.mxu0 0
        %1166 = vmatprep.subr.bf16.mxu0 0
        %1167 = vmatpush1.bf16.msra.mxu0 0
        %1168 = vmatprep.subr.bf16.mxu0 0
        %1169 = vmatpush1.bf16.msra.mxu0 0
        %1170 = vmatprep.subr.bf16.mxu0 0
        %1171 = vmatpush1.bf16.msra.mxu0 0
        %1172 = vmatprep.subr.bf16.mxu0 0
        %1173 = vmatpush1.bf16.msra.mxu0 0
        %1174 = vmatprep.subr.bf16.mxu0 0
        %1175 = vmatpush1.bf16.msra.mxu0 0
        %1176 = vmatprep.subr.bf16.mxu0 0
        %1177 = vmatpush1.bf16.msra.mxu0 0
        %1178 = vmatprep.subr.bf16.mxu0 0
        %1179 = vmatpush1.bf16.msra.mxu0 0
        %1180 = vmatprep.subr.bf16.mxu0 0
        %1181 = vmatpush1.bf16.msra.mxu0 0
        %1182 = vmatprep.subr.bf16.mxu0 0
        %1183 = vmatpush1.bf16.msra.mxu0 0
        %1184 = vmatprep.mubr.bf16.mxu0 0
        %1185 = vmatmul.mubr.bf16.gmra.mrb[0].mxu0 %v1147
        %v1186 = vpop.f32.mrb[0].mxu0
        %v1187 = vadd.f32 %v1141, %v1186
        %v1188 = vpop.f32.mrb[0].mxu0
        %v1189 = vpop.f32.mrb[0].mxu0
        %v1190 = vpop.f32.mrb[0].mxu0
        %1191 = vdwg.mxu0
        %1192 = vrot.lane.b32.xlu0 %v867, 112
        %v1193 = vpop.permute.xlu0 %1192
        %1194 = vrot.lane.b32.xlu0 %v867, 80
        %v1195 = vpop.permute.xlu0 %1194
        %v1197 = vsel %vm876, %v1193, 0
        %v1200 = vsel %vm876, %v1195, 0
        %1202 = vmatprep.subr.bf16.mxu0 0
        %1203 = vmatpush1.bf16.xpose.msra.mxu0 %v1200
        %1204 = vmatprep.subr.bf16.mxu0 0
        %1205 = vmatpush1.bf16.xpose.msra.mxu0 0
        %1206 = vmatprep.subr.bf16.mxu0 0
        %1207 = vmatpush1.bf16.xpose.msra.mxu0 0
        %1208 = vmatprep.subr.bf16.mxu0 0
        %1209 = vmatpush1.bf16.xpose.msra.mxu0 0
        %1210 = vmatprep.subr.bf16.mxu0 0
        %1211 = vmatpush1.bf16.xpose.msra.mxu0 0
        %1212 = vmatprep.subr.bf16.mxu0 0
        %1213 = vmatpush1.bf16.xpose.msra.mxu0 0
        %1214 = vmatprep.subr.bf16.mxu0 0
        %1215 = vmatpush1.bf16.xpose.msra.mxu0 0
        %1216 = vmatprep.subr.bf16.mxu0 0
        %1217 = vmatpush1.bf16.xpose.msra.mxu0 0
        %1218 = vmatprep.subr.bf16.mxu0 0
        %1219 = vmatpush1.bf16.xpose.msra.mxu0 0
        %1220 = vmatprep.subr.bf16.mxu0 0
        %1221 = vmatpush1.bf16.xpose.msra.mxu0 0
        %1222 = vmatprep.subr.bf16.mxu0 0
        %1223 = vmatpush1.bf16.xpose.msra.mxu0 0
        %1224 = vmatprep.subr.bf16.mxu0 0
        %1225 = vmatpush1.bf16.xpose.msra.mxu0 0
        %1226 = vmatprep.subr.bf16.mxu0 0
        %1227 = vmatpush1.bf16.xpose.msra.mxu0 0
        %1228 = vmatprep.subr.bf16.mxu0 0
        %1229 = vmatpush1.bf16.xpose.msra.mxu0 0
        %1230 = vmatprep.subr.bf16.mxu0 0
        %1231 = vmatpush1.bf16.xpose.msra.mxu0 0
        %1232 = vmatprep.subr.bf16.mxu0 0
        %1233 = vmatpush1.bf16.xpose.msra.mxu0 0
        %1234 = vmatprep.mubr.bf16.mxu0 0
        %1235 = vmatmul.mubr.bf16.gmra.mrb[0].mxu0 %v1197
        %v1236 = vpop.f32.mrb[0].mxu0
        %v1237 = vadd.f32 0.0, %v1236
        %v1238 = vpop.f32.mrb[0].mxu0
        %v1239 = vpop.f32.mrb[0].mxu0
        %v1240 = vpop.f32.mrb[0].mxu0
        %1241 = vdwg.mxu0
        %v1242 = vmul.f32 %v1237, 0.35355338
        %v1243 = vadd.f32 %v1242, %v868
        %v1244 = vsel %vm876, %v1243, -inf
        %1245 = vmax.xlane.f32.xlu0 %v1244
        %v1246 = vpop.xlane.xlu0 %1245
        %v1247 = vsub.f32 %v1243, %v1246
        %v1248 = vmul.f32 %v1247, 1.442695
        %v1249 = vpow.pop %v1248
        %v1250 = vsel %vm876, %v1249, 0.0
        %1251 = vadd.xlane.f32.xlu0 %v1250
        %v1252 = vpop.xlane.xlu0 %1251
        %v1253 = vrcp.pop %v1252
        %v1254 = vmul.f32 %v1249, %v1253
        %v1255 = vpack.c.bf16 %v1254, %v1254
        %1256 = vrot.lane.b32.xlu0 %v867, 48
        %v1257 = vpop.permute.xlu0 %1256
        %v1259 = vsel %vm876, %v1255, 0
        %v1262 = vsel %vm942, %v1257, 0
        %1264 = vmatprep.subr.bf16.mxu0 0
        %1265 = vmatpush1.bf16.msra.mxu0 %v1262
        %1266 = vmatprep.subr.bf16.mxu0 0
        %1267 = vmatpush1.bf16.msra.mxu0 0
        %1268 = vmatprep.subr.bf16.mxu0 0
        %1269 = vmatpush1.bf16.msra.mxu0 0
        %1270 = vmatprep.subr.bf16.mxu0 0
        %1271 = vmatpush1.bf16.msra.mxu0 0
        %1272 = vmatprep.subr.bf16.mxu0 0
        %1273 = vmatpush1.bf16.msra.mxu0 0
        %1274 = vmatprep.subr.bf16.mxu0 0
        %1275 = vmatpush1.bf16.msra.mxu0 0
        %1276 = vmatprep.subr.bf16.mxu0 0
        %1277 = vmatpush1.bf16.msra.mxu0 0
        %1278 = vmatprep.subr.bf16.mxu0 0
        %1279 = vmatpush1.bf16.msra.mxu0 0
        %1280 = vmatprep.subr.bf16.mxu0 0
        %1281 = vmatpush1.bf16.msra.mxu0 0
        %1282 = vmatprep.subr.bf16.mxu0 0
        %1283 = vmatpush1.bf16.msra.mxu0 0
        %1284 = vmatprep.subr.bf16.mxu0 0
        %1285 = vmatpush1.bf16.msra.mxu0 0
        %1286 = vmatprep.subr.bf16.mxu0 0
        %1287 = vmatpush1.bf16.msra.mxu0 0
        %1288 = vmatprep.subr.bf16.mxu0 0
        %1289 = vmatpush1.bf16.msra.mxu0 0
        %1290 = vmatprep.subr.bf16.mxu0 0
        %1291 = vmatpush1.bf16.msra.mxu0 0
        %1292 = vmatprep.subr.bf16.mxu0 0
        %1293 = vmatpush1.bf16.msra.mxu0 0
        %1294 = vmatprep.subr.bf16.mxu0 0
        %1295 = vmatpush1.bf16.msra.mxu0 0
        %1296 = vmatprep.mubr.bf16.mxu0 0
        %1297 = vmatmul.mubr.bf16.gmra.mrb[0].mxu0 %v1259
        %v1298 = vpop.f32.mrb[0].mxu0
        %v1299 = vadd.f32 0.0, %v1298
        %v1300 = vpop.f32.mrb[0].mxu0
        %v1301 = vpop.f32.mrb[0].mxu0
        %v1302 = vpop.f32.mrb[0].mxu0
        %1303 = vdwg.mxu0
        %v1304 = vpack.c.bf16 %v1299, %v1299
        %v1306 = vsel %vm876, %v1304, 0
        %v1309 = vsel %vm942, %v871, 0
        %1311 = vmatprep.subr.bf16.mxu0 0
        %1312 = vmatpush1.bf16.msra.mxu0 %v1309
        %1313 = vmatprep.subr.bf16.mxu0 0
        %1314 = vmatpush1.bf16.msra.mxu0 0
        %1315 = vmatprep.subr.bf16.mxu0 0
        %1316 = vmatpush1.bf16.msra.mxu0 0
        %1317 = vmatprep.subr.bf16.mxu0 0
        %1318 = vmatpush1.bf16.msra.mxu0 0
        %1319 = vmatprep.subr.bf16.mxu0 0
        %1320 = vmatpush1.bf16.msra.mxu0 0
        %1321 = vmatprep.subr.bf16.mxu0 0
        %1322 = vmatpush1.bf16.msra.mxu0 0
        %1323 = vmatprep.subr.bf16.mxu0 0
        %1324 = vmatpush1.bf16.msra.mxu0 0
        %1325 = vmatprep.subr.bf16.mxu0 0
        %1326 = vmatpush1.bf16.msra.mxu0 0
        %1327 = vmatprep.subr.bf16.mxu0 0
        %1328 = vmatpush1.bf16.msra.mxu0 0
        %1329 = vmatprep.subr.bf16.mxu0 0
        %1330 = vmatpush1.bf16.msra.mxu0 0
        %1331 = vmatprep.subr.bf16.mxu0 0
        %1332 = vmatpush1.bf16.msra.mxu0 0
        %1333 = vmatprep.subr.bf16.mxu0 0
        %1334 = vmatpush1.bf16.msra.mxu0 0
        %1335 = vmatprep.subr.bf16.mxu0 0
        %1336 = vmatpush1.bf16.msra.mxu0 0
        %1337 = vmatprep.subr.bf16.mxu0 0
        %1338 = vmatpush1.bf16.msra.mxu0 0
        %1339 = vmatprep.subr.bf16.mxu0 0
        %1340 = vmatpush1.bf16.msra.mxu0 0
        %1341 = vmatprep.subr.bf16.mxu0 0
        %1342 = vmatpush1.bf16.msra.mxu0 0
        %1343 = vmatprep.mubr.bf16.mxu0 0
        %1344 = vmatmul.mubr.bf16.gmra.mrb[0].mxu0 %v1306
        %v1345 = vpop.f32.mrb[0].mxu0
        %v1346 = vadd.f32 0.0, %v1345
        %v1347 = vpop.f32.mrb[0].mxu0
        %v1348 = vpop.f32.mrb[0].mxu0
        %v1349 = vpop.f32.mrb[0].mxu0
        %1350 = vdwg.mxu0
        %v1351 = vadd.f32 %v1187, %v1346
        %1352 = vrot.lane.b32.xlu0 %v867, 104
        %v1353 = vpop.permute.xlu0 %1352
        %1354 = vrot.lane.b32.xlu0 %v867, 72
        %v1355 = vpop.permute.xlu0 %1354
        %v1357 = vsel %vm876, %v1353, 0
        %v1360 = vsel %vm876, %v1355, 0
        %1362 = vmatprep.subr.bf16.mxu0 0
        %1363 = vmatpush1.bf16.xpose.msra.mxu0 %v1360
        %1364 = vmatprep.subr.bf16.mxu0 0
        %1365 = vmatpush1.bf16.xpose.msra.mxu0 0
        %1366 = vmatprep.subr.bf16.mxu0 0
        %1367 = vmatpush1.bf16.xpose.msra.mxu0 0
        %1368 = vmatprep.subr.bf16.mxu0 0
        %1369 = vmatpush1.bf16.xpose.msra.mxu0 0
        %1370 = vmatprep.subr.bf16.mxu0 0
        %1371 = vmatpush1.bf16.xpose.msra.mxu0 0
        %1372 = vmatprep.subr.bf16.mxu0 0
        %1373 = vmatpush1.bf16.xpose.msra.mxu0 0
        %1374 = vmatprep.subr.bf16.mxu0 0
        %1375 = vmatpush1.bf16.xpose.msra.mxu0 0
        %1376 = vmatprep.subr.bf16.mxu0 0
        %1377 = vmatpush1.bf16.xpose.msra.mxu0 0
        %1378 = vmatprep.subr.bf16.mxu0 0
        %1379 = vmatpush1.bf16.xpose.msra.mxu0 0
        %1380 = vmatprep.subr.bf16.mxu0 0
        %1381 = vmatpush1.bf16.xpose.msra.mxu0 0
        %1382 = vmatprep.subr.bf16.mxu0 0
        %1383 = vmatpush1.bf16.xpose.msra.mxu0 0
        %1384 = vmatprep.subr.bf16.mxu0 0
        %1385 = vmatpush1.bf16.xpose.msra.mxu0 0
        %1386 = vmatprep.subr.bf16.mxu0 0
        %1387 = vmatpush1.bf16.xpose.msra.mxu0 0
        %1388 = vmatprep.subr.bf16.mxu0 0
        %1389 = vmatpush1.bf16.xpose.msra.mxu0 0
        %1390 = vmatprep.subr.bf16.mxu0 0
        %1391 = vmatpush1.bf16.xpose.msra.mxu0 0
        %1392 = vmatprep.subr.bf16.mxu0 0
        %1393 = vmatpush1.bf16.xpose.msra.mxu0 0
        %1394 = vmatprep.mubr.bf16.mxu0 0
        %1395 = vmatmul.mubr.bf16.gmra.mrb[0].mxu0 %v1357
        %v1396 = vpop.f32.mrb[0].mxu0
        %v1397 = vadd.f32 0.0, %v1396
        %v1398 = vpop.f32.mrb[0].mxu0
        %v1399 = vpop.f32.mrb[0].mxu0
        %v1400 = vpop.f32.mrb[0].mxu0
        %1401 = vdwg.mxu0
        %v1402 = vmul.f32 %v1397, 0.35355338
        %v1403 = vadd.f32 %v1402, %v868
        %v1404 = vsel %vm876, %v1403, -inf
        %1405 = vmax.xlane.f32.xlu0 %v1404
        %v1406 = vpop.xlane.xlu0 %1405
        %v1407 = vsub.f32 %v1403, %v1406
        %v1408 = vmul.f32 %v1407, 1.442695
        %v1409 = vpow.pop %v1408
        %v1410 = vsel %vm876, %v1409, 0.0
        %1411 = vadd.xlane.f32.xlu0 %v1410
        %v1412 = vpop.xlane.xlu0 %1411
        %v1413 = vrcp.pop %v1412
        %v1414 = vmul.f32 %v1409, %v1413
        %v1415 = vpack.c.bf16 %v1414, %v1414
        %1416 = vrot.lane.b32.xlu0 %v867, 40
        %v1417 = vpop.permute.xlu0 %1416
        %v1419 = vsel %vm876, %v1415, 0
        %v1422 = vsel %vm942, %v1417, 0
        %1424 = vmatprep.subr.bf16.mxu0 0
        %1425 = vmatpush1.bf16.msra.mxu0 %v1422
        %1426 = vmatprep.subr.bf16.mxu0 0
        %1427 = vmatpush1.bf16.msra.mxu0 0
        %1428 = vmatprep.subr.bf16.mxu0 0
        %1429 = vmatpush1.bf16.msra.mxu0 0
        %1430 = vmatprep.subr.bf16.mxu0 0
        %1431 = vmatpush1.bf16.msra.mxu0 0
        %1432 = vmatprep.subr.bf16.mxu0 0
        %1433 = vmatpush1.bf16.msra.mxu0 0
        %1434 = vmatprep.subr.bf16.mxu0 0
        %1435 = vmatpush1.bf16.msra.mxu0 0
        %1436 = vmatprep.subr.bf16.mxu0 0
        %1437 = vmatpush1.bf16.msra.mxu0 0
        %1438 = vmatprep.subr.bf16.mxu0 0
        %1439 = vmatpush1.bf16.msra.mxu0 0
        %1440 = vmatprep.subr.bf16.mxu0 0
        %1441 = vmatpush1.bf16.msra.mxu0 0
        %1442 = vmatprep.subr.bf16.mxu0 0
        %1443 = vmatpush1.bf16.msra.mxu0 0
        %1444 = vmatprep.subr.bf16.mxu0 0
        %1445 = vmatpush1.bf16.msra.mxu0 0
        %1446 = vmatprep.subr.bf16.mxu0 0
        %1447 = vmatpush1.bf16.msra.mxu0 0
        %1448 = vmatprep.subr.bf16.mxu0 0
        %1449 = vmatpush1.bf16.msra.mxu0 0
        %1450 = vmatprep.subr.bf16.mxu0 0
        %1451 = vmatpush1.bf16.msra.mxu0 0
        %1452 = vmatprep.subr.bf16.mxu0 0
        %1453 = vmatpush1.bf16.msra.mxu0 0
        %1454 = vmatprep.subr.bf16.mxu0 0
        %1455 = vmatpush1.bf16.msra.mxu0 0
        %1456 = vmatprep.mubr.bf16.mxu0 0
        %1457 = vmatmul.mubr.bf16.gmra.mrb[0].mxu0 %v1419
        %v1458 = vpop.f32.mrb[0].mxu0
        %v1459 = vadd.f32 0.0, %v1458
        %v1460 = vpop.f32.mrb[0].mxu0
        %v1461 = vpop.f32.mrb[0].mxu0
        %v1462 = vpop.f32.mrb[0].mxu0
        %1463 = vdwg.mxu0
        %v1464 = vpack.c.bf16 %v1459, %v1459
        %v1466 = vsel %vm876, %v1464, 0
        %v1469 = vsel %vm942, %v872, 0
        %1471 = vmatprep.subr.bf16.mxu0 0
        %1472 = vmatpush1.bf16.msra.mxu0 %v1469
        %1473 = vmatprep.subr.bf16.mxu0 0
        %1474 = vmatpush1.bf16.msra.mxu0 0
        %1475 = vmatprep.subr.bf16.mxu0 0
        %1476 = vmatpush1.bf16.msra.mxu0 0
        %1477 = vmatprep.subr.bf16.mxu0 0
        %1478 = vmatpush1.bf16.msra.mxu0 0
        %1479 = vmatprep.subr.bf16.mxu0 0
        %1480 = vmatpush1.bf16.msra.mxu0 0
        %1481 = vmatprep.subr.bf16.mxu0 0
        %1482 = vmatpush1.bf16.msra.mxu0 0
        %1483 = vmatprep.subr.bf16.mxu0 0
        %1484 = vmatpush1.bf16.msra.mxu0 0
        %1485 = vmatprep.subr.bf16.mxu0 0
        %1486 = vmatpush1.bf16.msra.mxu0 0
        %1487 = vmatprep.subr.bf16.mxu0 0
        %1488 = vmatpush1.bf16.msra.mxu0 0
        %1489 = vmatprep.subr.bf16.mxu0 0
        %1490 = vmatpush1.bf16.msra.mxu0 0
        %1491 = vmatprep.subr.bf16.mxu0 0
        %1492 = vmatpush1.bf16.msra.mxu0 0
        %1493 = vmatprep.subr.bf16.mxu0 0
        %1494 = vmatpush1.bf16.msra.mxu0 0
        %1495 = vmatprep.subr.bf16.mxu0 0
        %1496 = vmatpush1.bf16.msra.mxu0 0
        %1497 = vmatprep.subr.bf16.mxu0 0
        %1498 = vmatpush1.bf16.msra.mxu0 0
        %1499 = vmatprep.subr.bf16.mxu0 0
        %1500 = vmatpush1.bf16.msra.mxu0 0
        %1501 = vmatprep.subr.bf16.mxu0 0
        %1502 = vmatpush1.bf16.msra.mxu0 0
        %1503 = vmatprep.mubr.bf16.mxu0 0
        %1504 = vmatmul.mubr.bf16.gmra.mrb[0].mxu0 %v1466
        %v1505 = vpop.f32.mrb[0].mxu0
        %v1506 = vadd.f32 0.0, %v1505
        %v1507 = vpop.f32.mrb[0].mxu0
        %v1508 = vpop.f32.mrb[0].mxu0
        %v1509 = vpop.f32.mrb[0].mxu0
        %1510 = vdwg.mxu0
        %v1511 = vadd.f32 %v1351, %v1506
        %v1512 = vld [vmem:[%s7] sm:$0x1]
        %v1514 = vlaneseq
        %v1515 = vshrl.u32 %v1514, 7
        %v1516 = vsub.s32 0, %v1515
        %v1517 = vrot.slane %v1512, %v1516
        %v1519 = vadd.f32 %v1511, %v1517
        %v1520 = vunpack.c.l.bf16 %v798
        %v1521 = vadd.f32 %v1520, %v1519
        %v1522 = vsel %vm823, %v1521, 0.0
        %1523 = vadd.xlane.f32.xlu0 %v1522
        %v1524 = vpop.xlane.xlu0 %1523
        %v1525 = vrcp.pop 32.0
        %v1526 = vmul.f32 %v1524, %v1525
        %v1527 = vsub.f32 %v1521, %v1526
        %v1528 = vmul.f32 %v1527, %v1527
        %v1529 = vsel %vm823, %v1528, 0.0
        %1530 = vadd.xlane.f32.xlu0 %v1529
        %v1531 = vpop.xlane.xlu0 %1530
        %v1532 = vmul.f32 %v1531, %v1525
        %v1533 = vadd.f32 %v1532, 1e-05
        %v1534 = vrsqrt.pop %v1533
        %v1535 = vmul.f32 %v1527, %v1534
        %v1536 = vld [vmem:[%s8] sm:$0x1]
        %v1538 = vlaneseq
        %v1539 = vshrl.u32 %v1538, 7
        %v1540 = vsub.s32 0, %v1539
        %v1541 = vrot.slane %v1536, %v1540
        %v1543 = vmul.f32 %v1535, %v1541
        %v1544 = vld [vmem:[%s9] sm:$0x1]
        %v1546 = vlaneseq
        %v1547 = vshrl.u32 %v1546, 7
        %v1548 = vsub.s32 0, %v1547
        %v1549 = vrot.slane %v1544, %v1548
        %v1551 = vadd.f32 %v1543, %v1549
        %v1552 = vpack.c.bf16 %v1551, %v1551
        %v1553 = vld [vmem:[%s10] sm:$0xf]
        %v1554 = vld [vmem:[%s10 + $0x4] sm:$0xf]
        %v1555 = vld [vmem:[%s10 + $0x8] sm:$0xf]
        %v1556 = vld [vmem:[%s10 + $0xc] sm:$0xf]
        %v1557 = vld [vmem:[%s11] sm:$0x1]
        %v1559 = vlaneseq
        %v1560 = vshrl.u32 %v1559, 7
        %v1561 = vsub.s32 0, %v1560
        %v1562 = vrot.slane %v1557, %v1561
        %v1568 = vunpack.c.l.b16 %v1553
        %v1569 = vunpack.c.l.b16 %v1554
        %v1570 = vunpack.c.l.b16 %v1555
        %v1571 = vunpack.c.l.b16 %v1556
        %v1572 = vpack.c.b16 %v1569, %v1568
        %v1573 = vpack.c.b16 %v1571, %v1570
        %v1577 = vsel %vm823, %v1552, 0
        %1579 = vmatprep.subr.bf16.mxu0 0
        %1580 = vmatpush1.bf16.msra.mxu0 %v1572
        %1581 = vmatprep.subr.bf16.mxu0 0
        %1582 = vmatpush1.bf16.msra.mxu0 %v1573
        %1583 = vmatprep.subr.bf16.mxu0 0
        %1584 = vmatpush1.bf16.msra.mxu0 0
        %1585 = vmatprep.subr.bf16.mxu0 0
        %1586 = vmatpush1.bf16.msra.mxu0 0
        %1587 = vmatprep.subr.bf16.mxu0 0
        %1588 = vmatpush1.bf16.msra.mxu0 0
        %1589 = vmatprep.subr.bf16.mxu0 0
        %1590 = vmatpush1.bf16.msra.mxu0 0
        %1591 = vmatprep.subr.bf16.mxu0 0
        %1592 = vmatpush1.bf16.msra.mxu0 0
        %1593 = vmatprep.subr.bf16.mxu0 0
        %1594 = vmatpush1.bf16.msra.mxu0 0
        %1595 = vmatprep.subr.bf16.mxu0 0
        %1596 = vmatpush1.bf16.msra.mxu0 0
        %1597 = vmatprep.subr.bf16.mxu0 0
        %1598 = vmatpush1.bf16.msra.mxu0 0
        %1599 = vmatprep.subr.bf16.mxu0 0
        %1600 = vmatpush1.bf16.msra.mxu0 0
        %1601 = vmatprep.subr.bf16.mxu0 0
        %1602 = vmatpush1.bf16.msra.mxu0 0
        %1603 = vmatprep.subr.bf16.mxu0 0
        %1604 = vmatpush1.bf16.msra.mxu0 0
        %1605 = vmatprep.subr.bf16.mxu0 0
        %1606 = vmatpush1.bf16.msra.mxu0 0
        %1607 = vmatprep.subr.bf16.mxu0 0
        %1608 = vmatpush1.bf16.msra.mxu0 0
        %1609 = vmatprep.subr.bf16.mxu0 0
        %1610 = vmatpush1.bf16.msra.mxu0 0
        %1611 = vmatprep.mubr.bf16.mxu0 0
        %1612 = vmatmul.mubr.bf16.gmra.mrb[0].mxu0 %v1577
        %v1613 = vpop.f32.mrb[0].mxu0
        %v1614 = vadd.f32 %v1562, %v1613
        %v1615 = vpop.f32.mrb[0].mxu0
        %v1616 = vpop.f32.mrb[0].mxu0
        %v1617 = vpop.f32.mrb[0].mxu0
        %1618 = vdwg.mxu0
        %v1619 = vpack.c.bf16 %v1614, %v1614
        %v1620 = vld [vmem:[%s12] sm:$0xf]
        %v1621 = vld [vmem:[%s12 + $0x4] sm:$0xf]
        %v1622 = vld [vmem:[%s12 + $0x8] sm:$0xf]
        %v1623 = vld [vmem:[%s12 + $0xc] sm:$0xf]
        %v1624 = vld [vmem:[%s13] sm:$0x1]
        %v1626 = vlaneseq
        %v1627 = vshrl.u32 %v1626, 7
        %v1628 = vsub.s32 0, %v1627
        %v1629 = vrot.slane %v1624, %v1628
        %v1635 = vunpack.c.l.b16 %v1620
        %v1636 = vunpack.c.l.b16 %v1621
        %v1637 = vunpack.c.l.b16 %v1622
        %v1638 = vunpack.c.l.b16 %v1623
        %v1639 = vpack.c.b16 %v1636, %v1635
        %v1640 = vpack.c.b16 %v1638, %v1637
        %v1644 = vsel %vm823, %v799, 0
        %1646 = vmatprep.subr.bf16.mxu0 0
        %1647 = vmatpush1.bf16.msra.mxu0 %v1639
        %1648 = vmatprep.subr.bf16.mxu0 0
        %1649 = vmatpush1.bf16.msra.mxu0 %v1640
        %1650 = vmatprep.subr.bf16.mxu0 0
        %1651 = vmatpush1.bf16.msra.mxu0 0
        %1652 = vmatprep.subr.bf16.mxu0 0
        %1653 = vmatpush1.bf16.msra.mxu0 0
        %1654 = vmatprep.subr.bf16.mxu0 0
        %1655 = vmatpush1.bf16.msra.mxu0 0
        %1656 = vmatprep.subr.bf16.mxu0 0
        %1657 = vmatpush1.bf16.msra.mxu0 0
        %1658 = vmatprep.subr.bf16.mxu0 0
        %1659 = vmatpush1.bf16.msra.mxu0 0
        %1660 = vmatprep.subr.bf16.mxu0 0
        %1661 = vmatpush1.bf16.msra.mxu0 0
        %1662 = vmatprep.subr.bf16.mxu0 0
        %1663 = vmatpush1.bf16.msra.mxu0 0
        %1664 = vmatprep.subr.bf16.mxu0 0
        %1665 = vmatpush1.bf16.msra.mxu0 0
        %1666 = vmatprep.subr.bf16.mxu0 0
        %1667 = vmatpush1.bf16.msra.mxu0 0
        %1668 = vmatprep.subr.bf16.mxu0 0
        %1669 = vmatpush1.bf16.msra.mxu0 0
        %1670 = vmatprep.subr.bf16.mxu0 0
        %1671 = vmatpush1.bf16.msra.mxu0 0
        %1672 = vmatprep.subr.bf16.mxu0 0
        %1673 = vmatpush1.bf16.msra.mxu0 0
        %1674 = vmatprep.subr.bf16.mxu0 0
        %1675 = vmatpush1.bf16.msra.mxu0 0
        %1676 = vmatprep.subr.bf16.mxu0 0
        %1677 = vmatpush1.bf16.msra.mxu0 0
        %1678 = vmatprep.mubr.bf16.mxu0 0
        %1679 = vmatmul.mubr.bf16.gmra.mrb[0].mxu0 %v1644
        %v1680 = vpop.f32.mrb[0].mxu0
        %v1681 = vadd.f32 %v1629, %v1680
        %v1682 = vpop.f32.mrb[0].mxu0
        %v1683 = vpop.f32.mrb[0].mxu0
        %v1684 = vpop.f32.mrb[0].mxu0
        %1685 = vdwg.mxu0
        %v1686 = vpack.c.bf16 %v1681, %v1681
        %v1687 = vld [vmem:[%s792] sm:$0xff]
        %v1688 = vld [vmem:[%s14] sm:$0xf]
        %v1689 = vld [vmem:[%s14 + $0x4] sm:$0xf]
        %v1690 = vld [vmem:[%s14 + $0x8] sm:$0xf]
        %v1691 = vld [vmem:[%s14 + $0xc] sm:$0xf]
        %v1693 = vsel %vm876, %v1619, 0
        %v1696 = vsel %vm876, %v1686, 0
        %1698 = vmatprep.subr.bf16.mxu0 0
        %1699 = vmatpush1.bf16.xpose.msra.mxu0 %v1696
        %1700 = vmatprep.subr.bf16.mxu0 0
        %1701 = vmatpush1.bf16.xpose.msra.mxu0 0
        %1702 = vmatprep.subr.bf16.mxu0 0
        %1703 = vmatpush1.bf16.xpose.msra.mxu0 0
        %1704 = vmatprep.subr.bf16.mxu0 0
        %1705 = vmatpush1.bf16.xpose.msra.mxu0 0
        %1706 = vmatprep.subr.bf16.mxu0 0
        %1707 = vmatpush1.bf16.xpose.msra.mxu0 0
        %1708 = vmatprep.subr.bf16.mxu0 0
        %1709 = vmatpush1.bf16.xpose.msra.mxu0 0
        %1710 = vmatprep.subr.bf16.mxu0 0
        %1711 = vmatpush1.bf16.xpose.msra.mxu0 0
        %1712 = vmatprep.subr.bf16.mxu0 0
        %1713 = vmatpush1.bf16.xpose.msra.mxu0 0
        %1714 = vmatprep.subr.bf16.mxu0 0
        %1715 = vmatpush1.bf16.xpose.msra.mxu0 0
        %1716 = vmatprep.subr.bf16.mxu0 0
        %1717 = vmatpush1.bf16.xpose.msra.mxu0 0
        %1718 = vmatprep.subr.bf16.mxu0 0
        %1719 = vmatpush1.bf16.xpose.msra.mxu0 0
        %1720 = vmatprep.subr.bf16.mxu0 0
        %1721 = vmatpush1.bf16.xpose.msra.mxu0 0
        %1722 = vmatprep.subr.bf16.mxu0 0
        %1723 = vmatpush1.bf16.xpose.msra.mxu0 0
        %1724 = vmatprep.subr.bf16.mxu0 0
        %1725 = vmatpush1.bf16.xpose.msra.mxu0 0
        %1726 = vmatprep.subr.bf16.mxu0 0
        %1727 = vmatpush1.bf16.xpose.msra.mxu0 0
        %1728 = vmatprep.subr.bf16.mxu0 0
        %1729 = vmatpush1.bf16.xpose.msra.mxu0 0
        %1730 = vmatprep.mubr.bf16.mxu0 0
        %1731 = vmatmul.mubr.bf16.gmra.mrb[0].mxu0 %v1693
        %v1732 = vpop.f32.mrb[0].mxu0
        %v1733 = vadd.f32 0.0, %v1732
        %v1734 = vpop.f32.mrb[0].mxu0
        %v1735 = vpop.f32.mrb[0].mxu0
        %v1736 = vpop.f32.mrb[0].mxu0
        %1737 = vdwg.mxu0
        %v1738 = vmul.f32 %v1733, 0.35355338
        %v1739 = vadd.f32 %v1738, %v1687
        %v1740 = vsel %vm876, %v1739, -inf
        %1741 = vmax.xlane.f32.xlu0 %v1740
        %v1742 = vpop.xlane.xlu0 %1741
        %v1743 = vsub.f32 %v1739, %v1742
        %v1744 = vmul.f32 %v1743, 1.442695
        %v1745 = vpow.pop %v1744
        %v1746 = vsel %vm876, %v1745, 0.0
        %1747 = vadd.xlane.f32.xlu0 %v1746
        %v1748 = vpop.xlane.xlu0 %1747
        %v1749 = vrcp.pop %v1748
        %v1750 = vmul.f32 %v1745, %v1749
        %v1751 = vpack.c.bf16 %v1750, %v1750
        %1753 = vrot.lane.b32.xlu0 %v1686, 96
        %v1754 = vpop.permute.xlu0 %1753
        %v1756 = vsel %vm876, %v1751, 0
        %v1759 = vsel %vm942, %v1754, 0
        %1761 = vmatprep.subr.bf16.mxu0 0
        %1762 = vmatpush1.bf16.msra.mxu0 %v1759
        %1763 = vmatprep.subr.bf16.mxu0 0
        %1764 = vmatpush1.bf16.msra.mxu0 0
        %1765 = vmatprep.subr.bf16.mxu0 0
        %1766 = vmatpush1.bf16.msra.mxu0 0
        %1767 = vmatprep.subr.bf16.mxu0 0
        %1768 = vmatpush1.bf16.msra.mxu0 0
        %1769 = vmatprep.subr.bf16.mxu0 0
        %1770 = vmatpush1.bf16.msra.mxu0 0
        %1771 = vmatprep.subr.bf16.mxu0 0
        %1772 = vmatpush1.bf16.msra.mxu0 0
        %1773 = vmatprep.subr.bf16.mxu0 0
        %1774 = vmatpush1.bf16.msra.mxu0 0
        %1775 = vmatprep.subr.bf16.mxu0 0
        %1776 = vmatpush1.bf16.msra.mxu0 0
        %1777 = vmatprep.subr.bf16.mxu0 0
        %1778 = vmatpush1.bf16.msra.mxu0 0
        %1779 = vmatprep.subr.bf16.mxu0 0
        %1780 = vmatpush1.bf16.msra.mxu0 0
        %1781 = vmatprep.subr.bf16.mxu0 0
        %1782 = vmatpush1.bf16.msra.mxu0 0
        %1783 = vmatprep.subr.bf16.mxu0 0
        %1784 = vmatpush1.bf16.msra.mxu0 0
        %1785 = vmatprep.subr.bf16.mxu0 0
        %1786 = vmatpush1.bf16.msra.mxu0 0
        %1787 = vmatprep.subr.bf16.mxu0 0
        %1788 = vmatpush1.bf16.msra.mxu0 0
        %1789 = vmatprep.subr.bf16.mxu0 0
        %1790 = vmatpush1.bf16.msra.mxu0 0
        %1791 = vmatprep.subr.bf16.mxu0 0
        %1792 = vmatpush1.bf16.msra.mxu0 0
        %1793 = vmatprep.mubr.bf16.mxu0 0
        %1794 = vmatmul.mubr.bf16.gmra.mrb[0].mxu0 %v1756
        %v1795 = vpop.f32.mrb[0].mxu0
        %v1796 = vadd.f32 0.0, %v1795
        %v1797 = vpop.f32.mrb[0].mxu0
        %v1798 = vpop.f32.mrb[0].mxu0
        %v1799 = vpop.f32.mrb[0].mxu0
        %1800 = vdwg.mxu0
        %v1801 = vpack.c.bf16 %v1796, %v1796
        %1803 = vrot.lane.b32.xlu0 %v1619, 120
        %v1804 = vpop.permute.xlu0 %1803
        %1805 = vrot.lane.b32.xlu0 %v1686, 120
        %v1806 = vpop.permute.xlu0 %1805
        %v1808 = vsel %vm876, %v1804, 0
        %v1811 = vsel %vm876, %v1806, 0
        %1813 = vmatprep.subr.bf16.mxu0 0
        %1814 = vmatpush1.bf16.xpose.msra.mxu0 %v1811
        %1815 = vmatprep.subr.bf16.mxu0 0
        %1816 = vmatpush1.bf16.xpose.msra.mxu0 0
        %1817 = vmatprep.subr.bf16.mxu0 0
        %1818 = vmatpush1.bf16.xpose.msra.mxu0 0
        %1819 = vmatprep.subr.bf16.mxu0 0
        %1820 = vmatpush1.bf16.xpose.msra.mxu0 0
        %1821 = vmatprep.subr.bf16.mxu0 0
        %1822 = vmatpush1.bf16.xpose.msra.mxu0 0
        %1823 = vmatprep.subr.bf16.mxu0 0
        %1824 = vmatpush1.bf16.xpose.msra.mxu0 0
        %1825 = vmatprep.subr.bf16.mxu0 0
        %1826 = vmatpush1.bf16.xpose.msra.mxu0 0
        %1827 = vmatprep.subr.bf16.mxu0 0
        %1828 = vmatpush1.bf16.xpose.msra.mxu0 0
        %1829 = vmatprep.subr.bf16.mxu0 0
        %1830 = vmatpush1.bf16.xpose.msra.mxu0 0
        %1831 = vmatprep.subr.bf16.mxu0 0
        %1832 = vmatpush1.bf16.xpose.msra.mxu0 0
        %1833 = vmatprep.subr.bf16.mxu0 0
        %1834 = vmatpush1.bf16.xpose.msra.mxu0 0
        %1835 = vmatprep.subr.bf16.mxu0 0
        %1836 = vmatpush1.bf16.xpose.msra.mxu0 0
        %1837 = vmatprep.subr.bf16.mxu0 0
        %1838 = vmatpush1.bf16.xpose.msra.mxu0 0
        %1839 = vmatprep.subr.bf16.mxu0 0
        %1840 = vmatpush1.bf16.xpose.msra.mxu0 0
        %1841 = vmatprep.subr.bf16.mxu0 0
        %1842 = vmatpush1.bf16.xpose.msra.mxu0 0
        %1843 = vmatprep.subr.bf16.mxu0 0
        %1844 = vmatpush1.bf16.xpose.msra.mxu0 0
        %1845 = vmatprep.mubr.bf16.mxu0 0
        %1846 = vmatmul.mubr.bf16.gmra.mrb[0].mxu0 %v1808
        %v1847 = vpop.f32.mrb[0].mxu0
        %v1848 = vadd.f32 0.0, %v1847
        %v1849 = vpop.f32.mrb[0].mxu0
        %v1850 = vpop.f32.mrb[0].mxu0
        %v1851 = vpop.f32.mrb[0].mxu0
        %1852 = vdwg.mxu0
        %v1853 = vmul.f32 %v1848, 0.35355338
        %v1854 = vadd.f32 %v1853, %v1687
        %v1855 = vsel %vm876, %v1854, -inf
        %1856 = vmax.xlane.f32.xlu0 %v1855
        %v1857 = vpop.xlane.xlu0 %1856
        %v1858 = vsub.f32 %v1854, %v1857
        %v1859 = vmul.f32 %v1858, 1.442695
        %v1860 = vpow.pop %v1859
        %v1861 = vsel %vm876, %v1860, 0.0
        %1862 = vadd.xlane.f32.xlu0 %v1861
        %v1863 = vpop.xlane.xlu0 %1862
        %v1864 = vrcp.pop %v1863
        %v1865 = vmul.f32 %v1860, %v1864
        %v1866 = vpack.c.bf16 %v1865, %v1865
        %1867 = vrot.lane.b32.xlu0 %v1686, 88
        %v1868 = vpop.permute.xlu0 %1867
        %v1870 = vsel %vm876, %v1866, 0
        %v1873 = vsel %vm942, %v1868, 0
        %1875 = vmatprep.subr.bf16.mxu0 0
        %1876 = vmatpush1.bf16.msra.mxu0 %v1873
        %1877 = vmatprep.subr.bf16.mxu0 0
        %1878 = vmatpush1.bf16.msra.mxu0 0
        %1879 = vmatprep.subr.bf16.mxu0 0
        %1880 = vmatpush1.bf16.msra.mxu0 0
        %1881 = vmatprep.subr.bf16.mxu0 0
        %1882 = vmatpush1.bf16.msra.mxu0 0
        %1883 = vmatprep.subr.bf16.mxu0 0
        %1884 = vmatpush1.bf16.msra.mxu0 0
        %1885 = vmatprep.subr.bf16.mxu0 0
        %1886 = vmatpush1.bf16.msra.mxu0 0
        %1887 = vmatprep.subr.bf16.mxu0 0
        %1888 = vmatpush1.bf16.msra.mxu0 0
        %1889 = vmatprep.subr.bf16.mxu0 0
        %1890 = vmatpush1.bf16.msra.mxu0 0
        %1891 = vmatprep.subr.bf16.mxu0 0
        %1892 = vmatpush1.bf16.msra.mxu0 0
        %1893 = vmatprep.subr.bf16.mxu0 0
        %1894 = vmatpush1.bf16.msra.mxu0 0
        %1895 = vmatprep.subr.bf16.mxu0 0
        %1896 = vmatpush1.bf16.msra.mxu0 0
        %1897 = vmatprep.subr.bf16.mxu0 0
        %1898 = vmatpush1.bf16.msra.mxu0 0
        %1899 = vmatprep.subr.bf16.mxu0 0
        %1900 = vmatpush1.bf16.msra.mxu0 0
        %1901 = vmatprep.subr.bf16.mxu0 0
        %1902 = vmatpush1.bf16.msra.mxu0 0
        %1903 = vmatprep.subr.bf16.mxu0 0
        %1904 = vmatpush1.bf16.msra.mxu0 0
        %1905 = vmatprep.subr.bf16.mxu0 0
        %1906 = vmatpush1.bf16.msra.mxu0 0
        %1907 = vmatprep.mubr.bf16.mxu0 0
        %1908 = vmatmul.mubr.bf16.gmra.mrb[0].mxu0 %v1870
        %v1909 = vpop.f32.mrb[0].mxu0
        %v1910 = vadd.f32 0.0, %v1909
        %v1911 = vpop.f32.mrb[0].mxu0
        %v1912 = vpop.f32.mrb[0].mxu0
        %v1913 = vpop.f32.mrb[0].mxu0
        %1914 = vdwg.mxu0
        %v1915 = vpack.c.bf16 %v1910, %v1910
        %v1917 = vsel %vm876, %v1915, 0
        %v1920 = vsel %vm942, %v1689, 0
        %1922 = vmatprep.subr.bf16.mxu0 0
        %1923 = vmatpush1.bf16.msra.mxu0 %v1920
        %1924 = vmatprep.subr.bf16.mxu0 0
        %1925 = vmatpush1.bf16.msra.mxu0 0
        %1926 = vmatprep.subr.bf16.mxu0 0
        %1927 = vmatpush1.bf16.msra.mxu0 0
        %1928 = vmatprep.subr.bf16.mxu0 0
        %1929 = vmatpush1.bf16.msra.mxu0 0
        %1930 = vmatprep.subr.bf16.mxu0 0
        %1931 = vmatpush1.bf16.msra.mxu0 0
        %1932 = vmatprep.subr.bf16.mxu0 0
        %1933 = vmatpush1.bf16.msra.mxu0 0
        %1934 = vmatprep.subr.bf16.mxu0 0
        %1935 = vmatpush1.bf16.msra.mxu0 0
        %1936 = vmatprep.subr.bf16.mxu0 0
        %1937 = vmatpush1.bf16.msra.mxu0 0
        %1938 = vmatprep.subr.bf16.mxu0 0
        %1939 = vmatpush1.bf16.msra.mxu0 0
        %1940 = vmatprep.subr.bf16.mxu0 0
        %1941 = vmatpush1.bf16.msra.mxu0 0
        %1942 = vmatprep.subr.bf16.mxu0 0
        %1943 = vmatpush1.bf16.msra.mxu0 0
        %1944 = vmatprep.subr.bf16.mxu0 0
        %1945 = vmatpush1.bf16.msra.mxu0 0
        %1946 = vmatprep.subr.bf16.mxu0 0
        %1947 = vmatpush1.bf16.msra.mxu0 0
        %1948 = vmatprep.subr.bf16.mxu0 0
        %1949 = vmatpush1.bf16.msra.mxu0 0
        %1950 = vmatprep.subr.bf16.mxu0 0
        %1951 = vmatpush1.bf16.msra.mxu0 0
        %1952 = vmatprep.subr.bf16.mxu0 0
        %1953 = vmatpush1.bf16.msra.mxu0 0
        %1954 = vmatprep.mubr.bf16.mxu0 0
        %1955 = vmatmul.mubr.bf16.gmra.mrb[0].mxu0 %v1917
        %v1956 = vpop.f32.mrb[0].mxu0
        %v1957 = vadd.f32 0.0, %v1956
        %v1958 = vpop.f32.mrb[0].mxu0
        %v1959 = vpop.f32.mrb[0].mxu0
        %v1960 = vpop.f32.mrb[0].mxu0
        %1961 = vdwg.mxu0
        %v1963 = vsel %vm876, %v1801, 0
        %v1966 = vsel %vm942, %v1688, 0
        %1968 = vmatprep.subr.bf16.mxu0 0
        %1969 = vmatpush1.bf16.msra.mxu0 %v1966
        %1970 = vmatprep.subr.bf16.mxu0 0
        %1971 = vmatpush1.bf16.msra.mxu0 0
        %1972 = vmatprep.subr.bf16.mxu0 0
        %1973 = vmatpush1.bf16.msra.mxu0 0
        %1974 = vmatprep.subr.bf16.mxu0 0
        %1975 = vmatpush1.bf16.msra.mxu0 0
        %1976 = vmatprep.subr.bf16.mxu0 0
        %1977 = vmatpush1.bf16.msra.mxu0 0
        %1978 = vmatprep.subr.bf16.mxu0 0
        %1979 = vmatpush1.bf16.msra.mxu0 0
        %1980 = vmatprep.subr.bf16.mxu0 0
        %1981 = vmatpush1.bf16.msra.mxu0 0
        %1982 = vmatprep.subr.bf16.mxu0 0
        %1983 = vmatpush1.bf16.msra.mxu0 0
        %1984 = vmatprep.subr.bf16.mxu0 0
        %1985 = vmatpush1.bf16.msra.mxu0 0
        %1986 = vmatprep.subr.bf16.mxu0 0
        %1987 = vmatpush1.bf16.msra.mxu0 0
        %1988 = vmatprep.subr.bf16.mxu0 0
        %1989 = vmatpush1.bf16.msra.mxu0 0
        %1990 = vmatprep.subr.bf16.mxu0 0
        %1991 = vmatpush1.bf16.msra.mxu0 0
        %1992 = vmatprep.subr.bf16.mxu0 0
        %1993 = vmatpush1.bf16.msra.mxu0 0
        %1994 = vmatprep.subr.bf16.mxu0 0
        %1995 = vmatpush1.bf16.msra.mxu0 0
        %1996 = vmatprep.subr.bf16.mxu0 0
        %1997 = vmatpush1.bf16.msra.mxu0 0
        %1998 = vmatprep.subr.bf16.mxu0 0
        %1999 = vmatpush1.bf16.msra.mxu0 0
        %2000 = vmatprep.mubr.bf16.mxu0 0
        %2001 = vmatmul.mubr.bf16.gmra.mrb[0].mxu0 %v1963
        %v2002 = vpop.f32.mrb[0].mxu0
        %v2003 = vadd.f32 %v1957, %v2002
        %v2004 = vpop.f32.mrb[0].mxu0
        %v2005 = vpop.f32.mrb[0].mxu0
        %v2006 = vpop.f32.mrb[0].mxu0
        %2007 = vdwg.mxu0
        %2008 = vrot.lane.b32.xlu0 %v1619, 112
        %v2009 = vpop.permute.xlu0 %2008
        %2010 = vrot.lane.b32.xlu0 %v1686, 112
        %v2011 = vpop.permute.xlu0 %2010
        %v2013 = vsel %vm876, %v2009, 0
        %v2016 = vsel %vm876, %v2011, 0
        %2018 = vmatprep.subr.bf16.mxu0 0
        %2019 = vmatpush1.bf16.xpose.msra.mxu0 %v2016
        %2020 = vmatprep.subr.bf16.mxu0 0
        %2021 = vmatpush1.bf16.xpose.msra.mxu0 0
        %2022 = vmatprep.subr.bf16.mxu0 0
        %2023 = vmatpush1.bf16.xpose.msra.mxu0 0
        %2024 = vmatprep.subr.bf16.mxu0 0
        %2025 = vmatpush1.bf16.xpose.msra.mxu0 0
        %2026 = vmatprep.subr.bf16.mxu0 0
        %2027 = vmatpush1.bf16.xpose.msra.mxu0 0
        %2028 = vmatprep.subr.bf16.mxu0 0
        %2029 = vmatpush1.bf16.xpose.msra.mxu0 0
        %2030 = vmatprep.subr.bf16.mxu0 0
        %2031 = vmatpush1.bf16.xpose.msra.mxu0 0
        %2032 = vmatprep.subr.bf16.mxu0 0
        %2033 = vmatpush1.bf16.xpose.msra.mxu0 0
        %2034 = vmatprep.subr.bf16.mxu0 0
        %2035 = vmatpush1.bf16.xpose.msra.mxu0 0
        %2036 = vmatprep.subr.bf16.mxu0 0
        %2037 = vmatpush1.bf16.xpose.msra.mxu0 0
        %2038 = vmatprep.subr.bf16.mxu0 0
        %2039 = vmatpush1.bf16.xpose.msra.mxu0 0
        %2040 = vmatprep.subr.bf16.mxu0 0
        %2041 = vmatpush1.bf16.xpose.msra.mxu0 0
        %2042 = vmatprep.subr.bf16.mxu0 0
        %2043 = vmatpush1.bf16.xpose.msra.mxu0 0
        %2044 = vmatprep.subr.bf16.mxu0 0
        %2045 = vmatpush1.bf16.xpose.msra.mxu0 0
        %2046 = vmatprep.subr.bf16.mxu0 0
        %2047 = vmatpush1.bf16.xpose.msra.mxu0 0
        %2048 = vmatprep.subr.bf16.mxu0 0
        %2049 = vmatpush1.bf16.xpose.msra.mxu0 0
        %2050 = vmatprep.mubr.bf16.mxu0 0
        %2051 = vmatmul.mubr.bf16.gmra.mrb[0].mxu0 %v2013
        %v2052 = vpop.f32.mrb[0].mxu0
        %v2053 = vadd.f32 0.0, %v2052
        %v2054 = vpop.f32.mrb[0].mxu0
        %v2055 = vpop.f32.mrb[0].mxu0
        %v2056 = vpop.f32.mrb[0].mxu0
        %2057 = vdwg.mxu0
        %v2058 = vmul.f32 %v2053, 0.35355338
        %v2059 = vadd.f32 %v2058, %v1687
        %v2060 = vsel %vm876, %v2059, -inf
        %2061 = vmax.xlane.f32.xlu0 %v2060
        %v2062 = vpop.xlane.xlu0 %2061
        %v2063 = vsub.f32 %v2059, %v2062
        %v2064 = vmul.f32 %v2063, 1.442695
        %v2065 = vpow.pop %v2064
        %v2066 = vsel %vm876, %v2065, 0.0
        %2067 = vadd.xlane.f32.xlu0 %v2066
        %v2068 = vpop.xlane.xlu0 %2067
        %v2069 = vrcp.pop %v2068
        %v2070 = vmul.f32 %v2065, %v2069
        %v2071 = vpack.c.bf16 %v2070, %v2070
        %2072 = vrot.lane.b32.xlu0 %v1686, 80
        %v2073 = vpop.permute.xlu0 %2072
        %v2075 = vsel %vm876, %v2071, 0
        %v2078 = vsel %vm942, %v2073, 0
        %2080 = vmatprep.subr.bf16.mxu0 0
        %2081 = vmatpush1.bf16.msra.mxu0 %v2078
        %2082 = vmatprep.subr.bf16.mxu0 0
        %2083 = vmatpush1.bf16.msra.mxu0 0
        %2084 = vmatprep.subr.bf16.mxu0 0
        %2085 = vmatpush1.bf16.msra.mxu0 0
        %2086 = vmatprep.subr.bf16.mxu0 0
        %2087 = vmatpush1.bf16.msra.mxu0 0
        %2088 = vmatprep.subr.bf16.mxu0 0
        %2089 = vmatpush1.bf16.msra.mxu0 0
        %2090 = vmatprep.subr.bf16.mxu0 0
        %2091 = vmatpush1.bf16.msra.mxu0 0
        %2092 = vmatprep.subr.bf16.mxu0 0
        %2093 = vmatpush1.bf16.msra.mxu0 0
        %2094 = vmatprep.subr.bf16.mxu0 0
        %2095 = vmatpush1.bf16.msra.mxu0 0
        %2096 = vmatprep.subr.bf16.mxu0 0
        %2097 = vmatpush1.bf16.msra.mxu0 0
        %2098 = vmatprep.subr.bf16.mxu0 0
        %2099 = vmatpush1.bf16.msra.mxu0 0
        %2100 = vmatprep.subr.bf16.mxu0 0
        %2101 = vmatpush1.bf16.msra.mxu0 0
        %2102 = vmatprep.subr.bf16.mxu0 0
        %2103 = vmatpush1.bf16.msra.mxu0 0
        %2104 = vmatprep.subr.bf16.mxu0 0
        %2105 = vmatpush1.bf16.msra.mxu0 0
        %2106 = vmatprep.subr.bf16.mxu0 0
        %2107 = vmatpush1.bf16.msra.mxu0 0
        %2108 = vmatprep.subr.bf16.mxu0 0
        %2109 = vmatpush1.bf16.msra.mxu0 0
        %2110 = vmatprep.subr.bf16.mxu0 0
        %2111 = vmatpush1.bf16.msra.mxu0 0
        %2112 = vmatprep.mubr.bf16.mxu0 0
        %2113 = vmatmul.mubr.bf16.gmra.mrb[0].mxu0 %v2075
        %v2114 = vpop.f32.mrb[0].mxu0
        %v2115 = vadd.f32 0.0, %v2114
        %v2116 = vpop.f32.mrb[0].mxu0
        %v2117 = vpop.f32.mrb[0].mxu0
        %v2118 = vpop.f32.mrb[0].mxu0
        %2119 = vdwg.mxu0
        %v2120 = vpack.c.bf16 %v2115, %v2115
        %v2122 = vsel %vm876, %v2120, 0
        %v2125 = vsel %vm942, %v1690, 0
        %2127 = vmatprep.subr.bf16.mxu0 0
        %2128 = vmatpush1.bf16.msra.mxu0 %v2125
        %2129 = vmatprep.subr.bf16.mxu0 0
        %2130 = vmatpush1.bf16.msra.mxu0 0
        %2131 = vmatprep.subr.bf16.mxu0 0
        %2132 = vmatpush1.bf16.msra.mxu0 0
        %2133 = vmatprep.subr.bf16.mxu0 0
        %2134 = vmatpush1.bf16.msra.mxu0 0
        %2135 = vmatprep.subr.bf16.mxu0 0
        %2136 = vmatpush1.bf16.msra.mxu0 0
        %2137 = vmatprep.subr.bf16.mxu0 0
        %2138 = vmatpush1.bf16.msra.mxu0 0
        %2139 = vmatprep.subr.bf16.mxu0 0
        %2140 = vmatpush1.bf16.msra.mxu0 0
        %2141 = vmatprep.subr.bf16.mxu0 0
        %2142 = vmatpush1.bf16.msra.mxu0 0
        %2143 = vmatprep.subr.bf16.mxu0 0
        %2144 = vmatpush1.bf16.msra.mxu0 0
        %2145 = vmatprep.subr.bf16.mxu0 0
        %2146 = vmatpush1.bf16.msra.mxu0 0
        %2147 = vmatprep.subr.bf16.mxu0 0
        %2148 = vmatpush1.bf16.msra.mxu0 0
        %2149 = vmatprep.subr.bf16.mxu0 0
        %2150 = vmatpush1.bf16.msra.mxu0 0
        %2151 = vmatprep.subr.bf16.mxu0 0
        %2152 = vmatpush1.bf16.msra.mxu0 0
        %2153 = vmatprep.subr.bf16.mxu0 0
        %2154 = vmatpush1.bf16.msra.mxu0 0
        %2155 = vmatprep.subr.bf16.mxu0 0
        %2156 = vmatpush1.bf16.msra.mxu0 0
        %2157 = vmatprep.subr.bf16.mxu0 0
        %2158 = vmatpush1.bf16.msra.mxu0 0
        %2159 = vmatprep.mubr.bf16.mxu0 0
        %2160 = vmatmul.mubr.bf16.gmra.mrb[0].mxu0 %v2122
        %v2161 = vpop.f32.mrb[0].mxu0
        %v2162 = vadd.f32 0.0, %v2161
        %v2163 = vpop.f32.mrb[0].mxu0
        %v2164 = vpop.f32.mrb[0].mxu0
        %v2165 = vpop.f32.mrb[0].mxu0
        %2166 = vdwg.mxu0
        %v2167 = vadd.f32 %v2003, %v2162
        %2168 = vrot.lane.b32.xlu0 %v1619, 104
        %v2169 = vpop.permute.xlu0 %2168
        %2170 = vrot.lane.b32.xlu0 %v1686, 104
        %v2171 = vpop.permute.xlu0 %2170
        %v2173 = vsel %vm876, %v2169, 0
        %v2176 = vsel %vm876, %v2171, 0
        %2178 = vmatprep.subr.bf16.mxu0 0
        %2179 = vmatpush1.bf16.xpose.msra.mxu0 %v2176
        %2180 = vmatprep.subr.bf16.mxu0 0
        %2181 = vmatpush1.bf16.xpose.msra.mxu0 0
        %2182 = vmatprep.subr.bf16.mxu0 0
        %2183 = vmatpush1.bf16.xpose.msra.mxu0 0
        %2184 = vmatprep.subr.bf16.mxu0 0
        %2185 = vmatpush1.bf16.xpose.msra.mxu0 0
        %2186 = vmatprep.subr.bf16.mxu0 0
        %2187 = vmatpush1.bf16.xpose.msra.mxu0 0
        %2188 = vmatprep.subr.bf16.mxu0 0
        %2189 = vmatpush1.bf16.xpose.msra.mxu0 0
        %2190 = vmatprep.subr.bf16.mxu0 0
        %2191 = vmatpush1.bf16.xpose.msra.mxu0 0
        %2192 = vmatprep.subr.bf16.mxu0 0
        %2193 = vmatpush1.bf16.xpose.msra.mxu0 0
        %2194 = vmatprep.subr.bf16.mxu0 0
        %2195 = vmatpush1.bf16.xpose.msra.mxu0 0
        %2196 = vmatprep.subr.bf16.mxu0 0
        %2197 = vmatpush1.bf16.xpose.msra.mxu0 0
        %2198 = vmatprep.subr.bf16.mxu0 0
        %2199 = vmatpush1.bf16.xpose.msra.mxu0 0
        %2200 = vmatprep.subr.bf16.mxu0 0
        %2201 = vmatpush1.bf16.xpose.msra.mxu0 0
        %2202 = vmatprep.subr.bf16.mxu0 0
        %2203 = vmatpush1.bf16.xpose.msra.mxu0 0
        %2204 = vmatprep.subr.bf16.mxu0 0
        %2205 = vmatpush1.bf16.xpose.msra.mxu0 0
        %2206 = vmatprep.subr.bf16.mxu0 0
        %2207 = vmatpush1.bf16.xpose.msra.mxu0 0
        %2208 = vmatprep.subr.bf16.mxu0 0
        %2209 = vmatpush1.bf16.xpose.msra.mxu0 0
        %2210 = vmatprep.mubr.bf16.mxu0 0
        %2211 = vmatmul.mubr.bf16.gmra.mrb[0].mxu0 %v2173
        %v2212 = vpop.f32.mrb[0].mxu0
        %v2213 = vadd.f32 0.0, %v2212
        %v2214 = vpop.f32.mrb[0].mxu0
        %v2215 = vpop.f32.mrb[0].mxu0
        %v2216 = vpop.f32.mrb[0].mxu0
        %2217 = vdwg.mxu0
        %v2218 = vmul.f32 %v2213, 0.35355338
        %v2219 = vadd.f32 %v2218, %v1687
        %v2220 = vsel %vm876, %v2219, -inf
        %2221 = vmax.xlane.f32.xlu0 %v2220
        %v2222 = vpop.xlane.xlu0 %2221
        %v2223 = vsub.f32 %v2219, %v2222
        %v2224 = vmul.f32 %v2223, 1.442695
        %v2225 = vpow.pop %v2224
        %v2226 = vsel %vm876, %v2225, 0.0
        %2227 = vadd.xlane.f32.xlu0 %v2226
        %v2228 = vpop.xlane.xlu0 %2227
        %v2229 = vrcp.pop %v2228
        %v2230 = vmul.f32 %v2225, %v2229
        %v2231 = vpack.c.bf16 %v2230, %v2230
        %2232 = vrot.lane.b32.xlu0 %v1686, 72
        %v2233 = vpop.permute.xlu0 %2232
        %v2235 = vsel %vm876, %v2231, 0
        %v2238 = vsel %vm942, %v2233, 0
        %2240 = vmatprep.subr.bf16.mxu0 0
        %2241 = vmatpush1.bf16.msra.mxu0 %v2238
        %2242 = vmatprep.subr.bf16.mxu0 0
        %2243 = vmatpush1.bf16.msra.mxu0 0
        %2244 = vmatprep.subr.bf16.mxu0 0
        %2245 = vmatpush1.bf16.msra.mxu0 0
        %2246 = vmatprep.subr.bf16.mxu0 0
        %2247 = vmatpush1.bf16.msra.mxu0 0
        %2248 = vmatprep.subr.bf16.mxu0 0
        %2249 = vmatpush1.bf16.msra.mxu0 0
        %2250 = vmatprep.subr.bf16.mxu0 0
        %2251 = vmatpush1.bf16.msra.mxu0 0
        %2252 = vmatprep.subr.bf16.mxu0 0
        %2253 = vmatpush1.bf16.msra.mxu0 0
        %2254 = vmatprep.subr.bf16.mxu0 0
        %2255 = vmatpush1.bf16.msra.mxu0 0
        %2256 = vmatprep.subr.bf16.mxu0 0
        %2257 = vmatpush1.bf16.msra.mxu0 0
        %2258 = vmatprep.subr.bf16.mxu0 0
        %2259 = vmatpush1.bf16.msra.mxu0 0
        %2260 = vmatprep.subr.bf16.mxu0 0
        %2261 = vmatpush1.bf16.msra.mxu0 0
        %2262 = vmatprep.subr.bf16.mxu0 0
        %2263 = vmatpush1.bf16.msra.mxu0 0
        %2264 = vmatprep.subr.bf16.mxu0 0
        %2265 = vmatpush1.bf16.msra.mxu0 0
        %2266 = vmatprep.subr.bf16.mxu0 0
        %2267 = vmatpush1.bf16.msra.mxu0 0
        %2268 = vmatprep.subr.bf16.mxu0 0
        %2269 = vmatpush1.bf16.msra.mxu0 0
        %2270 = vmatprep.subr.bf16.mxu0 0
        %2271 = vmatpush1.bf16.msra.mxu0 0
        %2272 = vmatprep.mubr.bf16.mxu0 0
        %2273 = vmatmul.mubr.bf16.gmra.mrb[0].mxu0 %v2235
        %v2274 = vpop.f32.mrb[0].mxu0
        %v2275 = vadd.f32 0.0, %v2274
        %v2276 = vpop.f32.mrb[0].mxu0
        %v2277 = vpop.f32.mrb[0].mxu0
        %v2278 = vpop.f32.mrb[0].mxu0
        %2279 = vdwg.mxu0
        %v2280 = vpack.c.bf16 %v2275, %v2275
        %v2282 = vsel %vm876, %v2280, 0
        %v2285 = vsel %vm942, %v1691, 0
        %2287 = vmatprep.subr.bf16.mxu0 0
        %2288 = vmatpush1.bf16.msra.mxu0 %v2285
        %2289 = vmatprep.subr.bf16.mxu0 0
        %2290 = vmatpush1.bf16.msra.mxu0 0
        %2291 = vmatprep.subr.bf16.mxu0 0
        %2292 = vmatpush1.bf16.msra.mxu0 0
        %2293 = vmatprep.subr.bf16.mxu0 0
        %2294 = vmatpush1.bf16.msra.mxu0 0
        %2295 = vmatprep.subr.bf16.mxu0 0
        %2296 = vmatpush1.bf16.msra.mxu0 0
        %2297 = vmatprep.subr.bf16.mxu0 0
        %2298 = vmatpush1.bf16.msra.mxu0 0
        %2299 = vmatprep.subr.bf16.mxu0 0
        %2300 = vmatpush1.bf16.msra.mxu0 0
        %2301 = vmatprep.subr.bf16.mxu0 0
        %2302 = vmatpush1.bf16.msra.mxu0 0
        %2303 = vmatprep.subr.bf16.mxu0 0
        %2304 = vmatpush1.bf16.msra.mxu0 0
        %2305 = vmatprep.subr.bf16.mxu0 0
        %2306 = vmatpush1.bf16.msra.mxu0 0
        %2307 = vmatprep.subr.bf16.mxu0 0
        %2308 = vmatpush1.bf16.msra.mxu0 0
        %2309 = vmatprep.subr.bf16.mxu0 0
        %2310 = vmatpush1.bf16.msra.mxu0 0
        %2311 = vmatprep.subr.bf16.mxu0 0
        %2312 = vmatpush1.bf16.msra.mxu0 0
        %2313 = vmatprep.subr.bf16.mxu0 0
        %2314 = vmatpush1.bf16.msra.mxu0 0
        %2315 = vmatprep.subr.bf16.mxu0 0
        %2316 = vmatpush1.bf16.msra.mxu0 0
        %2317 = vmatprep.subr.bf16.mxu0 0
        %2318 = vmatpush1.bf16.msra.mxu0 0
        %2319 = vmatprep.mubr.bf16.mxu0 0
        %2320 = vmatmul.mubr.bf16.gmra.mrb[0].mxu0 %v2282
        %v2321 = vpop.f32.mrb[0].mxu0
        %v2322 = vadd.f32 0.0, %v2321
        %v2323 = vpop.f32.mrb[0].mxu0
        %v2324 = vpop.f32.mrb[0].mxu0
        %v2325 = vpop.f32.mrb[0].mxu0
        %2326 = vdwg.mxu0
        %v2327 = vadd.f32 %v2167, %v2322
        %v2328 = vld [vmem:[%s15] sm:$0x1]
        %v2330 = vlaneseq
        %v2331 = vshrl.u32 %v2330, 7
        %v2332 = vsub.s32 0, %v2331
        %v2333 = vrot.slane %v2328, %v2332
        %v2335 = vadd.f32 %v2327, %v2333
        %v2336 = vadd.f32 %v1551, %v2335
        %v2337 = vsel %vm823, %v2336, 0.0
        %2338 = vadd.xlane.f32.xlu0 %v2337
        %v2339 = vpop.xlane.xlu0 %2338
        %v2340 = vmul.f32 %v2339, %v1525
        %v2341 = vsub.f32 %v2336, %v2340
        %v2342 = vmul.f32 %v2341, %v2341
        %v2343 = vsel %vm823, %v2342, 0.0
        %2344 = vadd.xlane.f32.xlu0 %v2343
        %v2345 = vpop.xlane.xlu0 %2344
        %v2346 = vmul.f32 %v2345, %v1525
        %v2347 = vadd.f32 %v2346, 1e-05
        %v2348 = vrsqrt.pop %v2347
        %v2349 = vmul.f32 %v2341, %v2348
        %v2350 = vld [vmem:[%s16] sm:$0x1]
        %v2352 = vlaneseq
        %v2353 = vshrl.u32 %v2352, 7
        %v2354 = vsub.s32 0, %v2353
        %v2355 = vrot.slane %v2350, %v2354
        %v2357 = vmul.f32 %v2349, %v2355
        %v2358 = vld [vmem:[%s17] sm:$0x1]
        %v2360 = vlaneseq
        %v2361 = vshrl.u32 %v2360, 7
        %v2362 = vsub.s32 0, %v2361
        %v2363 = vrot.slane %v2358, %v2362
        %v2365 = vadd.f32 %v2357, %v2363
        %v2366 = vpack.c.bf16 %v2365, %v2365
        %v2367 = vld [vmem:[%s18] sm:$0xf]
        %v2368 = vld [vmem:[%s18 + $0x4] sm:$0xf]
        %v2369 = vld [vmem:[%s18 + $0x8] sm:$0xf]
        %v2370 = vld [vmem:[%s18 + $0xc] sm:$0xf]
        %v2371 = vld [vmem:[%s19] sm:$0x1]
        %v2373 = vlaneseq
        %v2374 = vshrl.u32 %v2373, 7
        %v2375 = vsub.s32 0, %v2374
        %v2376 = vrot.slane %v2371, %v2375
        %v2382 = vunpack.c.l.b16 %v2367
        %v2383 = vunpack.c.l.b16 %v2368
        %v2384 = vunpack.c.l.b16 %v2369
        %v2385 = vunpack.c.l.b16 %v2370
        %v2386 = vpack.c.b16 %v2383, %v2382
        %v2387 = vpack.c.b16 %v2385, %v2384
        %v2391 = vsel %vm823, %v2366, 0
        %2393 = vmatprep.subr.bf16.mxu0 0
        %2394 = vmatpush1.bf16.msra.mxu0 %v2386
        %2395 = vmatprep.subr.bf16.mxu0 0
        %2396 = vmatpush1.bf16.msra.mxu0 %v2387
        %2397 = vmatprep.subr.bf16.mxu0 0
        %2398 = vmatpush1.bf16.msra.mxu0 0
        %2399 = vmatprep.subr.bf16.mxu0 0
        %2400 = vmatpush1.bf16.msra.mxu0 0
        %2401 = vmatprep.subr.bf16.mxu0 0
        %2402 = vmatpush1.bf16.msra.mxu0 0
        %2403 = vmatprep.subr.bf16.mxu0 0
        %2404 = vmatpush1.bf16.msra.mxu0 0
        %2405 = vmatprep.subr.bf16.mxu0 0
        %2406 = vmatpush1.bf16.msra.mxu0 0
        %2407 = vmatprep.subr.bf16.mxu0 0
        %2408 = vmatpush1.bf16.msra.mxu0 0
        %2409 = vmatprep.subr.bf16.mxu0 0
        %2410 = vmatpush1.bf16.msra.mxu0 0
        %2411 = vmatprep.subr.bf16.mxu0 0
        %2412 = vmatpush1.bf16.msra.mxu0 0
        %2413 = vmatprep.subr.bf16.mxu0 0
        %2414 = vmatpush1.bf16.msra.mxu0 0
        %2415 = vmatprep.subr.bf16.mxu0 0
        %2416 = vmatpush1.bf16.msra.mxu0 0
        %2417 = vmatprep.subr.bf16.mxu0 0
        %2418 = vmatpush1.bf16.msra.mxu0 0
        %2419 = vmatprep.subr.bf16.mxu0 0
        %2420 = vmatpush1.bf16.msra.mxu0 0
        %2421 = vmatprep.subr.bf16.mxu0 0
        %2422 = vmatpush1.bf16.msra.mxu0 0
        %2423 = vmatprep.subr.bf16.mxu0 0
        %2424 = vmatpush1.bf16.msra.mxu0 0
        %2425 = vmatprep.mubr.bf16.mxu0 0
        %2426 = vmatmul.mubr.bf16.gmra.mrb[0].mxu0 %v2391
        %v2427 = vpop.f32.mrb[0].mxu0
        %v2428 = vadd.f32 %v2376, %v2427
        %v2429 = vpop.f32.mrb[0].mxu0
        %v2430 = vpop.f32.mrb[0].mxu0
        %v2431 = vpop.f32.mrb[0].mxu0
        %2432 = vdwg.mxu0
        %v2433 = vmax.f32 %v2428, 0.0
        %v2434 = vpack.c.bf16 %v2433, %v2433
        %v2435 = vld [vmem:[%s20] sm:$0xf]
        %v2436 = vld [vmem:[%s20 + $0x4] sm:$0xf]
        %v2437 = vld [vmem:[%s20 + $0x8] sm:$0xf]
        %v2438 = vld [vmem:[%s20 + $0xc] sm:$0xf]
        %v2439 = vld [vmem:[%s20 + $0x10] sm:$0xf]
        %v2440 = vld [vmem:[%s20 + $0x14] sm:$0xf]
        %v2441 = vld [vmem:[%s20 + $0x18] sm:$0xf]
        %v2442 = vld [vmem:[%s20 + $0x1c] sm:$0xf]
        %v2443 = vld [vmem:[%s21] sm:$0x1]
        %v2445 = vlaneseq
        %v2446 = vshrl.u32 %v2445, 7
        %v2447 = vsub.s32 0, %v2446
        %v2448 = vrot.slane %v2443, %v2447
        %v2458 = vunpack.c.l.b16 %v2435
        %v2459 = vunpack.c.l.b16 %v2436
        %v2460 = vunpack.c.l.b16 %v2437
        %v2461 = vunpack.c.l.b16 %v2438
        %v2462 = vunpack.c.l.b16 %v2439
        %v2463 = vunpack.c.l.b16 %v2440
        %v2464 = vunpack.c.l.b16 %v2441
        %v2465 = vunpack.c.l.b16 %v2442
        %v2466 = vpack.c.b16 %v2459, %v2458
        %v2467 = vpack.c.b16 %v2461, %v2460
        %v2468 = vpack.c.b16 %v2463, %v2462
        %v2469 = vpack.c.b16 %v2465, %v2464
        %vm2474 = vcmask 523264
        %v2476 = vsel %vm2474, %v2434, 0
        %2478 = vmatprep.subr.bf16.mxu0 0
        %2479 = vmatpush1.bf16.msra.mxu0 %v2466
        %2480 = vmatprep.subr.bf16.mxu0 0
        %2481 = vmatpush1.bf16.msra.mxu0 %v2467
        %2482 = vmatprep.subr.bf16.mxu0 0
        %2483 = vmatpush1.bf16.msra.mxu0 %v2468
        %2484 = vmatprep.subr.bf16.mxu0 0
        %2485 = vmatpush1.bf16.msra.mxu0 %v2469
        %2486 = vmatprep.subr.bf16.mxu0 0
        %2487 = vmatpush1.bf16.msra.mxu0 0
        %2488 = vmatprep.subr.bf16.mxu0 0
        %2489 = vmatpush1.bf16.msra.mxu0 0
        %2490 = vmatprep.subr.bf16.mxu0 0
        %2491 = vmatpush1.bf16.msra.mxu0 0
        %2492 = vmatprep.subr.bf16.mxu0 0
        %2493 = vmatpush1.bf16.msra.mxu0 0
        %2494 = vmatprep.subr.bf16.mxu0 0
        %2495 = vmatpush1.bf16.msra.mxu0 0
        %2496 = vmatprep.subr.bf16.mxu0 0
        %2497 = vmatpush1.bf16.msra.mxu0 0
        %2498 = vmatprep.subr.bf16.mxu0 0
        %2499 = vmatpush1.bf16.msra.mxu0 0
        %2500 = vmatprep.subr.bf16.mxu0 0
        %2501 = vmatpush1.bf16.msra.mxu0 0
        %2502 = vmatprep.subr.bf16.mxu0 0
        %2503 = vmatpush1.bf16.msra.mxu0 0
        %2504 = vmatprep.subr.bf16.mxu0 0
        %2505 = vmatpush1.bf16.msra.mxu0 0
        %2506 = vmatprep.subr.bf16.mxu0 0
        %2507 = vmatpush1.bf16.msra.mxu0 0
        %2508 = vmatprep.subr.bf16.mxu0 0
        %2509 = vmatpush1.bf16.msra.mxu0 0
        %2510 = vmatprep.mubr.bf16.mxu0 0
        %2511 = vmatmul.mubr.bf16.gmra.mrb[0].mxu0 %v2476
        %v2512 = vpop.f32.mrb[0].mxu0
        %v2513 = vadd.f32 %v2448, %v2512
        %v2514 = vpop.f32.mrb[0].mxu0
        %v2515 = vpop.f32.mrb[0].mxu0
        %v2516 = vpop.f32.mrb[0].mxu0
        %2517 = vdwg.mxu0
        %v2518 = vadd.f32 %v2365, %v2513
        %v2519 = vsel %vm823, %v2518, 0.0
        %2520 = vadd.xlane.f32.xlu0 %v2519
        %v2521 = vpop.xlane.xlu0 %2520
        %v2522 = vmul.f32 %v2521, %v1525
        %v2523 = vsub.f32 %v2518, %v2522
        %v2524 = vmul.f32 %v2523, %v2523
        %v2525 = vsel %vm823, %v2524, 0.0
        %2526 = vadd.xlane.f32.xlu0 %v2525
        %v2527 = vpop.xlane.xlu0 %2526
        %v2528 = vmul.f32 %v2527, %v1525
        %v2529 = vadd.f32 %v2528, 1e-05
        %v2530 = vrsqrt.pop %v2529
        %v2531 = vmul.f32 %v2523, %v2530
        %v2532 = vld [vmem:[%s22] sm:$0x1]
        %v2534 = vlaneseq
        %v2535 = vshrl.u32 %v2534, 7
        %v2536 = vsub.s32 0, %v2535
        %v2537 = vrot.slane %v2532, %v2536
        %v2539 = vmul.f32 %v2531, %v2537
        %v2540 = vld [vmem:[#allocation2] sm:$0x1]
        %v2542 = vlaneseq
        %v2543 = vshrl.u32 %v2542, 7
        %v2544 = vsub.s32 0, %v2543
        %v2545 = vrot.slane %v2540, %v2544
        %v2547 = vadd.f32 %v2539, %v2545
        %v2548 = vpack.c.bf16 %v2547, %v2547
        %vm2549 = vcmask 257024
        %2550 = vst.msk [vmem:[%s796] sm:$0xf] %vm2549, %v2548
        %p2551 = scmp.lt.s32.totalorder %s36, 1
        %s2552 = scalar_select %p2551, %s36, 1
        %s2553 = smul.addr %s2552, 4
        %s2554 = scalar_lea.vmem %s24, %s2553
        // Predicated region
        $region121: #{decoder_forward.4} parent=115 // pred_check
          %p2555 = pneg %p578
        $region122: #{decoder_forward.4} parent=115 // pred_check_branch
          %2557 = sbr.rel (%p2555) target = $region124
        $region123: #{decoder_forward.4} parent=115 // pred_region
          _
        $region124: #{decoder_forward.4} parent=115 // pred_fallthru
          _
      $region116: #{decoder_forward.4} parent=5 // pred_fallthru
        _
      %p2558 = scmp.le.s32.totalorder 2, %s31
      // Predicated region
      $region125: #{decoder_forward.4} parent=5 // pred_check
        %p2559 = pneg %p2558
      $region126: #{decoder_forward.4} parent=5 // pred_check_branch
        %2561 = sbr.rel (%p2559) target = $region128
      $region127: #{decoder_forward.4} parent=5 // pred_region
        %s2562 = ssub.s32 %s31, 2
        // Predicated region
        $region129: #{decoder_forward.4} parent=127 // pred_check
          %p2563 = pneg %p584
        $region130: #{decoder_forward.4} parent=127 // pred_check_branch
          %2565 = sbr.rel (%p2563) target = $region132
        $region131: #{decoder_forward.4} parent=127 // pred_region
          %p2566 = scmp.lt.s32.totalorder %s37, 1
          %s2567 = scalar_select %p2566, %s37, 1
          %s2568 = smul.addr %s2567, 4
          %s2569 = scalar_lea.vmem %s24, %s2568
        $region132: #{decoder_forward.4} parent=127 // pred_fallthru
          _
      $region128: #{decoder_forward.4} parent=5 // pred_fallthru
        _
    $region6: #{decoder_forward.4} parent=1 // loop_footer
      %s35 = sadd.s32 1, %s31
    $region7: #{decoder_forward.4} parent=1 // loop_footer_branch
      %30 = sbr.rel target = $region3
    $region8: #{decoder_forward.4} parent=1 // loop_exit
      _
    %2570 = vsyncpa [#allocation3], 1
    %s2571 = scalar_lea.sflag [#allocation3], 1
    %2572 = vsyncpa %s2571, 1

</llo_original>
